<compile_context>
chip_gen: v6e
topology: v6e:2x2x1
jax: 0.10.0
libtpu: 0.0.40
codegen_flags: <defaults>
</compile_context>

<pallas_src>
import math
from functools import partial

import jax
import jax.numpy as jnp
from jax.experimental import pallas as pl
from jax.experimental.pallas import tpu as pltpu


# ---------------------------------------------------------------------------
# Small helpers
# ---------------------------------------------------------------------------
def _cdiv(a, b):
    return -(-a // b)


def _r8(n):
    return ((n + 7) // 8) * 8


def _r128(n):
    return ((n + 127) // 128) * 128


def _vmem_capacity_bytes():
    """Physical VMEM per TensorCore (best effort, conservative fallback)."""
    cap = None
    try:
        info = pltpu.get_tpu_info()
        for name in ("vmem_capacity_bytes", "vmem_bytes", "vmem_size_bytes"):
            v = getattr(info, name, None)
            if v:
                cap = int(v)
                break
    except Exception:
        cap = None
    if cap is None or cap <= 0:
        cap = 64 * 1024 * 1024          # conservative: v7x per-TC VMEM
    try:
        kind = jax.devices()[0].device_kind.lower()
        if "7" in kind:                 # v7x: only 64 MiB per TensorCore
            cap = min(cap, 64 * 1024 * 1024)
    except Exception:
        pass
    return cap


# ---------------------------------------------------------------------------
# Kernels
# ---------------------------------------------------------------------------
def _fused_kernel(*refs, has_bias):
    # x_ref: (tb, tc, I)  w_ref: (tc, I, O)  [b_ref: (tc, O)]  o_ref: (tb, tc, O)
    if has_bias:
        x_ref, w_ref, b_ref, o_ref = refs
    else:
        x_ref, w_ref, o_ref = refs
    # Single batched contraction over the whole (tb, tc) tile: one MXU stream
    # with f32 accumulation, ~2 relayouts per block instead of per-channel
    # sublane-strided slices of the x / out blocks.
    acc = jnp.einsum("bci,cio->bco", x_ref[...], w_ref[...],
                     preferred_element_type=jnp.float32)      # (tb, tc, O) f32
    if has_bias:
        acc = acc + b_ref[...]                                # (tc, O) bcast over tb
    o_ref[...] = acc.astype(o_ref.dtype)


def _kn_tiled_kernel(*refs, has_bias):
    # Grid: (c_tiles, b_tiles, o_tiles, i_tiles), reduction (i) innermost.
    # x_ref: (tb, tc, ti)  w_ref: (tc, ti, to)  [b_ref: (tc, to)]
    # o_ref: (tb, tc, to)  acc_ref: (tc, tb, to) f32 scratch
    if has_bias:
        x_ref, w_ref, b_ref, o_ref, acc_ref = refs
    else:
        x_ref, w_ref, o_ref, acc_ref = refs
    ki = pl.program_id(3)

    @pl.when(ki == 0)
    def _():
        acc_ref[...] = jnp.zeros_like(acc_ref)

    # Accumulate channel-leading ('cbo') so the transpose back to 'bco' is paid
    # once per output block (in finalize), not once per K step.
    acc_ref[...] += jnp.einsum("bci,cio->cbo", x_ref[...], w_ref[...],
                               preferred_element_type=jnp.float32)

    @pl.when(ki == pl.num_programs(3) - 1)
    def _():
        out = jnp.swapaxes(acc_ref[...], 0, 1)                # (tb, tc, to)
        if has_bias:
            out = out + b_ref[...]                            # (tc, to) bcast over tb
        o_ref[...] = out.astype(o_ref.dtype)


# ---------------------------------------------------------------------------
# Tile candidates and VMEM accounting
# ---------------------------------------------------------------------------
def _leading_tiles(dim, cap):
    """Block sizes for a leading (non-tiled) dim, largest first: the full dim
    if it fits the cap, then multiples of 8 (good MXU M alignment)."""
    cands = []
    if dim <= cap:
        cands.append(dim)
    m = min((dim // 8) * 8, (max(cap, 8) // 8) * 8)
    while m >= 8:
        if m != dim:
            cands.append(m)
        m -= 8
    if not cands:
        cands.append(dim)
    return cands


def _second_minor_tiles(dim, cap=1024):
    """Legal block sizes for a second-to-last (sublane) dim, largest first:
    the full dim, then multiples of 8."""
    cands = [dim]
    m = min((dim // 8) * 8, cap)
    while m >= 8:
        if m != dim:
            cands.append(m)
        m -= 8
    return cands


def _minor_tiles(dim, *, divisor_only=False, cap=2048):
    """Legal block sizes for a last (lane) dim, largest first: the full dim,
    then multiples of 128 (optionally only divisors of dim)."""
    cands = [dim]
    m = min((dim // 128) * 128, cap)
    while m >= 128:
        if m != dim and (not divisor_only or dim % m == 0):
            cands.append(m)
        m -= 128
    return cands


def _fused_vmem_bytes(tb, tc, I, O, isz, has_bias):
    x_blk = tb * _r8(tc) * _r128(I) * isz
    w_blk = tc * _r8(I) * _r128(O) * isz
    o_blk = tb * _r8(tc) * _r128(O) * isz
    b_blk = _r8(tc) * _r128(O) * isz if has_bias else 0
    pipeline = 2 * (x_blk + w_blk + o_blk + b_blk)            # double-buffered
    # Compute-side temporaries: channel-leading x copy, f32 batched-dot result,
    # f32 'bco' result before the cast/store.
    temps = (tc * _r8(tb) * _r128(I) * isz
             + tc * _r8(tb) * _r128(O) * 4
             + tb * _r8(tc) * _r128(O) * 4)
    return pipeline + temps


def _kn_vmem_bytes(tb, tc, ti, to, isz, has_bias):
    x_blk = tb * _r8(tc) * _r128(ti) * isz
    w_blk = tc * _r8(ti) * _r128(to) * isz
    o_blk = tb * _r8(tc) * _r128(to) * isz
    b_blk = _r8(tc) * _r128(to) * isz if has_bias else 0
    pipeline = 2 * (x_blk + w_blk + o_blk + b_blk)
    acc = tc * _r8(tb) * _r128(to) * 4                        # scratch (1 buffer)
    temps = (tc * _r8(tb) * _r128(ti) * isz
             + tc * _r8(tb) * _r128(to) * 4
             + tb * _r8(tc) * _r128(to) * 4)
    return pipeline + acc + temps


# ---------------------------------------------------------------------------
# Public wrapper
# ---------------------------------------------------------------------------
def stacked_linear(x, weight, bias=None, *,
                   vmem_budget_bytes=None, vmem_limit_bytes=None,
                   max_batch_tile=512):
    """x: (B, C, I), weight: (C, I, O), bias: (C, O) or None -> (B, C, O)."""
    B, C, I = x.shape
    Cw, Iw, O = weight.shape
    assert (C, I) == (Cw, Iw), "weight must be (n_channels, in_features, out_features)"
    has_bias = bias is not None
    if has_bias:
        assert bias.shape == (C, O)

    isz = jnp.dtype(x.dtype).itemsize
    cap = _vmem_capacity_bytes()
    budget = int(vmem_budget_bytes) if vmem_budget_bytes is not None else cap // 2
    limit = (int(vmem_limit_bytes) if vmem_limit_bytes is not None
             else int(cap * 0.9))

    # ---------------- Fast fused path: full I and O resident in VMEM ----------
    tb_cands = _leading_tiles(B, max_batch_tile)
    tc_cands = _second_minor_tiles(C)
    tb_target = min(_r8(B), 256)

    fused_choice = None                                  # (score, (tb, tc))
    for tc in tc_cands:                                  # prefer big channel tiles
        for tb in tb_cands:                              # descending
            if _fused_vmem_bytes(tb, tc, I, O, isz, has_bias) <= budget:
                score = (min(tb, tb_target), tc, tb)
                if fused_choice is None or score > fused_choice[0]:
                    fused_choice = (score, (tb, tc))
                break                                    # largest tb for this tc

    if fused_choice is not None:
        tb, tc = fused_choice[1]
        grid = (_cdiv(C, tc), _cdiv(B, tb))              # channel tiles OUTER
        # v7x megacore: split channels across cores so weight streams are
        # disjoint; only split batch when there is a single channel tile.
        sem = ("parallel", "arbitrary") if grid[0] >= 2 else ("arbitrary", "parallel")

        in_specs = [
            pl.BlockSpec((tb, tc, I), lambda ci, bi: (bi, ci, 0)),   # x
            pl.BlockSpec((tc, I, O), lambda ci, bi: (ci, 0, 0)),     # weight: constant
                                                                     # across batch tiles
        ]
        args = [x, weight]
        if has_bias:
            in_specs.append(pl.BlockSpec((tc, O), lambda ci, bi: (ci, 0)))
            args.append(bias)

        return pl.pallas_call(
            partial(_fused_kernel, has_bias=has_bias),
            out_shape=jax.ShapeDtypeStruct((B, C, O), x.dtype),
            grid=grid,
            in_specs=in_specs,
            out_specs=pl.BlockSpec((tb, tc, O), lambda ci, bi: (bi, ci, 0)),
            compiler_params=pltpu.CompilerParams(
                dimension_semantics=sem, vmem_limit_bytes=limit),
        )(*args)

    # ------------- K/N-tiled path: per-channel weight slab too large ----------
    tc = C if C < 8 else 8
    tb_cands_kn = _leading_tiles(B, 1024)
    ti_cands = _minor_tiles(I, divisor_only=True)        # K tiles must divide I
    to_cands = _minor_tiles(O)

    kn_choice = None                                     # (score, (tb, ti, to))
    for tb2 in tb_cands_kn:
        for to in to_cands:
            for ti in ti_cands:                          # descending
                if _kn_vmem_bytes(tb2, tc, ti, to, isz, has_bias) <= budget:
                    # fewer batch tiles -> fewer weight re-streams; then bigger tiles
                    score = (-_cdiv(B, tb2), to * ti, to)
                    if kn_choice is None or score > kn_choice[0]:
                        kn_choice = (score, (tb2, ti, to))
                    break
    if kn_choice is None:
        # Nothing meets the requested budget: smallest legal tiles, rely on the
        # explicit vmem_limit_bytes (correctness over the budget hint).
        kn_choice = (None, (min(B, 8), ti_cands[-1], to_cands[-1]))
    tb, ti, to = kn_choice[1]

    grid = (_cdiv(C, tc), _cdiv(B, tb), _cdiv(O, to), _cdiv(I, ti))
    sem = (("parallel", "arbitrary", "arbitrary", "arbitrary") if grid[0] >= 2
           else ("arbitrary", "parallel", "arbitrary", "arbitrary"))

    in_specs = [
        pl.BlockSpec((tb, tc, ti), lambda ci, bi, oi, ii: (bi, ci, ii)),   # x
        pl.BlockSpec((tc, ti, to), lambda ci, bi, oi, ii: (ci, ii, oi)),   # weight
    ]
    args = [x, weight]
    if has_bias:
        in_specs.append(pl.BlockSpec((tc, to), lambda ci, bi, oi, ii: (ci, oi)))
        args.append(bias)

    return pl.pallas_call(
        partial(_kn_tiled_kernel, has_bias=has_bias),
        out_shape=jax.ShapeDtypeStruct((B, C, O), x.dtype),
        grid=grid,
        in_specs=in_specs,
        out_specs=pl.BlockSpec((tb, tc, to), lambda ci, bi, oi, ii: (bi, ci, oi)),
        scratch_shapes=[pltpu.VMEM((tc, tb, to), jnp.float32)],
        compiler_params=pltpu.CompilerParams(
            dimension_semantics=sem, vmem_limit_bytes=limit),
    )(*args)


def init_stacked_linear_params(key, n_channels, in_features, out_features,
                               bias=True, dtype=jnp.float32):
    """Same init as the PyTorch module: U(-1/sqrt(fan_in), 1/sqrt(fan_in))."""
    bound = 1.0 / math.sqrt(in_features)
    kw, kb = jax.random.split(key)
    weight = jax.random.uniform(
        kw, (n_channels, in_features, out_features), dtype=dtype,
        minval=-bound, maxval=bound)
    b = None
    if bias:
        b = jax.random.uniform(
            kb, (n_channels, out_features), dtype=dtype,
            minval=-bound, maxval=bound)
    return weight, b


def _reference(x, weight, bias):
    mm = jnp.einsum("bci,cio->bco", x, weight, precision=jax.lax.Precision.HIGHEST)
    if bias is not None:
        mm = mm + bias[None, :, :]
    return mm


if __name__ == "__main__":
    key = jax.random.PRNGKey(0)
    k1, k2, k3, k4, k5, k6 = jax.random.split(key, 6)
    TOL = dict(atol=2e-2, rtol=2e-2)   # in-kernel matmul may use default MXU precision

    # --- Test 1: docstring-like shapes, fused path (single channel tile). ----
    B, C, I, O = 32, 4, 64, 128
    x = jax.random.normal(k1, (B, C, I), dtype=jnp.float32)
    weight, bias = init_stacked_linear_params(k2, C, I, O, bias=True)
    out = jax.block_until_ready(stacked_linear(x, weight, bias))
    assert out.shape == (B, C, O)
    assert jnp.allclose(out, _reference(x, weight, bias), **TOL)

    # --- Test 2: no-bias kernel variant. --------------------------------------
    out_nb = jax.block_until_ready(stacked_linear(x, weight, None))
    assert jnp.allclose(out_nb, _reference(x, weight, None), **TOL)

    # --- Test 3: multi channel-tile fused path with a ragged channel tile. ----
    B3, C3, I3, O3 = 20, 12, 128, 128
    x3 = jax.random.normal(k3, (B3, C3, I3), dtype=jnp.float32)
    w3, b3 = init_stacked_linear_params(k4, C3, I3, O3, bias=True)
    out3 = jax.block_until_ready(
        stacked_linear(x3, w3, b3, vmem_budget_bytes=1_900_000))
    assert out3.shape == (B3, C3, O3)
    assert jnp.allclose(out3, _reference(x3, w3, b3), **TOL)

    # --- Test 4: K/N-tiled path (I and O tiled, f32 accumulator scratch). -----
    B4, C4, I4, O4 = 16, 4, 256, 384
    x4 = jax.random.normal(k5, (B4, C4, I4), dtype=jnp.float32)
    w4, b4 = init_stacked_linear_params(k6, C4, I4, O4, bias=True)
    out4 = jax.block_until_ready(
        stacked_linear(x4, w4, b4, vmem_budget_bytes=1_000_000))
    assert out4.shape == (B4, C4, O4)
    assert jnp.allclose(out4, _reference(x4, w4, b4), **TOL)

    print("KERNEL_OK")
</pallas_src>

<mosaic_0001>
module attributes {stable_mosaic.version = 11 : i64} {
  func.func @_fused_kernel(%arg0: i32, %arg1: i32, %arg2: memref<32x4x64xf32, #tpu.memory_space<vmem>>, %arg3: memref<4x64x128xf32, #tpu.memory_space<vmem>>, %arg4: memref<4x128xf32, #tpu.memory_space<vmem>>, %arg5: memref<32x4x128xf32, #tpu.memory_space<vmem>>) attributes {dimension_semantics = [#tpu.dimension_semantics<arbitrary>, #tpu.dimension_semantics<parallel>], iteration_bounds = array<i64: 1, 1>, scalar_prefetch = 0 : i64, scratch_operands = 0 : i64, tpu.core_type = #tpu.core_type<tc>, window_params = [{transform_indices = @transform_0, window_bounds = array<i64: 32, 4, 64>}, {transform_indices = @transform_1, window_bounds = array<i64: 4, 64, 128>}, {transform_indices = @transform_2, window_bounds = array<i64: 4, 128>}, {transform_indices = @transform_3, window_bounds = array<i64: 32, 4, 128>}]} {
    %c0 = arith.constant 0 : index
    %c0_0 = arith.constant 0 : index
    %c0_1 = arith.constant 0 : index
    %0 = vector.load %arg2[%c0, %c0_0, %c0_1] : memref<32x4x64xf32, #tpu.memory_space<vmem>>, vector<32x4x64xf32>
    %c0_2 = arith.constant 0 : index
    %c0_3 = arith.constant 0 : index
    %c0_4 = arith.constant 0 : index
    %1 = vector.load %arg3[%c0_2, %c0_3, %c0_4] : memref<4x64x128xf32, #tpu.memory_space<vmem>>, vector<4x64x128xf32>
    "tpu.trace_start"() <{level = 10 : i32, message = "bci,cio->bco"}> : () -> ()
    %cst = arith.constant dense<0.000000e+00> : vector<4x128x32xf32>
    %2 = tpu.matmul %1, %0, %cst {dimension_numbers = #tpu.dot_dimension_numbers<[1], [2], [2], [0], [0, 0, 0, 2, 1, 0], [0], [1]>} : vector<4x64x128xf32>, vector<32x4x64xf32>, vector<4x128x32xf32> -> vector<4x128x32xf32>
    %3 = tpu.transpose %2, [2, 0, 1] : vector<4x128x32xf32> -> vector<32x4x128xf32>
    "tpu.trace_stop"() : () -> ()
    %c0_5 = arith.constant 0 : index
    %c0_6 = arith.constant 0 : index
    %4 = vector.load %arg4[%c0_5, %c0_6] : memref<4x128xf32, #tpu.memory_space<vmem>>, vector<4x128xf32>
    %5 = vector.shape_cast %4 : vector<4x128xf32> to vector<1x4x128xf32>
    %6 = vector.broadcast %5 : vector<1x4x128xf32> to vector<32x4x128xf32>
    %7 = arith.addf %3, %6 : vector<32x4x128xf32>
    %c0_7 = arith.constant 0 : index
    %c0_8 = arith.constant 0 : index
    %c0_9 = arith.constant 0 : index
    %8 = vector.load %arg5[%c0_7, %c0_8, %c0_9] : memref<32x4x128xf32, #tpu.memory_space<vmem>>, vector<32x4x128xf32>
    tpu.vector_store %arg5[%c0_7, %c0_8, %c0_9], %7 {strides = array<i32>} : memref<32x4x128xf32, #tpu.memory_space<vmem>>, vector<32x4x128xf32>,
    return
  }
  func.func @transform_0(%arg0: i32, %arg1: i32) -> (i32, i32, i32) {
    %c0_i32 = arith.constant 0 : i32
    %c0_i32_0 = arith.constant 0 : i32
    return %arg1, %arg0, %c0_i32 : i32, i32, i32
  }
  func.func @transform_1(%arg0: i32, %arg1: i32) -> (i32, i32, i32) {
    %c0_i32 = arith.constant 0 : i32
    %c0_i32_0 = arith.constant 0 : i32
    %c0_i32_1 = arith.constant 0 : i32
    return %arg0, %c0_i32, %c0_i32_0 : i32, i32, i32
  }
  func.func @transform_2(%arg0: i32, %arg1: i32) -> (i32, i32) {
    %c0_i32 = arith.constant 0 : i32
    %c0_i32_0 = arith.constant 0 : i32
    return %arg0, %c0_i32 : i32, i32
  }
  func.func @transform_3(%arg0: i32, %arg1: i32) -> (i32, i32, i32) {
    %c0_i32 = arith.constant 0 : i32
    %c0_i32_0 = arith.constant 0 : i32
    return %arg1, %arg0, %c0_i32 : i32, i32, i32
  }
}

</mosaic_0001>

<llo_original>
// kernel: tpu_custom_call.1
$region0: #{tpu_custom_call.1}
  #allocation0 [shape = 'u32[]', space=smem, size = 0x4, offset = 0x4, fixed_abs, tag = 'smem constant byte address 0x4 - core index']
  #allocation1 [shape = 'u32[144,128]{1,0:T(1,128)}', space=vmem, size = 0x12000, scoped, tag = 'internal scratch']
  %s0 = inlined_call_operand.hbm [shape: f32[32,4,64], index: 0, kind: input, shape index: {}]
  %s1 = inlined_call_operand.hbm [shape: f32[4,64,128], index: 1, kind: input, shape index: {}]
  %s2 = inlined_call_operand.hbm [shape: f32[4,128], index: 2, kind: input, shape index: {}]
  %s3 = inlined_call_operand.hbm [shape: f32[32,4,128], index: 3, kind: output, shape index: {}]
  %s4 = sld [smem:[#allocation0]]
  $region34: #{tpu_custom_call.1} parent=0
    _
  %s6 = ssub.s32 1, %s4
  %s7 = scalar_select 0, %s6, %s4
  $region1: #{tpu_custom_call.1} parent=0
    #allocation2 [shape = 'u8[65536]{0}', space=vmem, size = 0x10000, scoped, tag = 'input window, operand 0, single buffered']
    #allocation3 [shape = 's32[1]{0}', space=sflag, size = 0x4, scoped, tag = 'scoped memory for tpu_custom_call.1']
    #allocation4 [shape = 's32[1]{0}', space=sflag, size = 0x4, scoped, tag = 'scoped memory for tpu_custom_call.1']
    #allocation5 [shape = 'u8[131072]{0}', space=vmem, size = 0x20000, scoped, tag = 'input window, operand 1, single buffered']
    #allocation6 [shape = 's32[1]{0}', space=sflag, size = 0x4, scoped, tag = 'scoped memory for tpu_custom_call.1']
    #allocation7 [shape = 'u8[2048]{0}', space=vmem, size = 0x800, scoped, tag = 'input window, operand 2, single buffered']
    #allocation8 [shape = 'u8[65536]{0}', space=vmem, size = 0x10000, scoped, tag = 'output window, operand 0, single buffered']
    %8 = vsyncpa [#allocation3], 0
    %9 = vsyncpa [#allocation6], 0
    %10 = vsyncpa [#allocation4], 0
    // Predicated region
    $region2: #{tpu_custom_call.1} parent=1 // pred_check
      _
    $region3: #{tpu_custom_call.1} parent=1 // pred_check_branch
      %12 = sbr.rel (0) target = $region5
    $region4: #{tpu_custom_call.1} parent=1 // pred_region
      %s14 = ssub.s32 2048, 2048
      %15 = vsyncadd [#allocation3], %s14
      %s16 = sshll.u32 [#allocation2], 4
      %s17 = int_to_ptr.vmem [resolvable:$true] %s16
      %22 = dma.hbm_to_vmem [thread:$0]  %s0, 2048, %s17, [#allocation3], 64, 64, 4
    $region5: #{tpu_custom_call.1} parent=1 // pred_fallthru
      _
    // Predicated region
    $region6: #{tpu_custom_call.1} parent=1 // pred_check
      _
    $region7: #{tpu_custom_call.1} parent=1 // pred_check_branch
      %24 = sbr.rel (0) target = $region9
    $region8: #{tpu_custom_call.1} parent=1 // pred_region
      %s26 = ssub.s32 4096, 4096
      %27 = vsyncadd [#allocation6], %s26
      %s28 = sshll.u32 [#allocation5], 4
      %s29 = int_to_ptr.vmem [resolvable:$true] %s28
      %34 = dma.hbm_to_vmem [thread:$0]  %s1, 4096, %s29, [#allocation6], 128, 128, 8
    $region9: #{tpu_custom_call.1} parent=1 // pred_fallthru
      _
    // Predicated region
    $region10: #{tpu_custom_call.1} parent=1 // pred_check
      _
    $region11: #{tpu_custom_call.1} parent=1 // pred_check_branch
      %36 = sbr.rel (0) target = $region13
    $region12: #{tpu_custom_call.1} parent=1 // pred_region
      %s38 = ssub.s32 64, 64
      %39 = vsyncadd [#allocation6], %s38
      %s41 = sshll.u32 [#allocation7], 4
      %s42 = int_to_ptr.vmem [resolvable:$true] %s41
      %44 = dma.hbm_to_vmem [thread:$0]  %s2, 64, %s42, [#allocation6]
    $region13: #{tpu_custom_call.1} parent=1 // pred_fallthru
      _
    // Predicated region
    $region14: #{tpu_custom_call.1} parent=1 // pred_check
      _
    $region15: #{tpu_custom_call.1} parent=1 // pred_check_branch
      %46 = sbr.rel (0) target = $region17
    $region16: #{tpu_custom_call.1} parent=1 // pred_region
      %47 = dma.done [#allocation3], 2048
    $region17: #{tpu_custom_call.1} parent=1 // pred_fallthru
      _
    // Predicated region
    $region18: #{tpu_custom_call.1} parent=1 // pred_check
      _
    $region19: #{tpu_custom_call.1} parent=1 // pred_check_branch
      %49 = sbr.rel (0) target = $region21
    $region20: #{tpu_custom_call.1} parent=1 // pred_region
      %50 = dma.done [#allocation6], 4096
    $region21: #{tpu_custom_call.1} parent=1 // pred_fallthru
      _
    // Predicated region
    $region22: #{tpu_custom_call.1} parent=1 // pred_check
      _
    $region23: #{tpu_custom_call.1} parent=1 // pred_check_branch
      %52 = sbr.rel (0) target = $region25
    $region24: #{tpu_custom_call.1} parent=1 // pred_region
      %53 = dma.done [#allocation6], 64
    $region25: #{tpu_custom_call.1} parent=1 // pred_fallthru
      _
    %v54 = vld [vmem:[#allocation2] sm:$0xf]
    %v55 = vld [vmem:[#allocation2 + $0x4] sm:$0xf]
    %v56 = vld [vmem:[#allocation2 + $0x8] sm:$0xf]
    %v57 = vld [vmem:[#allocation2 + $0xc] sm:$0xf]
    %v58 = vld [vmem:[#allocation2 + $0x10] sm:$0xf]
    %v59 = vld [vmem:[#allocation2 + $0x14] sm:$0xf]
    %v60 = vld [vmem:[#allocation2 + $0x18] sm:$0xf]
    %v61 = vld [vmem:[#allocation2 + $0x1c] sm:$0xf]
    %v62 = vld [vmem:[#allocation2 + $0x20] sm:$0xf]
    %v63 = vld [vmem:[#allocation2 + $0x24] sm:$0xf]
    %v64 = vld [vmem:[#allocation2 + $0x28] sm:$0xf]
    %v65 = vld [vmem:[#allocation2 + $0x2c] sm:$0xf]
    %v66 = vld [vmem:[#allocation2 + $0x30] sm:$0xf]
    %v67 = vld [vmem:[#allocation2 + $0x34] sm:$0xf]
    %v68 = vld [vmem:[#allocation2 + $0x38] sm:$0xf]
    %v69 = vld [vmem:[#allocation2 + $0x3c] sm:$0xf]
    %v70 = vld [vmem:[#allocation2 + $0x40] sm:$0xf]
    %v71 = vld [vmem:[#allocation2 + $0x44] sm:$0xf]
    %v72 = vld [vmem:[#allocation2 + $0x48] sm:$0xf]
    %v73 = vld [vmem:[#allocation2 + $0x4c] sm:$0xf]
    %v74 = vld [vmem:[#allocation2 + $0x50] sm:$0xf]
    %v75 = vld [vmem:[#allocation2 + $0x54] sm:$0xf]
    %v76 = vld [vmem:[#allocation2 + $0x58] sm:$0xf]
    %v77 = vld [vmem:[#allocation2 + $0x5c] sm:$0xf]
    %v78 = vld [vmem:[#allocation2 + $0x60] sm:$0xf]
    %v79 = vld [vmem:[#allocation2 + $0x64] sm:$0xf]
    %v80 = vld [vmem:[#allocation2 + $0x68] sm:$0xf]
    %v81 = vld [vmem:[#allocation2 + $0x6c] sm:$0xf]
    %v82 = vld [vmem:[#allocation2 + $0x70] sm:$0xf]
    %v83 = vld [vmem:[#allocation2 + $0x74] sm:$0xf]
    %v84 = vld [vmem:[#allocation2 + $0x78] sm:$0xf]
    %v85 = vld [vmem:[#allocation2 + $0x7c] sm:$0xf]
    %v86 = vld [vmem:[#allocation5] sm:$0xff]
    %v87 = vld [vmem:[#allocation5 + $0x8] sm:$0xff]
    %v88 = vld [vmem:[#allocation5 + $0x10] sm:$0xff]
    %v89 = vld [vmem:[#allocation5 + $0x18] sm:$0xff]
    %v90 = vld [vmem:[#allocation5 + $0x20] sm:$0xff]
    %v91 = vld [vmem:[#allocation5 + $0x28] sm:$0xff]
    %v92 = vld [vmem:[#allocation5 + $0x30] sm:$0xff]
    %v93 = vld [vmem:[#allocation5 + $0x38] sm:$0xff]
    %v94 = vld [vmem:[#allocation5 + $0x40] sm:$0xff]
    %v95 = vld [vmem:[#allocation5 + $0x48] sm:$0xff]
    %v96 = vld [vmem:[#allocation5 + $0x50] sm:$0xff]
    %v97 = vld [vmem:[#allocation5 + $0x58] sm:$0xff]
    %v98 = vld [vmem:[#allocation5 + $0x60] sm:$0xff]
    %v99 = vld [vmem:[#allocation5 + $0x68] sm:$0xff]
    %v100 = vld [vmem:[#allocation5 + $0x70] sm:$0xff]
    %v101 = vld [vmem:[#allocation5 + $0x78] sm:$0xff]
    %v102 = vld [vmem:[#allocation5 + $0x80] sm:$0xff]
    %v103 = vld [vmem:[#allocation5 + $0x88] sm:$0xff]
    %v104 = vld [vmem:[#allocation5 + $0x90] sm:$0xff]
    %v105 = vld [vmem:[#allocation5 + $0x98] sm:$0xff]
    %v106 = vld [vmem:[#allocation5 + $0xa0] sm:$0xff]
    %v107 = vld [vmem:[#allocation5 + $0xa8] sm:$0xff]
    %v108 = vld [vmem:[#allocation5 + $0xb0] sm:$0xff]
    %v109 = vld [vmem:[#allocation5 + $0xb8] sm:$0xff]
    %v110 = vld [vmem:[#allocation5 + $0xc0] sm:$0xff]
    %v111 = vld [vmem:[#allocation5 + $0xc8] sm:$0xff]
    %v112 = vld [vmem:[#allocation5 + $0xd0] sm:$0xff]
    %v113 = vld [vmem:[#allocation5 + $0xd8] sm:$0xff]
    %v114 = vld [vmem:[#allocation5 + $0xe0] sm:$0xff]
    %v115 = vld [vmem:[#allocation5 + $0xe8] sm:$0xff]
    %v116 = vld [vmem:[#allocation5 + $0xf0] sm:$0xff]
    %v117 = vld [vmem:[#allocation5 + $0xf8] sm:$0xff]
    %118 = vxpose.xlu0.b32.start [1/16] %v54, 128
    %119 = vxpose.xlu0.b32.cont [2/16] 0.0, 128
    %120 = vxpose.xlu0.b32.cont [3/16] 0.0, 128
    %121 = vxpose.xlu0.b32.cont [4/16] 0.0, 128
    %122 = vxpose.xlu0.b32.cont [5/16] 0.0, 128
    %123 = vxpose.xlu0.b32.cont [6/16] 0.0, 128
    %124 = vxpose.xlu0.b32.cont [7/16] 0.0, 128
    %125 = vxpose.xlu0.b32.cont [8/16] 0.0, 128
    %126 = vxpose.xlu0.b32.cont [9/16] 0.0, 128
    %127 = vxpose.xlu0.b32.cont [10/16] 0.0, 128
    %128 = vxpose.xlu0.b32.cont [11/16] 0.0, 128
    %129 = vxpose.xlu0.b32.cont [12/16] 0.0, 128
    %130 = vxpose.xlu0.b32.cont [13/16] 0.0, 128
    %131 = vxpose.xlu0.b32.cont [14/16] 0.0, 128
    %132 = vxpose.xlu0.b32.cont [15/16] 0.0, 128
    %133 = vxpose.xlu0.b32.end [16/16] 0.0, 128
    %v134 = vpop.trf.xlu0
    %v135 = vpop.trf.xlu0
    %v136 = vpop.trf.xlu0
    %v137 = vpop.trf.xlu0
    %v138 = vpop.trf.xlu0
    %v139 = vpop.trf.xlu0
    %v140 = vpop.trf.xlu0
    %v141 = vpop.trf.xlu0
    %v142 = vpop.trf.xlu0
    %v143 = vpop.trf.xlu0
    %v144 = vpop.trf.xlu0
    %v145 = vpop.trf.xlu0
    %v146 = vpop.trf.xlu0
    %v147 = vpop.trf.xlu0
    %v148 = vpop.trf.xlu0
    %v149 = vpop.trf.xlu0
    %150 = vxpose.xlu0.b32.start [1/16] %v55, 128
    %151 = vxpose.xlu0.b32.cont [2/16] 0.0, 128
    %152 = vxpose.xlu0.b32.cont [3/16] 0.0, 128
    %153 = vxpose.xlu0.b32.cont [4/16] 0.0, 128
    %154 = vxpose.xlu0.b32.cont [5/16] 0.0, 128
    %155 = vxpose.xlu0.b32.cont [6/16] 0.0, 128
    %156 = vxpose.xlu0.b32.cont [7/16] 0.0, 128
    %157 = vxpose.xlu0.b32.cont [8/16] 0.0, 128
    %158 = vxpose.xlu0.b32.cont [9/16] 0.0, 128
    %159 = vxpose.xlu0.b32.cont [10/16] 0.0, 128
    %160 = vxpose.xlu0.b32.cont [11/16] 0.0, 128
    %161 = vxpose.xlu0.b32.cont [12/16] 0.0, 128
    %162 = vxpose.xlu0.b32.cont [13/16] 0.0, 128
    %163 = vxpose.xlu0.b32.cont [14/16] 0.0, 128
    %164 = vxpose.xlu0.b32.cont [15/16] 0.0, 128
    %165 = vxpose.xlu0.b32.end [16/16] 0.0, 128
    %v166 = vpop.trf.xlu0
    %v167 = vpop.trf.xlu0
    %v168 = vpop.trf.xlu0
    %v169 = vpop.trf.xlu0
    %v170 = vpop.trf.xlu0
    %v171 = vpop.trf.xlu0
    %v172 = vpop.trf.xlu0
    %v173 = vpop.trf.xlu0
    %v174 = vpop.trf.xlu0
    %v175 = vpop.trf.xlu0
    %v176 = vpop.trf.xlu0
    %v177 = vpop.trf.xlu0
    %v178 = vpop.trf.xlu0
    %v179 = vpop.trf.xlu0
    %v180 = vpop.trf.xlu0
    %v181 = vpop.trf.xlu0
    %182 = vxpose.xlu0.b32.start [1/16] %v56, 128
    %183 = vxpose.xlu0.b32.cont [2/16] 0.0, 128
    %184 = vxpose.xlu0.b32.cont [3/16] 0.0, 128
    %185 = vxpose.xlu0.b32.cont [4/16] 0.0, 128
    %186 = vxpose.xlu0.b32.cont [5/16] 0.0, 128
    %187 = vxpose.xlu0.b32.cont [6/16] 0.0, 128
    %188 = vxpose.xlu0.b32.cont [7/16] 0.0, 128
    %189 = vxpose.xlu0.b32.cont [8/16] 0.0, 128
    %190 = vxpose.xlu0.b32.cont [9/16] 0.0, 128
    %191 = vxpose.xlu0.b32.cont [10/16] 0.0, 128
    %192 = vxpose.xlu0.b32.cont [11/16] 0.0, 128
    %193 = vxpose.xlu0.b32.cont [12/16] 0.0, 128
    %194 = vxpose.xlu0.b32.cont [13/16] 0.0, 128
    %195 = vxpose.xlu0.b32.cont [14/16] 0.0, 128
    %196 = vxpose.xlu0.b32.cont [15/16] 0.0, 128
    %197 = vxpose.xlu0.b32.end [16/16] 0.0, 128
    %v198 = vpop.trf.xlu0
    %v199 = vpop.trf.xlu0
    %v200 = vpop.trf.xlu0
    %v201 = vpop.trf.xlu0
    %v202 = vpop.trf.xlu0
    %v203 = vpop.trf.xlu0
    %v204 = vpop.trf.xlu0
    %v205 = vpop.trf.xlu0
    %v206 = vpop.trf.xlu0
    %v207 = vpop.trf.xlu0
    %v208 = vpop.trf.xlu0
    %v209 = vpop.trf.xlu0
    %v210 = vpop.trf.xlu0
    %v211 = vpop.trf.xlu0
    %v212 = vpop.trf.xlu0
    %v213 = vpop.trf.xlu0
    %214 = vxpose.xlu0.b32.start [1/16] %v57, 128
    %215 = vxpose.xlu0.b32.cont [2/16] 0.0, 128
    %216 = vxpose.xlu0.b32.cont [3/16] 0.0, 128
    %217 = vxpose.xlu0.b32.cont [4/16] 0.0, 128
    %218 = vxpose.xlu0.b32.cont [5/16] 0.0, 128
    %219 = vxpose.xlu0.b32.cont [6/16] 0.0, 128
    %220 = vxpose.xlu0.b32.cont [7/16] 0.0, 128
    %221 = vxpose.xlu0.b32.cont [8/16] 0.0, 128
    %222 = vxpose.xlu0.b32.cont [9/16] 0.0, 128
    %223 = vxpose.xlu0.b32.cont [10/16] 0.0, 128
    %224 = vxpose.xlu0.b32.cont [11/16] 0.0, 128
    %225 = vxpose.xlu0.b32.cont [12/16] 0.0, 128
    %226 = vxpose.xlu0.b32.cont [13/16] 0.0, 128
    %227 = vxpose.xlu0.b32.cont [14/16] 0.0, 128
    %228 = vxpose.xlu0.b32.cont [15/16] 0.0, 128
    %229 = vxpose.xlu0.b32.end [16/16] 0.0, 128
    %v230 = vpop.trf.xlu0
    %v231 = vpop.trf.xlu0
    %v232 = vpop.trf.xlu0
    %v233 = vpop.trf.xlu0
    %v234 = vpop.trf.xlu0
    %v235 = vpop.trf.xlu0
    %v236 = vpop.trf.xlu0
    %v237 = vpop.trf.xlu0
    %v238 = vpop.trf.xlu0
    %v239 = vpop.trf.xlu0
    %v240 = vpop.trf.xlu0
    %v241 = vpop.trf.xlu0
    %v242 = vpop.trf.xlu0
    %v243 = vpop.trf.xlu0
    %v244 = vpop.trf.xlu0
    %v245 = vpop.trf.xlu0
    %246 = vxpose.xlu0.b32.start [1/16] %v58, 128
    %247 = vxpose.xlu0.b32.cont [2/16] 0.0, 128
    %248 = vxpose.xlu0.b32.cont [3/16] 0.0, 128
    %249 = vxpose.xlu0.b32.cont [4/16] 0.0, 128
    %250 = vxpose.xlu0.b32.cont [5/16] 0.0, 128
    %251 = vxpose.xlu0.b32.cont [6/16] 0.0, 128
    %252 = vxpose.xlu0.b32.cont [7/16] 0.0, 128
    %253 = vxpose.xlu0.b32.cont [8/16] 0.0, 128
    %254 = vxpose.xlu0.b32.cont [9/16] 0.0, 128
    %255 = vxpose.xlu0.b32.cont [10/16] 0.0, 128
    %256 = vxpose.xlu0.b32.cont [11/16] 0.0, 128
    %257 = vxpose.xlu0.b32.cont [12/16] 0.0, 128
    %258 = vxpose.xlu0.b32.cont [13/16] 0.0, 128
    %259 = vxpose.xlu0.b32.cont [14/16] 0.0, 128
    %260 = vxpose.xlu0.b32.cont [15/16] 0.0, 128
    %261 = vxpose.xlu0.b32.end [16/16] 0.0, 128
    %v262 = vpop.trf.xlu0
    %v263 = vpop.trf.xlu0
    %v264 = vpop.trf.xlu0
    %v265 = vpop.trf.xlu0
    %v266 = vpop.trf.xlu0
    %v267 = vpop.trf.xlu0
    %v268 = vpop.trf.xlu0
    %v269 = vpop.trf.xlu0
    %v270 = vpop.trf.xlu0
    %v271 = vpop.trf.xlu0
    %v272 = vpop.trf.xlu0
    %v273 = vpop.trf.xlu0
    %v274 = vpop.trf.xlu0
    %v275 = vpop.trf.xlu0
    %v276 = vpop.trf.xlu0
    %v277 = vpop.trf.xlu0
    %278 = vxpose.xlu0.b32.start [1/16] %v59, 128
    %279 = vxpose.xlu0.b32.cont [2/16] 0.0, 128
    %280 = vxpose.xlu0.b32.cont [3/16] 0.0, 128
    %281 = vxpose.xlu0.b32.cont [4/16] 0.0, 128
    %282 = vxpose.xlu0.b32.cont [5/16] 0.0, 128
    %283 = vxpose.xlu0.b32.cont [6/16] 0.0, 128
    %284 = vxpose.xlu0.b32.cont [7/16] 0.0, 128
    %285 = vxpose.xlu0.b32.cont [8/16] 0.0, 128
    %286 = vxpose.xlu0.b32.cont [9/16] 0.0, 128
    %287 = vxpose.xlu0.b32.cont [10/16] 0.0, 128
    %288 = vxpose.xlu0.b32.cont [11/16] 0.0, 128
    %289 = vxpose.xlu0.b32.cont [12/16] 0.0, 128
    %290 = vxpose.xlu0.b32.cont [13/16] 0.0, 128
    %291 = vxpose.xlu0.b32.cont [14/16] 0.0, 128
    %292 = vxpose.xlu0.b32.cont [15/16] 0.0, 128
    %293 = vxpose.xlu0.b32.end [16/16] 0.0, 128
    %v294 = vpop.trf.xlu0
    %v295 = vpop.trf.xlu0
    %v296 = vpop.trf.xlu0
    %v297 = vpop.trf.xlu0
    %v298 = vpop.trf.xlu0
    %v299 = vpop.trf.xlu0
    %v300 = vpop.trf.xlu0
    %v301 = vpop.trf.xlu0
    %v302 = vpop.trf.xlu0
    %v303 = vpop.trf.xlu0
    %v304 = vpop.trf.xlu0
    %v305 = vpop.trf.xlu0
    %v306 = vpop.trf.xlu0
    %v307 = vpop.trf.xlu0
    %v308 = vpop.trf.xlu0
    %v309 = vpop.trf.xlu0
    %310 = vxpose.xlu0.b32.start [1/16] %v60, 128
    %311 = vxpose.xlu0.b32.cont [2/16] 0.0, 128
    %312 = vxpose.xlu0.b32.cont [3/16] 0.0, 128
    %313 = vxpose.xlu0.b32.cont [4/16] 0.0, 128
    %314 = vxpose.xlu0.b32.cont [5/16] 0.0, 128
    %315 = vxpose.xlu0.b32.cont [6/16] 0.0, 128
    %316 = vxpose.xlu0.b32.cont [7/16] 0.0, 128
    %317 = vxpose.xlu0.b32.cont [8/16] 0.0, 128
    %318 = vxpose.xlu0.b32.cont [9/16] 0.0, 128
    %319 = vxpose.xlu0.b32.cont [10/16] 0.0, 128
    %320 = vxpose.xlu0.b32.cont [11/16] 0.0, 128
    %321 = vxpose.xlu0.b32.cont [12/16] 0.0, 128
    %322 = vxpose.xlu0.b32.cont [13/16] 0.0, 128
    %323 = vxpose.xlu0.b32.cont [14/16] 0.0, 128
    %324 = vxpose.xlu0.b32.cont [15/16] 0.0, 128
    %325 = vxpose.xlu0.b32.end [16/16] 0.0, 128
    %v326 = vpop.trf.xlu0
    %v327 = vpop.trf.xlu0
    %v328 = vpop.trf.xlu0
    %v329 = vpop.trf.xlu0
    %v330 = vpop.trf.xlu0
    %v331 = vpop.trf.xlu0
    %v332 = vpop.trf.xlu0
    %v333 = vpop.trf.xlu0
    %v334 = vpop.trf.xlu0
    %v335 = vpop.trf.xlu0
    %v336 = vpop.trf.xlu0
    %v337 = vpop.trf.xlu0
    %v338 = vpop.trf.xlu0
    %v339 = vpop.trf.xlu0
    %v340 = vpop.trf.xlu0
    %v341 = vpop.trf.xlu0
    %342 = vxpose.xlu0.b32.start [1/16] %v61, 128
    %343 = vxpose.xlu0.b32.cont [2/16] 0.0, 128
    %344 = vxpose.xlu0.b32.cont [3/16] 0.0, 128
    %345 = vxpose.xlu0.b32.cont [4/16] 0.0, 128
    %346 = vxpose.xlu0.b32.cont [5/16] 0.0, 128
    %347 = vxpose.xlu0.b32.cont [6/16] 0.0, 128
    %348 = vxpose.xlu0.b32.cont [7/16] 0.0, 128
    %349 = vxpose.xlu0.b32.cont [8/16] 0.0, 128
    %350 = vxpose.xlu0.b32.cont [9/16] 0.0, 128
    %351 = vxpose.xlu0.b32.cont [10/16] 0.0, 128
    %352 = vxpose.xlu0.b32.cont [11/16] 0.0, 128
    %353 = vxpose.xlu0.b32.cont [12/16] 0.0, 128
    %354 = vxpose.xlu0.b32.cont [13/16] 0.0, 128
    %355 = vxpose.xlu0.b32.cont [14/16] 0.0, 128
    %356 = vxpose.xlu0.b32.cont [15/16] 0.0, 128
    %357 = vxpose.xlu0.b32.end [16/16] 0.0, 128
    %v358 = vpop.trf.xlu0
    %v359 = vpop.trf.xlu0
    %v360 = vpop.trf.xlu0
    %v361 = vpop.trf.xlu0
    %v362 = vpop.trf.xlu0
    %v363 = vpop.trf.xlu0
    %v364 = vpop.trf.xlu0
    %v365 = vpop.trf.xlu0
    %v366 = vpop.trf.xlu0
    %v367 = vpop.trf.xlu0
    %v368 = vpop.trf.xlu0
    %v369 = vpop.trf.xlu0
    %v370 = vpop.trf.xlu0
    %v371 = vpop.trf.xlu0
    %v372 = vpop.trf.xlu0
    %v373 = vpop.trf.xlu0
    %374 = vxpose.xlu0.b32.start [1/16] %v62, 128
    %375 = vxpose.xlu0.b32.cont [2/16] 0.0, 128
    %376 = vxpose.xlu0.b32.cont [3/16] 0.0, 128
    %377 = vxpose.xlu0.b32.cont [4/16] 0.0, 128
    %378 = vxpose.xlu0.b32.cont [5/16] 0.0, 128
    %379 = vxpose.xlu0.b32.cont [6/16] 0.0, 128
    %380 = vxpose.xlu0.b32.cont [7/16] 0.0, 128
    %381 = vxpose.xlu0.b32.cont [8/16] 0.0, 128
    %382 = vxpose.xlu0.b32.cont [9/16] 0.0, 128
    %383 = vxpose.xlu0.b32.cont [10/16] 0.0, 128
    %384 = vxpose.xlu0.b32.cont [11/16] 0.0, 128
    %385 = vxpose.xlu0.b32.cont [12/16] 0.0, 128
    %386 = vxpose.xlu0.b32.cont [13/16] 0.0, 128
    %387 = vxpose.xlu0.b32.cont [14/16] 0.0, 128
    %388 = vxpose.xlu0.b32.cont [15/16] 0.0, 128
    %389 = vxpose.xlu0.b32.end [16/16] 0.0, 128
    %v390 = vpop.trf.xlu0
    %v391 = vpop.trf.xlu0
    %v392 = vpop.trf.xlu0
    %v393 = vpop.trf.xlu0
    %v394 = vpop.trf.xlu0
    %v395 = vpop.trf.xlu0
    %v396 = vpop.trf.xlu0
    %v397 = vpop.trf.xlu0
    %v398 = vpop.trf.xlu0
    %v399 = vpop.trf.xlu0
    %v400 = vpop.trf.xlu0
    %v401 = vpop.trf.xlu0
    %v402 = vpop.trf.xlu0
    %v403 = vpop.trf.xlu0
    %v404 = vpop.trf.xlu0
    %v405 = vpop.trf.xlu0
    %406 = vxpose.xlu0.b32.start [1/16] %v63, 128
    %407 = vxpose.xlu0.b32.cont [2/16] 0.0, 128
    %408 = vxpose.xlu0.b32.cont [3/16] 0.0, 128
    %409 = vxpose.xlu0.b32.cont [4/16] 0.0, 128
    %410 = vxpose.xlu0.b32.cont [5/16] 0.0, 128
    %411 = vxpose.xlu0.b32.cont [6/16] 0.0, 128
    %412 = vxpose.xlu0.b32.cont [7/16] 0.0, 128
    %413 = vxpose.xlu0.b32.cont [8/16] 0.0, 128
    %414 = vxpose.xlu0.b32.cont [9/16] 0.0, 128
    %415 = vxpose.xlu0.b32.cont [10/16] 0.0, 128
    %416 = vxpose.xlu0.b32.cont [11/16] 0.0, 128
    %417 = vxpose.xlu0.b32.cont [12/16] 0.0, 128
    %418 = vxpose.xlu0.b32.cont [13/16] 0.0, 128
    %419 = vxpose.xlu0.b32.cont [14/16] 0.0, 128
    %420 = vxpose.xlu0.b32.cont [15/16] 0.0, 128
    %421 = vxpose.xlu0.b32.end [16/16] 0.0, 128
    %v422 = vpop.trf.xlu0
    %v423 = vpop.trf.xlu0
    %v424 = vpop.trf.xlu0
    %v425 = vpop.trf.xlu0
    %v426 = vpop.trf.xlu0
    %v427 = vpop.trf.xlu0
    %v428 = vpop.trf.xlu0
    %v429 = vpop.trf.xlu0
    %v430 = vpop.trf.xlu0
    %v431 = vpop.trf.xlu0
    %v432 = vpop.trf.xlu0
    %v433 = vpop.trf.xlu0
    %v434 = vpop.trf.xlu0
    %v435 = vpop.trf.xlu0
    %v436 = vpop.trf.xlu0
    %v437 = vpop.trf.xlu0
    %438 = vxpose.xlu0.b32.start [1/16] %v64, 128
    %439 = vxpose.xlu0.b32.cont [2/16] 0.0, 128
    %440 = vxpose.xlu0.b32.cont [3/16] 0.0, 128
    %441 = vxpose.xlu0.b32.cont [4/16] 0.0, 128
    %442 = vxpose.xlu0.b32.cont [5/16] 0.0, 128
    %443 = vxpose.xlu0.b32.cont [6/16] 0.0, 128
    %444 = vxpose.xlu0.b32.cont [7/16] 0.0, 128
    %445 = vxpose.xlu0.b32.cont [8/16] 0.0, 128
    %446 = vxpose.xlu0.b32.cont [9/16] 0.0, 128
    %447 = vxpose.xlu0.b32.cont [10/16] 0.0, 128
    %448 = vxpose.xlu0.b32.cont [11/16] 0.0, 128
    %449 = vxpose.xlu0.b32.cont [12/16] 0.0, 128
    %450 = vxpose.xlu0.b32.cont [13/16] 0.0, 128
    %451 = vxpose.xlu0.b32.cont [14/16] 0.0, 128
    %452 = vxpose.xlu0.b32.cont [15/16] 0.0, 128
    %453 = vxpose.xlu0.b32.end [16/16] 0.0, 128
    %v454 = vpop.trf.xlu0
    %v455 = vpop.trf.xlu0
    %v456 = vpop.trf.xlu0
    %v457 = vpop.trf.xlu0
    %v458 = vpop.trf.xlu0
    %v459 = vpop.trf.xlu0
    %v460 = vpop.trf.xlu0
    %v461 = vpop.trf.xlu0
    %v462 = vpop.trf.xlu0
    %v463 = vpop.trf.xlu0
    %v464 = vpop.trf.xlu0
    %v465 = vpop.trf.xlu0
    %v466 = vpop.trf.xlu0
    %v467 = vpop.trf.xlu0
    %v468 = vpop.trf.xlu0
    %v469 = vpop.trf.xlu0
    %470 = vxpose.xlu0.b32.start [1/16] %v65, 128
    %471 = vxpose.xlu0.b32.cont [2/16] 0.0, 128
    %472 = vxpose.xlu0.b32.cont [3/16] 0.0, 128
    %473 = vxpose.xlu0.b32.cont [4/16] 0.0, 128
    %474 = vxpose.xlu0.b32.cont [5/16] 0.0, 128
    %475 = vxpose.xlu0.b32.cont [6/16] 0.0, 128
    %476 = vxpose.xlu0.b32.cont [7/16] 0.0, 128
    %477 = vxpose.xlu0.b32.cont [8/16] 0.0, 128
    %478 = vxpose.xlu0.b32.cont [9/16] 0.0, 128
    %479 = vxpose.xlu0.b32.cont [10/16] 0.0, 128
    %480 = vxpose.xlu0.b32.cont [11/16] 0.0, 128
    %481 = vxpose.xlu0.b32.cont [12/16] 0.0, 128
    %482 = vxpose.xlu0.b32.cont [13/16] 0.0, 128
    %483 = vxpose.xlu0.b32.cont [14/16] 0.0, 128
    %484 = vxpose.xlu0.b32.cont [15/16] 0.0, 128
    %485 = vxpose.xlu0.b32.end [16/16] 0.0, 128
    %v486 = vpop.trf.xlu0
    %v487 = vpop.trf.xlu0
    %v488 = vpop.trf.xlu0
    %v489 = vpop.trf.xlu0
    %v490 = vpop.trf.xlu0
    %v491 = vpop.trf.xlu0
    %v492 = vpop.trf.xlu0
    %v493 = vpop.trf.xlu0
    %v494 = vpop.trf.xlu0
    %v495 = vpop.trf.xlu0
    %v496 = vpop.trf.xlu0
    %v497 = vpop.trf.xlu0
    %v498 = vpop.trf.xlu0
    %v499 = vpop.trf.xlu0
    %v500 = vpop.trf.xlu0
    %v501 = vpop.trf.xlu0
    %502 = vxpose.xlu0.b32.start [1/16] %v66, 128
    %503 = vxpose.xlu0.b32.cont [2/16] 0.0, 128
    %504 = vxpose.xlu0.b32.cont [3/16] 0.0, 128
    %505 = vxpose.xlu0.b32.cont [4/16] 0.0, 128
    %506 = vxpose.xlu0.b32.cont [5/16] 0.0, 128
    %507 = vxpose.xlu0.b32.cont [6/16] 0.0, 128
    %508 = vxpose.xlu0.b32.cont [7/16] 0.0, 128
    %509 = vxpose.xlu0.b32.cont [8/16] 0.0, 128
    %510 = vxpose.xlu0.b32.cont [9/16] 0.0, 128
    %511 = vxpose.xlu0.b32.cont [10/16] 0.0, 128
    %512 = vxpose.xlu0.b32.cont [11/16] 0.0, 128
    %513 = vxpose.xlu0.b32.cont [12/16] 0.0, 128
    %514 = vxpose.xlu0.b32.cont [13/16] 0.0, 128
    %515 = vxpose.xlu0.b32.cont [14/16] 0.0, 128
    %516 = vxpose.xlu0.b32.cont [15/16] 0.0, 128
    %517 = vxpose.xlu0.b32.end [16/16] 0.0, 128
    %v518 = vpop.trf.xlu0
    %v519 = vpop.trf.xlu0
    %v520 = vpop.trf.xlu0
    %v521 = vpop.trf.xlu0
    %v522 = vpop.trf.xlu0
    %v523 = vpop.trf.xlu0
    %v524 = vpop.trf.xlu0
    %v525 = vpop.trf.xlu0
    %v526 = vpop.trf.xlu0
    %v527 = vpop.trf.xlu0
    %v528 = vpop.trf.xlu0
    %v529 = vpop.trf.xlu0
    %v530 = vpop.trf.xlu0
    %v531 = vpop.trf.xlu0
    %v532 = vpop.trf.xlu0
    %v533 = vpop.trf.xlu0
    %534 = vxpose.xlu0.b32.start [1/16] %v67, 128
    %535 = vxpose.xlu0.b32.cont [2/16] 0.0, 128
    %536 = vxpose.xlu0.b32.cont [3/16] 0.0, 128
    %537 = vxpose.xlu0.b32.cont [4/16] 0.0, 128
    %538 = vxpose.xlu0.b32.cont [5/16] 0.0, 128
    %539 = vxpose.xlu0.b32.cont [6/16] 0.0, 128
    %540 = vxpose.xlu0.b32.cont [7/16] 0.0, 128
    %541 = vxpose.xlu0.b32.cont [8/16] 0.0, 128
    %542 = vxpose.xlu0.b32.cont [9/16] 0.0, 128
    %543 = vxpose.xlu0.b32.cont [10/16] 0.0, 128
    %544 = vxpose.xlu0.b32.cont [11/16] 0.0, 128
    %545 = vxpose.xlu0.b32.cont [12/16] 0.0, 128
    %546 = vxpose.xlu0.b32.cont [13/16] 0.0, 128
    %547 = vxpose.xlu0.b32.cont [14/16] 0.0, 128
    %548 = vxpose.xlu0.b32.cont [15/16] 0.0, 128
    %549 = vxpose.xlu0.b32.end [16/16] 0.0, 128
    %v550 = vpop.trf.xlu0
    %v551 = vpop.trf.xlu0
    %v552 = vpop.trf.xlu0
    %v553 = vpop.trf.xlu0
    %v554 = vpop.trf.xlu0
    %v555 = vpop.trf.xlu0
    %v556 = vpop.trf.xlu0
    %v557 = vpop.trf.xlu0
    %v558 = vpop.trf.xlu0
    %v559 = vpop.trf.xlu0
    %v560 = vpop.trf.xlu0
    %v561 = vpop.trf.xlu0
    %v562 = vpop.trf.xlu0
    %v563 = vpop.trf.xlu0
    %v564 = vpop.trf.xlu0
    %v565 = vpop.trf.xlu0
    %566 = vxpose.xlu0.b32.start [1/16] %v68, 128
    %567 = vxpose.xlu0.b32.cont [2/16] 0.0, 128
    %568 = vxpose.xlu0.b32.cont [3/16] 0.0, 128
    %569 = vxpose.xlu0.b32.cont [4/16] 0.0, 128
    %570 = vxpose.xlu0.b32.cont [5/16] 0.0, 128
    %571 = vxpose.xlu0.b32.cont [6/16] 0.0, 128
    %572 = vxpose.xlu0.b32.cont [7/16] 0.0, 128
    %573 = vxpose.xlu0.b32.cont [8/16] 0.0, 128
    %574 = vxpose.xlu0.b32.cont [9/16] 0.0, 128
    %575 = vxpose.xlu0.b32.cont [10/16] 0.0, 128
    %576 = vxpose.xlu0.b32.cont [11/16] 0.0, 128
    %577 = vxpose.xlu0.b32.cont [12/16] 0.0, 128
    %578 = vxpose.xlu0.b32.cont [13/16] 0.0, 128
    %579 = vxpose.xlu0.b32.cont [14/16] 0.0, 128
    %580 = vxpose.xlu0.b32.cont [15/16] 0.0, 128
    %581 = vxpose.xlu0.b32.end [16/16] 0.0, 128
    %v582 = vpop.trf.xlu0
    %v583 = vpop.trf.xlu0
    %v584 = vpop.trf.xlu0
    %v585 = vpop.trf.xlu0
    %v586 = vpop.trf.xlu0
    %v587 = vpop.trf.xlu0
    %v588 = vpop.trf.xlu0
    %v589 = vpop.trf.xlu0
    %v590 = vpop.trf.xlu0
    %v591 = vpop.trf.xlu0
    %v592 = vpop.trf.xlu0
    %v593 = vpop.trf.xlu0
    %v594 = vpop.trf.xlu0
    %v595 = vpop.trf.xlu0
    %v596 = vpop.trf.xlu0
    %v597 = vpop.trf.xlu0
    %598 = vxpose.xlu0.b32.start [1/16] %v69, 128
    %599 = vxpose.xlu0.b32.cont [2/16] 0.0, 128
    %600 = vxpose.xlu0.b32.cont [3/16] 0.0, 128
    %601 = vxpose.xlu0.b32.cont [4/16] 0.0, 128
    %602 = vxpose.xlu0.b32.cont [5/16] 0.0, 128
    %603 = vxpose.xlu0.b32.cont [6/16] 0.0, 128
    %604 = vxpose.xlu0.b32.cont [7/16] 0.0, 128
    %605 = vxpose.xlu0.b32.cont [8/16] 0.0, 128
    %606 = vxpose.xlu0.b32.cont [9/16] 0.0, 128
    %607 = vxpose.xlu0.b32.cont [10/16] 0.0, 128
    %608 = vxpose.xlu0.b32.cont [11/16] 0.0, 128
    %609 = vxpose.xlu0.b32.cont [12/16] 0.0, 128
    %610 = vxpose.xlu0.b32.cont [13/16] 0.0, 128
    %611 = vxpose.xlu0.b32.cont [14/16] 0.0, 128
    %612 = vxpose.xlu0.b32.cont [15/16] 0.0, 128
    %613 = vxpose.xlu0.b32.end [16/16] 0.0, 128
    %v614 = vpop.trf.xlu0
    %v615 = vpop.trf.xlu0
    %v616 = vpop.trf.xlu0
    %v617 = vpop.trf.xlu0
    %v618 = vpop.trf.xlu0
    %v619 = vpop.trf.xlu0
    %v620 = vpop.trf.xlu0
    %v621 = vpop.trf.xlu0
    %v622 = vpop.trf.xlu0
    %v623 = vpop.trf.xlu0
    %v624 = vpop.trf.xlu0
    %v625 = vpop.trf.xlu0
    %v626 = vpop.trf.xlu0
    %v627 = vpop.trf.xlu0
    %v628 = vpop.trf.xlu0
    %v629 = vpop.trf.xlu0
    %630 = vxpose.xlu0.b32.start [1/16] %v70, 128
    %631 = vxpose.xlu0.b32.cont [2/16] 0.0, 128
    %632 = vxpose.xlu0.b32.cont [3/16] 0.0, 128
    %633 = vxpose.xlu0.b32.cont [4/16] 0.0, 128
    %634 = vxpose.xlu0.b32.cont [5/16] 0.0, 128
    %635 = vxpose.xlu0.b32.cont [6/16] 0.0, 128
    %636 = vxpose.xlu0.b32.cont [7/16] 0.0, 128
    %637 = vxpose.xlu0.b32.cont [8/16] 0.0, 128
    %638 = vxpose.xlu0.b32.cont [9/16] 0.0, 128
    %639 = vxpose.xlu0.b32.cont [10/16] 0.0, 128
    %640 = vxpose.xlu0.b32.cont [11/16] 0.0, 128
    %641 = vxpose.xlu0.b32.cont [12/16] 0.0, 128
    %642 = vxpose.xlu0.b32.cont [13/16] 0.0, 128
    %643 = vxpose.xlu0.b32.cont [14/16] 0.0, 128
    %644 = vxpose.xlu0.b32.cont [15/16] 0.0, 128
    %645 = vxpose.xlu0.b32.end [16/16] 0.0, 128
    %v646 = vpop.trf.xlu0
    %v647 = vpop.trf.xlu0
    %v648 = vpop.trf.xlu0
    %v649 = vpop.trf.xlu0
    %v650 = vpop.trf.xlu0
    %v651 = vpop.trf.xlu0
    %v652 = vpop.trf.xlu0
    %v653 = vpop.trf.xlu0
    %v654 = vpop.trf.xlu0
    %v655 = vpop.trf.xlu0
    %v656 = vpop.trf.xlu0
    %v657 = vpop.trf.xlu0
    %v658 = vpop.trf.xlu0
    %v659 = vpop.trf.xlu0
    %v660 = vpop.trf.xlu0
    %v661 = vpop.trf.xlu0
    %662 = vxpose.xlu0.b32.start [1/16] %v71, 128
    %663 = vxpose.xlu0.b32.cont [2/16] 0.0, 128
    %664 = vxpose.xlu0.b32.cont [3/16] 0.0, 128
    %665 = vxpose.xlu0.b32.cont [4/16] 0.0, 128
    %666 = vxpose.xlu0.b32.cont [5/16] 0.0, 128
    %667 = vxpose.xlu0.b32.cont [6/16] 0.0, 128
    %668 = vxpose.xlu0.b32.cont [7/16] 0.0, 128
    %669 = vxpose.xlu0.b32.cont [8/16] 0.0, 128
    %670 = vxpose.xlu0.b32.cont [9/16] 0.0, 128
    %671 = vxpose.xlu0.b32.cont [10/16] 0.0, 128
    %672 = vxpose.xlu0.b32.cont [11/16] 0.0, 128
    %673 = vxpose.xlu0.b32.cont [12/16] 0.0, 128
    %674 = vxpose.xlu0.b32.cont [13/16] 0.0, 128
    %675 = vxpose.xlu0.b32.cont [14/16] 0.0, 128
    %676 = vxpose.xlu0.b32.cont [15/16] 0.0, 128
    %677 = vxpose.xlu0.b32.end [16/16] 0.0, 128
    %v678 = vpop.trf.xlu0
    %v679 = vpop.trf.xlu0
    %v680 = vpop.trf.xlu0
    %v681 = vpop.trf.xlu0
    %v682 = vpop.trf.xlu0
    %v683 = vpop.trf.xlu0
    %v684 = vpop.trf.xlu0
    %v685 = vpop.trf.xlu0
    %v686 = vpop.trf.xlu0
    %v687 = vpop.trf.xlu0
    %v688 = vpop.trf.xlu0
    %v689 = vpop.trf.xlu0
    %v690 = vpop.trf.xlu0
    %v691 = vpop.trf.xlu0
    %v692 = vpop.trf.xlu0
    %v693 = vpop.trf.xlu0
    %694 = vxpose.xlu0.b32.start [1/16] %v72, 128
    %695 = vxpose.xlu0.b32.cont [2/16] 0.0, 128
    %696 = vxpose.xlu0.b32.cont [3/16] 0.0, 128
    %697 = vxpose.xlu0.b32.cont [4/16] 0.0, 128
    %698 = vxpose.xlu0.b32.cont [5/16] 0.0, 128
    %699 = vxpose.xlu0.b32.cont [6/16] 0.0, 128
    %700 = vxpose.xlu0.b32.cont [7/16] 0.0, 128
    %701 = vxpose.xlu0.b32.cont [8/16] 0.0, 128
    %702 = vxpose.xlu0.b32.cont [9/16] 0.0, 128
    %703 = vxpose.xlu0.b32.cont [10/16] 0.0, 128
    %704 = vxpose.xlu0.b32.cont [11/16] 0.0, 128
    %705 = vxpose.xlu0.b32.cont [12/16] 0.0, 128
    %706 = vxpose.xlu0.b32.cont [13/16] 0.0, 128
    %707 = vxpose.xlu0.b32.cont [14/16] 0.0, 128
    %708 = vxpose.xlu0.b32.cont [15/16] 0.0, 128
    %709 = vxpose.xlu0.b32.end [16/16] 0.0, 128
    %v710 = vpop.trf.xlu0
    %v711 = vpop.trf.xlu0
    %v712 = vpop.trf.xlu0
    %v713 = vpop.trf.xlu0
    %v714 = vpop.trf.xlu0
    %v715 = vpop.trf.xlu0
    %v716 = vpop.trf.xlu0
    %v717 = vpop.trf.xlu0
    %v718 = vpop.trf.xlu0
    %v719 = vpop.trf.xlu0
    %v720 = vpop.trf.xlu0
    %v721 = vpop.trf.xlu0
    %v722 = vpop.trf.xlu0
    %v723 = vpop.trf.xlu0
    %v724 = vpop.trf.xlu0
    %v725 = vpop.trf.xlu0
    %726 = vxpose.xlu0.b32.start [1/16] %v73, 128
    %727 = vxpose.xlu0.b32.cont [2/16] 0.0, 128
    %728 = vxpose.xlu0.b32.cont [3/16] 0.0, 128
    %729 = vxpose.xlu0.b32.cont [4/16] 0.0, 128
    %730 = vxpose.xlu0.b32.cont [5/16] 0.0, 128
    %731 = vxpose.xlu0.b32.cont [6/16] 0.0, 128
    %732 = vxpose.xlu0.b32.cont [7/16] 0.0, 128
    %733 = vxpose.xlu0.b32.cont [8/16] 0.0, 128
    %734 = vxpose.xlu0.b32.cont [9/16] 0.0, 128
    %735 = vxpose.xlu0.b32.cont [10/16] 0.0, 128
    %736 = vxpose.xlu0.b32.cont [11/16] 0.0, 128
    %737 = vxpose.xlu0.b32.cont [12/16] 0.0, 128
    %738 = vxpose.xlu0.b32.cont [13/16] 0.0, 128
    %739 = vxpose.xlu0.b32.cont [14/16] 0.0, 128
    %740 = vxpose.xlu0.b32.cont [15/16] 0.0, 128
    %741 = vxpose.xlu0.b32.end [16/16] 0.0, 128
    %v742 = vpop.trf.xlu0
    %v743 = vpop.trf.xlu0
    %v744 = vpop.trf.xlu0
    %v745 = vpop.trf.xlu0
    %v746 = vpop.trf.xlu0
    %v747 = vpop.trf.xlu0
    %v748 = vpop.trf.xlu0
    %v749 = vpop.trf.xlu0
    %v750 = vpop.trf.xlu0
    %v751 = vpop.trf.xlu0
    %v752 = vpop.trf.xlu0
    %v753 = vpop.trf.xlu0
    %v754 = vpop.trf.xlu0
    %v755 = vpop.trf.xlu0
    %v756 = vpop.trf.xlu0
    %v757 = vpop.trf.xlu0
    %758 = vxpose.xlu0.b32.start [1/16] %v74, 128
    %759 = vxpose.xlu0.b32.cont [2/16] 0.0, 128
    %760 = vxpose.xlu0.b32.cont [3/16] 0.0, 128
    %761 = vxpose.xlu0.b32.cont [4/16] 0.0, 128
    %762 = vxpose.xlu0.b32.cont [5/16] 0.0, 128
    %763 = vxpose.xlu0.b32.cont [6/16] 0.0, 128
    %764 = vxpose.xlu0.b32.cont [7/16] 0.0, 128
    %765 = vxpose.xlu0.b32.cont [8/16] 0.0, 128
    %766 = vxpose.xlu0.b32.cont [9/16] 0.0, 128
    %767 = vxpose.xlu0.b32.cont [10/16] 0.0, 128
    %768 = vxpose.xlu0.b32.cont [11/16] 0.0, 128
    %769 = vxpose.xlu0.b32.cont [12/16] 0.0, 128
    %770 = vxpose.xlu0.b32.cont [13/16] 0.0, 128
    %771 = vxpose.xlu0.b32.cont [14/16] 0.0, 128
    %772 = vxpose.xlu0.b32.cont [15/16] 0.0, 128
    %773 = vxpose.xlu0.b32.end [16/16] 0.0, 128
    %v774 = vpop.trf.xlu0
    %v775 = vpop.trf.xlu0
    %v776 = vpop.trf.xlu0
    %v777 = vpop.trf.xlu0
    %v778 = vpop.trf.xlu0
    %v779 = vpop.trf.xlu0
    %v780 = vpop.trf.xlu0
    %v781 = vpop.trf.xlu0
    %v782 = vpop.trf.xlu0
    %v783 = vpop.trf.xlu0
    %v784 = vpop.trf.xlu0
    %v785 = vpop.trf.xlu0
    %v786 = vpop.trf.xlu0
    %v787 = vpop.trf.xlu0
    %v788 = vpop.trf.xlu0
    %v789 = vpop.trf.xlu0
    %790 = vxpose.xlu0.b32.start [1/16] %v75, 128
    %791 = vxpose.xlu0.b32.cont [2/16] 0.0, 128
    %792 = vxpose.xlu0.b32.cont [3/16] 0.0, 128
    %793 = vxpose.xlu0.b32.cont [4/16] 0.0, 128
    %794 = vxpose.xlu0.b32.cont [5/16] 0.0, 128
    %795 = vxpose.xlu0.b32.cont [6/16] 0.0, 128
    %796 = vxpose.xlu0.b32.cont [7/16] 0.0, 128
    %797 = vxpose.xlu0.b32.cont [8/16] 0.0, 128
    %798 = vxpose.xlu0.b32.cont [9/16] 0.0, 128
    %799 = vxpose.xlu0.b32.cont [10/16] 0.0, 128
    %800 = vxpose.xlu0.b32.cont [11/16] 0.0, 128
    %801 = vxpose.xlu0.b32.cont [12/16] 0.0, 128
    %802 = vxpose.xlu0.b32.cont [13/16] 0.0, 128
    %803 = vxpose.xlu0.b32.cont [14/16] 0.0, 128
    %804 = vxpose.xlu0.b32.cont [15/16] 0.0, 128
    %805 = vxpose.xlu0.b32.end [16/16] 0.0, 128
    %v806 = vpop.trf.xlu0
    %v807 = vpop.trf.xlu0
    %v808 = vpop.trf.xlu0
    %v809 = vpop.trf.xlu0
    %v810 = vpop.trf.xlu0
    %v811 = vpop.trf.xlu0
    %v812 = vpop.trf.xlu0
    %v813 = vpop.trf.xlu0
    %v814 = vpop.trf.xlu0
    %v815 = vpop.trf.xlu0
    %v816 = vpop.trf.xlu0
    %v817 = vpop.trf.xlu0
    %v818 = vpop.trf.xlu0
    %v819 = vpop.trf.xlu0
    %v820 = vpop.trf.xlu0
    %v821 = vpop.trf.xlu0
    %822 = vxpose.xlu0.b32.start [1/16] %v76, 128
    %823 = vxpose.xlu0.b32.cont [2/16] 0.0, 128
    %824 = vxpose.xlu0.b32.cont [3/16] 0.0, 128
    %825 = vxpose.xlu0.b32.cont [4/16] 0.0, 128
    %826 = vxpose.xlu0.b32.cont [5/16] 0.0, 128
    %827 = vxpose.xlu0.b32.cont [6/16] 0.0, 128
    %828 = vxpose.xlu0.b32.cont [7/16] 0.0, 128
    %829 = vxpose.xlu0.b32.cont [8/16] 0.0, 128
    %830 = vxpose.xlu0.b32.cont [9/16] 0.0, 128
    %831 = vxpose.xlu0.b32.cont [10/16] 0.0, 128
    %832 = vxpose.xlu0.b32.cont [11/16] 0.0, 128
    %833 = vxpose.xlu0.b32.cont [12/16] 0.0, 128
    %834 = vxpose.xlu0.b32.cont [13/16] 0.0, 128
    %835 = vxpose.xlu0.b32.cont [14/16] 0.0, 128
    %836 = vxpose.xlu0.b32.cont [15/16] 0.0, 128
    %837 = vxpose.xlu0.b32.end [16/16] 0.0, 128
    %v838 = vpop.trf.xlu0
    %v839 = vpop.trf.xlu0
    %v840 = vpop.trf.xlu0
    %v841 = vpop.trf.xlu0
    %v842 = vpop.trf.xlu0
    %v843 = vpop.trf.xlu0
    %v844 = vpop.trf.xlu0
    %v845 = vpop.trf.xlu0
    %v846 = vpop.trf.xlu0
    %v847 = vpop.trf.xlu0
    %v848 = vpop.trf.xlu0
    %v849 = vpop.trf.xlu0
    %v850 = vpop.trf.xlu0
    %v851 = vpop.trf.xlu0
    %v852 = vpop.trf.xlu0
    %v853 = vpop.trf.xlu0
    %854 = vxpose.xlu0.b32.start [1/16] %v77, 128
    %855 = vxpose.xlu0.b32.cont [2/16] 0.0, 128
    %856 = vxpose.xlu0.b32.cont [3/16] 0.0, 128
    %857 = vxpose.xlu0.b32.cont [4/16] 0.0, 128
    %858 = vxpose.xlu0.b32.cont [5/16] 0.0, 128
    %859 = vxpose.xlu0.b32.cont [6/16] 0.0, 128
    %860 = vxpose.xlu0.b32.cont [7/16] 0.0, 128
    %861 = vxpose.xlu0.b32.cont [8/16] 0.0, 128
    %862 = vxpose.xlu0.b32.cont [9/16] 0.0, 128
    %863 = vxpose.xlu0.b32.cont [10/16] 0.0, 128
    %864 = vxpose.xlu0.b32.cont [11/16] 0.0, 128
    %865 = vxpose.xlu0.b32.cont [12/16] 0.0, 128
    %866 = vxpose.xlu0.b32.cont [13/16] 0.0, 128
    %867 = vxpose.xlu0.b32.cont [14/16] 0.0, 128
    %868 = vxpose.xlu0.b32.cont [15/16] 0.0, 128
    %869 = vxpose.xlu0.b32.end [16/16] 0.0, 128
    %v870 = vpop.trf.xlu0
    %v871 = vpop.trf.xlu0
    %v872 = vpop.trf.xlu0
    %v873 = vpop.trf.xlu0
    %v874 = vpop.trf.xlu0
    %v875 = vpop.trf.xlu0
    %v876 = vpop.trf.xlu0
    %v877 = vpop.trf.xlu0
    %v878 = vpop.trf.xlu0
    %v879 = vpop.trf.xlu0
    %v880 = vpop.trf.xlu0
    %v881 = vpop.trf.xlu0
    %v882 = vpop.trf.xlu0
    %v883 = vpop.trf.xlu0
    %v884 = vpop.trf.xlu0
    %v885 = vpop.trf.xlu0
    %886 = vxpose.xlu0.b32.start [1/16] %v78, 128
    %887 = vxpose.xlu0.b32.cont [2/16] 0.0, 128
    %888 = vxpose.xlu0.b32.cont [3/16] 0.0, 128
    %889 = vxpose.xlu0.b32.cont [4/16] 0.0, 128
    %890 = vxpose.xlu0.b32.cont [5/16] 0.0, 128
    %891 = vxpose.xlu0.b32.cont [6/16] 0.0, 128
    %892 = vxpose.xlu0.b32.cont [7/16] 0.0, 128
    %893 = vxpose.xlu0.b32.cont [8/16] 0.0, 128
    %894 = vxpose.xlu0.b32.cont [9/16] 0.0, 128
    %895 = vxpose.xlu0.b32.cont [10/16] 0.0, 128
    %896 = vxpose.xlu0.b32.cont [11/16] 0.0, 128
    %897 = vxpose.xlu0.b32.cont [12/16] 0.0, 128
    %898 = vxpose.xlu0.b32.cont [13/16] 0.0, 128
    %899 = vxpose.xlu0.b32.cont [14/16] 0.0, 128
    %900 = vxpose.xlu0.b32.cont [15/16] 0.0, 128
    %901 = vxpose.xlu0.b32.end [16/16] 0.0, 128
    %v902 = vpop.trf.xlu0
    %v903 = vpop.trf.xlu0
    %v904 = vpop.trf.xlu0
    %v905 = vpop.trf.xlu0
    %v906 = vpop.trf.xlu0
    %v907 = vpop.trf.xlu0
    %v908 = vpop.trf.xlu0
    %v909 = vpop.trf.xlu0
    %v910 = vpop.trf.xlu0
    %v911 = vpop.trf.xlu0
    %v912 = vpop.trf.xlu0
    %v913 = vpop.trf.xlu0
    %v914 = vpop.trf.xlu0
    %v915 = vpop.trf.xlu0
    %v916 = vpop.trf.xlu0
    %v917 = vpop.trf.xlu0
    %918 = vxpose.xlu0.b32.start [1/16] %v79, 128
    %919 = vxpose.xlu0.b32.cont [2/16] 0.0, 128
    %920 = vxpose.xlu0.b32.cont [3/16] 0.0, 128
    %921 = vxpose.xlu0.b32.cont [4/16] 0.0, 128
    %922 = vxpose.xlu0.b32.cont [5/16] 0.0, 128
    %923 = vxpose.xlu0.b32.cont [6/16] 0.0, 128
    %924 = vxpose.xlu0.b32.cont [7/16] 0.0, 128
    %925 = vxpose.xlu0.b32.cont [8/16] 0.0, 128
    %926 = vxpose.xlu0.b32.cont [9/16] 0.0, 128
    %927 = vxpose.xlu0.b32.cont [10/16] 0.0, 128
    %928 = vxpose.xlu0.b32.cont [11/16] 0.0, 128
    %929 = vxpose.xlu0.b32.cont [12/16] 0.0, 128
    %930 = vxpose.xlu0.b32.cont [13/16] 0.0, 128
    %931 = vxpose.xlu0.b32.cont [14/16] 0.0, 128
    %932 = vxpose.xlu0.b32.cont [15/16] 0.0, 128
    %933 = vxpose.xlu0.b32.end [16/16] 0.0, 128
    %v934 = vpop.trf.xlu0
    %v935 = vpop.trf.xlu0
    %v936 = vpop.trf.xlu0
    %v937 = vpop.trf.xlu0
    %v938 = vpop.trf.xlu0
    %v939 = vpop.trf.xlu0
    %v940 = vpop.trf.xlu0
    %v941 = vpop.trf.xlu0
    %v942 = vpop.trf.xlu0
    %v943 = vpop.trf.xlu0
    %v944 = vpop.trf.xlu0
    %v945 = vpop.trf.xlu0
    %v946 = vpop.trf.xlu0
    %v947 = vpop.trf.xlu0
    %v948 = vpop.trf.xlu0
    %v949 = vpop.trf.xlu0
    %950 = vxpose.xlu0.b32.start [1/16] %v80, 128
    %951 = vxpose.xlu0.b32.cont [2/16] 0.0, 128
    %952 = vxpose.xlu0.b32.cont [3/16] 0.0, 128
    %953 = vxpose.xlu0.b32.cont [4/16] 0.0, 128
    %954 = vxpose.xlu0.b32.cont [5/16] 0.0, 128
    %955 = vxpose.xlu0.b32.cont [6/16] 0.0, 128
    %956 = vxpose.xlu0.b32.cont [7/16] 0.0, 128
    %957 = vxpose.xlu0.b32.cont [8/16] 0.0, 128
    %958 = vxpose.xlu0.b32.cont [9/16] 0.0, 128
    %959 = vxpose.xlu0.b32.cont [10/16] 0.0, 128
    %960 = vxpose.xlu0.b32.cont [11/16] 0.0, 128
    %961 = vxpose.xlu0.b32.cont [12/16] 0.0, 128
    %962 = vxpose.xlu0.b32.cont [13/16] 0.0, 128
    %963 = vxpose.xlu0.b32.cont [14/16] 0.0, 128
    %964 = vxpose.xlu0.b32.cont [15/16] 0.0, 128
    %965 = vxpose.xlu0.b32.end [16/16] 0.0, 128
    %v966 = vpop.trf.xlu0
    %v967 = vpop.trf.xlu0
    %v968 = vpop.trf.xlu0
    %v969 = vpop.trf.xlu0
    %v970 = vpop.trf.xlu0
    %v971 = vpop.trf.xlu0
    %v972 = vpop.trf.xlu0
    %v973 = vpop.trf.xlu0
    %v974 = vpop.trf.xlu0
    %v975 = vpop.trf.xlu0
    %v976 = vpop.trf.xlu0
    %v977 = vpop.trf.xlu0
    %v978 = vpop.trf.xlu0
    %v979 = vpop.trf.xlu0
    %v980 = vpop.trf.xlu0
    %v981 = vpop.trf.xlu0
    %982 = vxpose.xlu0.b32.start [1/16] %v81, 128
    %983 = vxpose.xlu0.b32.cont [2/16] 0.0, 128
    %984 = vxpose.xlu0.b32.cont [3/16] 0.0, 128
    %985 = vxpose.xlu0.b32.cont [4/16] 0.0, 128
    %986 = vxpose.xlu0.b32.cont [5/16] 0.0, 128
    %987 = vxpose.xlu0.b32.cont [6/16] 0.0, 128
    %988 = vxpose.xlu0.b32.cont [7/16] 0.0, 128
    %989 = vxpose.xlu0.b32.cont [8/16] 0.0, 128
    %990 = vxpose.xlu0.b32.cont [9/16] 0.0, 128
    %991 = vxpose.xlu0.b32.cont [10/16] 0.0, 128
    %992 = vxpose.xlu0.b32.cont [11/16] 0.0, 128
    %993 = vxpose.xlu0.b32.cont [12/16] 0.0, 128
    %994 = vxpose.xlu0.b32.cont [13/16] 0.0, 128
    %995 = vxpose.xlu0.b32.cont [14/16] 0.0, 128
    %996 = vxpose.xlu0.b32.cont [15/16] 0.0, 128
    %997 = vxpose.xlu0.b32.end [16/16] 0.0, 128
    %v998 = vpop.trf.xlu0
    %v999 = vpop.trf.xlu0
    %v1000 = vpop.trf.xlu0
    %v1001 = vpop.trf.xlu0
    %v1002 = vpop.trf.xlu0
    %v1003 = vpop.trf.xlu0
    %v1004 = vpop.trf.xlu0
    %v1005 = vpop.trf.xlu0
    %v1006 = vpop.trf.xlu0
    %v1007 = vpop.trf.xlu0
    %v1008 = vpop.trf.xlu0
    %v1009 = vpop.trf.xlu0
    %v1010 = vpop.trf.xlu0
    %v1011 = vpop.trf.xlu0
    %v1012 = vpop.trf.xlu0
    %v1013 = vpop.trf.xlu0
    %1014 = vxpose.xlu0.b32.start [1/16] %v82, 128
    %1015 = vxpose.xlu0.b32.cont [2/16] 0.0, 128
    %1016 = vxpose.xlu0.b32.cont [3/16] 0.0, 128
    %1017 = vxpose.xlu0.b32.cont [4/16] 0.0, 128
    %1018 = vxpose.xlu0.b32.cont [5/16] 0.0, 128
    %1019 = vxpose.xlu0.b32.cont [6/16] 0.0, 128
    %1020 = vxpose.xlu0.b32.cont [7/16] 0.0, 128
    %1021 = vxpose.xlu0.b32.cont [8/16] 0.0, 128
    %1022 = vxpose.xlu0.b32.cont [9/16] 0.0, 128
    %1023 = vxpose.xlu0.b32.cont [10/16] 0.0, 128
    %1024 = vxpose.xlu0.b32.cont [11/16] 0.0, 128
    %1025 = vxpose.xlu0.b32.cont [12/16] 0.0, 128
    %1026 = vxpose.xlu0.b32.cont [13/16] 0.0, 128
    %1027 = vxpose.xlu0.b32.cont [14/16] 0.0, 128
    %1028 = vxpose.xlu0.b32.cont [15/16] 0.0, 128
    %1029 = vxpose.xlu0.b32.end [16/16] 0.0, 128
    %v1030 = vpop.trf.xlu0
    %v1031 = vpop.trf.xlu0
    %v1032 = vpop.trf.xlu0
    %v1033 = vpop.trf.xlu0
    %v1034 = vpop.trf.xlu0
    %v1035 = vpop.trf.xlu0
    %v1036 = vpop.trf.xlu0
    %v1037 = vpop.trf.xlu0
    %v1038 = vpop.trf.xlu0
    %v1039 = vpop.trf.xlu0
    %v1040 = vpop.trf.xlu0
    %v1041 = vpop.trf.xlu0
    %v1042 = vpop.trf.xlu0
    %v1043 = vpop.trf.xlu0
    %v1044 = vpop.trf.xlu0
    %v1045 = vpop.trf.xlu0
    %1046 = vxpose.xlu0.b32.start [1/16] %v83, 128
    %1047 = vxpose.xlu0.b32.cont [2/16] 0.0, 128
    %1048 = vxpose.xlu0.b32.cont [3/16] 0.0, 128
    %1049 = vxpose.xlu0.b32.cont [4/16] 0.0, 128
    %1050 = vxpose.xlu0.b32.cont [5/16] 0.0, 128
    %1051 = vxpose.xlu0.b32.cont [6/16] 0.0, 128
    %1052 = vxpose.xlu0.b32.cont [7/16] 0.0, 128
    %1053 = vxpose.xlu0.b32.cont [8/16] 0.0, 128
    %1054 = vxpose.xlu0.b32.cont [9/16] 0.0, 128
    %1055 = vxpose.xlu0.b32.cont [10/16] 0.0, 128
    %1056 = vxpose.xlu0.b32.cont [11/16] 0.0, 128
    %1057 = vxpose.xlu0.b32.cont [12/16] 0.0, 128
    %1058 = vxpose.xlu0.b32.cont [13/16] 0.0, 128
    %1059 = vxpose.xlu0.b32.cont [14/16] 0.0, 128
    %1060 = vxpose.xlu0.b32.cont [15/16] 0.0, 128
    %1061 = vxpose.xlu0.b32.end [16/16] 0.0, 128
    %v1062 = vpop.trf.xlu0
    %v1063 = vpop.trf.xlu0
    %v1064 = vpop.trf.xlu0
    %v1065 = vpop.trf.xlu0
    %v1066 = vpop.trf.xlu0
    %v1067 = vpop.trf.xlu0
    %v1068 = vpop.trf.xlu0
    %v1069 = vpop.trf.xlu0
    %v1070 = vpop.trf.xlu0
    %v1071 = vpop.trf.xlu0
    %v1072 = vpop.trf.xlu0
    %v1073 = vpop.trf.xlu0
    %v1074 = vpop.trf.xlu0
    %v1075 = vpop.trf.xlu0
    %v1076 = vpop.trf.xlu0
    %v1077 = vpop.trf.xlu0
    %1078 = vxpose.xlu0.b32.start [1/16] %v84, 128
    %1079 = vxpose.xlu0.b32.cont [2/16] 0.0, 128
    %1080 = vxpose.xlu0.b32.cont [3/16] 0.0, 128
    %1081 = vxpose.xlu0.b32.cont [4/16] 0.0, 128
    %1082 = vxpose.xlu0.b32.cont [5/16] 0.0, 128
    %1083 = vxpose.xlu0.b32.cont [6/16] 0.0, 128
    %1084 = vxpose.xlu0.b32.cont [7/16] 0.0, 128
    %1085 = vxpose.xlu0.b32.cont [8/16] 0.0, 128
    %1086 = vxpose.xlu0.b32.cont [9/16] 0.0, 128
    %1087 = vxpose.xlu0.b32.cont [10/16] 0.0, 128
    %1088 = vxpose.xlu0.b32.cont [11/16] 0.0, 128
    %1089 = vxpose.xlu0.b32.cont [12/16] 0.0, 128
    %1090 = vxpose.xlu0.b32.cont [13/16] 0.0, 128
    %1091 = vxpose.xlu0.b32.cont [14/16] 0.0, 128
    %1092 = vxpose.xlu0.b32.cont [15/16] 0.0, 128
    %1093 = vxpose.xlu0.b32.end [16/16] 0.0, 128
    %v1094 = vpop.trf.xlu0
    %v1095 = vpop.trf.xlu0
    %v1096 = vpop.trf.xlu0
    %v1097 = vpop.trf.xlu0
    %v1098 = vpop.trf.xlu0
    %v1099 = vpop.trf.xlu0
    %v1100 = vpop.trf.xlu0
    %v1101 = vpop.trf.xlu0
    %v1102 = vpop.trf.xlu0
    %v1103 = vpop.trf.xlu0
    %v1104 = vpop.trf.xlu0
    %v1105 = vpop.trf.xlu0
    %v1106 = vpop.trf.xlu0
    %v1107 = vpop.trf.xlu0
    %v1108 = vpop.trf.xlu0
    %v1109 = vpop.trf.xlu0
    %1110 = vxpose.xlu0.b32.start [1/16] %v85, 128
    %1111 = vxpose.xlu0.b32.cont [2/16] 0.0, 128
    %1112 = vxpose.xlu0.b32.cont [3/16] 0.0, 128
    %1113 = vxpose.xlu0.b32.cont [4/16] 0.0, 128
    %1114 = vxpose.xlu0.b32.cont [5/16] 0.0, 128
    %1115 = vxpose.xlu0.b32.cont [6/16] 0.0, 128
    %1116 = vxpose.xlu0.b32.cont [7/16] 0.0, 128
    %1117 = vxpose.xlu0.b32.cont [8/16] 0.0, 128
    %1118 = vxpose.xlu0.b32.cont [9/16] 0.0, 128
    %1119 = vxpose.xlu0.b32.cont [10/16] 0.0, 128
    %1120 = vxpose.xlu0.b32.cont [11/16] 0.0, 128
    %1121 = vxpose.xlu0.b32.cont [12/16] 0.0, 128
    %1122 = vxpose.xlu0.b32.cont [13/16] 0.0, 128
    %1123 = vxpose.xlu0.b32.cont [14/16] 0.0, 128
    %1124 = vxpose.xlu0.b32.cont [15/16] 0.0, 128
    %1125 = vxpose.xlu0.b32.end [16/16] 0.0, 128
    %v1126 = vpop.trf.xlu0
    %v1127 = vpop.trf.xlu0
    %v1128 = vpop.trf.xlu0
    %v1129 = vpop.trf.xlu0
    %v1130 = vpop.trf.xlu0
    %v1131 = vpop.trf.xlu0
    %v1132 = vpop.trf.xlu0
    %v1133 = vpop.trf.xlu0
    %v1134 = vpop.trf.xlu0
    %v1135 = vpop.trf.xlu0
    %v1136 = vpop.trf.xlu0
    %v1137 = vpop.trf.xlu0
    %v1138 = vpop.trf.xlu0
    %v1139 = vpop.trf.xlu0
    %v1140 = vpop.trf.xlu0
    %v1141 = vpop.trf.xlu0
    %v1142 = vcombine.low %v134, %v198
    %v1143 = vcombine.high %v134, %v198
    %v1145 = vunpack.c.l.s4 1983009808
    %v1146 = vunpack.c.0.s8 %v1145
    %v1147 = vlaneseq
    %v1148 = vshrl.u32 %v1147, 7
    %v1149 = vsub.s32 %v1146, %v1148
    %v1150 = vrot.slane %v1142, %v1149
    %v1152 = vunpack.c.l.s4 1983009808
    %v1153 = vunpack.c.0.s8 %v1152
    %v1154 = vlaneseq
    %v1155 = vshrl.u32 %v1154, 7
    %v1156 = vsub.s32 %v1153, %v1155
    %v1157 = vrot.slane %v1143, %v1156
    %v1158 = vcombine.low %v166, %v230
    %v1159 = vcombine.high %v166, %v230
    %v1161 = vunpack.c.l.s4 1983009808
    %v1162 = vunpack.c.0.s8 %v1161
    %v1163 = vlaneseq
    %v1164 = vshrl.u32 %v1163, 7
    %v1165 = vsub.s32 %v1162, %v1164
    %v1166 = vrot.slane %v1158, %v1165
    %v1168 = vunpack.c.l.s4 1983009808
    %v1169 = vunpack.c.0.s8 %v1168
    %v1170 = vlaneseq
    %v1171 = vshrl.u32 %v1170, 7
    %v1172 = vsub.s32 %v1169, %v1171
    %v1173 = vrot.slane %v1159, %v1172
    %v1174 = vcombine.low %v262, %v326
    %v1175 = vcombine.high %v262, %v326
    %v1177 = vunpack.c.l.s4 1983009808
    %v1178 = vunpack.c.0.s8 %v1177
    %v1179 = vlaneseq
    %v1180 = vshrl.u32 %v1179, 7
    %v1181 = vsub.s32 %v1178, %v1180
    %v1182 = vrot.slane %v1174, %v1181
    %v1184 = vunpack.c.l.s4 1983009808
    %v1185 = vunpack.c.0.s8 %v1184
    %v1186 = vlaneseq
    %v1187 = vshrl.u32 %v1186, 7
    %v1188 = vsub.s32 %v1185, %v1187
    %v1189 = vrot.slane %v1175, %v1188
    %v1190 = vcombine.low %v294, %v358
    %v1191 = vcombine.high %v294, %v358
    %v1193 = vunpack.c.l.s4 1983009808
    %v1194 = vunpack.c.0.s8 %v1193
    %v1195 = vlaneseq
    %v1196 = vshrl.u32 %v1195, 7
    %v1197 = vsub.s32 %v1194, %v1196
    %v1198 = vrot.slane %v1190, %v1197
    %v1200 = vunpack.c.l.s4 1983009808
    %v1201 = vunpack.c.0.s8 %v1200
    %v1202 = vlaneseq
    %v1203 = vshrl.u32 %v1202, 7
    %v1204 = vsub.s32 %v1201, %v1203
    %v1205 = vrot.slane %v1191, %v1204
    %v1206 = vcombine.low %v1150, %v1166
    %v1207 = vcombine.high %v1150, %v1166
    %v1209 = vunpack.c.l.s4 1934713408
    %v1210 = vunpack.c.0.s8 %v1209
    %v1211 = vlaneseq
    %v1212 = vshrl.u32 %v1211, 7
    %v1213 = vsub.s32 %v1210, %v1212
    %v1214 = vrot.slane %v1206, %v1213
    %v1216 = vunpack.c.l.s4 1934713408
    %v1217 = vunpack.c.0.s8 %v1216
    %v1218 = vlaneseq
    %v1219 = vshrl.u32 %v1218, 7
    %v1220 = vsub.s32 %v1217, %v1219
    %v1221 = vrot.slane %v1207, %v1220
    %v1222 = vcombine.low %v1157, %v1173
    %v1223 = vcombine.high %v1157, %v1173
    %v1225 = vunpack.c.l.s4 1934713408
    %v1226 = vunpack.c.0.s8 %v1225
    %v1227 = vlaneseq
    %v1228 = vshrl.u32 %v1227, 7
    %v1229 = vsub.s32 %v1226, %v1228
    %v1230 = vrot.slane %v1222, %v1229
    %v1232 = vunpack.c.l.s4 1934713408
    %v1233 = vunpack.c.0.s8 %v1232
    %v1234 = vlaneseq
    %v1235 = vshrl.u32 %v1234, 7
    %v1236 = vsub.s32 %v1233, %v1235
    %v1237 = vrot.slane %v1223, %v1236
    %v1238 = vcombine.low %v1182, %v1198
    %v1239 = vcombine.high %v1182, %v1198
    %v1241 = vunpack.c.l.s4 1934713408
    %v1242 = vunpack.c.0.s8 %v1241
    %v1243 = vlaneseq
    %v1244 = vshrl.u32 %v1243, 7
    %v1245 = vsub.s32 %v1242, %v1244
    %v1246 = vrot.slane %v1238, %v1245
    %v1248 = vunpack.c.l.s4 1934713408
    %v1249 = vunpack.c.0.s8 %v1248
    %v1250 = vlaneseq
    %v1251 = vshrl.u32 %v1250, 7
    %v1252 = vsub.s32 %v1249, %v1251
    %v1253 = vrot.slane %v1239, %v1252
    %v1254 = vcombine.low %v1189, %v1205
    %v1255 = vcombine.high %v1189, %v1205
    %v1257 = vunpack.c.l.s4 1934713408
    %v1258 = vunpack.c.0.s8 %v1257
    %v1259 = vlaneseq
    %v1260 = vshrl.u32 %v1259, 7
    %v1261 = vsub.s32 %v1258, %v1260
    %v1262 = vrot.slane %v1254, %v1261
    %v1264 = vunpack.c.l.s4 1934713408
    %v1265 = vunpack.c.0.s8 %v1264
    %v1266 = vlaneseq
    %v1267 = vshrl.u32 %v1266, 7
    %v1268 = vsub.s32 %v1265, %v1267
    %v1269 = vrot.slane %v1255, %v1268
    %v1270 = vcombine.low %v1214, %v1246
    %v1271 = vcombine.high %v1214, %v1246
    %v1272 = vcombine.low %v1221, %v1253
    %v1273 = vcombine.high %v1221, %v1253
    %v1274 = vcombine.low %v1230, %v1262
    %v1275 = vcombine.high %v1230, %v1262
    %v1276 = vcombine.low %v1237, %v1269
    %v1277 = vcombine.high %v1237, %v1269
    %v1278 = vcombine.low %v390, %v454
    %v1279 = vcombine.high %v390, %v454
    %v1281 = vunpack.c.l.s4 1983009808
    %v1282 = vunpack.c.0.s8 %v1281
    %v1283 = vlaneseq
    %v1284 = vshrl.u32 %v1283, 7
    %v1285 = vsub.s32 %v1282, %v1284
    %v1286 = vrot.slane %v1278, %v1285
    %v1288 = vunpack.c.l.s4 1983009808
    %v1289 = vunpack.c.0.s8 %v1288
    %v1290 = vlaneseq
    %v1291 = vshrl.u32 %v1290, 7
    %v1292 = vsub.s32 %v1289, %v1291
    %v1293 = vrot.slane %v1279, %v1292
    %v1294 = vcombine.low %v422, %v486
    %v1295 = vcombine.high %v422, %v486
    %v1297 = vunpack.c.l.s4 1983009808
    %v1298 = vunpack.c.0.s8 %v1297
    %v1299 = vlaneseq
    %v1300 = vshrl.u32 %v1299, 7
    %v1301 = vsub.s32 %v1298, %v1300
    %v1302 = vrot.slane %v1294, %v1301
    %v1304 = vunpack.c.l.s4 1983009808
    %v1305 = vunpack.c.0.s8 %v1304
    %v1306 = vlaneseq
    %v1307 = vshrl.u32 %v1306, 7
    %v1308 = vsub.s32 %v1305, %v1307
    %v1309 = vrot.slane %v1295, %v1308
    %v1310 = vcombine.low %v518, %v582
    %v1311 = vcombine.high %v518, %v582
    %v1313 = vunpack.c.l.s4 1983009808
    %v1314 = vunpack.c.0.s8 %v1313
    %v1315 = vlaneseq
    %v1316 = vshrl.u32 %v1315, 7
    %v1317 = vsub.s32 %v1314, %v1316
    %v1318 = vrot.slane %v1310, %v1317
    %v1320 = vunpack.c.l.s4 1983009808
    %v1321 = vunpack.c.0.s8 %v1320
    %v1322 = vlaneseq
    %v1323 = vshrl.u32 %v1322, 7
    %v1324 = vsub.s32 %v1321, %v1323
    %v1325 = vrot.slane %v1311, %v1324
    %v1326 = vcombine.low %v550, %v614
    %v1327 = vcombine.high %v550, %v614
    %v1329 = vunpack.c.l.s4 1983009808
    %v1330 = vunpack.c.0.s8 %v1329
    %v1331 = vlaneseq
    %v1332 = vshrl.u32 %v1331, 7
    %v1333 = vsub.s32 %v1330, %v1332
    %v1334 = vrot.slane %v1326, %v1333
    %v1336 = vunpack.c.l.s4 1983009808
    %v1337 = vunpack.c.0.s8 %v1336
    %v1338 = vlaneseq
    %v1339 = vshrl.u32 %v1338, 7
    %v1340 = vsub.s32 %v1337, %v1339
    %v1341 = vrot.slane %v1327, %v1340
    %v1342 = vcombine.low %v1286, %v1302
    %v1343 = vcombine.high %v1286, %v1302
    %v1345 = vunpack.c.l.s4 1934713408
    %v1346 = vunpack.c.0.s8 %v1345
    %v1347 = vlaneseq
    %v1348 = vshrl.u32 %v1347, 7
    %v1349 = vsub.s32 %v1346, %v1348
    %v1350 = vrot.slane %v1342, %v1349
    %v1352 = vunpack.c.l.s4 1934713408
    %v1353 = vunpack.c.0.s8 %v1352
    %v1354 = vlaneseq
    %v1355 = vshrl.u32 %v1354, 7
    %v1356 = vsub.s32 %v1353, %v1355
    %v1357 = vrot.slane %v1343, %v1356
    %v1358 = vcombine.low %v1293, %v1309
    %v1359 = vcombine.high %v1293, %v1309
    %v1361 = vunpack.c.l.s4 1934713408
    %v1362 = vunpack.c.0.s8 %v1361
    %v1363 = vlaneseq
    %v1364 = vshrl.u32 %v1363, 7
    %v1365 = vsub.s32 %v1362, %v1364
    %v1366 = vrot.slane %v1358, %v1365
    %v1368 = vunpack.c.l.s4 1934713408
    %v1369 = vunpack.c.0.s8 %v1368
    %v1370 = vlaneseq
    %v1371 = vshrl.u32 %v1370, 7
    %v1372 = vsub.s32 %v1369, %v1371
    %v1373 = vrot.slane %v1359, %v1372
    %v1374 = vcombine.low %v1318, %v1334
    %v1375 = vcombine.high %v1318, %v1334
    %v1377 = vunpack.c.l.s4 1934713408
    %v1378 = vunpack.c.0.s8 %v1377
    %v1379 = vlaneseq
    %v1380 = vshrl.u32 %v1379, 7
    %v1381 = vsub.s32 %v1378, %v1380
    %v1382 = vrot.slane %v1374, %v1381
    %v1384 = vunpack.c.l.s4 1934713408
    %v1385 = vunpack.c.0.s8 %v1384
    %v1386 = vlaneseq
    %v1387 = vshrl.u32 %v1386, 7
    %v1388 = vsub.s32 %v1385, %v1387
    %v1389 = vrot.slane %v1375, %v1388
    %v1390 = vcombine.low %v1325, %v1341
    %v1391 = vcombine.high %v1325, %v1341
    %v1393 = vunpack.c.l.s4 1934713408
    %v1394 = vunpack.c.0.s8 %v1393
    %v1395 = vlaneseq
    %v1396 = vshrl.u32 %v1395, 7
    %v1397 = vsub.s32 %v1394, %v1396
    %v1398 = vrot.slane %v1390, %v1397
    %v1400 = vunpack.c.l.s4 1934713408
    %v1401 = vunpack.c.0.s8 %v1400
    %v1402 = vlaneseq
    %v1403 = vshrl.u32 %v1402, 7
    %v1404 = vsub.s32 %v1401, %v1403
    %v1405 = vrot.slane %v1391, %v1404
    %v1406 = vcombine.low %v1350, %v1382
    %v1407 = vcombine.high %v1350, %v1382
    %v1408 = vcombine.low %v1357, %v1389
    %v1409 = vcombine.high %v1357, %v1389
    %v1410 = vcombine.low %v1366, %v1398
    %v1411 = vcombine.high %v1366, %v1398
    %v1412 = vcombine.low %v1373, %v1405
    %v1413 = vcombine.high %v1373, %v1405
    %v1414 = vcombine.low %v646, %v710
    %v1415 = vcombine.high %v646, %v710
    %v1417 = vunpack.c.l.s4 1983009808
    %v1418 = vunpack.c.0.s8 %v1417
    %v1419 = vlaneseq
    %v1420 = vshrl.u32 %v1419, 7
    %v1421 = vsub.s32 %v1418, %v1420
    %v1422 = vrot.slane %v1414, %v1421
    %v1424 = vunpack.c.l.s4 1983009808
    %v1425 = vunpack.c.0.s8 %v1424
    %v1426 = vlaneseq
    %v1427 = vshrl.u32 %v1426, 7
    %v1428 = vsub.s32 %v1425, %v1427
    %v1429 = vrot.slane %v1415, %v1428
    %v1430 = vcombine.low %v678, %v742
    %v1431 = vcombine.high %v678, %v742
    %v1433 = vunpack.c.l.s4 1983009808
    %v1434 = vunpack.c.0.s8 %v1433
    %v1435 = vlaneseq
    %v1436 = vshrl.u32 %v1435, 7
    %v1437 = vsub.s32 %v1434, %v1436
    %v1438 = vrot.slane %v1430, %v1437
    %v1440 = vunpack.c.l.s4 1983009808
    %v1441 = vunpack.c.0.s8 %v1440
    %v1442 = vlaneseq
    %v1443 = vshrl.u32 %v1442, 7
    %v1444 = vsub.s32 %v1441, %v1443
    %v1445 = vrot.slane %v1431, %v1444
    %v1446 = vcombine.low %v774, %v838
    %v1447 = vcombine.high %v774, %v838
    %v1449 = vunpack.c.l.s4 1983009808
    %v1450 = vunpack.c.0.s8 %v1449
    %v1451 = vlaneseq
    %v1452 = vshrl.u32 %v1451, 7
    %v1453 = vsub.s32 %v1450, %v1452
    %v1454 = vrot.slane %v1446, %v1453
    %v1456 = vunpack.c.l.s4 1983009808
    %v1457 = vunpack.c.0.s8 %v1456
    %v1458 = vlaneseq
    %v1459 = vshrl.u32 %v1458, 7
    %v1460 = vsub.s32 %v1457, %v1459
    %v1461 = vrot.slane %v1447, %v1460
    %v1462 = vcombine.low %v806, %v870
    %v1463 = vcombine.high %v806, %v870
    %v1465 = vunpack.c.l.s4 1983009808
    %v1466 = vunpack.c.0.s8 %v1465
    %v1467 = vlaneseq
    %v1468 = vshrl.u32 %v1467, 7
    %v1469 = vsub.s32 %v1466, %v1468
    %v1470 = vrot.slane %v1462, %v1469
    %v1472 = vunpack.c.l.s4 1983009808
    %v1473 = vunpack.c.0.s8 %v1472
    %v1474 = vlaneseq
    %v1475 = vshrl.u32 %v1474, 7
    %v1476 = vsub.s32 %v1473, %v1475
    %v1477 = vrot.slane %v1463, %v1476
    %v1478 = vcombine.low %v1422, %v1438
    %v1479 = vcombine.high %v1422, %v1438
    %v1481 = vunpack.c.l.s4 1934713408
    %v1482 = vunpack.c.0.s8 %v1481
    %v1483 = vlaneseq
    %v1484 = vshrl.u32 %v1483, 7
    %v1485 = vsub.s32 %v1482, %v1484
    %v1486 = vrot.slane %v1478, %v1485
    %v1488 = vunpack.c.l.s4 1934713408
    %v1489 = vunpack.c.0.s8 %v1488
    %v1490 = vlaneseq
    %v1491 = vshrl.u32 %v1490, 7
    %v1492 = vsub.s32 %v1489, %v1491
    %v1493 = vrot.slane %v1479, %v1492
    %v1494 = vcombine.low %v1429, %v1445
    %v1495 = vcombine.high %v1429, %v1445
    %v1497 = vunpack.c.l.s4 1934713408
    %v1498 = vunpack.c.0.s8 %v1497
    %v1499 = vlaneseq
    %v1500 = vshrl.u32 %v1499, 7
    %v1501 = vsub.s32 %v1498, %v1500
    %v1502 = vrot.slane %v1494, %v1501
    %v1504 = vunpack.c.l.s4 1934713408
    %v1505 = vunpack.c.0.s8 %v1504
    %v1506 = vlaneseq
    %v1507 = vshrl.u32 %v1506, 7
    %v1508 = vsub.s32 %v1505, %v1507
    %v1509 = vrot.slane %v1495, %v1508
    %v1510 = vcombine.low %v1454, %v1470
    %v1511 = vcombine.high %v1454, %v1470
    %v1513 = vunpack.c.l.s4 1934713408
    %v1514 = vunpack.c.0.s8 %v1513
    %v1515 = vlaneseq
    %v1516 = vshrl.u32 %v1515, 7
    %v1517 = vsub.s32 %v1514, %v1516
    %v1518 = vrot.slane %v1510, %v1517
    %v1520 = vunpack.c.l.s4 1934713408
    %v1521 = vunpack.c.0.s8 %v1520
    %v1522 = vlaneseq
    %v1523 = vshrl.u32 %v1522, 7
    %v1524 = vsub.s32 %v1521, %v1523
    %v1525 = vrot.slane %v1511, %v1524
    %v1526 = vcombine.low %v1461, %v1477
    %v1527 = vcombine.high %v1461, %v1477
    %v1529 = vunpack.c.l.s4 1934713408
    %v1530 = vunpack.c.0.s8 %v1529
    %v1531 = vlaneseq
    %v1532 = vshrl.u32 %v1531, 7
    %v1533 = vsub.s32 %v1530, %v1532
    %v1534 = vrot.slane %v1526, %v1533
    %v1536 = vunpack.c.l.s4 1934713408
    %v1537 = vunpack.c.0.s8 %v1536
    %v1538 = vlaneseq
    %v1539 = vshrl.u32 %v1538, 7
    %v1540 = vsub.s32 %v1537, %v1539
    %v1541 = vrot.slane %v1527, %v1540
    %v1542 = vcombine.low %v1486, %v1518
    %v1543 = vcombine.high %v1486, %v1518
    %v1544 = vcombine.low %v1493, %v1525
    %v1545 = vcombine.high %v1493, %v1525
    %v1546 = vcombine.low %v1502, %v1534
    %v1547 = vcombine.high %v1502, %v1534
    %v1548 = vcombine.low %v1509, %v1541
    %v1549 = vcombine.high %v1509, %v1541
    %v1550 = vcombine.low %v902, %v966
    %v1551 = vcombine.high %v902, %v966
    %v1553 = vunpack.c.l.s4 1983009808
    %v1554 = vunpack.c.0.s8 %v1553
    %v1555 = vlaneseq
    %v1556 = vshrl.u32 %v1555, 7
    %v1557 = vsub.s32 %v1554, %v1556
    %v1558 = vrot.slane %v1550, %v1557
    %v1560 = vunpack.c.l.s4 1983009808
    %v1561 = vunpack.c.0.s8 %v1560
    %v1562 = vlaneseq
    %v1563 = vshrl.u32 %v1562, 7
    %v1564 = vsub.s32 %v1561, %v1563
    %v1565 = vrot.slane %v1551, %v1564
    %v1566 = vcombine.low %v934, %v998
    %v1567 = vcombine.high %v934, %v998
    %v1569 = vunpack.c.l.s4 1983009808
    %v1570 = vunpack.c.0.s8 %v1569
    %v1571 = vlaneseq
    %v1572 = vshrl.u32 %v1571, 7
    %v1573 = vsub.s32 %v1570, %v1572
    %v1574 = vrot.slane %v1566, %v1573
    %v1576 = vunpack.c.l.s4 1983009808
    %v1577 = vunpack.c.0.s8 %v1576
    %v1578 = vlaneseq
    %v1579 = vshrl.u32 %v1578, 7
    %v1580 = vsub.s32 %v1577, %v1579
    %v1581 = vrot.slane %v1567, %v1580
    %v1582 = vcombine.low %v1030, %v1094
    %v1583 = vcombine.high %v1030, %v1094
    %v1585 = vunpack.c.l.s4 1983009808
    %v1586 = vunpack.c.0.s8 %v1585
    %v1587 = vlaneseq
    %v1588 = vshrl.u32 %v1587, 7
    %v1589 = vsub.s32 %v1586, %v1588
    %v1590 = vrot.slane %v1582, %v1589
    %v1592 = vunpack.c.l.s4 1983009808
    %v1593 = vunpack.c.0.s8 %v1592
    %v1594 = vlaneseq
    %v1595 = vshrl.u32 %v1594, 7
    %v1596 = vsub.s32 %v1593, %v1595
    %v1597 = vrot.slane %v1583, %v1596
    %v1598 = vcombine.low %v1062, %v1126
    %v1599 = vcombine.high %v1062, %v1126
    %v1601 = vunpack.c.l.s4 1983009808
    %v1602 = vunpack.c.0.s8 %v1601
    %v1603 = vlaneseq
    %v1604 = vshrl.u32 %v1603, 7
    %v1605 = vsub.s32 %v1602, %v1604
    %v1606 = vrot.slane %v1598, %v1605
    %v1608 = vunpack.c.l.s4 1983009808
    %v1609 = vunpack.c.0.s8 %v1608
    %v1610 = vlaneseq
    %v1611 = vshrl.u32 %v1610, 7
    %v1612 = vsub.s32 %v1609, %v1611
    %v1613 = vrot.slane %v1599, %v1612
    %v1614 = vcombine.low %v1558, %v1574
    %v1615 = vcombine.high %v1558, %v1574
    %v1617 = vunpack.c.l.s4 1934713408
    %v1618 = vunpack.c.0.s8 %v1617
    %v1619 = vlaneseq
    %v1620 = vshrl.u32 %v1619, 7
    %v1621 = vsub.s32 %v1618, %v1620
    %v1622 = vrot.slane %v1614, %v1621
    %v1624 = vunpack.c.l.s4 1934713408
    %v1625 = vunpack.c.0.s8 %v1624
    %v1626 = vlaneseq
    %v1627 = vshrl.u32 %v1626, 7
    %v1628 = vsub.s32 %v1625, %v1627
    %v1629 = vrot.slane %v1615, %v1628
    %v1630 = vcombine.low %v1565, %v1581
    %v1631 = vcombine.high %v1565, %v1581
    %v1633 = vunpack.c.l.s4 1934713408
    %v1634 = vunpack.c.0.s8 %v1633
    %v1635 = vlaneseq
    %v1636 = vshrl.u32 %v1635, 7
    %v1637 = vsub.s32 %v1634, %v1636
    %v1638 = vrot.slane %v1630, %v1637
    %v1640 = vunpack.c.l.s4 1934713408
    %v1641 = vunpack.c.0.s8 %v1640
    %v1642 = vlaneseq
    %v1643 = vshrl.u32 %v1642, 7
    %v1644 = vsub.s32 %v1641, %v1643
    %v1645 = vrot.slane %v1631, %v1644
    %v1646 = vcombine.low %v1590, %v1606
    %v1647 = vcombine.high %v1590, %v1606
    %v1649 = vunpack.c.l.s4 1934713408
    %v1650 = vunpack.c.0.s8 %v1649
    %v1651 = vlaneseq
    %v1652 = vshrl.u32 %v1651, 7
    %v1653 = vsub.s32 %v1650, %v1652
    %v1654 = vrot.slane %v1646, %v1653
    %v1656 = vunpack.c.l.s4 1934713408
    %v1657 = vunpack.c.0.s8 %v1656
    %v1658 = vlaneseq
    %v1659 = vshrl.u32 %v1658, 7
    %v1660 = vsub.s32 %v1657, %v1659
    %v1661 = vrot.slane %v1647, %v1660
    %v1662 = vcombine.low %v1597, %v1613
    %v1663 = vcombine.high %v1597, %v1613
    %v1665 = vunpack.c.l.s4 1934713408
    %v1666 = vunpack.c.0.s8 %v1665
    %v1667 = vlaneseq
    %v1668 = vshrl.u32 %v1667, 7
    %v1669 = vsub.s32 %v1666, %v1668
    %v1670 = vrot.slane %v1662, %v1669
    %v1672 = vunpack.c.l.s4 1934713408
    %v1673 = vunpack.c.0.s8 %v1672
    %v1674 = vlaneseq
    %v1675 = vshrl.u32 %v1674, 7
    %v1676 = vsub.s32 %v1673, %v1675
    %v1677 = vrot.slane %v1663, %v1676
    %v1678 = vcombine.low %v1622, %v1654
    %v1679 = vcombine.high %v1622, %v1654
    %v1680 = vcombine.low %v1629, %v1661
    %v1681 = vcombine.high %v1629, %v1661
    %v1682 = vcombine.low %v1638, %v1670
    %v1683 = vcombine.high %v1638, %v1670
    %v1684 = vcombine.low %v1645, %v1677
    %v1685 = vcombine.high %v1645, %v1677
    %v1686 = vcombine.low %v135, %v199
    %v1687 = vcombine.high %v135, %v199
    %v1689 = vunpack.c.l.s4 1983009808
    %v1690 = vunpack.c.0.s8 %v1689
    %v1691 = vlaneseq
    %v1692 = vshrl.u32 %v1691, 7
    %v1693 = vsub.s32 %v1690, %v1692
    %v1694 = vrot.slane %v1686, %v1693
    %v1696 = vunpack.c.l.s4 1983009808
    %v1697 = vunpack.c.0.s8 %v1696
    %v1698 = vlaneseq
    %v1699 = vshrl.u32 %v1698, 7
    %v1700 = vsub.s32 %v1697, %v1699
    %v1701 = vrot.slane %v1687, %v1700
    %v1702 = vcombine.low %v167, %v231
    %v1703 = vcombine.high %v167, %v231
    %v1705 = vunpack.c.l.s4 1983009808
    %v1706 = vunpack.c.0.s8 %v1705
    %v1707 = vlaneseq
    %v1708 = vshrl.u32 %v1707, 7
    %v1709 = vsub.s32 %v1706, %v1708
    %v1710 = vrot.slane %v1702, %v1709
    %v1712 = vunpack.c.l.s4 1983009808
    %v1713 = vunpack.c.0.s8 %v1712
    %v1714 = vlaneseq
    %v1715 = vshrl.u32 %v1714, 7
    %v1716 = vsub.s32 %v1713, %v1715
    %v1717 = vrot.slane %v1703, %v1716
    %v1718 = vcombine.low %v263, %v327
    %v1719 = vcombine.high %v263, %v327
    %v1721 = vunpack.c.l.s4 1983009808
    %v1722 = vunpack.c.0.s8 %v1721
    %v1723 = vlaneseq
    %v1724 = vshrl.u32 %v1723, 7
    %v1725 = vsub.s32 %v1722, %v1724
    %v1726 = vrot.slane %v1718, %v1725
    %v1728 = vunpack.c.l.s4 1983009808
    %v1729 = vunpack.c.0.s8 %v1728
    %v1730 = vlaneseq
    %v1731 = vshrl.u32 %v1730, 7
    %v1732 = vsub.s32 %v1729, %v1731
    %v1733 = vrot.slane %v1719, %v1732
    %v1734 = vcombine.low %v295, %v359
    %v1735 = vcombine.high %v295, %v359
    %v1737 = vunpack.c.l.s4 1983009808
    %v1738 = vunpack.c.0.s8 %v1737
    %v1739 = vlaneseq
    %v1740 = vshrl.u32 %v1739, 7
    %v1741 = vsub.s32 %v1738, %v1740
    %v1742 = vrot.slane %v1734, %v1741
    %v1744 = vunpack.c.l.s4 1983009808
    %v1745 = vunpack.c.0.s8 %v1744
    %v1746 = vlaneseq
    %v1747 = vshrl.u32 %v1746, 7
    %v1748 = vsub.s32 %v1745, %v1747
    %v1749 = vrot.slane %v1735, %v1748
    %v1750 = vcombine.low %v1694, %v1710
    %v1751 = vcombine.high %v1694, %v1710
    %v1753 = vunpack.c.l.s4 1934713408
    %v1754 = vunpack.c.0.s8 %v1753
    %v1755 = vlaneseq
    %v1756 = vshrl.u32 %v1755, 7
    %v1757 = vsub.s32 %v1754, %v1756
    %v1758 = vrot.slane %v1750, %v1757
    %v1760 = vunpack.c.l.s4 1934713408
    %v1761 = vunpack.c.0.s8 %v1760
    %v1762 = vlaneseq
    %v1763 = vshrl.u32 %v1762, 7
    %v1764 = vsub.s32 %v1761, %v1763
    %v1765 = vrot.slane %v1751, %v1764
    %v1766 = vcombine.low %v1701, %v1717
    %v1767 = vcombine.high %v1701, %v1717
    %v1769 = vunpack.c.l.s4 1934713408
    %v1770 = vunpack.c.0.s8 %v1769
    %v1771 = vlaneseq
    %v1772 = vshrl.u32 %v1771, 7
    %v1773 = vsub.s32 %v1770, %v1772
    %v1774 = vrot.slane %v1766, %v1773
    %v1776 = vunpack.c.l.s4 1934713408
    %v1777 = vunpack.c.0.s8 %v1776
    %v1778 = vlaneseq
    %v1779 = vshrl.u32 %v1778, 7
    %v1780 = vsub.s32 %v1777, %v1779
    %v1781 = vrot.slane %v1767, %v1780
    %v1782 = vcombine.low %v1726, %v1742
    %v1783 = vcombine.high %v1726, %v1742
    %v1785 = vunpack.c.l.s4 1934713408
    %v1786 = vunpack.c.0.s8 %v1785
    %v1787 = vlaneseq
    %v1788 = vshrl.u32 %v1787, 7
    %v1789 = vsub.s32 %v1786, %v1788
    %v1790 = vrot.slane %v1782, %v1789
    %v1792 = vunpack.c.l.s4 1934713408
    %v1793 = vunpack.c.0.s8 %v1792
    %v1794 = vlaneseq
    %v1795 = vshrl.u32 %v1794, 7
    %v1796 = vsub.s32 %v1793, %v1795
    %v1797 = vrot.slane %v1783, %v1796
    %v1798 = vcombine.low %v1733, %v1749
    %v1799 = vcombine.high %v1733, %v1749
    %v1801 = vunpack.c.l.s4 1934713408
    %v1802 = vunpack.c.0.s8 %v1801
    %v1803 = vlaneseq
    %v1804 = vshrl.u32 %v1803, 7
    %v1805 = vsub.s32 %v1802, %v1804
    %v1806 = vrot.slane %v1798, %v1805
    %v1808 = vunpack.c.l.s4 1934713408
    %v1809 = vunpack.c.0.s8 %v1808
    %v1810 = vlaneseq
    %v1811 = vshrl.u32 %v1810, 7
    %v1812 = vsub.s32 %v1809, %v1811
    %v1813 = vrot.slane %v1799, %v1812
    %v1814 = vcombine.low %v1758, %v1790
    %v1815 = vcombine.high %v1758, %v1790
    %v1816 = vcombine.low %v1765, %v1797
    %v1817 = vcombine.high %v1765, %v1797
    %v1818 = vcombine.low %v1774, %v1806
    %v1819 = vcombine.high %v1774, %v1806
    %v1820 = vcombine.low %v1781, %v1813
    %v1821 = vcombine.high %v1781, %v1813
    %v1822 = vcombine.low %v391, %v455
    %v1823 = vcombine.high %v391, %v455
    %v1825 = vunpack.c.l.s4 1983009808
    %v1826 = vunpack.c.0.s8 %v1825
    %v1827 = vlaneseq
    %v1828 = vshrl.u32 %v1827, 7
    %v1829 = vsub.s32 %v1826, %v1828
    %v1830 = vrot.slane %v1822, %v1829
    %v1832 = vunpack.c.l.s4 1983009808
    %v1833 = vunpack.c.0.s8 %v1832
    %v1834 = vlaneseq
    %v1835 = vshrl.u32 %v1834, 7
    %v1836 = vsub.s32 %v1833, %v1835
    %v1837 = vrot.slane %v1823, %v1836
    %v1838 = vcombine.low %v423, %v487
    %v1839 = vcombine.high %v423, %v487
    %v1841 = vunpack.c.l.s4 1983009808
    %v1842 = vunpack.c.0.s8 %v1841
    %v1843 = vlaneseq
    %v1844 = vshrl.u32 %v1843, 7
    %v1845 = vsub.s32 %v1842, %v1844
    %v1846 = vrot.slane %v1838, %v1845
    %v1848 = vunpack.c.l.s4 1983009808
    %v1849 = vunpack.c.0.s8 %v1848
    %v1850 = vlaneseq
    %v1851 = vshrl.u32 %v1850, 7
    %v1852 = vsub.s32 %v1849, %v1851
    %v1853 = vrot.slane %v1839, %v1852
    %v1854 = vcombine.low %v519, %v583
    %v1855 = vcombine.high %v519, %v583
    %v1857 = vunpack.c.l.s4 1983009808
    %v1858 = vunpack.c.0.s8 %v1857
    %v1859 = vlaneseq
    %v1860 = vshrl.u32 %v1859, 7
    %v1861 = vsub.s32 %v1858, %v1860
    %v1862 = vrot.slane %v1854, %v1861
    %v1864 = vunpack.c.l.s4 1983009808
    %v1865 = vunpack.c.0.s8 %v1864
    %v1866 = vlaneseq
    %v1867 = vshrl.u32 %v1866, 7
    %v1868 = vsub.s32 %v1865, %v1867
    %v1869 = vrot.slane %v1855, %v1868
    %v1870 = vcombine.low %v551, %v615
    %v1871 = vcombine.high %v551, %v615
    %v1873 = vunpack.c.l.s4 1983009808
    %v1874 = vunpack.c.0.s8 %v1873
    %v1875 = vlaneseq
    %v1876 = vshrl.u32 %v1875, 7
    %v1877 = vsub.s32 %v1874, %v1876
    %v1878 = vrot.slane %v1870, %v1877
    %v1880 = vunpack.c.l.s4 1983009808
    %v1881 = vunpack.c.0.s8 %v1880
    %v1882 = vlaneseq
    %v1883 = vshrl.u32 %v1882, 7
    %v1884 = vsub.s32 %v1881, %v1883
    %v1885 = vrot.slane %v1871, %v1884
    %v1886 = vcombine.low %v1830, %v1846
    %v1887 = vcombine.high %v1830, %v1846
    %v1889 = vunpack.c.l.s4 1934713408
    %v1890 = vunpack.c.0.s8 %v1889
    %v1891 = vlaneseq
    %v1892 = vshrl.u32 %v1891, 7
    %v1893 = vsub.s32 %v1890, %v1892
    %v1894 = vrot.slane %v1886, %v1893
    %v1896 = vunpack.c.l.s4 1934713408
    %v1897 = vunpack.c.0.s8 %v1896
    %v1898 = vlaneseq
    %v1899 = vshrl.u32 %v1898, 7
    %v1900 = vsub.s32 %v1897, %v1899
    %v1901 = vrot.slane %v1887, %v1900
    %v1902 = vcombine.low %v1837, %v1853
    %v1903 = vcombine.high %v1837, %v1853
    %v1905 = vunpack.c.l.s4 1934713408
    %v1906 = vunpack.c.0.s8 %v1905
    %v1907 = vlaneseq
    %v1908 = vshrl.u32 %v1907, 7
    %v1909 = vsub.s32 %v1906, %v1908
    %v1910 = vrot.slane %v1902, %v1909
    %v1912 = vunpack.c.l.s4 1934713408
    %v1913 = vunpack.c.0.s8 %v1912
    %v1914 = vlaneseq
    %v1915 = vshrl.u32 %v1914, 7
    %v1916 = vsub.s32 %v1913, %v1915
    %v1917 = vrot.slane %v1903, %v1916
    %v1918 = vcombine.low %v1862, %v1878
    %v1919 = vcombine.high %v1862, %v1878
    %v1921 = vunpack.c.l.s4 1934713408
    %v1922 = vunpack.c.0.s8 %v1921
    %v1923 = vlaneseq
    %v1924 = vshrl.u32 %v1923, 7
    %v1925 = vsub.s32 %v1922, %v1924
    %v1926 = vrot.slane %v1918, %v1925
    %v1928 = vunpack.c.l.s4 1934713408
    %v1929 = vunpack.c.0.s8 %v1928
    %v1930 = vlaneseq
    %v1931 = vshrl.u32 %v1930, 7
    %v1932 = vsub.s32 %v1929, %v1931
    %v1933 = vrot.slane %v1919, %v1932
    %v1934 = vcombine.low %v1869, %v1885
    %v1935 = vcombine.high %v1869, %v1885
    %v1937 = vunpack.c.l.s4 1934713408
    %v1938 = vunpack.c.0.s8 %v1937
    %v1939 = vlaneseq
    %v1940 = vshrl.u32 %v1939, 7
    %v1941 = vsub.s32 %v1938, %v1940
    %v1942 = vrot.slane %v1934, %v1941
    %v1944 = vunpack.c.l.s4 1934713408
    %v1945 = vunpack.c.0.s8 %v1944
    %v1946 = vlaneseq
    %v1947 = vshrl.u32 %v1946, 7
    %v1948 = vsub.s32 %v1945, %v1947
    %v1949 = vrot.slane %v1935, %v1948
    %v1950 = vcombine.low %v1894, %v1926
    %v1951 = vcombine.high %v1894, %v1926
    %v1952 = vcombine.low %v1901, %v1933
    %v1953 = vcombine.high %v1901, %v1933
    %v1954 = vcombine.low %v1910, %v1942
    %v1955 = vcombine.high %v1910, %v1942
    %v1956 = vcombine.low %v1917, %v1949
    %v1957 = vcombine.high %v1917, %v1949
    %v1958 = vcombine.low %v647, %v711
    %v1959 = vcombine.high %v647, %v711
    %v1961 = vunpack.c.l.s4 1983009808
    %v1962 = vunpack.c.0.s8 %v1961
    %v1963 = vlaneseq
    %v1964 = vshrl.u32 %v1963, 7
    %v1965 = vsub.s32 %v1962, %v1964
    %v1966 = vrot.slane %v1958, %v1965
    %v1968 = vunpack.c.l.s4 1983009808
    %v1969 = vunpack.c.0.s8 %v1968
    %v1970 = vlaneseq
    %v1971 = vshrl.u32 %v1970, 7
    %v1972 = vsub.s32 %v1969, %v1971
    %v1973 = vrot.slane %v1959, %v1972
    %v1974 = vcombine.low %v679, %v743
    %v1975 = vcombine.high %v679, %v743
    %v1977 = vunpack.c.l.s4 1983009808
    %v1978 = vunpack.c.0.s8 %v1977
    %v1979 = vlaneseq
    %v1980 = vshrl.u32 %v1979, 7
    %v1981 = vsub.s32 %v1978, %v1980
    %v1982 = vrot.slane %v1974, %v1981
    %v1984 = vunpack.c.l.s4 1983009808
    %v1985 = vunpack.c.0.s8 %v1984
    %v1986 = vlaneseq
    %v1987 = vshrl.u32 %v1986, 7
    %v1988 = vsub.s32 %v1985, %v1987
    %v1989 = vrot.slane %v1975, %v1988
    %v1990 = vcombine.low %v775, %v839
    %v1991 = vcombine.high %v775, %v839
    %v1993 = vunpack.c.l.s4 1983009808
    %v1994 = vunpack.c.0.s8 %v1993
    %v1995 = vlaneseq
    %v1996 = vshrl.u32 %v1995, 7
    %v1997 = vsub.s32 %v1994, %v1996
    %v1998 = vrot.slane %v1990, %v1997
    %v2000 = vunpack.c.l.s4 1983009808
    %v2001 = vunpack.c.0.s8 %v2000
    %v2002 = vlaneseq
    %v2003 = vshrl.u32 %v2002, 7
    %v2004 = vsub.s32 %v2001, %v2003
    %v2005 = vrot.slane %v1991, %v2004
    %v2006 = vcombine.low %v807, %v871
    %v2007 = vcombine.high %v807, %v871
    %v2009 = vunpack.c.l.s4 1983009808
    %v2010 = vunpack.c.0.s8 %v2009
    %v2011 = vlaneseq
    %v2012 = vshrl.u32 %v2011, 7
    %v2013 = vsub.s32 %v2010, %v2012
    %v2014 = vrot.slane %v2006, %v2013
    %v2016 = vunpack.c.l.s4 1983009808
    %v2017 = vunpack.c.0.s8 %v2016
    %v2018 = vlaneseq
    %v2019 = vshrl.u32 %v2018, 7
    %v2020 = vsub.s32 %v2017, %v2019
    %v2021 = vrot.slane %v2007, %v2020
    %v2022 = vcombine.low %v1966, %v1982
    %v2023 = vcombine.high %v1966, %v1982
    %v2025 = vunpack.c.l.s4 1934713408
    %v2026 = vunpack.c.0.s8 %v2025
    %v2027 = vlaneseq
    %v2028 = vshrl.u32 %v2027, 7
    %v2029 = vsub.s32 %v2026, %v2028
    %v2030 = vrot.slane %v2022, %v2029
    %v2032 = vunpack.c.l.s4 1934713408
    %v2033 = vunpack.c.0.s8 %v2032
    %v2034 = vlaneseq
    %v2035 = vshrl.u32 %v2034, 7
    %v2036 = vsub.s32 %v2033, %v2035
    %v2037 = vrot.slane %v2023, %v2036
    %v2038 = vcombine.low %v1973, %v1989
    %v2039 = vcombine.high %v1973, %v1989
    %v2041 = vunpack.c.l.s4 1934713408
    %v2042 = vunpack.c.0.s8 %v2041
    %v2043 = vlaneseq
    %v2044 = vshrl.u32 %v2043, 7
    %v2045 = vsub.s32 %v2042, %v2044
    %v2046 = vrot.slane %v2038, %v2045
    %v2048 = vunpack.c.l.s4 1934713408
    %v2049 = vunpack.c.0.s8 %v2048
    %v2050 = vlaneseq
    %v2051 = vshrl.u32 %v2050, 7
    %v2052 = vsub.s32 %v2049, %v2051
    %v2053 = vrot.slane %v2039, %v2052
    %v2054 = vcombine.low %v1998, %v2014
    %v2055 = vcombine.high %v1998, %v2014
    %v2057 = vunpack.c.l.s4 1934713408
    %v2058 = vunpack.c.0.s8 %v2057
    %v2059 = vlaneseq
    %v2060 = vshrl.u32 %v2059, 7
    %v2061 = vsub.s32 %v2058, %v2060
    %v2062 = vrot.slane %v2054, %v2061
    %v2064 = vunpack.c.l.s4 1934713408
    %v2065 = vunpack.c.0.s8 %v2064
    %v2066 = vlaneseq
    %v2067 = vshrl.u32 %v2066, 7
    %v2068 = vsub.s32 %v2065, %v2067
    %v2069 = vrot.slane %v2055, %v2068
    %v2070 = vcombine.low %v2005, %v2021
    %v2071 = vcombine.high %v2005, %v2021
    %v2073 = vunpack.c.l.s4 1934713408
    %v2074 = vunpack.c.0.s8 %v2073
    %v2075 = vlaneseq
    %v2076 = vshrl.u32 %v2075, 7
    %v2077 = vsub.s32 %v2074, %v2076
    %v2078 = vrot.slane %v2070, %v2077
    %v2080 = vunpack.c.l.s4 1934713408
    %v2081 = vunpack.c.0.s8 %v2080
    %v2082 = vlaneseq
    %v2083 = vshrl.u32 %v2082, 7
    %v2084 = vsub.s32 %v2081, %v2083
    %v2085 = vrot.slane %v2071, %v2084
    %v2086 = vcombine.low %v2030, %v2062
    %v2087 = vcombine.high %v2030, %v2062
    %v2088 = vcombine.low %v2037, %v2069
    %v2089 = vcombine.high %v2037, %v2069
    %v2090 = vcombine.low %v2046, %v2078
    %v2091 = vcombine.high %v2046, %v2078
    %v2092 = vcombine.low %v2053, %v2085
    %v2093 = vcombine.high %v2053, %v2085
    %v2094 = vcombine.low %v903, %v967
    %v2095 = vcombine.high %v903, %v967
    %v2097 = vunpack.c.l.s4 1983009808
    %v2098 = vunpack.c.0.s8 %v2097
    %v2099 = vlaneseq
    %v2100 = vshrl.u32 %v2099, 7
    %v2101 = vsub.s32 %v2098, %v2100
    %v2102 = vrot.slane %v2094, %v2101
    %v2104 = vunpack.c.l.s4 1983009808
    %v2105 = vunpack.c.0.s8 %v2104
    %v2106 = vlaneseq
    %v2107 = vshrl.u32 %v2106, 7
    %v2108 = vsub.s32 %v2105, %v2107
    %v2109 = vrot.slane %v2095, %v2108
    %v2110 = vcombine.low %v935, %v999
    %v2111 = vcombine.high %v935, %v999
    %v2113 = vunpack.c.l.s4 1983009808
    %v2114 = vunpack.c.0.s8 %v2113
    %v2115 = vlaneseq
    %v2116 = vshrl.u32 %v2115, 7
    %v2117 = vsub.s32 %v2114, %v2116
    %v2118 = vrot.slane %v2110, %v2117
    %v2120 = vunpack.c.l.s4 1983009808
    %v2121 = vunpack.c.0.s8 %v2120
    %v2122 = vlaneseq
    %v2123 = vshrl.u32 %v2122, 7
    %v2124 = vsub.s32 %v2121, %v2123
    %v2125 = vrot.slane %v2111, %v2124
    %v2126 = vcombine.low %v1031, %v1095
    %v2127 = vcombine.high %v1031, %v1095
    %v2129 = vunpack.c.l.s4 1983009808
    %v2130 = vunpack.c.0.s8 %v2129
    %v2131 = vlaneseq
    %v2132 = vshrl.u32 %v2131, 7
    %v2133 = vsub.s32 %v2130, %v2132
    %v2134 = vrot.slane %v2126, %v2133
    %v2136 = vunpack.c.l.s4 1983009808
    %v2137 = vunpack.c.0.s8 %v2136
    %v2138 = vlaneseq
    %v2139 = vshrl.u32 %v2138, 7
    %v2140 = vsub.s32 %v2137, %v2139
    %v2141 = vrot.slane %v2127, %v2140
    %v2142 = vcombine.low %v1063, %v1127
    %v2143 = vcombine.high %v1063, %v1127
    %v2145 = vunpack.c.l.s4 1983009808
    %v2146 = vunpack.c.0.s8 %v2145
    %v2147 = vlaneseq
    %v2148 = vshrl.u32 %v2147, 7
    %v2149 = vsub.s32 %v2146, %v2148
    %v2150 = vrot.slane %v2142, %v2149
    %v2152 = vunpack.c.l.s4 1983009808
    %v2153 = vunpack.c.0.s8 %v2152
    %v2154 = vlaneseq
    %v2155 = vshrl.u32 %v2154, 7
    %v2156 = vsub.s32 %v2153, %v2155
    %v2157 = vrot.slane %v2143, %v2156
    %v2158 = vcombine.low %v2102, %v2118
    %v2159 = vcombine.high %v2102, %v2118
    %v2161 = vunpack.c.l.s4 1934713408
    %v2162 = vunpack.c.0.s8 %v2161
    %v2163 = vlaneseq
    %v2164 = vshrl.u32 %v2163, 7
    %v2165 = vsub.s32 %v2162, %v2164
    %v2166 = vrot.slane %v2158, %v2165
    %v2168 = vunpack.c.l.s4 1934713408
    %v2169 = vunpack.c.0.s8 %v2168
    %v2170 = vlaneseq
    %v2171 = vshrl.u32 %v2170, 7
    %v2172 = vsub.s32 %v2169, %v2171
    %v2173 = vrot.slane %v2159, %v2172
    %v2174 = vcombine.low %v2109, %v2125
    %v2175 = vcombine.high %v2109, %v2125
    %v2177 = vunpack.c.l.s4 1934713408
    %v2178 = vunpack.c.0.s8 %v2177
    %v2179 = vlaneseq
    %v2180 = vshrl.u32 %v2179, 7
    %v2181 = vsub.s32 %v2178, %v2180
    %v2182 = vrot.slane %v2174, %v2181
    %v2184 = vunpack.c.l.s4 1934713408
    %v2185 = vunpack.c.0.s8 %v2184
    %v2186 = vlaneseq
    %v2187 = vshrl.u32 %v2186, 7
    %v2188 = vsub.s32 %v2185, %v2187
    %v2189 = vrot.slane %v2175, %v2188
    %v2190 = vcombine.low %v2134, %v2150
    %v2191 = vcombine.high %v2134, %v2150
    %v2193 = vunpack.c.l.s4 1934713408
    %v2194 = vunpack.c.0.s8 %v2193
    %v2195 = vlaneseq
    %v2196 = vshrl.u32 %v2195, 7
    %v2197 = vsub.s32 %v2194, %v2196
    %v2198 = vrot.slane %v2190, %v2197
    %v2200 = vunpack.c.l.s4 1934713408
    %v2201 = vunpack.c.0.s8 %v2200
    %v2202 = vlaneseq
    %v2203 = vshrl.u32 %v2202, 7
    %v2204 = vsub.s32 %v2201, %v2203
    %v2205 = vrot.slane %v2191, %v2204
    %v2206 = vcombine.low %v2141, %v2157
    %v2207 = vcombine.high %v2141, %v2157
    %v2209 = vunpack.c.l.s4 1934713408
    %v2210 = vunpack.c.0.s8 %v2209
    %v2211 = vlaneseq
    %v2212 = vshrl.u32 %v2211, 7
    %v2213 = vsub.s32 %v2210, %v2212
    %v2214 = vrot.slane %v2206, %v2213
    %v2216 = vunpack.c.l.s4 1934713408
    %v2217 = vunpack.c.0.s8 %v2216
    %v2218 = vlaneseq
    %v2219 = vshrl.u32 %v2218, 7
    %v2220 = vsub.s32 %v2217, %v2219
    %v2221 = vrot.slane %v2207, %v2220
    %v2222 = vcombine.low %v2166, %v2198
    %v2223 = vcombine.high %v2166, %v2198
    %v2224 = vcombine.low %v2173, %v2205
    %v2225 = vcombine.high %v2173, %v2205
    %v2226 = vcombine.low %v2182, %v2214
    %v2227 = vcombine.high %v2182, %v2214
    %v2228 = vcombine.low %v2189, %v2221
    %v2229 = vcombine.high %v2189, %v2221
    %v2230 = vcombine.low %v136, %v200
    %v2231 = vcombine.high %v136, %v200
    %v2233 = vunpack.c.l.s4 1983009808
    %v2234 = vunpack.c.0.s8 %v2233
    %v2235 = vlaneseq
    %v2236 = vshrl.u32 %v2235, 7
    %v2237 = vsub.s32 %v2234, %v2236
    %v2238 = vrot.slane %v2230, %v2237
    %v2240 = vunpack.c.l.s4 1983009808
    %v2241 = vunpack.c.0.s8 %v2240
    %v2242 = vlaneseq
    %v2243 = vshrl.u32 %v2242, 7
    %v2244 = vsub.s32 %v2241, %v2243
    %v2245 = vrot.slane %v2231, %v2244
    %v2246 = vcombine.low %v168, %v232
    %v2247 = vcombine.high %v168, %v232
    %v2249 = vunpack.c.l.s4 1983009808
    %v2250 = vunpack.c.0.s8 %v2249
    %v2251 = vlaneseq
    %v2252 = vshrl.u32 %v2251, 7
    %v2253 = vsub.s32 %v2250, %v2252
    %v2254 = vrot.slane %v2246, %v2253
    %v2256 = vunpack.c.l.s4 1983009808
    %v2257 = vunpack.c.0.s8 %v2256
    %v2258 = vlaneseq
    %v2259 = vshrl.u32 %v2258, 7
    %v2260 = vsub.s32 %v2257, %v2259
    %v2261 = vrot.slane %v2247, %v2260
    %v2262 = vcombine.low %v264, %v328
    %v2263 = vcombine.high %v264, %v328
    %v2265 = vunpack.c.l.s4 1983009808
    %v2266 = vunpack.c.0.s8 %v2265
    %v2267 = vlaneseq
    %v2268 = vshrl.u32 %v2267, 7
    %v2269 = vsub.s32 %v2266, %v2268
    %v2270 = vrot.slane %v2262, %v2269
    %v2272 = vunpack.c.l.s4 1983009808
    %v2273 = vunpack.c.0.s8 %v2272
    %v2274 = vlaneseq
    %v2275 = vshrl.u32 %v2274, 7
    %v2276 = vsub.s32 %v2273, %v2275
    %v2277 = vrot.slane %v2263, %v2276
    %v2278 = vcombine.low %v296, %v360
    %v2279 = vcombine.high %v296, %v360
    %v2281 = vunpack.c.l.s4 1983009808
    %v2282 = vunpack.c.0.s8 %v2281
    %v2283 = vlaneseq
    %v2284 = vshrl.u32 %v2283, 7
    %v2285 = vsub.s32 %v2282, %v2284
    %v2286 = vrot.slane %v2278, %v2285
    %v2288 = vunpack.c.l.s4 1983009808
    %v2289 = vunpack.c.0.s8 %v2288
    %v2290 = vlaneseq
    %v2291 = vshrl.u32 %v2290, 7
    %v2292 = vsub.s32 %v2289, %v2291
    %v2293 = vrot.slane %v2279, %v2292
    %v2294 = vcombine.low %v2238, %v2254
    %v2295 = vcombine.high %v2238, %v2254
    %v2297 = vunpack.c.l.s4 1934713408
    %v2298 = vunpack.c.0.s8 %v2297
    %v2299 = vlaneseq
    %v2300 = vshrl.u32 %v2299, 7
    %v2301 = vsub.s32 %v2298, %v2300
    %v2302 = vrot.slane %v2294, %v2301
    %v2304 = vunpack.c.l.s4 1934713408
    %v2305 = vunpack.c.0.s8 %v2304
    %v2306 = vlaneseq
    %v2307 = vshrl.u32 %v2306, 7
    %v2308 = vsub.s32 %v2305, %v2307
    %v2309 = vrot.slane %v2295, %v2308
    %v2310 = vcombine.low %v2245, %v2261
    %v2311 = vcombine.high %v2245, %v2261
    %v2313 = vunpack.c.l.s4 1934713408
    %v2314 = vunpack.c.0.s8 %v2313
    %v2315 = vlaneseq
    %v2316 = vshrl.u32 %v2315, 7
    %v2317 = vsub.s32 %v2314, %v2316
    %v2318 = vrot.slane %v2310, %v2317
    %v2320 = vunpack.c.l.s4 1934713408
    %v2321 = vunpack.c.0.s8 %v2320
    %v2322 = vlaneseq
    %v2323 = vshrl.u32 %v2322, 7
    %v2324 = vsub.s32 %v2321, %v2323
    %v2325 = vrot.slane %v2311, %v2324
    %v2326 = vcombine.low %v2270, %v2286
    %v2327 = vcombine.high %v2270, %v2286
    %v2329 = vunpack.c.l.s4 1934713408
    %v2330 = vunpack.c.0.s8 %v2329
    %v2331 = vlaneseq
    %v2332 = vshrl.u32 %v2331, 7
    %v2333 = vsub.s32 %v2330, %v2332
    %v2334 = vrot.slane %v2326, %v2333
    %v2336 = vunpack.c.l.s4 1934713408
    %v2337 = vunpack.c.0.s8 %v2336
    %v2338 = vlaneseq
    %v2339 = vshrl.u32 %v2338, 7
    %v2340 = vsub.s32 %v2337, %v2339
    %v2341 = vrot.slane %v2327, %v2340
    %v2342 = vcombine.low %v2277, %v2293
    %v2343 = vcombine.high %v2277, %v2293
    %v2345 = vunpack.c.l.s4 1934713408
    %v2346 = vunpack.c.0.s8 %v2345
    %v2347 = vlaneseq
    %v2348 = vshrl.u32 %v2347, 7
    %v2349 = vsub.s32 %v2346, %v2348
    %v2350 = vrot.slane %v2342, %v2349
    %v2352 = vunpack.c.l.s4 1934713408
    %v2353 = vunpack.c.0.s8 %v2352
    %v2354 = vlaneseq
    %v2355 = vshrl.u32 %v2354, 7
    %v2356 = vsub.s32 %v2353, %v2355
    %v2357 = vrot.slane %v2343, %v2356
    %v2358 = vcombine.low %v2302, %v2334
    %v2359 = vcombine.high %v2302, %v2334
    %v2360 = vcombine.low %v2309, %v2341
    %v2361 = vcombine.high %v2309, %v2341
    %v2362 = vcombine.low %v2318, %v2350
    %v2363 = vcombine.high %v2318, %v2350
    %v2364 = vcombine.low %v2325, %v2357
    %v2365 = vcombine.high %v2325, %v2357
    %v2366 = vcombine.low %v392, %v456
    %v2367 = vcombine.high %v392, %v456
    %v2369 = vunpack.c.l.s4 1983009808
    %v2370 = vunpack.c.0.s8 %v2369
    %v2371 = vlaneseq
    %v2372 = vshrl.u32 %v2371, 7
    %v2373 = vsub.s32 %v2370, %v2372
    %v2374 = vrot.slane %v2366, %v2373
    %v2376 = vunpack.c.l.s4 1983009808
    %v2377 = vunpack.c.0.s8 %v2376
    %v2378 = vlaneseq
    %v2379 = vshrl.u32 %v2378, 7
    %v2380 = vsub.s32 %v2377, %v2379
    %v2381 = vrot.slane %v2367, %v2380
    %v2382 = vcombine.low %v424, %v488
    %v2383 = vcombine.high %v424, %v488
    %v2385 = vunpack.c.l.s4 1983009808
    %v2386 = vunpack.c.0.s8 %v2385
    %v2387 = vlaneseq
    %v2388 = vshrl.u32 %v2387, 7
    %v2389 = vsub.s32 %v2386, %v2388
    %v2390 = vrot.slane %v2382, %v2389
    %v2392 = vunpack.c.l.s4 1983009808
    %v2393 = vunpack.c.0.s8 %v2392
    %v2394 = vlaneseq
    %v2395 = vshrl.u32 %v2394, 7
    %v2396 = vsub.s32 %v2393, %v2395
    %v2397 = vrot.slane %v2383, %v2396
    %v2398 = vcombine.low %v520, %v584
    %v2399 = vcombine.high %v520, %v584
    %v2401 = vunpack.c.l.s4 1983009808
    %v2402 = vunpack.c.0.s8 %v2401
    %v2403 = vlaneseq
    %v2404 = vshrl.u32 %v2403, 7
    %v2405 = vsub.s32 %v2402, %v2404
    %v2406 = vrot.slane %v2398, %v2405
    %v2408 = vunpack.c.l.s4 1983009808
    %v2409 = vunpack.c.0.s8 %v2408
    %v2410 = vlaneseq
    %v2411 = vshrl.u32 %v2410, 7
    %v2412 = vsub.s32 %v2409, %v2411
    %v2413 = vrot.slane %v2399, %v2412
    %v2414 = vcombine.low %v552, %v616
    %v2415 = vcombine.high %v552, %v616
    %v2417 = vunpack.c.l.s4 1983009808
    %v2418 = vunpack.c.0.s8 %v2417
    %v2419 = vlaneseq
    %v2420 = vshrl.u32 %v2419, 7
    %v2421 = vsub.s32 %v2418, %v2420
    %v2422 = vrot.slane %v2414, %v2421
    %v2424 = vunpack.c.l.s4 1983009808
    %v2425 = vunpack.c.0.s8 %v2424
    %v2426 = vlaneseq
    %v2427 = vshrl.u32 %v2426, 7
    %v2428 = vsub.s32 %v2425, %v2427
    %v2429 = vrot.slane %v2415, %v2428
    %v2430 = vcombine.low %v2374, %v2390
    %v2431 = vcombine.high %v2374, %v2390
    %v2433 = vunpack.c.l.s4 1934713408
    %v2434 = vunpack.c.0.s8 %v2433
    %v2435 = vlaneseq
    %v2436 = vshrl.u32 %v2435, 7
    %v2437 = vsub.s32 %v2434, %v2436
    %v2438 = vrot.slane %v2430, %v2437
    %v2440 = vunpack.c.l.s4 1934713408
    %v2441 = vunpack.c.0.s8 %v2440
    %v2442 = vlaneseq
    %v2443 = vshrl.u32 %v2442, 7
    %v2444 = vsub.s32 %v2441, %v2443
    %v2445 = vrot.slane %v2431, %v2444
    %v2446 = vcombine.low %v2381, %v2397
    %v2447 = vcombine.high %v2381, %v2397
    %v2449 = vunpack.c.l.s4 1934713408
    %v2450 = vunpack.c.0.s8 %v2449
    %v2451 = vlaneseq
    %v2452 = vshrl.u32 %v2451, 7
    %v2453 = vsub.s32 %v2450, %v2452
    %v2454 = vrot.slane %v2446, %v2453
    %v2456 = vunpack.c.l.s4 1934713408
    %v2457 = vunpack.c.0.s8 %v2456
    %v2458 = vlaneseq
    %v2459 = vshrl.u32 %v2458, 7
    %v2460 = vsub.s32 %v2457, %v2459
    %v2461 = vrot.slane %v2447, %v2460
    %v2462 = vcombine.low %v2406, %v2422
    %v2463 = vcombine.high %v2406, %v2422
    %v2465 = vunpack.c.l.s4 1934713408
    %v2466 = vunpack.c.0.s8 %v2465
    %v2467 = vlaneseq
    %v2468 = vshrl.u32 %v2467, 7
    %v2469 = vsub.s32 %v2466, %v2468
    %v2470 = vrot.slane %v2462, %v2469
    %v2472 = vunpack.c.l.s4 1934713408
    %v2473 = vunpack.c.0.s8 %v2472
    %v2474 = vlaneseq
    %v2475 = vshrl.u32 %v2474, 7
    %v2476 = vsub.s32 %v2473, %v2475
    %v2477 = vrot.slane %v2463, %v2476
    %v2478 = vcombine.low %v2413, %v2429
    %v2479 = vcombine.high %v2413, %v2429
    %v2481 = vunpack.c.l.s4 1934713408
    %v2482 = vunpack.c.0.s8 %v2481
    %v2483 = vlaneseq
    %v2484 = vshrl.u32 %v2483, 7
    %v2485 = vsub.s32 %v2482, %v2484
    %v2486 = vrot.slane %v2478, %v2485
    %v2488 = vunpack.c.l.s4 1934713408
    %v2489 = vunpack.c.0.s8 %v2488
    %v2490 = vlaneseq
    %v2491 = vshrl.u32 %v2490, 7
    %v2492 = vsub.s32 %v2489, %v2491
    %v2493 = vrot.slane %v2479, %v2492
    %v2494 = vcombine.low %v2438, %v2470
    %v2495 = vcombine.high %v2438, %v2470
    %v2496 = vcombine.low %v2445, %v2477
    %v2497 = vcombine.high %v2445, %v2477
    %v2498 = vcombine.low %v2454, %v2486
    %v2499 = vcombine.high %v2454, %v2486
    %v2500 = vcombine.low %v2461, %v2493
    %v2501 = vcombine.high %v2461, %v2493
    %v2502 = vcombine.low %v648, %v712
    %v2503 = vcombine.high %v648, %v712
    %v2505 = vunpack.c.l.s4 1983009808
    %v2506 = vunpack.c.0.s8 %v2505
    %v2507 = vlaneseq
    %v2508 = vshrl.u32 %v2507, 7
    %v2509 = vsub.s32 %v2506, %v2508
    %v2510 = vrot.slane %v2502, %v2509
    %v2512 = vunpack.c.l.s4 1983009808
    %v2513 = vunpack.c.0.s8 %v2512
    %v2514 = vlaneseq
    %v2515 = vshrl.u32 %v2514, 7
    %v2516 = vsub.s32 %v2513, %v2515
    %v2517 = vrot.slane %v2503, %v2516
    %v2518 = vcombine.low %v680, %v744
    %v2519 = vcombine.high %v680, %v744
    %v2521 = vunpack.c.l.s4 1983009808
    %v2522 = vunpack.c.0.s8 %v2521
    %v2523 = vlaneseq
    %v2524 = vshrl.u32 %v2523, 7
    %v2525 = vsub.s32 %v2522, %v2524
    %v2526 = vrot.slane %v2518, %v2525
    %v2528 = vunpack.c.l.s4 1983009808
    %v2529 = vunpack.c.0.s8 %v2528
    %v2530 = vlaneseq
    %v2531 = vshrl.u32 %v2530, 7
    %v2532 = vsub.s32 %v2529, %v2531
    %v2533 = vrot.slane %v2519, %v2532
    %v2534 = vcombine.low %v776, %v840
    %v2535 = vcombine.high %v776, %v840
    %v2537 = vunpack.c.l.s4 1983009808
    %v2538 = vunpack.c.0.s8 %v2537
    %v2539 = vlaneseq
    %v2540 = vshrl.u32 %v2539, 7
    %v2541 = vsub.s32 %v2538, %v2540
    %v2542 = vrot.slane %v2534, %v2541
    %v2544 = vunpack.c.l.s4 1983009808
    %v2545 = vunpack.c.0.s8 %v2544
    %v2546 = vlaneseq
    %v2547 = vshrl.u32 %v2546, 7
    %v2548 = vsub.s32 %v2545, %v2547
    %v2549 = vrot.slane %v2535, %v2548
    %v2550 = vcombine.low %v808, %v872
    %v2551 = vcombine.high %v808, %v872
    %v2553 = vunpack.c.l.s4 1983009808
    %v2554 = vunpack.c.0.s8 %v2553
    %v2555 = vlaneseq
    %v2556 = vshrl.u32 %v2555, 7
    %v2557 = vsub.s32 %v2554, %v2556
    %v2558 = vrot.slane %v2550, %v2557
    %v2560 = vunpack.c.l.s4 1983009808
    %v2561 = vunpack.c.0.s8 %v2560
    %v2562 = vlaneseq
    %v2563 = vshrl.u32 %v2562, 7
    %v2564 = vsub.s32 %v2561, %v2563
    %v2565 = vrot.slane %v2551, %v2564
    %v2566 = vcombine.low %v2510, %v2526
    %v2567 = vcombine.high %v2510, %v2526
    %v2569 = vunpack.c.l.s4 1934713408
    %v2570 = vunpack.c.0.s8 %v2569
    %v2571 = vlaneseq
    %v2572 = vshrl.u32 %v2571, 7
    %v2573 = vsub.s32 %v2570, %v2572
    %v2574 = vrot.slane %v2566, %v2573
    %v2576 = vunpack.c.l.s4 1934713408
    %v2577 = vunpack.c.0.s8 %v2576
    %v2578 = vlaneseq
    %v2579 = vshrl.u32 %v2578, 7
    %v2580 = vsub.s32 %v2577, %v2579
    %v2581 = vrot.slane %v2567, %v2580
    %v2582 = vcombine.low %v2517, %v2533
    %v2583 = vcombine.high %v2517, %v2533
    %v2585 = vunpack.c.l.s4 1934713408
    %v2586 = vunpack.c.0.s8 %v2585
    %v2587 = vlaneseq
    %v2588 = vshrl.u32 %v2587, 7
    %v2589 = vsub.s32 %v2586, %v2588
    %v2590 = vrot.slane %v2582, %v2589
    %v2592 = vunpack.c.l.s4 1934713408
    %v2593 = vunpack.c.0.s8 %v2592
    %v2594 = vlaneseq
    %v2595 = vshrl.u32 %v2594, 7
    %v2596 = vsub.s32 %v2593, %v2595
    %v2597 = vrot.slane %v2583, %v2596
    %v2598 = vcombine.low %v2542, %v2558
    %v2599 = vcombine.high %v2542, %v2558
    %v2601 = vunpack.c.l.s4 1934713408
    %v2602 = vunpack.c.0.s8 %v2601
    %v2603 = vlaneseq
    %v2604 = vshrl.u32 %v2603, 7
    %v2605 = vsub.s32 %v2602, %v2604
    %v2606 = vrot.slane %v2598, %v2605
    %v2608 = vunpack.c.l.s4 1934713408
    %v2609 = vunpack.c.0.s8 %v2608
    %v2610 = vlaneseq
    %v2611 = vshrl.u32 %v2610, 7
    %v2612 = vsub.s32 %v2609, %v2611
    %v2613 = vrot.slane %v2599, %v2612
    %v2614 = vcombine.low %v2549, %v2565
    %v2615 = vcombine.high %v2549, %v2565
    %v2617 = vunpack.c.l.s4 1934713408
    %v2618 = vunpack.c.0.s8 %v2617
    %v2619 = vlaneseq
    %v2620 = vshrl.u32 %v2619, 7
    %v2621 = vsub.s32 %v2618, %v2620
    %v2622 = vrot.slane %v2614, %v2621
    %v2624 = vunpack.c.l.s4 1934713408
    %v2625 = vunpack.c.0.s8 %v2624
    %v2626 = vlaneseq
    %v2627 = vshrl.u32 %v2626, 7
    %v2628 = vsub.s32 %v2625, %v2627
    %v2629 = vrot.slane %v2615, %v2628
    %v2630 = vcombine.low %v2574, %v2606
    %v2631 = vcombine.high %v2574, %v2606
    %v2632 = vcombine.low %v2581, %v2613
    %v2633 = vcombine.high %v2581, %v2613
    %v2634 = vcombine.low %v2590, %v2622
    %v2635 = vcombine.high %v2590, %v2622
    %v2636 = vcombine.low %v2597, %v2629
    %v2637 = vcombine.high %v2597, %v2629
    %v2638 = vcombine.low %v904, %v968
    %v2639 = vcombine.high %v904, %v968
    %v2641 = vunpack.c.l.s4 1983009808
    %v2642 = vunpack.c.0.s8 %v2641
    %v2643 = vlaneseq
    %v2644 = vshrl.u32 %v2643, 7
    %v2645 = vsub.s32 %v2642, %v2644
    %v2646 = vrot.slane %v2638, %v2645
    %v2648 = vunpack.c.l.s4 1983009808
    %v2649 = vunpack.c.0.s8 %v2648
    %v2650 = vlaneseq
    %v2651 = vshrl.u32 %v2650, 7
    %v2652 = vsub.s32 %v2649, %v2651
    %v2653 = vrot.slane %v2639, %v2652
    %v2654 = vcombine.low %v936, %v1000
    %v2655 = vcombine.high %v936, %v1000
    %v2657 = vunpack.c.l.s4 1983009808
    %v2658 = vunpack.c.0.s8 %v2657
    %v2659 = vlaneseq
    %v2660 = vshrl.u32 %v2659, 7
    %v2661 = vsub.s32 %v2658, %v2660
    %v2662 = vrot.slane %v2654, %v2661
    %v2664 = vunpack.c.l.s4 1983009808
    %v2665 = vunpack.c.0.s8 %v2664
    %v2666 = vlaneseq
    %v2667 = vshrl.u32 %v2666, 7
    %v2668 = vsub.s32 %v2665, %v2667
    %v2669 = vrot.slane %v2655, %v2668
    %v2670 = vcombine.low %v1032, %v1096
    %v2671 = vcombine.high %v1032, %v1096
    %v2673 = vunpack.c.l.s4 1983009808
    %v2674 = vunpack.c.0.s8 %v2673
    %v2675 = vlaneseq
    %v2676 = vshrl.u32 %v2675, 7
    %v2677 = vsub.s32 %v2674, %v2676
    %v2678 = vrot.slane %v2670, %v2677
    %v2680 = vunpack.c.l.s4 1983009808
    %v2681 = vunpack.c.0.s8 %v2680
    %v2682 = vlaneseq
    %v2683 = vshrl.u32 %v2682, 7
    %v2684 = vsub.s32 %v2681, %v2683
    %v2685 = vrot.slane %v2671, %v2684
    %v2686 = vcombine.low %v1064, %v1128
    %v2687 = vcombine.high %v1064, %v1128
    %v2689 = vunpack.c.l.s4 1983009808
    %v2690 = vunpack.c.0.s8 %v2689
    %v2691 = vlaneseq
    %v2692 = vshrl.u32 %v2691, 7
    %v2693 = vsub.s32 %v2690, %v2692
    %v2694 = vrot.slane %v2686, %v2693
    %v2696 = vunpack.c.l.s4 1983009808
    %v2697 = vunpack.c.0.s8 %v2696
    %v2698 = vlaneseq
    %v2699 = vshrl.u32 %v2698, 7
    %v2700 = vsub.s32 %v2697, %v2699
    %v2701 = vrot.slane %v2687, %v2700
    %v2702 = vcombine.low %v2646, %v2662
    %v2703 = vcombine.high %v2646, %v2662
    %v2705 = vunpack.c.l.s4 1934713408
    %v2706 = vunpack.c.0.s8 %v2705
    %v2707 = vlaneseq
    %v2708 = vshrl.u32 %v2707, 7
    %v2709 = vsub.s32 %v2706, %v2708
    %v2710 = vrot.slane %v2702, %v2709
    %v2712 = vunpack.c.l.s4 1934713408
    %v2713 = vunpack.c.0.s8 %v2712
    %v2714 = vlaneseq
    %v2715 = vshrl.u32 %v2714, 7
    %v2716 = vsub.s32 %v2713, %v2715
    %v2717 = vrot.slane %v2703, %v2716
    %v2718 = vcombine.low %v2653, %v2669
    %v2719 = vcombine.high %v2653, %v2669
    %v2721 = vunpack.c.l.s4 1934713408
    %v2722 = vunpack.c.0.s8 %v2721
    %v2723 = vlaneseq
    %v2724 = vshrl.u32 %v2723, 7
    %v2725 = vsub.s32 %v2722, %v2724
    %v2726 = vrot.slane %v2718, %v2725
    %v2728 = vunpack.c.l.s4 1934713408
    %v2729 = vunpack.c.0.s8 %v2728
    %v2730 = vlaneseq
    %v2731 = vshrl.u32 %v2730, 7
    %v2732 = vsub.s32 %v2729, %v2731
    %v2733 = vrot.slane %v2719, %v2732
    %v2734 = vcombine.low %v2678, %v2694
    %v2735 = vcombine.high %v2678, %v2694
    %v2737 = vunpack.c.l.s4 1934713408
    %v2738 = vunpack.c.0.s8 %v2737
    %v2739 = vlaneseq
    %v2740 = vshrl.u32 %v2739, 7
    %v2741 = vsub.s32 %v2738, %v2740
    %v2742 = vrot.slane %v2734, %v2741
    %v2744 = vunpack.c.l.s4 1934713408
    %v2745 = vunpack.c.0.s8 %v2744
    %v2746 = vlaneseq
    %v2747 = vshrl.u32 %v2746, 7
    %v2748 = vsub.s32 %v2745, %v2747
    %v2749 = vrot.slane %v2735, %v2748
    %v2750 = vcombine.low %v2685, %v2701
    %v2751 = vcombine.high %v2685, %v2701
    %v2753 = vunpack.c.l.s4 1934713408
    %v2754 = vunpack.c.0.s8 %v2753
    %v2755 = vlaneseq
    %v2756 = vshrl.u32 %v2755, 7
    %v2757 = vsub.s32 %v2754, %v2756
    %v2758 = vrot.slane %v2750, %v2757
    %v2760 = vunpack.c.l.s4 1934713408
    %v2761 = vunpack.c.0.s8 %v2760
    %v2762 = vlaneseq
    %v2763 = vshrl.u32 %v2762, 7
    %v2764 = vsub.s32 %v2761, %v2763
    %v2765 = vrot.slane %v2751, %v2764
    %v2766 = vcombine.low %v2710, %v2742
    %v2767 = vcombine.high %v2710, %v2742
    %v2768 = vcombine.low %v2717, %v2749
    %v2769 = vcombine.high %v2717, %v2749
    %v2770 = vcombine.low %v2726, %v2758
    %v2771 = vcombine.high %v2726, %v2758
    %v2772 = vcombine.low %v2733, %v2765
    %v2773 = vcombine.high %v2733, %v2765
    %v2774 = vcombine.low %v137, %v201
    %v2775 = vcombine.high %v137, %v201
    %v2777 = vunpack.c.l.s4 1983009808
    %v2778 = vunpack.c.0.s8 %v2777
    %v2779 = vlaneseq
    %v2780 = vshrl.u32 %v2779, 7
    %v2781 = vsub.s32 %v2778, %v2780
    %v2782 = vrot.slane %v2774, %v2781
    %v2784 = vunpack.c.l.s4 1983009808
    %v2785 = vunpack.c.0.s8 %v2784
    %v2786 = vlaneseq
    %v2787 = vshrl.u32 %v2786, 7
    %v2788 = vsub.s32 %v2785, %v2787
    %v2789 = vrot.slane %v2775, %v2788
    %v2790 = vcombine.low %v169, %v233
    %v2791 = vcombine.high %v169, %v233
    %v2793 = vunpack.c.l.s4 1983009808
    %v2794 = vunpack.c.0.s8 %v2793
    %v2795 = vlaneseq
    %v2796 = vshrl.u32 %v2795, 7
    %v2797 = vsub.s32 %v2794, %v2796
    %v2798 = vrot.slane %v2790, %v2797
    %v2800 = vunpack.c.l.s4 1983009808
    %v2801 = vunpack.c.0.s8 %v2800
    %v2802 = vlaneseq
    %v2803 = vshrl.u32 %v2802, 7
    %v2804 = vsub.s32 %v2801, %v2803
    %v2805 = vrot.slane %v2791, %v2804
    %v2806 = vcombine.low %v265, %v329
    %v2807 = vcombine.high %v265, %v329
    %v2809 = vunpack.c.l.s4 1983009808
    %v2810 = vunpack.c.0.s8 %v2809
    %v2811 = vlaneseq
    %v2812 = vshrl.u32 %v2811, 7
    %v2813 = vsub.s32 %v2810, %v2812
    %v2814 = vrot.slane %v2806, %v2813
    %v2816 = vunpack.c.l.s4 1983009808
    %v2817 = vunpack.c.0.s8 %v2816
    %v2818 = vlaneseq
    %v2819 = vshrl.u32 %v2818, 7
    %v2820 = vsub.s32 %v2817, %v2819
    %v2821 = vrot.slane %v2807, %v2820
    %v2822 = vcombine.low %v297, %v361
    %v2823 = vcombine.high %v297, %v361
    %v2825 = vunpack.c.l.s4 1983009808
    %v2826 = vunpack.c.0.s8 %v2825
    %v2827 = vlaneseq
    %v2828 = vshrl.u32 %v2827, 7
    %v2829 = vsub.s32 %v2826, %v2828
    %v2830 = vrot.slane %v2822, %v2829
    %v2832 = vunpack.c.l.s4 1983009808
    %v2833 = vunpack.c.0.s8 %v2832
    %v2834 = vlaneseq
    %v2835 = vshrl.u32 %v2834, 7
    %v2836 = vsub.s32 %v2833, %v2835
    %v2837 = vrot.slane %v2823, %v2836
    %v2838 = vcombine.low %v2782, %v2798
    %v2839 = vcombine.high %v2782, %v2798
    %v2841 = vunpack.c.l.s4 1934713408
    %v2842 = vunpack.c.0.s8 %v2841
    %v2843 = vlaneseq
    %v2844 = vshrl.u32 %v2843, 7
    %v2845 = vsub.s32 %v2842, %v2844
    %v2846 = vrot.slane %v2838, %v2845
    %v2848 = vunpack.c.l.s4 1934713408
    %v2849 = vunpack.c.0.s8 %v2848
    %v2850 = vlaneseq
    %v2851 = vshrl.u32 %v2850, 7
    %v2852 = vsub.s32 %v2849, %v2851
    %v2853 = vrot.slane %v2839, %v2852
    %v2854 = vcombine.low %v2789, %v2805
    %v2855 = vcombine.high %v2789, %v2805
    %v2857 = vunpack.c.l.s4 1934713408
    %v2858 = vunpack.c.0.s8 %v2857
    %v2859 = vlaneseq
    %v2860 = vshrl.u32 %v2859, 7
    %v2861 = vsub.s32 %v2858, %v2860
    %v2862 = vrot.slane %v2854, %v2861
    %v2864 = vunpack.c.l.s4 1934713408
    %v2865 = vunpack.c.0.s8 %v2864
    %v2866 = vlaneseq
    %v2867 = vshrl.u32 %v2866, 7
    %v2868 = vsub.s32 %v2865, %v2867
    %v2869 = vrot.slane %v2855, %v2868
    %v2870 = vcombine.low %v2814, %v2830
    %v2871 = vcombine.high %v2814, %v2830
    %v2873 = vunpack.c.l.s4 1934713408
    %v2874 = vunpack.c.0.s8 %v2873
    %v2875 = vlaneseq
    %v2876 = vshrl.u32 %v2875, 7
    %v2877 = vsub.s32 %v2874, %v2876
    %v2878 = vrot.slane %v2870, %v2877
    %v2880 = vunpack.c.l.s4 1934713408
    %v2881 = vunpack.c.0.s8 %v2880
    %v2882 = vlaneseq
    %v2883 = vshrl.u32 %v2882, 7
    %v2884 = vsub.s32 %v2881, %v2883
    %v2885 = vrot.slane %v2871, %v2884
    %v2886 = vcombine.low %v2821, %v2837
    %v2887 = vcombine.high %v2821, %v2837
    %v2889 = vunpack.c.l.s4 1934713408
    %v2890 = vunpack.c.0.s8 %v2889
    %v2891 = vlaneseq
    %v2892 = vshrl.u32 %v2891, 7
    %v2893 = vsub.s32 %v2890, %v2892
    %v2894 = vrot.slane %v2886, %v2893
    %v2896 = vunpack.c.l.s4 1934713408
    %v2897 = vunpack.c.0.s8 %v2896
    %v2898 = vlaneseq
    %v2899 = vshrl.u32 %v2898, 7
    %v2900 = vsub.s32 %v2897, %v2899
    %v2901 = vrot.slane %v2887, %v2900
    %v2902 = vcombine.low %v2846, %v2878
    %v2903 = vcombine.high %v2846, %v2878
    %v2904 = vcombine.low %v2853, %v2885
    %v2905 = vcombine.high %v2853, %v2885
    %v2906 = vcombine.low %v2862, %v2894
    %v2907 = vcombine.high %v2862, %v2894
    %v2908 = vcombine.low %v2869, %v2901
    %v2909 = vcombine.high %v2869, %v2901
    %v2910 = vcombine.low %v393, %v457
    %v2911 = vcombine.high %v393, %v457
    %v2913 = vunpack.c.l.s4 1983009808
    %v2914 = vunpack.c.0.s8 %v2913
    %v2915 = vlaneseq
    %v2916 = vshrl.u32 %v2915, 7
    %v2917 = vsub.s32 %v2914, %v2916
    %v2918 = vrot.slane %v2910, %v2917
    %v2920 = vunpack.c.l.s4 1983009808
    %v2921 = vunpack.c.0.s8 %v2920
    %v2922 = vlaneseq
    %v2923 = vshrl.u32 %v2922, 7
    %v2924 = vsub.s32 %v2921, %v2923
    %v2925 = vrot.slane %v2911, %v2924
    %v2926 = vcombine.low %v425, %v489
    %v2927 = vcombine.high %v425, %v489
    %v2929 = vunpack.c.l.s4 1983009808
    %v2930 = vunpack.c.0.s8 %v2929
    %v2931 = vlaneseq
    %v2932 = vshrl.u32 %v2931, 7
    %v2933 = vsub.s32 %v2930, %v2932
    %v2934 = vrot.slane %v2926, %v2933
    %v2936 = vunpack.c.l.s4 1983009808
    %v2937 = vunpack.c.0.s8 %v2936
    %v2938 = vlaneseq
    %v2939 = vshrl.u32 %v2938, 7
    %v2940 = vsub.s32 %v2937, %v2939
    %v2941 = vrot.slane %v2927, %v2940
    %v2942 = vcombine.low %v521, %v585
    %v2943 = vcombine.high %v521, %v585
    %v2945 = vunpack.c.l.s4 1983009808
    %v2946 = vunpack.c.0.s8 %v2945
    %v2947 = vlaneseq
    %v2948 = vshrl.u32 %v2947, 7
    %v2949 = vsub.s32 %v2946, %v2948
    %v2950 = vrot.slane %v2942, %v2949
    %v2952 = vunpack.c.l.s4 1983009808
    %v2953 = vunpack.c.0.s8 %v2952
    %v2954 = vlaneseq
    %v2955 = vshrl.u32 %v2954, 7
    %v2956 = vsub.s32 %v2953, %v2955
    %v2957 = vrot.slane %v2943, %v2956
    %v2958 = vcombine.low %v553, %v617
    %v2959 = vcombine.high %v553, %v617
    %v2961 = vunpack.c.l.s4 1983009808
    %v2962 = vunpack.c.0.s8 %v2961
    %v2963 = vlaneseq
    %v2964 = vshrl.u32 %v2963, 7
    %v2965 = vsub.s32 %v2962, %v2964
    %v2966 = vrot.slane %v2958, %v2965
    %v2968 = vunpack.c.l.s4 1983009808
    %v2969 = vunpack.c.0.s8 %v2968
    %v2970 = vlaneseq
    %v2971 = vshrl.u32 %v2970, 7
    %v2972 = vsub.s32 %v2969, %v2971
    %v2973 = vrot.slane %v2959, %v2972
    %v2974 = vcombine.low %v2918, %v2934
    %v2975 = vcombine.high %v2918, %v2934
    %v2977 = vunpack.c.l.s4 1934713408
    %v2978 = vunpack.c.0.s8 %v2977
    %v2979 = vlaneseq
    %v2980 = vshrl.u32 %v2979, 7
    %v2981 = vsub.s32 %v2978, %v2980
    %v2982 = vrot.slane %v2974, %v2981
    %v2984 = vunpack.c.l.s4 1934713408
    %v2985 = vunpack.c.0.s8 %v2984
    %v2986 = vlaneseq
    %v2987 = vshrl.u32 %v2986, 7
    %v2988 = vsub.s32 %v2985, %v2987
    %v2989 = vrot.slane %v2975, %v2988
    %v2990 = vcombine.low %v2925, %v2941
    %v2991 = vcombine.high %v2925, %v2941
    %v2993 = vunpack.c.l.s4 1934713408
    %v2994 = vunpack.c.0.s8 %v2993
    %v2995 = vlaneseq
    %v2996 = vshrl.u32 %v2995, 7
    %v2997 = vsub.s32 %v2994, %v2996
    %v2998 = vrot.slane %v2990, %v2997
    %v3000 = vunpack.c.l.s4 1934713408
    %v3001 = vunpack.c.0.s8 %v3000
    %v3002 = vlaneseq
    %v3003 = vshrl.u32 %v3002, 7
    %v3004 = vsub.s32 %v3001, %v3003
    %v3005 = vrot.slane %v2991, %v3004
    %v3006 = vcombine.low %v2950, %v2966
    %v3007 = vcombine.high %v2950, %v2966
    %v3009 = vunpack.c.l.s4 1934713408
    %v3010 = vunpack.c.0.s8 %v3009
    %v3011 = vlaneseq
    %v3012 = vshrl.u32 %v3011, 7
    %v3013 = vsub.s32 %v3010, %v3012
    %v3014 = vrot.slane %v3006, %v3013
    %v3016 = vunpack.c.l.s4 1934713408
    %v3017 = vunpack.c.0.s8 %v3016
    %v3018 = vlaneseq
    %v3019 = vshrl.u32 %v3018, 7
    %v3020 = vsub.s32 %v3017, %v3019
    %v3021 = vrot.slane %v3007, %v3020
    %v3022 = vcombine.low %v2957, %v2973
    %v3023 = vcombine.high %v2957, %v2973
    %v3025 = vunpack.c.l.s4 1934713408
    %v3026 = vunpack.c.0.s8 %v3025
    %v3027 = vlaneseq
    %v3028 = vshrl.u32 %v3027, 7
    %v3029 = vsub.s32 %v3026, %v3028
    %v3030 = vrot.slane %v3022, %v3029
    %v3032 = vunpack.c.l.s4 1934713408
    %v3033 = vunpack.c.0.s8 %v3032
    %v3034 = vlaneseq
    %v3035 = vshrl.u32 %v3034, 7
    %v3036 = vsub.s32 %v3033, %v3035
    %v3037 = vrot.slane %v3023, %v3036
    %v3038 = vcombine.low %v2982, %v3014
    %v3039 = vcombine.high %v2982, %v3014
    %v3040 = vcombine.low %v2989, %v3021
    %v3041 = vcombine.high %v2989, %v3021
    %v3042 = vcombine.low %v2998, %v3030
    %v3043 = vcombine.high %v2998, %v3030
    %v3044 = vcombine.low %v3005, %v3037
    %v3045 = vcombine.high %v3005, %v3037
    %v3046 = vcombine.low %v649, %v713
    %v3047 = vcombine.high %v649, %v713
    %v3049 = vunpack.c.l.s4 1983009808
    %v3050 = vunpack.c.0.s8 %v3049
    %v3051 = vlaneseq
    %v3052 = vshrl.u32 %v3051, 7
    %v3053 = vsub.s32 %v3050, %v3052
    %v3054 = vrot.slane %v3046, %v3053
    %v3056 = vunpack.c.l.s4 1983009808
    %v3057 = vunpack.c.0.s8 %v3056
    %v3058 = vlaneseq
    %v3059 = vshrl.u32 %v3058, 7
    %v3060 = vsub.s32 %v3057, %v3059
    %v3061 = vrot.slane %v3047, %v3060
    %v3062 = vcombine.low %v681, %v745
    %v3063 = vcombine.high %v681, %v745
    %v3065 = vunpack.c.l.s4 1983009808
    %v3066 = vunpack.c.0.s8 %v3065
    %v3067 = vlaneseq
    %v3068 = vshrl.u32 %v3067, 7
    %v3069 = vsub.s32 %v3066, %v3068
    %v3070 = vrot.slane %v3062, %v3069
    %v3072 = vunpack.c.l.s4 1983009808
    %v3073 = vunpack.c.0.s8 %v3072
    %v3074 = vlaneseq
    %v3075 = vshrl.u32 %v3074, 7
    %v3076 = vsub.s32 %v3073, %v3075
    %v3077 = vrot.slane %v3063, %v3076
    %v3078 = vcombine.low %v777, %v841
    %v3079 = vcombine.high %v777, %v841
    %v3081 = vunpack.c.l.s4 1983009808
    %v3082 = vunpack.c.0.s8 %v3081
    %v3083 = vlaneseq
    %v3084 = vshrl.u32 %v3083, 7
    %v3085 = vsub.s32 %v3082, %v3084
    %v3086 = vrot.slane %v3078, %v3085
    %v3088 = vunpack.c.l.s4 1983009808
    %v3089 = vunpack.c.0.s8 %v3088
    %v3090 = vlaneseq
    %v3091 = vshrl.u32 %v3090, 7
    %v3092 = vsub.s32 %v3089, %v3091
    %v3093 = vrot.slane %v3079, %v3092
    %v3094 = vcombine.low %v809, %v873
    %v3095 = vcombine.high %v809, %v873
    %v3097 = vunpack.c.l.s4 1983009808
    %v3098 = vunpack.c.0.s8 %v3097
    %v3099 = vlaneseq
    %v3100 = vshrl.u32 %v3099, 7
    %v3101 = vsub.s32 %v3098, %v3100
    %v3102 = vrot.slane %v3094, %v3101
    %v3104 = vunpack.c.l.s4 1983009808
    %v3105 = vunpack.c.0.s8 %v3104
    %v3106 = vlaneseq
    %v3107 = vshrl.u32 %v3106, 7
    %v3108 = vsub.s32 %v3105, %v3107
    %v3109 = vrot.slane %v3095, %v3108
    %v3110 = vcombine.low %v3054, %v3070
    %v3111 = vcombine.high %v3054, %v3070
    %v3113 = vunpack.c.l.s4 1934713408
    %v3114 = vunpack.c.0.s8 %v3113
    %v3115 = vlaneseq
    %v3116 = vshrl.u32 %v3115, 7
    %v3117 = vsub.s32 %v3114, %v3116
    %v3118 = vrot.slane %v3110, %v3117
    %v3120 = vunpack.c.l.s4 1934713408
    %v3121 = vunpack.c.0.s8 %v3120
    %v3122 = vlaneseq
    %v3123 = vshrl.u32 %v3122, 7
    %v3124 = vsub.s32 %v3121, %v3123
    %v3125 = vrot.slane %v3111, %v3124
    %v3126 = vcombine.low %v3061, %v3077
    %v3127 = vcombine.high %v3061, %v3077
    %v3129 = vunpack.c.l.s4 1934713408
    %v3130 = vunpack.c.0.s8 %v3129
    %v3131 = vlaneseq
    %v3132 = vshrl.u32 %v3131, 7
    %v3133 = vsub.s32 %v3130, %v3132
    %v3134 = vrot.slane %v3126, %v3133
    %v3136 = vunpack.c.l.s4 1934713408
    %v3137 = vunpack.c.0.s8 %v3136
    %v3138 = vlaneseq
    %v3139 = vshrl.u32 %v3138, 7
    %v3140 = vsub.s32 %v3137, %v3139
    %v3141 = vrot.slane %v3127, %v3140
    %v3142 = vcombine.low %v3086, %v3102
    %v3143 = vcombine.high %v3086, %v3102
    %v3145 = vunpack.c.l.s4 1934713408
    %v3146 = vunpack.c.0.s8 %v3145
    %v3147 = vlaneseq
    %v3148 = vshrl.u32 %v3147, 7
    %v3149 = vsub.s32 %v3146, %v3148
    %v3150 = vrot.slane %v3142, %v3149
    %v3152 = vunpack.c.l.s4 1934713408
    %v3153 = vunpack.c.0.s8 %v3152
    %v3154 = vlaneseq
    %v3155 = vshrl.u32 %v3154, 7
    %v3156 = vsub.s32 %v3153, %v3155
    %v3157 = vrot.slane %v3143, %v3156
    %v3158 = vcombine.low %v3093, %v3109
    %v3159 = vcombine.high %v3093, %v3109
    %v3161 = vunpack.c.l.s4 1934713408
    %v3162 = vunpack.c.0.s8 %v3161
    %v3163 = vlaneseq
    %v3164 = vshrl.u32 %v3163, 7
    %v3165 = vsub.s32 %v3162, %v3164
    %v3166 = vrot.slane %v3158, %v3165
    %v3168 = vunpack.c.l.s4 1934713408
    %v3169 = vunpack.c.0.s8 %v3168
    %v3170 = vlaneseq
    %v3171 = vshrl.u32 %v3170, 7
    %v3172 = vsub.s32 %v3169, %v3171
    %v3173 = vrot.slane %v3159, %v3172
    %v3174 = vcombine.low %v3118, %v3150
    %v3175 = vcombine.high %v3118, %v3150
    %v3176 = vcombine.low %v3125, %v3157
    %v3177 = vcombine.high %v3125, %v3157
    %v3178 = vcombine.low %v3134, %v3166
    %v3179 = vcombine.high %v3134, %v3166
    %v3180 = vcombine.low %v3141, %v3173
    %v3181 = vcombine.high %v3141, %v3173
    %v3182 = vcombine.low %v905, %v969
    %v3183 = vcombine.high %v905, %v969
    %v3185 = vunpack.c.l.s4 1983009808
    %v3186 = vunpack.c.0.s8 %v3185
    %v3187 = vlaneseq
    %v3188 = vshrl.u32 %v3187, 7
    %v3189 = vsub.s32 %v3186, %v3188
    %v3190 = vrot.slane %v3182, %v3189
    %v3192 = vunpack.c.l.s4 1983009808
    %v3193 = vunpack.c.0.s8 %v3192
    %v3194 = vlaneseq
    %v3195 = vshrl.u32 %v3194, 7
    %v3196 = vsub.s32 %v3193, %v3195
    %v3197 = vrot.slane %v3183, %v3196
    %v3198 = vcombine.low %v937, %v1001
    %v3199 = vcombine.high %v937, %v1001
    %v3201 = vunpack.c.l.s4 1983009808
    %v3202 = vunpack.c.0.s8 %v3201
    %v3203 = vlaneseq
    %v3204 = vshrl.u32 %v3203, 7
    %v3205 = vsub.s32 %v3202, %v3204
    %v3206 = vrot.slane %v3198, %v3205
    %v3208 = vunpack.c.l.s4 1983009808
    %v3209 = vunpack.c.0.s8 %v3208
    %v3210 = vlaneseq
    %v3211 = vshrl.u32 %v3210, 7
    %v3212 = vsub.s32 %v3209, %v3211
    %v3213 = vrot.slane %v3199, %v3212
    %v3214 = vcombine.low %v1033, %v1097
    %v3215 = vcombine.high %v1033, %v1097
    %v3217 = vunpack.c.l.s4 1983009808
    %v3218 = vunpack.c.0.s8 %v3217
    %v3219 = vlaneseq
    %v3220 = vshrl.u32 %v3219, 7
    %v3221 = vsub.s32 %v3218, %v3220
    %v3222 = vrot.slane %v3214, %v3221
    %v3224 = vunpack.c.l.s4 1983009808
    %v3225 = vunpack.c.0.s8 %v3224
    %v3226 = vlaneseq
    %v3227 = vshrl.u32 %v3226, 7
    %v3228 = vsub.s32 %v3225, %v3227
    %v3229 = vrot.slane %v3215, %v3228
    %v3230 = vcombine.low %v1065, %v1129
    %v3231 = vcombine.high %v1065, %v1129
    %v3233 = vunpack.c.l.s4 1983009808
    %v3234 = vunpack.c.0.s8 %v3233
    %v3235 = vlaneseq
    %v3236 = vshrl.u32 %v3235, 7
    %v3237 = vsub.s32 %v3234, %v3236
    %v3238 = vrot.slane %v3230, %v3237
    %v3240 = vunpack.c.l.s4 1983009808
    %v3241 = vunpack.c.0.s8 %v3240
    %v3242 = vlaneseq
    %v3243 = vshrl.u32 %v3242, 7
    %v3244 = vsub.s32 %v3241, %v3243
    %v3245 = vrot.slane %v3231, %v3244
    %v3246 = vcombine.low %v3190, %v3206
    %v3247 = vcombine.high %v3190, %v3206
    %v3249 = vunpack.c.l.s4 1934713408
    %v3250 = vunpack.c.0.s8 %v3249
    %v3251 = vlaneseq
    %v3252 = vshrl.u32 %v3251, 7
    %v3253 = vsub.s32 %v3250, %v3252
    %v3254 = vrot.slane %v3246, %v3253
    %v3256 = vunpack.c.l.s4 1934713408
    %v3257 = vunpack.c.0.s8 %v3256
    %v3258 = vlaneseq
    %v3259 = vshrl.u32 %v3258, 7
    %v3260 = vsub.s32 %v3257, %v3259
    %v3261 = vrot.slane %v3247, %v3260
    %v3262 = vcombine.low %v3197, %v3213
    %v3263 = vcombine.high %v3197, %v3213
    %v3265 = vunpack.c.l.s4 1934713408
    %v3266 = vunpack.c.0.s8 %v3265
    %v3267 = vlaneseq
    %v3268 = vshrl.u32 %v3267, 7
    %v3269 = vsub.s32 %v3266, %v3268
    %v3270 = vrot.slane %v3262, %v3269
    %v3272 = vunpack.c.l.s4 1934713408
    %v3273 = vunpack.c.0.s8 %v3272
    %v3274 = vlaneseq
    %v3275 = vshrl.u32 %v3274, 7
    %v3276 = vsub.s32 %v3273, %v3275
    %v3277 = vrot.slane %v3263, %v3276
    %v3278 = vcombine.low %v3222, %v3238
    %v3279 = vcombine.high %v3222, %v3238
    %v3281 = vunpack.c.l.s4 1934713408
    %v3282 = vunpack.c.0.s8 %v3281
    %v3283 = vlaneseq
    %v3284 = vshrl.u32 %v3283, 7
    %v3285 = vsub.s32 %v3282, %v3284
    %v3286 = vrot.slane %v3278, %v3285
    %v3288 = vunpack.c.l.s4 1934713408
    %v3289 = vunpack.c.0.s8 %v3288
    %v3290 = vlaneseq
    %v3291 = vshrl.u32 %v3290, 7
    %v3292 = vsub.s32 %v3289, %v3291
    %v3293 = vrot.slane %v3279, %v3292
    %v3294 = vcombine.low %v3229, %v3245
    %v3295 = vcombine.high %v3229, %v3245
    %v3297 = vunpack.c.l.s4 1934713408
    %v3298 = vunpack.c.0.s8 %v3297
    %v3299 = vlaneseq
    %v3300 = vshrl.u32 %v3299, 7
    %v3301 = vsub.s32 %v3298, %v3300
    %v3302 = vrot.slane %v3294, %v3301
    %v3304 = vunpack.c.l.s4 1934713408
    %v3305 = vunpack.c.0.s8 %v3304
    %v3306 = vlaneseq
    %v3307 = vshrl.u32 %v3306, 7
    %v3308 = vsub.s32 %v3305, %v3307
    %v3309 = vrot.slane %v3295, %v3308
    %v3310 = vcombine.low %v3254, %v3286
    %v3311 = vcombine.high %v3254, %v3286
    %v3312 = vcombine.low %v3261, %v3293
    %v3313 = vcombine.high %v3261, %v3293
    %v3314 = vcombine.low %v3270, %v3302
    %v3315 = vcombine.high %v3270, %v3302
    %v3316 = vcombine.low %v3277, %v3309
    %v3317 = vcombine.high %v3277, %v3309
    %v3318 = vcombine.low %v138, %v202
    %v3319 = vcombine.high %v138, %v202
    %v3321 = vunpack.c.l.s4 1983009808
    %v3322 = vunpack.c.0.s8 %v3321
    %v3323 = vlaneseq
    %v3324 = vshrl.u32 %v3323, 7
    %v3325 = vsub.s32 %v3322, %v3324
    %v3326 = vrot.slane %v3318, %v3325
    %v3328 = vunpack.c.l.s4 1983009808
    %v3329 = vunpack.c.0.s8 %v3328
    %v3330 = vlaneseq
    %v3331 = vshrl.u32 %v3330, 7
    %v3332 = vsub.s32 %v3329, %v3331
    %v3333 = vrot.slane %v3319, %v3332
    %v3334 = vcombine.low %v170, %v234
    %v3335 = vcombine.high %v170, %v234
    %v3337 = vunpack.c.l.s4 1983009808
    %v3338 = vunpack.c.0.s8 %v3337
    %v3339 = vlaneseq
    %v3340 = vshrl.u32 %v3339, 7
    %v3341 = vsub.s32 %v3338, %v3340
    %v3342 = vrot.slane %v3334, %v3341
    %v3344 = vunpack.c.l.s4 1983009808
    %v3345 = vunpack.c.0.s8 %v3344
    %v3346 = vlaneseq
    %v3347 = vshrl.u32 %v3346, 7
    %v3348 = vsub.s32 %v3345, %v3347
    %v3349 = vrot.slane %v3335, %v3348
    %v3350 = vcombine.low %v266, %v330
    %v3351 = vcombine.high %v266, %v330
    %v3353 = vunpack.c.l.s4 1983009808
    %v3354 = vunpack.c.0.s8 %v3353
    %v3355 = vlaneseq
    %v3356 = vshrl.u32 %v3355, 7
    %v3357 = vsub.s32 %v3354, %v3356
    %v3358 = vrot.slane %v3350, %v3357
    %v3360 = vunpack.c.l.s4 1983009808
    %v3361 = vunpack.c.0.s8 %v3360
    %v3362 = vlaneseq
    %v3363 = vshrl.u32 %v3362, 7
    %v3364 = vsub.s32 %v3361, %v3363
    %v3365 = vrot.slane %v3351, %v3364
    %v3366 = vcombine.low %v298, %v362
    %v3367 = vcombine.high %v298, %v362
    %v3369 = vunpack.c.l.s4 1983009808
    %v3370 = vunpack.c.0.s8 %v3369
    %v3371 = vlaneseq
    %v3372 = vshrl.u32 %v3371, 7
    %v3373 = vsub.s32 %v3370, %v3372
    %v3374 = vrot.slane %v3366, %v3373
    %v3376 = vunpack.c.l.s4 1983009808
    %v3377 = vunpack.c.0.s8 %v3376
    %v3378 = vlaneseq
    %v3379 = vshrl.u32 %v3378, 7
    %v3380 = vsub.s32 %v3377, %v3379
    %v3381 = vrot.slane %v3367, %v3380
    %v3382 = vcombine.low %v3326, %v3342
    %v3383 = vcombine.high %v3326, %v3342
    %v3385 = vunpack.c.l.s4 1934713408
    %v3386 = vunpack.c.0.s8 %v3385
    %v3387 = vlaneseq
    %v3388 = vshrl.u32 %v3387, 7
    %v3389 = vsub.s32 %v3386, %v3388
    %v3390 = vrot.slane %v3382, %v3389
    %v3392 = vunpack.c.l.s4 1934713408
    %v3393 = vunpack.c.0.s8 %v3392
    %v3394 = vlaneseq
    %v3395 = vshrl.u32 %v3394, 7
    %v3396 = vsub.s32 %v3393, %v3395
    %v3397 = vrot.slane %v3383, %v3396
    %v3398 = vcombine.low %v3333, %v3349
    %v3399 = vcombine.high %v3333, %v3349
    %v3401 = vunpack.c.l.s4 1934713408
    %v3402 = vunpack.c.0.s8 %v3401
    %v3403 = vlaneseq
    %v3404 = vshrl.u32 %v3403, 7
    %v3405 = vsub.s32 %v3402, %v3404
    %v3406 = vrot.slane %v3398, %v3405
    %v3408 = vunpack.c.l.s4 1934713408
    %v3409 = vunpack.c.0.s8 %v3408
    %v3410 = vlaneseq
    %v3411 = vshrl.u32 %v3410, 7
    %v3412 = vsub.s32 %v3409, %v3411
    %v3413 = vrot.slane %v3399, %v3412
    %v3414 = vcombine.low %v3358, %v3374
    %v3415 = vcombine.high %v3358, %v3374
    %v3417 = vunpack.c.l.s4 1934713408
    %v3418 = vunpack.c.0.s8 %v3417
    %v3419 = vlaneseq
    %v3420 = vshrl.u32 %v3419, 7
    %v3421 = vsub.s32 %v3418, %v3420
    %v3422 = vrot.slane %v3414, %v3421
    %v3424 = vunpack.c.l.s4 1934713408
    %v3425 = vunpack.c.0.s8 %v3424
    %v3426 = vlaneseq
    %v3427 = vshrl.u32 %v3426, 7
    %v3428 = vsub.s32 %v3425, %v3427
    %v3429 = vrot.slane %v3415, %v3428
    %v3430 = vcombine.low %v3365, %v3381
    %v3431 = vcombine.high %v3365, %v3381
    %v3433 = vunpack.c.l.s4 1934713408
    %v3434 = vunpack.c.0.s8 %v3433
    %v3435 = vlaneseq
    %v3436 = vshrl.u32 %v3435, 7
    %v3437 = vsub.s32 %v3434, %v3436
    %v3438 = vrot.slane %v3430, %v3437
    %v3440 = vunpack.c.l.s4 1934713408
    %v3441 = vunpack.c.0.s8 %v3440
    %v3442 = vlaneseq
    %v3443 = vshrl.u32 %v3442, 7
    %v3444 = vsub.s32 %v3441, %v3443
    %v3445 = vrot.slane %v3431, %v3444
    %v3446 = vcombine.low %v3390, %v3422
    %v3447 = vcombine.high %v3390, %v3422
    %v3448 = vcombine.low %v3397, %v3429
    %v3449 = vcombine.high %v3397, %v3429
    %v3450 = vcombine.low %v3406, %v3438
    %v3451 = vcombine.high %v3406, %v3438
    %v3452 = vcombine.low %v3413, %v3445
    %v3453 = vcombine.high %v3413, %v3445
    %v3454 = vcombine.low %v394, %v458
    %v3455 = vcombine.high %v394, %v458
    %v3457 = vunpack.c.l.s4 1983009808
    %v3458 = vunpack.c.0.s8 %v3457
    %v3459 = vlaneseq
    %v3460 = vshrl.u32 %v3459, 7
    %v3461 = vsub.s32 %v3458, %v3460
    %v3462 = vrot.slane %v3454, %v3461
    %v3464 = vunpack.c.l.s4 1983009808
    %v3465 = vunpack.c.0.s8 %v3464
    %v3466 = vlaneseq
    %v3467 = vshrl.u32 %v3466, 7
    %v3468 = vsub.s32 %v3465, %v3467
    %v3469 = vrot.slane %v3455, %v3468
    %v3470 = vcombine.low %v426, %v490
    %v3471 = vcombine.high %v426, %v490
    %v3473 = vunpack.c.l.s4 1983009808
    %v3474 = vunpack.c.0.s8 %v3473
    %v3475 = vlaneseq
    %v3476 = vshrl.u32 %v3475, 7
    %v3477 = vsub.s32 %v3474, %v3476
    %v3478 = vrot.slane %v3470, %v3477
    %v3480 = vunpack.c.l.s4 1983009808
    %v3481 = vunpack.c.0.s8 %v3480
    %v3482 = vlaneseq
    %v3483 = vshrl.u32 %v3482, 7
    %v3484 = vsub.s32 %v3481, %v3483
    %v3485 = vrot.slane %v3471, %v3484
    %v3486 = vcombine.low %v522, %v586
    %v3487 = vcombine.high %v522, %v586
    %v3489 = vunpack.c.l.s4 1983009808
    %v3490 = vunpack.c.0.s8 %v3489
    %v3491 = vlaneseq
    %v3492 = vshrl.u32 %v3491, 7
    %v3493 = vsub.s32 %v3490, %v3492
    %v3494 = vrot.slane %v3486, %v3493
    %v3496 = vunpack.c.l.s4 1983009808
    %v3497 = vunpack.c.0.s8 %v3496
    %v3498 = vlaneseq
    %v3499 = vshrl.u32 %v3498, 7
    %v3500 = vsub.s32 %v3497, %v3499
    %v3501 = vrot.slane %v3487, %v3500
    %v3502 = vcombine.low %v554, %v618
    %v3503 = vcombine.high %v554, %v618
    %v3505 = vunpack.c.l.s4 1983009808
    %v3506 = vunpack.c.0.s8 %v3505
    %v3507 = vlaneseq
    %v3508 = vshrl.u32 %v3507, 7
    %v3509 = vsub.s32 %v3506, %v3508
    %v3510 = vrot.slane %v3502, %v3509
    %v3512 = vunpack.c.l.s4 1983009808
    %v3513 = vunpack.c.0.s8 %v3512
    %v3514 = vlaneseq
    %v3515 = vshrl.u32 %v3514, 7
    %v3516 = vsub.s32 %v3513, %v3515
    %v3517 = vrot.slane %v3503, %v3516
    %v3518 = vcombine.low %v3462, %v3478
    %v3519 = vcombine.high %v3462, %v3478
    %v3521 = vunpack.c.l.s4 1934713408
    %v3522 = vunpack.c.0.s8 %v3521
    %v3523 = vlaneseq
    %v3524 = vshrl.u32 %v3523, 7
    %v3525 = vsub.s32 %v3522, %v3524
    %v3526 = vrot.slane %v3518, %v3525
    %v3528 = vunpack.c.l.s4 1934713408
    %v3529 = vunpack.c.0.s8 %v3528
    %v3530 = vlaneseq
    %v3531 = vshrl.u32 %v3530, 7
    %v3532 = vsub.s32 %v3529, %v3531
    %v3533 = vrot.slane %v3519, %v3532
    %v3534 = vcombine.low %v3469, %v3485
    %v3535 = vcombine.high %v3469, %v3485
    %v3537 = vunpack.c.l.s4 1934713408
    %v3538 = vunpack.c.0.s8 %v3537
    %v3539 = vlaneseq
    %v3540 = vshrl.u32 %v3539, 7
    %v3541 = vsub.s32 %v3538, %v3540
    %v3542 = vrot.slane %v3534, %v3541
    %v3544 = vunpack.c.l.s4 1934713408
    %v3545 = vunpack.c.0.s8 %v3544
    %v3546 = vlaneseq
    %v3547 = vshrl.u32 %v3546, 7
    %v3548 = vsub.s32 %v3545, %v3547
    %v3549 = vrot.slane %v3535, %v3548
    %v3550 = vcombine.low %v3494, %v3510
    %v3551 = vcombine.high %v3494, %v3510
    %v3553 = vunpack.c.l.s4 1934713408
    %v3554 = vunpack.c.0.s8 %v3553
    %v3555 = vlaneseq
    %v3556 = vshrl.u32 %v3555, 7
    %v3557 = vsub.s32 %v3554, %v3556
    %v3558 = vrot.slane %v3550, %v3557
    %v3560 = vunpack.c.l.s4 1934713408
    %v3561 = vunpack.c.0.s8 %v3560
    %v3562 = vlaneseq
    %v3563 = vshrl.u32 %v3562, 7
    %v3564 = vsub.s32 %v3561, %v3563
    %v3565 = vrot.slane %v3551, %v3564
    %v3566 = vcombine.low %v3501, %v3517
    %v3567 = vcombine.high %v3501, %v3517
    %v3569 = vunpack.c.l.s4 1934713408
    %v3570 = vunpack.c.0.s8 %v3569
    %v3571 = vlaneseq
    %v3572 = vshrl.u32 %v3571, 7
    %v3573 = vsub.s32 %v3570, %v3572
    %v3574 = vrot.slane %v3566, %v3573
    %v3576 = vunpack.c.l.s4 1934713408
    %v3577 = vunpack.c.0.s8 %v3576
    %v3578 = vlaneseq
    %v3579 = vshrl.u32 %v3578, 7
    %v3580 = vsub.s32 %v3577, %v3579
    %v3581 = vrot.slane %v3567, %v3580
    %v3582 = vcombine.low %v3526, %v3558
    %v3583 = vcombine.high %v3526, %v3558
    %v3584 = vcombine.low %v3533, %v3565
    %v3585 = vcombine.high %v3533, %v3565
    %v3586 = vcombine.low %v3542, %v3574
    %v3587 = vcombine.high %v3542, %v3574
    %v3588 = vcombine.low %v3549, %v3581
    %v3589 = vcombine.high %v3549, %v3581
    %v3590 = vcombine.low %v650, %v714
    %v3591 = vcombine.high %v650, %v714
    %v3593 = vunpack.c.l.s4 1983009808
    %v3594 = vunpack.c.0.s8 %v3593
    %v3595 = vlaneseq
    %v3596 = vshrl.u32 %v3595, 7
    %v3597 = vsub.s32 %v3594, %v3596
    %v3598 = vrot.slane %v3590, %v3597
    %v3600 = vunpack.c.l.s4 1983009808
    %v3601 = vunpack.c.0.s8 %v3600
    %v3602 = vlaneseq
    %v3603 = vshrl.u32 %v3602, 7
    %v3604 = vsub.s32 %v3601, %v3603
    %v3605 = vrot.slane %v3591, %v3604
    %v3606 = vcombine.low %v682, %v746
    %v3607 = vcombine.high %v682, %v746
    %v3609 = vunpack.c.l.s4 1983009808
    %v3610 = vunpack.c.0.s8 %v3609
    %v3611 = vlaneseq
    %v3612 = vshrl.u32 %v3611, 7
    %v3613 = vsub.s32 %v3610, %v3612
    %v3614 = vrot.slane %v3606, %v3613
    %v3616 = vunpack.c.l.s4 1983009808
    %v3617 = vunpack.c.0.s8 %v3616
    %v3618 = vlaneseq
    %v3619 = vshrl.u32 %v3618, 7
    %v3620 = vsub.s32 %v3617, %v3619
    %v3621 = vrot.slane %v3607, %v3620
    %v3622 = vcombine.low %v778, %v842
    %v3623 = vcombine.high %v778, %v842
    %v3625 = vunpack.c.l.s4 1983009808
    %v3626 = vunpack.c.0.s8 %v3625
    %v3627 = vlaneseq
    %v3628 = vshrl.u32 %v3627, 7
    %v3629 = vsub.s32 %v3626, %v3628
    %v3630 = vrot.slane %v3622, %v3629
    %v3632 = vunpack.c.l.s4 1983009808
    %v3633 = vunpack.c.0.s8 %v3632
    %v3634 = vlaneseq
    %v3635 = vshrl.u32 %v3634, 7
    %v3636 = vsub.s32 %v3633, %v3635
    %v3637 = vrot.slane %v3623, %v3636
    %v3638 = vcombine.low %v810, %v874
    %v3639 = vcombine.high %v810, %v874
    %v3641 = vunpack.c.l.s4 1983009808
    %v3642 = vunpack.c.0.s8 %v3641
    %v3643 = vlaneseq
    %v3644 = vshrl.u32 %v3643, 7
    %v3645 = vsub.s32 %v3642, %v3644
    %v3646 = vrot.slane %v3638, %v3645
    %v3648 = vunpack.c.l.s4 1983009808
    %v3649 = vunpack.c.0.s8 %v3648
    %v3650 = vlaneseq
    %v3651 = vshrl.u32 %v3650, 7
    %v3652 = vsub.s32 %v3649, %v3651
    %v3653 = vrot.slane %v3639, %v3652
    %v3654 = vcombine.low %v3598, %v3614
    %v3655 = vcombine.high %v3598, %v3614
    %v3657 = vunpack.c.l.s4 1934713408
    %v3658 = vunpack.c.0.s8 %v3657
    %v3659 = vlaneseq
    %v3660 = vshrl.u32 %v3659, 7
    %v3661 = vsub.s32 %v3658, %v3660
    %v3662 = vrot.slane %v3654, %v3661
    %v3664 = vunpack.c.l.s4 1934713408
    %v3665 = vunpack.c.0.s8 %v3664
    %v3666 = vlaneseq
    %v3667 = vshrl.u32 %v3666, 7
    %v3668 = vsub.s32 %v3665, %v3667
    %v3669 = vrot.slane %v3655, %v3668
    %v3670 = vcombine.low %v3605, %v3621
    %v3671 = vcombine.high %v3605, %v3621
    %v3673 = vunpack.c.l.s4 1934713408
    %v3674 = vunpack.c.0.s8 %v3673
    %v3675 = vlaneseq
    %v3676 = vshrl.u32 %v3675, 7
    %v3677 = vsub.s32 %v3674, %v3676
    %v3678 = vrot.slane %v3670, %v3677
    %v3680 = vunpack.c.l.s4 1934713408
    %v3681 = vunpack.c.0.s8 %v3680
    %v3682 = vlaneseq
    %v3683 = vshrl.u32 %v3682, 7
    %v3684 = vsub.s32 %v3681, %v3683
    %v3685 = vrot.slane %v3671, %v3684
    %v3686 = vcombine.low %v3630, %v3646
    %v3687 = vcombine.high %v3630, %v3646
    %v3689 = vunpack.c.l.s4 1934713408
    %v3690 = vunpack.c.0.s8 %v3689
    %v3691 = vlaneseq
    %v3692 = vshrl.u32 %v3691, 7
    %v3693 = vsub.s32 %v3690, %v3692
    %v3694 = vrot.slane %v3686, %v3693
    %v3696 = vunpack.c.l.s4 1934713408
    %v3697 = vunpack.c.0.s8 %v3696
    %v3698 = vlaneseq
    %v3699 = vshrl.u32 %v3698, 7
    %v3700 = vsub.s32 %v3697, %v3699
    %v3701 = vrot.slane %v3687, %v3700
    %v3702 = vcombine.low %v3637, %v3653
    %v3703 = vcombine.high %v3637, %v3653
    %v3705 = vunpack.c.l.s4 1934713408
    %v3706 = vunpack.c.0.s8 %v3705
    %v3707 = vlaneseq
    %v3708 = vshrl.u32 %v3707, 7
    %v3709 = vsub.s32 %v3706, %v3708
    %v3710 = vrot.slane %v3702, %v3709
    %v3712 = vunpack.c.l.s4 1934713408
    %v3713 = vunpack.c.0.s8 %v3712
    %v3714 = vlaneseq
    %v3715 = vshrl.u32 %v3714, 7
    %v3716 = vsub.s32 %v3713, %v3715
    %v3717 = vrot.slane %v3703, %v3716
    %v3718 = vcombine.low %v3662, %v3694
    %v3719 = vcombine.high %v3662, %v3694
    %v3720 = vcombine.low %v3669, %v3701
    %v3721 = vcombine.high %v3669, %v3701
    %v3722 = vcombine.low %v3678, %v3710
    %v3723 = vcombine.high %v3678, %v3710
    %v3724 = vcombine.low %v3685, %v3717
    %v3725 = vcombine.high %v3685, %v3717
    %v3726 = vcombine.low %v906, %v970
    %v3727 = vcombine.high %v906, %v970
    %v3729 = vunpack.c.l.s4 1983009808
    %v3730 = vunpack.c.0.s8 %v3729
    %v3731 = vlaneseq
    %v3732 = vshrl.u32 %v3731, 7
    %v3733 = vsub.s32 %v3730, %v3732
    %v3734 = vrot.slane %v3726, %v3733
    %v3736 = vunpack.c.l.s4 1983009808
    %v3737 = vunpack.c.0.s8 %v3736
    %v3738 = vlaneseq
    %v3739 = vshrl.u32 %v3738, 7
    %v3740 = vsub.s32 %v3737, %v3739
    %v3741 = vrot.slane %v3727, %v3740
    %v3742 = vcombine.low %v938, %v1002
    %v3743 = vcombine.high %v938, %v1002
    %v3745 = vunpack.c.l.s4 1983009808
    %v3746 = vunpack.c.0.s8 %v3745
    %v3747 = vlaneseq
    %v3748 = vshrl.u32 %v3747, 7
    %v3749 = vsub.s32 %v3746, %v3748
    %v3750 = vrot.slane %v3742, %v3749
    %v3752 = vunpack.c.l.s4 1983009808
    %v3753 = vunpack.c.0.s8 %v3752
    %v3754 = vlaneseq
    %v3755 = vshrl.u32 %v3754, 7
    %v3756 = vsub.s32 %v3753, %v3755
    %v3757 = vrot.slane %v3743, %v3756
    %v3758 = vcombine.low %v1034, %v1098
    %v3759 = vcombine.high %v1034, %v1098
    %v3761 = vunpack.c.l.s4 1983009808
    %v3762 = vunpack.c.0.s8 %v3761
    %v3763 = vlaneseq
    %v3764 = vshrl.u32 %v3763, 7
    %v3765 = vsub.s32 %v3762, %v3764
    %v3766 = vrot.slane %v3758, %v3765
    %v3768 = vunpack.c.l.s4 1983009808
    %v3769 = vunpack.c.0.s8 %v3768
    %v3770 = vlaneseq
    %v3771 = vshrl.u32 %v3770, 7
    %v3772 = vsub.s32 %v3769, %v3771
    %v3773 = vrot.slane %v3759, %v3772
    %v3774 = vcombine.low %v1066, %v1130
    %v3775 = vcombine.high %v1066, %v1130
    %v3777 = vunpack.c.l.s4 1983009808
    %v3778 = vunpack.c.0.s8 %v3777
    %v3779 = vlaneseq
    %v3780 = vshrl.u32 %v3779, 7
    %v3781 = vsub.s32 %v3778, %v3780
    %v3782 = vrot.slane %v3774, %v3781
    %v3784 = vunpack.c.l.s4 1983009808
    %v3785 = vunpack.c.0.s8 %v3784
    %v3786 = vlaneseq
    %v3787 = vshrl.u32 %v3786, 7
    %v3788 = vsub.s32 %v3785, %v3787
    %v3789 = vrot.slane %v3775, %v3788
    %v3790 = vcombine.low %v3734, %v3750
    %v3791 = vcombine.high %v3734, %v3750
    %v3793 = vunpack.c.l.s4 1934713408
    %v3794 = vunpack.c.0.s8 %v3793
    %v3795 = vlaneseq
    %v3796 = vshrl.u32 %v3795, 7
    %v3797 = vsub.s32 %v3794, %v3796
    %v3798 = vrot.slane %v3790, %v3797
    %v3800 = vunpack.c.l.s4 1934713408
    %v3801 = vunpack.c.0.s8 %v3800
    %v3802 = vlaneseq
    %v3803 = vshrl.u32 %v3802, 7
    %v3804 = vsub.s32 %v3801, %v3803
    %v3805 = vrot.slane %v3791, %v3804
    %v3806 = vcombine.low %v3741, %v3757
    %v3807 = vcombine.high %v3741, %v3757
    %v3809 = vunpack.c.l.s4 1934713408
    %v3810 = vunpack.c.0.s8 %v3809
    %v3811 = vlaneseq
    %v3812 = vshrl.u32 %v3811, 7
    %v3813 = vsub.s32 %v3810, %v3812
    %v3814 = vrot.slane %v3806, %v3813
    %v3816 = vunpack.c.l.s4 1934713408
    %v3817 = vunpack.c.0.s8 %v3816
    %v3818 = vlaneseq
    %v3819 = vshrl.u32 %v3818, 7
    %v3820 = vsub.s32 %v3817, %v3819
    %v3821 = vrot.slane %v3807, %v3820
    %v3822 = vcombine.low %v3766, %v3782
    %v3823 = vcombine.high %v3766, %v3782
    %v3825 = vunpack.c.l.s4 1934713408
    %v3826 = vunpack.c.0.s8 %v3825
    %v3827 = vlaneseq
    %v3828 = vshrl.u32 %v3827, 7
    %v3829 = vsub.s32 %v3826, %v3828
    %v3830 = vrot.slane %v3822, %v3829
    %v3832 = vunpack.c.l.s4 1934713408
    %v3833 = vunpack.c.0.s8 %v3832
    %v3834 = vlaneseq
    %v3835 = vshrl.u32 %v3834, 7
    %v3836 = vsub.s32 %v3833, %v3835
    %v3837 = vrot.slane %v3823, %v3836
    %v3838 = vcombine.low %v3773, %v3789
    %v3839 = vcombine.high %v3773, %v3789
    %v3841 = vunpack.c.l.s4 1934713408
    %v3842 = vunpack.c.0.s8 %v3841
    %v3843 = vlaneseq
    %v3844 = vshrl.u32 %v3843, 7
    %v3845 = vsub.s32 %v3842, %v3844
    %v3846 = vrot.slane %v3838, %v3845
    %v3848 = vunpack.c.l.s4 1934713408
    %v3849 = vunpack.c.0.s8 %v3848
    %v3850 = vlaneseq
    %v3851 = vshrl.u32 %v3850, 7
    %v3852 = vsub.s32 %v3849, %v3851
    %v3853 = vrot.slane %v3839, %v3852
    %v3854 = vcombine.low %v3798, %v3830
    %v3855 = vcombine.high %v3798, %v3830
    %v3856 = vcombine.low %v3805, %v3837
    %v3857 = vcombine.high %v3805, %v3837
    %v3858 = vcombine.low %v3814, %v3846
    %v3859 = vcombine.high %v3814, %v3846
    %v3860 = vcombine.low %v3821, %v3853
    %v3861 = vcombine.high %v3821, %v3853
    %v3862 = vcombine.low %v139, %v203
    %v3863 = vcombine.high %v139, %v203
    %v3865 = vunpack.c.l.s4 1983009808
    %v3866 = vunpack.c.0.s8 %v3865
    %v3867 = vlaneseq
    %v3868 = vshrl.u32 %v3867, 7
    %v3869 = vsub.s32 %v3866, %v3868
    %v3870 = vrot.slane %v3862, %v3869
    %v3872 = vunpack.c.l.s4 1983009808
    %v3873 = vunpack.c.0.s8 %v3872
    %v3874 = vlaneseq
    %v3875 = vshrl.u32 %v3874, 7
    %v3876 = vsub.s32 %v3873, %v3875
    %v3877 = vrot.slane %v3863, %v3876
    %v3878 = vcombine.low %v171, %v235
    %v3879 = vcombine.high %v171, %v235
    %v3881 = vunpack.c.l.s4 1983009808
    %v3882 = vunpack.c.0.s8 %v3881
    %v3883 = vlaneseq
    %v3884 = vshrl.u32 %v3883, 7
    %v3885 = vsub.s32 %v3882, %v3884
    %v3886 = vrot.slane %v3878, %v3885
    %v3888 = vunpack.c.l.s4 1983009808
    %v3889 = vunpack.c.0.s8 %v3888
    %v3890 = vlaneseq
    %v3891 = vshrl.u32 %v3890, 7
    %v3892 = vsub.s32 %v3889, %v3891
    %v3893 = vrot.slane %v3879, %v3892
    %v3894 = vcombine.low %v267, %v331
    %v3895 = vcombine.high %v267, %v331
    %v3897 = vunpack.c.l.s4 1983009808
    %v3898 = vunpack.c.0.s8 %v3897
    %v3899 = vlaneseq
    %v3900 = vshrl.u32 %v3899, 7
    %v3901 = vsub.s32 %v3898, %v3900
    %v3902 = vrot.slane %v3894, %v3901
    %v3904 = vunpack.c.l.s4 1983009808
    %v3905 = vunpack.c.0.s8 %v3904
    %v3906 = vlaneseq
    %v3907 = vshrl.u32 %v3906, 7
    %v3908 = vsub.s32 %v3905, %v3907
    %v3909 = vrot.slane %v3895, %v3908
    %v3910 = vcombine.low %v299, %v363
    %v3911 = vcombine.high %v299, %v363
    %v3913 = vunpack.c.l.s4 1983009808
    %v3914 = vunpack.c.0.s8 %v3913
    %v3915 = vlaneseq
    %v3916 = vshrl.u32 %v3915, 7
    %v3917 = vsub.s32 %v3914, %v3916
    %v3918 = vrot.slane %v3910, %v3917
    %v3920 = vunpack.c.l.s4 1983009808
    %v3921 = vunpack.c.0.s8 %v3920
    %v3922 = vlaneseq
    %v3923 = vshrl.u32 %v3922, 7
    %v3924 = vsub.s32 %v3921, %v3923
    %v3925 = vrot.slane %v3911, %v3924
    %v3926 = vcombine.low %v3870, %v3886
    %v3927 = vcombine.high %v3870, %v3886
    %v3929 = vunpack.c.l.s4 1934713408
    %v3930 = vunpack.c.0.s8 %v3929
    %v3931 = vlaneseq
    %v3932 = vshrl.u32 %v3931, 7
    %v3933 = vsub.s32 %v3930, %v3932
    %v3934 = vrot.slane %v3926, %v3933
    %v3936 = vunpack.c.l.s4 1934713408
    %v3937 = vunpack.c.0.s8 %v3936
    %v3938 = vlaneseq
    %v3939 = vshrl.u32 %v3938, 7
    %v3940 = vsub.s32 %v3937, %v3939
    %v3941 = vrot.slane %v3927, %v3940
    %v3942 = vcombine.low %v3877, %v3893
    %v3943 = vcombine.high %v3877, %v3893
    %v3945 = vunpack.c.l.s4 1934713408
    %v3946 = vunpack.c.0.s8 %v3945
    %v3947 = vlaneseq
    %v3948 = vshrl.u32 %v3947, 7
    %v3949 = vsub.s32 %v3946, %v3948
    %v3950 = vrot.slane %v3942, %v3949
    %v3952 = vunpack.c.l.s4 1934713408
    %v3953 = vunpack.c.0.s8 %v3952
    %v3954 = vlaneseq
    %v3955 = vshrl.u32 %v3954, 7
    %v3956 = vsub.s32 %v3953, %v3955
    %v3957 = vrot.slane %v3943, %v3956
    %v3958 = vcombine.low %v3902, %v3918
    %v3959 = vcombine.high %v3902, %v3918
    %v3961 = vunpack.c.l.s4 1934713408
    %v3962 = vunpack.c.0.s8 %v3961
    %v3963 = vlaneseq
    %v3964 = vshrl.u32 %v3963, 7
    %v3965 = vsub.s32 %v3962, %v3964
    %v3966 = vrot.slane %v3958, %v3965
    %v3968 = vunpack.c.l.s4 1934713408
    %v3969 = vunpack.c.0.s8 %v3968
    %v3970 = vlaneseq
    %v3971 = vshrl.u32 %v3970, 7
    %v3972 = vsub.s32 %v3969, %v3971
    %v3973 = vrot.slane %v3959, %v3972
    %v3974 = vcombine.low %v3909, %v3925
    %v3975 = vcombine.high %v3909, %v3925
    %v3977 = vunpack.c.l.s4 1934713408
    %v3978 = vunpack.c.0.s8 %v3977
    %v3979 = vlaneseq
    %v3980 = vshrl.u32 %v3979, 7
    %v3981 = vsub.s32 %v3978, %v3980
    %v3982 = vrot.slane %v3974, %v3981
    %v3984 = vunpack.c.l.s4 1934713408
    %v3985 = vunpack.c.0.s8 %v3984
    %v3986 = vlaneseq
    %v3987 = vshrl.u32 %v3986, 7
    %v3988 = vsub.s32 %v3985, %v3987
    %v3989 = vrot.slane %v3975, %v3988
    %v3990 = vcombine.low %v3934, %v3966
    %v3991 = vcombine.high %v3934, %v3966
    %v3992 = vcombine.low %v3941, %v3973
    %v3993 = vcombine.high %v3941, %v3973
    %v3994 = vcombine.low %v3950, %v3982
    %v3995 = vcombine.high %v3950, %v3982
    %v3996 = vcombine.low %v3957, %v3989
    %v3997 = vcombine.high %v3957, %v3989
    %v3998 = vcombine.low %v395, %v459
    %v3999 = vcombine.high %v395, %v459
    %v4001 = vunpack.c.l.s4 1983009808
    %v4002 = vunpack.c.0.s8 %v4001
    %v4003 = vlaneseq
    %v4004 = vshrl.u32 %v4003, 7
    %v4005 = vsub.s32 %v4002, %v4004
    %v4006 = vrot.slane %v3998, %v4005
    %v4008 = vunpack.c.l.s4 1983009808
    %v4009 = vunpack.c.0.s8 %v4008
    %v4010 = vlaneseq
    %v4011 = vshrl.u32 %v4010, 7
    %v4012 = vsub.s32 %v4009, %v4011
    %v4013 = vrot.slane %v3999, %v4012
    %v4014 = vcombine.low %v427, %v491
    %v4015 = vcombine.high %v427, %v491
    %v4017 = vunpack.c.l.s4 1983009808
    %v4018 = vunpack.c.0.s8 %v4017
    %v4019 = vlaneseq
    %v4020 = vshrl.u32 %v4019, 7
    %v4021 = vsub.s32 %v4018, %v4020
    %v4022 = vrot.slane %v4014, %v4021
    %v4024 = vunpack.c.l.s4 1983009808
    %v4025 = vunpack.c.0.s8 %v4024
    %v4026 = vlaneseq
    %v4027 = vshrl.u32 %v4026, 7
    %v4028 = vsub.s32 %v4025, %v4027
    %v4029 = vrot.slane %v4015, %v4028
    %v4030 = vcombine.low %v523, %v587
    %v4031 = vcombine.high %v523, %v587
    %v4033 = vunpack.c.l.s4 1983009808
    %v4034 = vunpack.c.0.s8 %v4033
    %v4035 = vlaneseq
    %v4036 = vshrl.u32 %v4035, 7
    %v4037 = vsub.s32 %v4034, %v4036
    %v4038 = vrot.slane %v4030, %v4037
    %v4040 = vunpack.c.l.s4 1983009808
    %v4041 = vunpack.c.0.s8 %v4040
    %v4042 = vlaneseq
    %v4043 = vshrl.u32 %v4042, 7
    %v4044 = vsub.s32 %v4041, %v4043
    %v4045 = vrot.slane %v4031, %v4044
    %v4046 = vcombine.low %v555, %v619
    %v4047 = vcombine.high %v555, %v619
    %v4049 = vunpack.c.l.s4 1983009808
    %v4050 = vunpack.c.0.s8 %v4049
    %v4051 = vlaneseq
    %v4052 = vshrl.u32 %v4051, 7
    %v4053 = vsub.s32 %v4050, %v4052
    %v4054 = vrot.slane %v4046, %v4053
    %v4056 = vunpack.c.l.s4 1983009808
    %v4057 = vunpack.c.0.s8 %v4056
    %v4058 = vlaneseq
    %v4059 = vshrl.u32 %v4058, 7
    %v4060 = vsub.s32 %v4057, %v4059
    %v4061 = vrot.slane %v4047, %v4060
    %v4062 = vcombine.low %v4006, %v4022
    %v4063 = vcombine.high %v4006, %v4022
    %v4065 = vunpack.c.l.s4 1934713408
    %v4066 = vunpack.c.0.s8 %v4065
    %v4067 = vlaneseq
    %v4068 = vshrl.u32 %v4067, 7
    %v4069 = vsub.s32 %v4066, %v4068
    %v4070 = vrot.slane %v4062, %v4069
    %v4072 = vunpack.c.l.s4 1934713408
    %v4073 = vunpack.c.0.s8 %v4072
    %v4074 = vlaneseq
    %v4075 = vshrl.u32 %v4074, 7
    %v4076 = vsub.s32 %v4073, %v4075
    %v4077 = vrot.slane %v4063, %v4076
    %v4078 = vcombine.low %v4013, %v4029
    %v4079 = vcombine.high %v4013, %v4029
    %v4081 = vunpack.c.l.s4 1934713408
    %v4082 = vunpack.c.0.s8 %v4081
    %v4083 = vlaneseq
    %v4084 = vshrl.u32 %v4083, 7
    %v4085 = vsub.s32 %v4082, %v4084
    %v4086 = vrot.slane %v4078, %v4085
    %v4088 = vunpack.c.l.s4 1934713408
    %v4089 = vunpack.c.0.s8 %v4088
    %v4090 = vlaneseq
    %v4091 = vshrl.u32 %v4090, 7
    %v4092 = vsub.s32 %v4089, %v4091
    %v4093 = vrot.slane %v4079, %v4092
    %v4094 = vcombine.low %v4038, %v4054
    %v4095 = vcombine.high %v4038, %v4054
    %v4097 = vunpack.c.l.s4 1934713408
    %v4098 = vunpack.c.0.s8 %v4097
    %v4099 = vlaneseq
    %v4100 = vshrl.u32 %v4099, 7
    %v4101 = vsub.s32 %v4098, %v4100
    %v4102 = vrot.slane %v4094, %v4101
    %v4104 = vunpack.c.l.s4 1934713408
    %v4105 = vunpack.c.0.s8 %v4104
    %v4106 = vlaneseq
    %v4107 = vshrl.u32 %v4106, 7
    %v4108 = vsub.s32 %v4105, %v4107
    %v4109 = vrot.slane %v4095, %v4108
    %v4110 = vcombine.low %v4045, %v4061
    %v4111 = vcombine.high %v4045, %v4061
    %v4113 = vunpack.c.l.s4 1934713408
    %v4114 = vunpack.c.0.s8 %v4113
    %v4115 = vlaneseq
    %v4116 = vshrl.u32 %v4115, 7
    %v4117 = vsub.s32 %v4114, %v4116
    %v4118 = vrot.slane %v4110, %v4117
    %v4120 = vunpack.c.l.s4 1934713408
    %v4121 = vunpack.c.0.s8 %v4120
    %v4122 = vlaneseq
    %v4123 = vshrl.u32 %v4122, 7
    %v4124 = vsub.s32 %v4121, %v4123
    %v4125 = vrot.slane %v4111, %v4124
    %v4126 = vcombine.low %v4070, %v4102
    %v4127 = vcombine.high %v4070, %v4102
    %v4128 = vcombine.low %v4077, %v4109
    %v4129 = vcombine.high %v4077, %v4109
    %v4130 = vcombine.low %v4086, %v4118
    %v4131 = vcombine.high %v4086, %v4118
    %v4132 = vcombine.low %v4093, %v4125
    %v4133 = vcombine.high %v4093, %v4125
    %v4134 = vcombine.low %v651, %v715
    %v4135 = vcombine.high %v651, %v715
    %v4137 = vunpack.c.l.s4 1983009808
    %v4138 = vunpack.c.0.s8 %v4137
    %v4139 = vlaneseq
    %v4140 = vshrl.u32 %v4139, 7
    %v4141 = vsub.s32 %v4138, %v4140
    %v4142 = vrot.slane %v4134, %v4141
    %v4144 = vunpack.c.l.s4 1983009808
    %v4145 = vunpack.c.0.s8 %v4144
    %v4146 = vlaneseq
    %v4147 = vshrl.u32 %v4146, 7
    %v4148 = vsub.s32 %v4145, %v4147
    %v4149 = vrot.slane %v4135, %v4148
    %v4150 = vcombine.low %v683, %v747
    %v4151 = vcombine.high %v683, %v747
    %v4153 = vunpack.c.l.s4 1983009808
    %v4154 = vunpack.c.0.s8 %v4153
    %v4155 = vlaneseq
    %v4156 = vshrl.u32 %v4155, 7
    %v4157 = vsub.s32 %v4154, %v4156
    %v4158 = vrot.slane %v4150, %v4157
    %v4160 = vunpack.c.l.s4 1983009808
    %v4161 = vunpack.c.0.s8 %v4160
    %v4162 = vlaneseq
    %v4163 = vshrl.u32 %v4162, 7
    %v4164 = vsub.s32 %v4161, %v4163
    %v4165 = vrot.slane %v4151, %v4164
    %v4166 = vcombine.low %v779, %v843
    %v4167 = vcombine.high %v779, %v843
    %v4169 = vunpack.c.l.s4 1983009808
    %v4170 = vunpack.c.0.s8 %v4169
    %v4171 = vlaneseq
    %v4172 = vshrl.u32 %v4171, 7
    %v4173 = vsub.s32 %v4170, %v4172
    %v4174 = vrot.slane %v4166, %v4173
    %v4176 = vunpack.c.l.s4 1983009808
    %v4177 = vunpack.c.0.s8 %v4176
    %v4178 = vlaneseq
    %v4179 = vshrl.u32 %v4178, 7
    %v4180 = vsub.s32 %v4177, %v4179
    %v4181 = vrot.slane %v4167, %v4180
    %v4182 = vcombine.low %v811, %v875
    %v4183 = vcombine.high %v811, %v875
    %v4185 = vunpack.c.l.s4 1983009808
    %v4186 = vunpack.c.0.s8 %v4185
    %v4187 = vlaneseq
    %v4188 = vshrl.u32 %v4187, 7
    %v4189 = vsub.s32 %v4186, %v4188
    %v4190 = vrot.slane %v4182, %v4189
    %v4192 = vunpack.c.l.s4 1983009808
    %v4193 = vunpack.c.0.s8 %v4192
    %v4194 = vlaneseq
    %v4195 = vshrl.u32 %v4194, 7
    %v4196 = vsub.s32 %v4193, %v4195
    %v4197 = vrot.slane %v4183, %v4196
    %v4198 = vcombine.low %v4142, %v4158
    %v4199 = vcombine.high %v4142, %v4158
    %v4201 = vunpack.c.l.s4 1934713408
    %v4202 = vunpack.c.0.s8 %v4201
    %v4203 = vlaneseq
    %v4204 = vshrl.u32 %v4203, 7
    %v4205 = vsub.s32 %v4202, %v4204
    %v4206 = vrot.slane %v4198, %v4205
    %v4208 = vunpack.c.l.s4 1934713408
    %v4209 = vunpack.c.0.s8 %v4208
    %v4210 = vlaneseq
    %v4211 = vshrl.u32 %v4210, 7
    %v4212 = vsub.s32 %v4209, %v4211
    %v4213 = vrot.slane %v4199, %v4212
    %v4214 = vcombine.low %v4149, %v4165
    %v4215 = vcombine.high %v4149, %v4165
    %v4217 = vunpack.c.l.s4 1934713408
    %v4218 = vunpack.c.0.s8 %v4217
    %v4219 = vlaneseq
    %v4220 = vshrl.u32 %v4219, 7
    %v4221 = vsub.s32 %v4218, %v4220
    %v4222 = vrot.slane %v4214, %v4221
    %v4224 = vunpack.c.l.s4 1934713408
    %v4225 = vunpack.c.0.s8 %v4224
    %v4226 = vlaneseq
    %v4227 = vshrl.u32 %v4226, 7
    %v4228 = vsub.s32 %v4225, %v4227
    %v4229 = vrot.slane %v4215, %v4228
    %v4230 = vcombine.low %v4174, %v4190
    %v4231 = vcombine.high %v4174, %v4190
    %v4233 = vunpack.c.l.s4 1934713408
    %v4234 = vunpack.c.0.s8 %v4233
    %v4235 = vlaneseq
    %v4236 = vshrl.u32 %v4235, 7
    %v4237 = vsub.s32 %v4234, %v4236
    %v4238 = vrot.slane %v4230, %v4237
    %v4240 = vunpack.c.l.s4 1934713408
    %v4241 = vunpack.c.0.s8 %v4240
    %v4242 = vlaneseq
    %v4243 = vshrl.u32 %v4242, 7
    %v4244 = vsub.s32 %v4241, %v4243
    %v4245 = vrot.slane %v4231, %v4244
    %v4246 = vcombine.low %v4181, %v4197
    %v4247 = vcombine.high %v4181, %v4197
    %v4249 = vunpack.c.l.s4 1934713408
    %v4250 = vunpack.c.0.s8 %v4249
    %v4251 = vlaneseq
    %v4252 = vshrl.u32 %v4251, 7
    %v4253 = vsub.s32 %v4250, %v4252
    %v4254 = vrot.slane %v4246, %v4253
    %v4256 = vunpack.c.l.s4 1934713408
    %v4257 = vunpack.c.0.s8 %v4256
    %v4258 = vlaneseq
    %v4259 = vshrl.u32 %v4258, 7
    %v4260 = vsub.s32 %v4257, %v4259
    %v4261 = vrot.slane %v4247, %v4260
    %v4262 = vcombine.low %v4206, %v4238
    %v4263 = vcombine.high %v4206, %v4238
    %v4264 = vcombine.low %v4213, %v4245
    %v4265 = vcombine.high %v4213, %v4245
    %v4266 = vcombine.low %v4222, %v4254
    %v4267 = vcombine.high %v4222, %v4254
    %v4268 = vcombine.low %v4229, %v4261
    %v4269 = vcombine.high %v4229, %v4261
    %v4270 = vcombine.low %v907, %v971
    %v4271 = vcombine.high %v907, %v971
    %v4273 = vunpack.c.l.s4 1983009808
    %v4274 = vunpack.c.0.s8 %v4273
    %v4275 = vlaneseq
    %v4276 = vshrl.u32 %v4275, 7
    %v4277 = vsub.s32 %v4274, %v4276
    %v4278 = vrot.slane %v4270, %v4277
    %v4280 = vunpack.c.l.s4 1983009808
    %v4281 = vunpack.c.0.s8 %v4280
    %v4282 = vlaneseq
    %v4283 = vshrl.u32 %v4282, 7
    %v4284 = vsub.s32 %v4281, %v4283
    %v4285 = vrot.slane %v4271, %v4284
    %v4286 = vcombine.low %v939, %v1003
    %v4287 = vcombine.high %v939, %v1003
    %v4289 = vunpack.c.l.s4 1983009808
    %v4290 = vunpack.c.0.s8 %v4289
    %v4291 = vlaneseq
    %v4292 = vshrl.u32 %v4291, 7
    %v4293 = vsub.s32 %v4290, %v4292
    %v4294 = vrot.slane %v4286, %v4293
    %v4296 = vunpack.c.l.s4 1983009808
    %v4297 = vunpack.c.0.s8 %v4296
    %v4298 = vlaneseq
    %v4299 = vshrl.u32 %v4298, 7
    %v4300 = vsub.s32 %v4297, %v4299
    %v4301 = vrot.slane %v4287, %v4300
    %v4302 = vcombine.low %v1035, %v1099
    %v4303 = vcombine.high %v1035, %v1099
    %v4305 = vunpack.c.l.s4 1983009808
    %v4306 = vunpack.c.0.s8 %v4305
    %v4307 = vlaneseq
    %v4308 = vshrl.u32 %v4307, 7
    %v4309 = vsub.s32 %v4306, %v4308
    %v4310 = vrot.slane %v4302, %v4309
    %v4312 = vunpack.c.l.s4 1983009808
    %v4313 = vunpack.c.0.s8 %v4312
    %v4314 = vlaneseq
    %v4315 = vshrl.u32 %v4314, 7
    %v4316 = vsub.s32 %v4313, %v4315
    %v4317 = vrot.slane %v4303, %v4316
    %v4318 = vcombine.low %v1067, %v1131
    %v4319 = vcombine.high %v1067, %v1131
    %v4321 = vunpack.c.l.s4 1983009808
    %v4322 = vunpack.c.0.s8 %v4321
    %v4323 = vlaneseq
    %v4324 = vshrl.u32 %v4323, 7
    %v4325 = vsub.s32 %v4322, %v4324
    %v4326 = vrot.slane %v4318, %v4325
    %v4328 = vunpack.c.l.s4 1983009808
    %v4329 = vunpack.c.0.s8 %v4328
    %v4330 = vlaneseq
    %v4331 = vshrl.u32 %v4330, 7
    %v4332 = vsub.s32 %v4329, %v4331
    %v4333 = vrot.slane %v4319, %v4332
    %v4334 = vcombine.low %v4278, %v4294
    %v4335 = vcombine.high %v4278, %v4294
    %v4337 = vunpack.c.l.s4 1934713408
    %v4338 = vunpack.c.0.s8 %v4337
    %v4339 = vlaneseq
    %v4340 = vshrl.u32 %v4339, 7
    %v4341 = vsub.s32 %v4338, %v4340
    %v4342 = vrot.slane %v4334, %v4341
    %v4344 = vunpack.c.l.s4 1934713408
    %v4345 = vunpack.c.0.s8 %v4344
    %v4346 = vlaneseq
    %v4347 = vshrl.u32 %v4346, 7
    %v4348 = vsub.s32 %v4345, %v4347
    %v4349 = vrot.slane %v4335, %v4348
    %v4350 = vcombine.low %v4285, %v4301
    %v4351 = vcombine.high %v4285, %v4301
    %v4353 = vunpack.c.l.s4 1934713408
    %v4354 = vunpack.c.0.s8 %v4353
    %v4355 = vlaneseq
    %v4356 = vshrl.u32 %v4355, 7
    %v4357 = vsub.s32 %v4354, %v4356
    %v4358 = vrot.slane %v4350, %v4357
    %v4360 = vunpack.c.l.s4 1934713408
    %v4361 = vunpack.c.0.s8 %v4360
    %v4362 = vlaneseq
    %v4363 = vshrl.u32 %v4362, 7
    %v4364 = vsub.s32 %v4361, %v4363
    %v4365 = vrot.slane %v4351, %v4364
    %v4366 = vcombine.low %v4310, %v4326
    %v4367 = vcombine.high %v4310, %v4326
    %v4369 = vunpack.c.l.s4 1934713408
    %v4370 = vunpack.c.0.s8 %v4369
    %v4371 = vlaneseq
    %v4372 = vshrl.u32 %v4371, 7
    %v4373 = vsub.s32 %v4370, %v4372
    %v4374 = vrot.slane %v4366, %v4373
    %v4376 = vunpack.c.l.s4 1934713408
    %v4377 = vunpack.c.0.s8 %v4376
    %v4378 = vlaneseq
    %v4379 = vshrl.u32 %v4378, 7
    %v4380 = vsub.s32 %v4377, %v4379
    %v4381 = vrot.slane %v4367, %v4380
    %v4382 = vcombine.low %v4317, %v4333
    %v4383 = vcombine.high %v4317, %v4333
    %v4385 = vunpack.c.l.s4 1934713408
    %v4386 = vunpack.c.0.s8 %v4385
    %v4387 = vlaneseq
    %v4388 = vshrl.u32 %v4387, 7
    %v4389 = vsub.s32 %v4386, %v4388
    %v4390 = vrot.slane %v4382, %v4389
    %v4392 = vunpack.c.l.s4 1934713408
    %v4393 = vunpack.c.0.s8 %v4392
    %v4394 = vlaneseq
    %v4395 = vshrl.u32 %v4394, 7
    %v4396 = vsub.s32 %v4393, %v4395
    %v4397 = vrot.slane %v4383, %v4396
    %v4398 = vcombine.low %v4342, %v4374
    %v4399 = vcombine.high %v4342, %v4374
    %v4400 = vcombine.low %v4349, %v4381
    %v4401 = vcombine.high %v4349, %v4381
    %v4402 = vcombine.low %v4358, %v4390
    %v4403 = vcombine.high %v4358, %v4390
    %v4404 = vcombine.low %v4365, %v4397
    %v4405 = vcombine.high %v4365, %v4397
    %v4406 = vcombine.low %v140, %v204
    %v4407 = vcombine.high %v140, %v204
    %v4409 = vunpack.c.l.s4 1983009808
    %v4410 = vunpack.c.0.s8 %v4409
    %v4411 = vlaneseq
    %v4412 = vshrl.u32 %v4411, 7
    %v4413 = vsub.s32 %v4410, %v4412
    %v4414 = vrot.slane %v4406, %v4413
    %v4416 = vunpack.c.l.s4 1983009808
    %v4417 = vunpack.c.0.s8 %v4416
    %v4418 = vlaneseq
    %v4419 = vshrl.u32 %v4418, 7
    %v4420 = vsub.s32 %v4417, %v4419
    %v4421 = vrot.slane %v4407, %v4420
    %v4422 = vcombine.low %v172, %v236
    %v4423 = vcombine.high %v172, %v236
    %v4425 = vunpack.c.l.s4 1983009808
    %v4426 = vunpack.c.0.s8 %v4425
    %v4427 = vlaneseq
    %v4428 = vshrl.u32 %v4427, 7
    %v4429 = vsub.s32 %v4426, %v4428
    %v4430 = vrot.slane %v4422, %v4429
    %v4432 = vunpack.c.l.s4 1983009808
    %v4433 = vunpack.c.0.s8 %v4432
    %v4434 = vlaneseq
    %v4435 = vshrl.u32 %v4434, 7
    %v4436 = vsub.s32 %v4433, %v4435
    %v4437 = vrot.slane %v4423, %v4436
    %v4438 = vcombine.low %v268, %v332
    %v4439 = vcombine.high %v268, %v332
    %v4441 = vunpack.c.l.s4 1983009808
    %v4442 = vunpack.c.0.s8 %v4441
    %v4443 = vlaneseq
    %v4444 = vshrl.u32 %v4443, 7
    %v4445 = vsub.s32 %v4442, %v4444
    %v4446 = vrot.slane %v4438, %v4445
    %v4448 = vunpack.c.l.s4 1983009808
    %v4449 = vunpack.c.0.s8 %v4448
    %v4450 = vlaneseq
    %v4451 = vshrl.u32 %v4450, 7
    %v4452 = vsub.s32 %v4449, %v4451
    %v4453 = vrot.slane %v4439, %v4452
    %v4454 = vcombine.low %v300, %v364
    %v4455 = vcombine.high %v300, %v364
    %v4457 = vunpack.c.l.s4 1983009808
    %v4458 = vunpack.c.0.s8 %v4457
    %v4459 = vlaneseq
    %v4460 = vshrl.u32 %v4459, 7
    %v4461 = vsub.s32 %v4458, %v4460
    %v4462 = vrot.slane %v4454, %v4461
    %v4464 = vunpack.c.l.s4 1983009808
    %v4465 = vunpack.c.0.s8 %v4464
    %v4466 = vlaneseq
    %v4467 = vshrl.u32 %v4466, 7
    %v4468 = vsub.s32 %v4465, %v4467
    %v4469 = vrot.slane %v4455, %v4468
    %v4470 = vcombine.low %v4414, %v4430
    %v4471 = vcombine.high %v4414, %v4430
    %v4473 = vunpack.c.l.s4 1934713408
    %v4474 = vunpack.c.0.s8 %v4473
    %v4475 = vlaneseq
    %v4476 = vshrl.u32 %v4475, 7
    %v4477 = vsub.s32 %v4474, %v4476
    %v4478 = vrot.slane %v4470, %v4477
    %v4480 = vunpack.c.l.s4 1934713408
    %v4481 = vunpack.c.0.s8 %v4480
    %v4482 = vlaneseq
    %v4483 = vshrl.u32 %v4482, 7
    %v4484 = vsub.s32 %v4481, %v4483
    %v4485 = vrot.slane %v4471, %v4484
    %v4486 = vcombine.low %v4421, %v4437
    %v4487 = vcombine.high %v4421, %v4437
    %v4489 = vunpack.c.l.s4 1934713408
    %v4490 = vunpack.c.0.s8 %v4489
    %v4491 = vlaneseq
    %v4492 = vshrl.u32 %v4491, 7
    %v4493 = vsub.s32 %v4490, %v4492
    %v4494 = vrot.slane %v4486, %v4493
    %v4496 = vunpack.c.l.s4 1934713408
    %v4497 = vunpack.c.0.s8 %v4496
    %v4498 = vlaneseq
    %v4499 = vshrl.u32 %v4498, 7
    %v4500 = vsub.s32 %v4497, %v4499
    %v4501 = vrot.slane %v4487, %v4500
    %v4502 = vcombine.low %v4446, %v4462
    %v4503 = vcombine.high %v4446, %v4462
    %v4505 = vunpack.c.l.s4 1934713408
    %v4506 = vunpack.c.0.s8 %v4505
    %v4507 = vlaneseq
    %v4508 = vshrl.u32 %v4507, 7
    %v4509 = vsub.s32 %v4506, %v4508
    %v4510 = vrot.slane %v4502, %v4509
    %v4512 = vunpack.c.l.s4 1934713408
    %v4513 = vunpack.c.0.s8 %v4512
    %v4514 = vlaneseq
    %v4515 = vshrl.u32 %v4514, 7
    %v4516 = vsub.s32 %v4513, %v4515
    %v4517 = vrot.slane %v4503, %v4516
    %v4518 = vcombine.low %v4453, %v4469
    %v4519 = vcombine.high %v4453, %v4469
    %v4521 = vunpack.c.l.s4 1934713408
    %v4522 = vunpack.c.0.s8 %v4521
    %v4523 = vlaneseq
    %v4524 = vshrl.u32 %v4523, 7
    %v4525 = vsub.s32 %v4522, %v4524
    %v4526 = vrot.slane %v4518, %v4525
    %v4528 = vunpack.c.l.s4 1934713408
    %v4529 = vunpack.c.0.s8 %v4528
    %v4530 = vlaneseq
    %v4531 = vshrl.u32 %v4530, 7
    %v4532 = vsub.s32 %v4529, %v4531
    %v4533 = vrot.slane %v4519, %v4532
    %v4534 = vcombine.low %v4478, %v4510
    %v4535 = vcombine.high %v4478, %v4510
    %v4536 = vcombine.low %v4485, %v4517
    %v4537 = vcombine.high %v4485, %v4517
    %v4538 = vcombine.low %v4494, %v4526
    %v4539 = vcombine.high %v4494, %v4526
    %v4540 = vcombine.low %v4501, %v4533
    %v4541 = vcombine.high %v4501, %v4533
    %v4542 = vcombine.low %v396, %v460
    %v4543 = vcombine.high %v396, %v460
    %v4545 = vunpack.c.l.s4 1983009808
    %v4546 = vunpack.c.0.s8 %v4545
    %v4547 = vlaneseq
    %v4548 = vshrl.u32 %v4547, 7
    %v4549 = vsub.s32 %v4546, %v4548
    %v4550 = vrot.slane %v4542, %v4549
    %v4552 = vunpack.c.l.s4 1983009808
    %v4553 = vunpack.c.0.s8 %v4552
    %v4554 = vlaneseq
    %v4555 = vshrl.u32 %v4554, 7
    %v4556 = vsub.s32 %v4553, %v4555
    %v4557 = vrot.slane %v4543, %v4556
    %v4558 = vcombine.low %v428, %v492
    %v4559 = vcombine.high %v428, %v492
    %v4561 = vunpack.c.l.s4 1983009808
    %v4562 = vunpack.c.0.s8 %v4561
    %v4563 = vlaneseq
    %v4564 = vshrl.u32 %v4563, 7
    %v4565 = vsub.s32 %v4562, %v4564
    %v4566 = vrot.slane %v4558, %v4565
    %v4568 = vunpack.c.l.s4 1983009808
    %v4569 = vunpack.c.0.s8 %v4568
    %v4570 = vlaneseq
    %v4571 = vshrl.u32 %v4570, 7
    %v4572 = vsub.s32 %v4569, %v4571
    %v4573 = vrot.slane %v4559, %v4572
    %v4574 = vcombine.low %v524, %v588
    %v4575 = vcombine.high %v524, %v588
    %v4577 = vunpack.c.l.s4 1983009808
    %v4578 = vunpack.c.0.s8 %v4577
    %v4579 = vlaneseq
    %v4580 = vshrl.u32 %v4579, 7
    %v4581 = vsub.s32 %v4578, %v4580
    %v4582 = vrot.slane %v4574, %v4581
    %v4584 = vunpack.c.l.s4 1983009808
    %v4585 = vunpack.c.0.s8 %v4584
    %v4586 = vlaneseq
    %v4587 = vshrl.u32 %v4586, 7
    %v4588 = vsub.s32 %v4585, %v4587
    %v4589 = vrot.slane %v4575, %v4588
    %v4590 = vcombine.low %v556, %v620
    %v4591 = vcombine.high %v556, %v620
    %v4593 = vunpack.c.l.s4 1983009808
    %v4594 = vunpack.c.0.s8 %v4593
    %v4595 = vlaneseq
    %v4596 = vshrl.u32 %v4595, 7
    %v4597 = vsub.s32 %v4594, %v4596
    %v4598 = vrot.slane %v4590, %v4597
    %v4600 = vunpack.c.l.s4 1983009808
    %v4601 = vunpack.c.0.s8 %v4600
    %v4602 = vlaneseq
    %v4603 = vshrl.u32 %v4602, 7
    %v4604 = vsub.s32 %v4601, %v4603
    %v4605 = vrot.slane %v4591, %v4604
    %v4606 = vcombine.low %v4550, %v4566
    %v4607 = vcombine.high %v4550, %v4566
    %v4609 = vunpack.c.l.s4 1934713408
    %v4610 = vunpack.c.0.s8 %v4609
    %v4611 = vlaneseq
    %v4612 = vshrl.u32 %v4611, 7
    %v4613 = vsub.s32 %v4610, %v4612
    %v4614 = vrot.slane %v4606, %v4613
    %v4616 = vunpack.c.l.s4 1934713408
    %v4617 = vunpack.c.0.s8 %v4616
    %v4618 = vlaneseq
    %v4619 = vshrl.u32 %v4618, 7
    %v4620 = vsub.s32 %v4617, %v4619
    %v4621 = vrot.slane %v4607, %v4620
    %v4622 = vcombine.low %v4557, %v4573
    %v4623 = vcombine.high %v4557, %v4573
    %v4625 = vunpack.c.l.s4 1934713408
    %v4626 = vunpack.c.0.s8 %v4625
    %v4627 = vlaneseq
    %v4628 = vshrl.u32 %v4627, 7
    %v4629 = vsub.s32 %v4626, %v4628
    %v4630 = vrot.slane %v4622, %v4629
    %v4632 = vunpack.c.l.s4 1934713408
    %v4633 = vunpack.c.0.s8 %v4632
    %v4634 = vlaneseq
    %v4635 = vshrl.u32 %v4634, 7
    %v4636 = vsub.s32 %v4633, %v4635
    %v4637 = vrot.slane %v4623, %v4636
    %v4638 = vcombine.low %v4582, %v4598
    %v4639 = vcombine.high %v4582, %v4598
    %v4641 = vunpack.c.l.s4 1934713408
    %v4642 = vunpack.c.0.s8 %v4641
    %v4643 = vlaneseq
    %v4644 = vshrl.u32 %v4643, 7
    %v4645 = vsub.s32 %v4642, %v4644
    %v4646 = vrot.slane %v4638, %v4645
    %v4648 = vunpack.c.l.s4 1934713408
    %v4649 = vunpack.c.0.s8 %v4648
    %v4650 = vlaneseq
    %v4651 = vshrl.u32 %v4650, 7
    %v4652 = vsub.s32 %v4649, %v4651
    %v4653 = vrot.slane %v4639, %v4652
    %v4654 = vcombine.low %v4589, %v4605
    %v4655 = vcombine.high %v4589, %v4605
    %v4657 = vunpack.c.l.s4 1934713408
    %v4658 = vunpack.c.0.s8 %v4657
    %v4659 = vlaneseq
    %v4660 = vshrl.u32 %v4659, 7
    %v4661 = vsub.s32 %v4658, %v4660
    %v4662 = vrot.slane %v4654, %v4661
    %v4664 = vunpack.c.l.s4 1934713408
    %v4665 = vunpack.c.0.s8 %v4664
    %v4666 = vlaneseq
    %v4667 = vshrl.u32 %v4666, 7
    %v4668 = vsub.s32 %v4665, %v4667
    %v4669 = vrot.slane %v4655, %v4668
    %v4670 = vcombine.low %v4614, %v4646
    %v4671 = vcombine.high %v4614, %v4646
    %v4672 = vcombine.low %v4621, %v4653
    %v4673 = vcombine.high %v4621, %v4653
    %v4674 = vcombine.low %v4630, %v4662
    %v4675 = vcombine.high %v4630, %v4662
    %v4676 = vcombine.low %v4637, %v4669
    %v4677 = vcombine.high %v4637, %v4669
    %v4678 = vcombine.low %v652, %v716
    %v4679 = vcombine.high %v652, %v716
    %v4681 = vunpack.c.l.s4 1983009808
    %v4682 = vunpack.c.0.s8 %v4681
    %v4683 = vlaneseq
    %v4684 = vshrl.u32 %v4683, 7
    %v4685 = vsub.s32 %v4682, %v4684
    %v4686 = vrot.slane %v4678, %v4685
    %v4688 = vunpack.c.l.s4 1983009808
    %v4689 = vunpack.c.0.s8 %v4688
    %v4690 = vlaneseq
    %v4691 = vshrl.u32 %v4690, 7
    %v4692 = vsub.s32 %v4689, %v4691
    %v4693 = vrot.slane %v4679, %v4692
    %v4694 = vcombine.low %v684, %v748
    %v4695 = vcombine.high %v684, %v748
    %v4697 = vunpack.c.l.s4 1983009808
    %v4698 = vunpack.c.0.s8 %v4697
    %v4699 = vlaneseq
    %v4700 = vshrl.u32 %v4699, 7
    %v4701 = vsub.s32 %v4698, %v4700
    %v4702 = vrot.slane %v4694, %v4701
    %v4704 = vunpack.c.l.s4 1983009808
    %v4705 = vunpack.c.0.s8 %v4704
    %v4706 = vlaneseq
    %v4707 = vshrl.u32 %v4706, 7
    %v4708 = vsub.s32 %v4705, %v4707
    %v4709 = vrot.slane %v4695, %v4708
    %v4710 = vcombine.low %v780, %v844
    %v4711 = vcombine.high %v780, %v844
    %v4713 = vunpack.c.l.s4 1983009808
    %v4714 = vunpack.c.0.s8 %v4713
    %v4715 = vlaneseq
    %v4716 = vshrl.u32 %v4715, 7
    %v4717 = vsub.s32 %v4714, %v4716
    %v4718 = vrot.slane %v4710, %v4717
    %v4720 = vunpack.c.l.s4 1983009808
    %v4721 = vunpack.c.0.s8 %v4720
    %v4722 = vlaneseq
    %v4723 = vshrl.u32 %v4722, 7
    %v4724 = vsub.s32 %v4721, %v4723
    %v4725 = vrot.slane %v4711, %v4724
    %v4726 = vcombine.low %v812, %v876
    %v4727 = vcombine.high %v812, %v876
    %v4729 = vunpack.c.l.s4 1983009808
    %v4730 = vunpack.c.0.s8 %v4729
    %v4731 = vlaneseq
    %v4732 = vshrl.u32 %v4731, 7
    %v4733 = vsub.s32 %v4730, %v4732
    %v4734 = vrot.slane %v4726, %v4733
    %v4736 = vunpack.c.l.s4 1983009808
    %v4737 = vunpack.c.0.s8 %v4736
    %v4738 = vlaneseq
    %v4739 = vshrl.u32 %v4738, 7
    %v4740 = vsub.s32 %v4737, %v4739
    %v4741 = vrot.slane %v4727, %v4740
    %v4742 = vcombine.low %v4686, %v4702
    %v4743 = vcombine.high %v4686, %v4702
    %v4745 = vunpack.c.l.s4 1934713408
    %v4746 = vunpack.c.0.s8 %v4745
    %v4747 = vlaneseq
    %v4748 = vshrl.u32 %v4747, 7
    %v4749 = vsub.s32 %v4746, %v4748
    %v4750 = vrot.slane %v4742, %v4749
    %v4752 = vunpack.c.l.s4 1934713408
    %v4753 = vunpack.c.0.s8 %v4752
    %v4754 = vlaneseq
    %v4755 = vshrl.u32 %v4754, 7
    %v4756 = vsub.s32 %v4753, %v4755
    %v4757 = vrot.slane %v4743, %v4756
    %v4758 = vcombine.low %v4693, %v4709
    %v4759 = vcombine.high %v4693, %v4709
    %v4761 = vunpack.c.l.s4 1934713408
    %v4762 = vunpack.c.0.s8 %v4761
    %v4763 = vlaneseq
    %v4764 = vshrl.u32 %v4763, 7
    %v4765 = vsub.s32 %v4762, %v4764
    %v4766 = vrot.slane %v4758, %v4765
    %v4768 = vunpack.c.l.s4 1934713408
    %v4769 = vunpack.c.0.s8 %v4768
    %v4770 = vlaneseq
    %v4771 = vshrl.u32 %v4770, 7
    %v4772 = vsub.s32 %v4769, %v4771
    %v4773 = vrot.slane %v4759, %v4772
    %v4774 = vcombine.low %v4718, %v4734
    %v4775 = vcombine.high %v4718, %v4734
    %v4777 = vunpack.c.l.s4 1934713408
    %v4778 = vunpack.c.0.s8 %v4777
    %v4779 = vlaneseq
    %v4780 = vshrl.u32 %v4779, 7
    %v4781 = vsub.s32 %v4778, %v4780
    %v4782 = vrot.slane %v4774, %v4781
    %v4784 = vunpack.c.l.s4 1934713408
    %v4785 = vunpack.c.0.s8 %v4784
    %v4786 = vlaneseq
    %v4787 = vshrl.u32 %v4786, 7
    %v4788 = vsub.s32 %v4785, %v4787
    %v4789 = vrot.slane %v4775, %v4788
    %v4790 = vcombine.low %v4725, %v4741
    %v4791 = vcombine.high %v4725, %v4741
    %v4793 = vunpack.c.l.s4 1934713408
    %v4794 = vunpack.c.0.s8 %v4793
    %v4795 = vlaneseq
    %v4796 = vshrl.u32 %v4795, 7
    %v4797 = vsub.s32 %v4794, %v4796
    %v4798 = vrot.slane %v4790, %v4797
    %v4800 = vunpack.c.l.s4 1934713408
    %v4801 = vunpack.c.0.s8 %v4800
    %v4802 = vlaneseq
    %v4803 = vshrl.u32 %v4802, 7
    %v4804 = vsub.s32 %v4801, %v4803
    %v4805 = vrot.slane %v4791, %v4804
    %v4806 = vcombine.low %v4750, %v4782
    %v4807 = vcombine.high %v4750, %v4782
    %v4808 = vcombine.low %v4757, %v4789
    %v4809 = vcombine.high %v4757, %v4789
    %v4810 = vcombine.low %v4766, %v4798
    %v4811 = vcombine.high %v4766, %v4798
    %v4812 = vcombine.low %v4773, %v4805
    %v4813 = vcombine.high %v4773, %v4805
    %v4814 = vcombine.low %v908, %v972
    %v4815 = vcombine.high %v908, %v972
    %v4817 = vunpack.c.l.s4 1983009808
    %v4818 = vunpack.c.0.s8 %v4817
    %v4819 = vlaneseq
    %v4820 = vshrl.u32 %v4819, 7
    %v4821 = vsub.s32 %v4818, %v4820
    %v4822 = vrot.slane %v4814, %v4821
    %v4824 = vunpack.c.l.s4 1983009808
    %v4825 = vunpack.c.0.s8 %v4824
    %v4826 = vlaneseq
    %v4827 = vshrl.u32 %v4826, 7
    %v4828 = vsub.s32 %v4825, %v4827
    %v4829 = vrot.slane %v4815, %v4828
    %v4830 = vcombine.low %v940, %v1004
    %v4831 = vcombine.high %v940, %v1004
    %v4833 = vunpack.c.l.s4 1983009808
    %v4834 = vunpack.c.0.s8 %v4833
    %v4835 = vlaneseq
    %v4836 = vshrl.u32 %v4835, 7
    %v4837 = vsub.s32 %v4834, %v4836
    %v4838 = vrot.slane %v4830, %v4837
    %v4840 = vunpack.c.l.s4 1983009808
    %v4841 = vunpack.c.0.s8 %v4840
    %v4842 = vlaneseq
    %v4843 = vshrl.u32 %v4842, 7
    %v4844 = vsub.s32 %v4841, %v4843
    %v4845 = vrot.slane %v4831, %v4844
    %v4846 = vcombine.low %v1036, %v1100
    %v4847 = vcombine.high %v1036, %v1100
    %v4849 = vunpack.c.l.s4 1983009808
    %v4850 = vunpack.c.0.s8 %v4849
    %v4851 = vlaneseq
    %v4852 = vshrl.u32 %v4851, 7
    %v4853 = vsub.s32 %v4850, %v4852
    %v4854 = vrot.slane %v4846, %v4853
    %v4856 = vunpack.c.l.s4 1983009808
    %v4857 = vunpack.c.0.s8 %v4856
    %v4858 = vlaneseq
    %v4859 = vshrl.u32 %v4858, 7
    %v4860 = vsub.s32 %v4857, %v4859
    %v4861 = vrot.slane %v4847, %v4860
    %v4862 = vcombine.low %v1068, %v1132
    %v4863 = vcombine.high %v1068, %v1132
    %v4865 = vunpack.c.l.s4 1983009808
    %v4866 = vunpack.c.0.s8 %v4865
    %v4867 = vlaneseq
    %v4868 = vshrl.u32 %v4867, 7
    %v4869 = vsub.s32 %v4866, %v4868
    %v4870 = vrot.slane %v4862, %v4869
    %v4872 = vunpack.c.l.s4 1983009808
    %v4873 = vunpack.c.0.s8 %v4872
    %v4874 = vlaneseq
    %v4875 = vshrl.u32 %v4874, 7
    %v4876 = vsub.s32 %v4873, %v4875
    %v4877 = vrot.slane %v4863, %v4876
    %v4878 = vcombine.low %v4822, %v4838
    %v4879 = vcombine.high %v4822, %v4838
    %v4881 = vunpack.c.l.s4 1934713408
    %v4882 = vunpack.c.0.s8 %v4881
    %v4883 = vlaneseq
    %v4884 = vshrl.u32 %v4883, 7
    %v4885 = vsub.s32 %v4882, %v4884
    %v4886 = vrot.slane %v4878, %v4885
    %v4888 = vunpack.c.l.s4 1934713408
    %v4889 = vunpack.c.0.s8 %v4888
    %v4890 = vlaneseq
    %v4891 = vshrl.u32 %v4890, 7
    %v4892 = vsub.s32 %v4889, %v4891
    %v4893 = vrot.slane %v4879, %v4892
    %v4894 = vcombine.low %v4829, %v4845
    %v4895 = vcombine.high %v4829, %v4845
    %v4897 = vunpack.c.l.s4 1934713408
    %v4898 = vunpack.c.0.s8 %v4897
    %v4899 = vlaneseq
    %v4900 = vshrl.u32 %v4899, 7
    %v4901 = vsub.s32 %v4898, %v4900
    %v4902 = vrot.slane %v4894, %v4901
    %v4904 = vunpack.c.l.s4 1934713408
    %v4905 = vunpack.c.0.s8 %v4904
    %v4906 = vlaneseq
    %v4907 = vshrl.u32 %v4906, 7
    %v4908 = vsub.s32 %v4905, %v4907
    %v4909 = vrot.slane %v4895, %v4908
    %v4910 = vcombine.low %v4854, %v4870
    %v4911 = vcombine.high %v4854, %v4870
    %v4913 = vunpack.c.l.s4 1934713408
    %v4914 = vunpack.c.0.s8 %v4913
    %v4915 = vlaneseq
    %v4916 = vshrl.u32 %v4915, 7
    %v4917 = vsub.s32 %v4914, %v4916
    %v4918 = vrot.slane %v4910, %v4917
    %v4920 = vunpack.c.l.s4 1934713408
    %v4921 = vunpack.c.0.s8 %v4920
    %v4922 = vlaneseq
    %v4923 = vshrl.u32 %v4922, 7
    %v4924 = vsub.s32 %v4921, %v4923
    %v4925 = vrot.slane %v4911, %v4924
    %v4926 = vcombine.low %v4861, %v4877
    %v4927 = vcombine.high %v4861, %v4877
    %v4929 = vunpack.c.l.s4 1934713408
    %v4930 = vunpack.c.0.s8 %v4929
    %v4931 = vlaneseq
    %v4932 = vshrl.u32 %v4931, 7
    %v4933 = vsub.s32 %v4930, %v4932
    %v4934 = vrot.slane %v4926, %v4933
    %v4936 = vunpack.c.l.s4 1934713408
    %v4937 = vunpack.c.0.s8 %v4936
    %v4938 = vlaneseq
    %v4939 = vshrl.u32 %v4938, 7
    %v4940 = vsub.s32 %v4937, %v4939
    %v4941 = vrot.slane %v4927, %v4940
    %v4942 = vcombine.low %v4886, %v4918
    %v4943 = vcombine.high %v4886, %v4918
    %v4944 = vcombine.low %v4893, %v4925
    %v4945 = vcombine.high %v4893, %v4925
    %v4946 = vcombine.low %v4902, %v4934
    %v4947 = vcombine.high %v4902, %v4934
    %v4948 = vcombine.low %v4909, %v4941
    %v4949 = vcombine.high %v4909, %v4941
    %v4950 = vcombine.low %v141, %v205
    %v4951 = vcombine.high %v141, %v205
    %v4953 = vunpack.c.l.s4 1983009808
    %v4954 = vunpack.c.0.s8 %v4953
    %v4955 = vlaneseq
    %v4956 = vshrl.u32 %v4955, 7
    %v4957 = vsub.s32 %v4954, %v4956
    %v4958 = vrot.slane %v4950, %v4957
    %v4960 = vunpack.c.l.s4 1983009808
    %v4961 = vunpack.c.0.s8 %v4960
    %v4962 = vlaneseq
    %v4963 = vshrl.u32 %v4962, 7
    %v4964 = vsub.s32 %v4961, %v4963
    %v4965 = vrot.slane %v4951, %v4964
    %v4966 = vcombine.low %v173, %v237
    %v4967 = vcombine.high %v173, %v237
    %v4969 = vunpack.c.l.s4 1983009808
    %v4970 = vunpack.c.0.s8 %v4969
    %v4971 = vlaneseq
    %v4972 = vshrl.u32 %v4971, 7
    %v4973 = vsub.s32 %v4970, %v4972
    %v4974 = vrot.slane %v4966, %v4973
    %v4976 = vunpack.c.l.s4 1983009808
    %v4977 = vunpack.c.0.s8 %v4976
    %v4978 = vlaneseq
    %v4979 = vshrl.u32 %v4978, 7
    %v4980 = vsub.s32 %v4977, %v4979
    %v4981 = vrot.slane %v4967, %v4980
    %v4982 = vcombine.low %v269, %v333
    %v4983 = vcombine.high %v269, %v333
    %v4985 = vunpack.c.l.s4 1983009808
    %v4986 = vunpack.c.0.s8 %v4985
    %v4987 = vlaneseq
    %v4988 = vshrl.u32 %v4987, 7
    %v4989 = vsub.s32 %v4986, %v4988
    %v4990 = vrot.slane %v4982, %v4989
    %v4992 = vunpack.c.l.s4 1983009808
    %v4993 = vunpack.c.0.s8 %v4992
    %v4994 = vlaneseq
    %v4995 = vshrl.u32 %v4994, 7
    %v4996 = vsub.s32 %v4993, %v4995
    %v4997 = vrot.slane %v4983, %v4996
    %v4998 = vcombine.low %v301, %v365
    %v4999 = vcombine.high %v301, %v365
    %v5001 = vunpack.c.l.s4 1983009808
    %v5002 = vunpack.c.0.s8 %v5001
    %v5003 = vlaneseq
    %v5004 = vshrl.u32 %v5003, 7
    %v5005 = vsub.s32 %v5002, %v5004
    %v5006 = vrot.slane %v4998, %v5005
    %v5008 = vunpack.c.l.s4 1983009808
    %v5009 = vunpack.c.0.s8 %v5008
    %v5010 = vlaneseq
    %v5011 = vshrl.u32 %v5010, 7
    %v5012 = vsub.s32 %v5009, %v5011
    %v5013 = vrot.slane %v4999, %v5012
    %v5014 = vcombine.low %v4958, %v4974
    %v5015 = vcombine.high %v4958, %v4974
    %v5017 = vunpack.c.l.s4 1934713408
    %v5018 = vunpack.c.0.s8 %v5017
    %v5019 = vlaneseq
    %v5020 = vshrl.u32 %v5019, 7
    %v5021 = vsub.s32 %v5018, %v5020
    %v5022 = vrot.slane %v5014, %v5021
    %v5024 = vunpack.c.l.s4 1934713408
    %v5025 = vunpack.c.0.s8 %v5024
    %v5026 = vlaneseq
    %v5027 = vshrl.u32 %v5026, 7
    %v5028 = vsub.s32 %v5025, %v5027
    %v5029 = vrot.slane %v5015, %v5028
    %v5030 = vcombine.low %v4965, %v4981
    %v5031 = vcombine.high %v4965, %v4981
    %v5033 = vunpack.c.l.s4 1934713408
    %v5034 = vunpack.c.0.s8 %v5033
    %v5035 = vlaneseq
    %v5036 = vshrl.u32 %v5035, 7
    %v5037 = vsub.s32 %v5034, %v5036
    %v5038 = vrot.slane %v5030, %v5037
    %v5040 = vunpack.c.l.s4 1934713408
    %v5041 = vunpack.c.0.s8 %v5040
    %v5042 = vlaneseq
    %v5043 = vshrl.u32 %v5042, 7
    %v5044 = vsub.s32 %v5041, %v5043
    %v5045 = vrot.slane %v5031, %v5044
    %v5046 = vcombine.low %v4990, %v5006
    %v5047 = vcombine.high %v4990, %v5006
    %v5049 = vunpack.c.l.s4 1934713408
    %v5050 = vunpack.c.0.s8 %v5049
    %v5051 = vlaneseq
    %v5052 = vshrl.u32 %v5051, 7
    %v5053 = vsub.s32 %v5050, %v5052
    %v5054 = vrot.slane %v5046, %v5053
    %v5056 = vunpack.c.l.s4 1934713408
    %v5057 = vunpack.c.0.s8 %v5056
    %v5058 = vlaneseq
    %v5059 = vshrl.u32 %v5058, 7
    %v5060 = vsub.s32 %v5057, %v5059
    %v5061 = vrot.slane %v5047, %v5060
    %v5062 = vcombine.low %v4997, %v5013
    %v5063 = vcombine.high %v4997, %v5013
    %v5065 = vunpack.c.l.s4 1934713408
    %v5066 = vunpack.c.0.s8 %v5065
    %v5067 = vlaneseq
    %v5068 = vshrl.u32 %v5067, 7
    %v5069 = vsub.s32 %v5066, %v5068
    %v5070 = vrot.slane %v5062, %v5069
    %v5072 = vunpack.c.l.s4 1934713408
    %v5073 = vunpack.c.0.s8 %v5072
    %v5074 = vlaneseq
    %v5075 = vshrl.u32 %v5074, 7
    %v5076 = vsub.s32 %v5073, %v5075
    %v5077 = vrot.slane %v5063, %v5076
    %v5078 = vcombine.low %v5022, %v5054
    %v5079 = vcombine.high %v5022, %v5054
    %v5080 = vcombine.low %v5029, %v5061
    %v5081 = vcombine.high %v5029, %v5061
    %v5082 = vcombine.low %v5038, %v5070
    %v5083 = vcombine.high %v5038, %v5070
    %v5084 = vcombine.low %v5045, %v5077
    %v5085 = vcombine.high %v5045, %v5077
    %v5086 = vcombine.low %v397, %v461
    %v5087 = vcombine.high %v397, %v461
    %v5089 = vunpack.c.l.s4 1983009808
    %v5090 = vunpack.c.0.s8 %v5089
    %v5091 = vlaneseq
    %v5092 = vshrl.u32 %v5091, 7
    %v5093 = vsub.s32 %v5090, %v5092
    %v5094 = vrot.slane %v5086, %v5093
    %v5096 = vunpack.c.l.s4 1983009808
    %v5097 = vunpack.c.0.s8 %v5096
    %v5098 = vlaneseq
    %v5099 = vshrl.u32 %v5098, 7
    %v5100 = vsub.s32 %v5097, %v5099
    %v5101 = vrot.slane %v5087, %v5100
    %v5102 = vcombine.low %v429, %v493
    %v5103 = vcombine.high %v429, %v493
    %v5105 = vunpack.c.l.s4 1983009808
    %v5106 = vunpack.c.0.s8 %v5105
    %v5107 = vlaneseq
    %v5108 = vshrl.u32 %v5107, 7
    %v5109 = vsub.s32 %v5106, %v5108
    %v5110 = vrot.slane %v5102, %v5109
    %v5112 = vunpack.c.l.s4 1983009808
    %v5113 = vunpack.c.0.s8 %v5112
    %v5114 = vlaneseq
    %v5115 = vshrl.u32 %v5114, 7
    %v5116 = vsub.s32 %v5113, %v5115
    %v5117 = vrot.slane %v5103, %v5116
    %v5118 = vcombine.low %v525, %v589
    %v5119 = vcombine.high %v525, %v589
    %v5121 = vunpack.c.l.s4 1983009808
    %v5122 = vunpack.c.0.s8 %v5121
    %v5123 = vlaneseq
    %v5124 = vshrl.u32 %v5123, 7
    %v5125 = vsub.s32 %v5122, %v5124
    %v5126 = vrot.slane %v5118, %v5125
    %v5128 = vunpack.c.l.s4 1983009808
    %v5129 = vunpack.c.0.s8 %v5128
    %v5130 = vlaneseq
    %v5131 = vshrl.u32 %v5130, 7
    %v5132 = vsub.s32 %v5129, %v5131
    %v5133 = vrot.slane %v5119, %v5132
    %v5134 = vcombine.low %v557, %v621
    %v5135 = vcombine.high %v557, %v621
    %v5137 = vunpack.c.l.s4 1983009808
    %v5138 = vunpack.c.0.s8 %v5137
    %v5139 = vlaneseq
    %v5140 = vshrl.u32 %v5139, 7
    %v5141 = vsub.s32 %v5138, %v5140
    %v5142 = vrot.slane %v5134, %v5141
    %v5144 = vunpack.c.l.s4 1983009808
    %v5145 = vunpack.c.0.s8 %v5144
    %v5146 = vlaneseq
    %v5147 = vshrl.u32 %v5146, 7
    %v5148 = vsub.s32 %v5145, %v5147
    %v5149 = vrot.slane %v5135, %v5148
    %v5150 = vcombine.low %v5094, %v5110
    %v5151 = vcombine.high %v5094, %v5110
    %v5153 = vunpack.c.l.s4 1934713408
    %v5154 = vunpack.c.0.s8 %v5153
    %v5155 = vlaneseq
    %v5156 = vshrl.u32 %v5155, 7
    %v5157 = vsub.s32 %v5154, %v5156
    %v5158 = vrot.slane %v5150, %v5157
    %v5160 = vunpack.c.l.s4 1934713408
    %v5161 = vunpack.c.0.s8 %v5160
    %v5162 = vlaneseq
    %v5163 = vshrl.u32 %v5162, 7
    %v5164 = vsub.s32 %v5161, %v5163
    %v5165 = vrot.slane %v5151, %v5164
    %v5166 = vcombine.low %v5101, %v5117
    %v5167 = vcombine.high %v5101, %v5117
    %v5169 = vunpack.c.l.s4 1934713408
    %v5170 = vunpack.c.0.s8 %v5169
    %v5171 = vlaneseq
    %v5172 = vshrl.u32 %v5171, 7
    %v5173 = vsub.s32 %v5170, %v5172
    %v5174 = vrot.slane %v5166, %v5173
    %v5176 = vunpack.c.l.s4 1934713408
    %v5177 = vunpack.c.0.s8 %v5176
    %v5178 = vlaneseq
    %v5179 = vshrl.u32 %v5178, 7
    %v5180 = vsub.s32 %v5177, %v5179
    %v5181 = vrot.slane %v5167, %v5180
    %v5182 = vcombine.low %v5126, %v5142
    %v5183 = vcombine.high %v5126, %v5142
    %v5185 = vunpack.c.l.s4 1934713408
    %v5186 = vunpack.c.0.s8 %v5185
    %v5187 = vlaneseq
    %v5188 = vshrl.u32 %v5187, 7
    %v5189 = vsub.s32 %v5186, %v5188
    %v5190 = vrot.slane %v5182, %v5189
    %v5192 = vunpack.c.l.s4 1934713408
    %v5193 = vunpack.c.0.s8 %v5192
    %v5194 = vlaneseq
    %v5195 = vshrl.u32 %v5194, 7
    %v5196 = vsub.s32 %v5193, %v5195
    %v5197 = vrot.slane %v5183, %v5196
    %v5198 = vcombine.low %v5133, %v5149
    %v5199 = vcombine.high %v5133, %v5149
    %v5201 = vunpack.c.l.s4 1934713408
    %v5202 = vunpack.c.0.s8 %v5201
    %v5203 = vlaneseq
    %v5204 = vshrl.u32 %v5203, 7
    %v5205 = vsub.s32 %v5202, %v5204
    %v5206 = vrot.slane %v5198, %v5205
    %v5208 = vunpack.c.l.s4 1934713408
    %v5209 = vunpack.c.0.s8 %v5208
    %v5210 = vlaneseq
    %v5211 = vshrl.u32 %v5210, 7
    %v5212 = vsub.s32 %v5209, %v5211
    %v5213 = vrot.slane %v5199, %v5212
    %v5214 = vcombine.low %v5158, %v5190
    %v5215 = vcombine.high %v5158, %v5190
    %v5216 = vcombine.low %v5165, %v5197
    %v5217 = vcombine.high %v5165, %v5197
    %v5218 = vcombine.low %v5174, %v5206
    %v5219 = vcombine.high %v5174, %v5206
    %v5220 = vcombine.low %v5181, %v5213
    %v5221 = vcombine.high %v5181, %v5213
    %v5222 = vcombine.low %v653, %v717
    %v5223 = vcombine.high %v653, %v717
    %v5225 = vunpack.c.l.s4 1983009808
    %v5226 = vunpack.c.0.s8 %v5225
    %v5227 = vlaneseq
    %v5228 = vshrl.u32 %v5227, 7
    %v5229 = vsub.s32 %v5226, %v5228
    %v5230 = vrot.slane %v5222, %v5229
    %v5232 = vunpack.c.l.s4 1983009808
    %v5233 = vunpack.c.0.s8 %v5232
    %v5234 = vlaneseq
    %v5235 = vshrl.u32 %v5234, 7
    %v5236 = vsub.s32 %v5233, %v5235
    %v5237 = vrot.slane %v5223, %v5236
    %v5238 = vcombine.low %v685, %v749
    %v5239 = vcombine.high %v685, %v749
    %v5241 = vunpack.c.l.s4 1983009808
    %v5242 = vunpack.c.0.s8 %v5241
    %v5243 = vlaneseq
    %v5244 = vshrl.u32 %v5243, 7
    %v5245 = vsub.s32 %v5242, %v5244
    %v5246 = vrot.slane %v5238, %v5245
    %v5248 = vunpack.c.l.s4 1983009808
    %v5249 = vunpack.c.0.s8 %v5248
    %v5250 = vlaneseq
    %v5251 = vshrl.u32 %v5250, 7
    %v5252 = vsub.s32 %v5249, %v5251
    %v5253 = vrot.slane %v5239, %v5252
    %v5254 = vcombine.low %v781, %v845
    %v5255 = vcombine.high %v781, %v845
    %v5257 = vunpack.c.l.s4 1983009808
    %v5258 = vunpack.c.0.s8 %v5257
    %v5259 = vlaneseq
    %v5260 = vshrl.u32 %v5259, 7
    %v5261 = vsub.s32 %v5258, %v5260
    %v5262 = vrot.slane %v5254, %v5261
    %v5264 = vunpack.c.l.s4 1983009808
    %v5265 = vunpack.c.0.s8 %v5264
    %v5266 = vlaneseq
    %v5267 = vshrl.u32 %v5266, 7
    %v5268 = vsub.s32 %v5265, %v5267
    %v5269 = vrot.slane %v5255, %v5268
    %v5270 = vcombine.low %v813, %v877
    %v5271 = vcombine.high %v813, %v877
    %v5273 = vunpack.c.l.s4 1983009808
    %v5274 = vunpack.c.0.s8 %v5273
    %v5275 = vlaneseq
    %v5276 = vshrl.u32 %v5275, 7
    %v5277 = vsub.s32 %v5274, %v5276
    %v5278 = vrot.slane %v5270, %v5277
    %v5280 = vunpack.c.l.s4 1983009808
    %v5281 = vunpack.c.0.s8 %v5280
    %v5282 = vlaneseq
    %v5283 = vshrl.u32 %v5282, 7
    %v5284 = vsub.s32 %v5281, %v5283
    %v5285 = vrot.slane %v5271, %v5284
    %v5286 = vcombine.low %v5230, %v5246
    %v5287 = vcombine.high %v5230, %v5246
    %v5289 = vunpack.c.l.s4 1934713408
    %v5290 = vunpack.c.0.s8 %v5289
    %v5291 = vlaneseq
    %v5292 = vshrl.u32 %v5291, 7
    %v5293 = vsub.s32 %v5290, %v5292
    %v5294 = vrot.slane %v5286, %v5293
    %v5296 = vunpack.c.l.s4 1934713408
    %v5297 = vunpack.c.0.s8 %v5296
    %v5298 = vlaneseq
    %v5299 = vshrl.u32 %v5298, 7
    %v5300 = vsub.s32 %v5297, %v5299
    %v5301 = vrot.slane %v5287, %v5300
    %v5302 = vcombine.low %v5237, %v5253
    %v5303 = vcombine.high %v5237, %v5253
    %v5305 = vunpack.c.l.s4 1934713408
    %v5306 = vunpack.c.0.s8 %v5305
    %v5307 = vlaneseq
    %v5308 = vshrl.u32 %v5307, 7
    %v5309 = vsub.s32 %v5306, %v5308
    %v5310 = vrot.slane %v5302, %v5309
    %v5312 = vunpack.c.l.s4 1934713408
    %v5313 = vunpack.c.0.s8 %v5312
    %v5314 = vlaneseq
    %v5315 = vshrl.u32 %v5314, 7
    %v5316 = vsub.s32 %v5313, %v5315
    %v5317 = vrot.slane %v5303, %v5316
    %v5318 = vcombine.low %v5262, %v5278
    %v5319 = vcombine.high %v5262, %v5278
    %v5321 = vunpack.c.l.s4 1934713408
    %v5322 = vunpack.c.0.s8 %v5321
    %v5323 = vlaneseq
    %v5324 = vshrl.u32 %v5323, 7
    %v5325 = vsub.s32 %v5322, %v5324
    %v5326 = vrot.slane %v5318, %v5325
    %v5328 = vunpack.c.l.s4 1934713408
    %v5329 = vunpack.c.0.s8 %v5328
    %v5330 = vlaneseq
    %v5331 = vshrl.u32 %v5330, 7
    %v5332 = vsub.s32 %v5329, %v5331
    %v5333 = vrot.slane %v5319, %v5332
    %v5334 = vcombine.low %v5269, %v5285
    %v5335 = vcombine.high %v5269, %v5285
    %v5337 = vunpack.c.l.s4 1934713408
    %v5338 = vunpack.c.0.s8 %v5337
    %v5339 = vlaneseq
    %v5340 = vshrl.u32 %v5339, 7
    %v5341 = vsub.s32 %v5338, %v5340
    %v5342 = vrot.slane %v5334, %v5341
    %v5344 = vunpack.c.l.s4 1934713408
    %v5345 = vunpack.c.0.s8 %v5344
    %v5346 = vlaneseq
    %v5347 = vshrl.u32 %v5346, 7
    %v5348 = vsub.s32 %v5345, %v5347
    %v5349 = vrot.slane %v5335, %v5348
    %v5350 = vcombine.low %v5294, %v5326
    %v5351 = vcombine.high %v5294, %v5326
    %v5352 = vcombine.low %v5301, %v5333
    %v5353 = vcombine.high %v5301, %v5333
    %v5354 = vcombine.low %v5310, %v5342
    %v5355 = vcombine.high %v5310, %v5342
    %v5356 = vcombine.low %v5317, %v5349
    %v5357 = vcombine.high %v5317, %v5349
    %v5358 = vcombine.low %v909, %v973
    %v5359 = vcombine.high %v909, %v973
    %v5361 = vunpack.c.l.s4 1983009808
    %v5362 = vunpack.c.0.s8 %v5361
    %v5363 = vlaneseq
    %v5364 = vshrl.u32 %v5363, 7
    %v5365 = vsub.s32 %v5362, %v5364
    %v5366 = vrot.slane %v5358, %v5365
    %v5368 = vunpack.c.l.s4 1983009808
    %v5369 = vunpack.c.0.s8 %v5368
    %v5370 = vlaneseq
    %v5371 = vshrl.u32 %v5370, 7
    %v5372 = vsub.s32 %v5369, %v5371
    %v5373 = vrot.slane %v5359, %v5372
    %v5374 = vcombine.low %v941, %v1005
    %v5375 = vcombine.high %v941, %v1005
    %v5377 = vunpack.c.l.s4 1983009808
    %v5378 = vunpack.c.0.s8 %v5377
    %v5379 = vlaneseq
    %v5380 = vshrl.u32 %v5379, 7
    %v5381 = vsub.s32 %v5378, %v5380
    %v5382 = vrot.slane %v5374, %v5381
    %v5384 = vunpack.c.l.s4 1983009808
    %v5385 = vunpack.c.0.s8 %v5384
    %v5386 = vlaneseq
    %v5387 = vshrl.u32 %v5386, 7
    %v5388 = vsub.s32 %v5385, %v5387
    %v5389 = vrot.slane %v5375, %v5388
    %v5390 = vcombine.low %v1037, %v1101
    %v5391 = vcombine.high %v1037, %v1101
    %v5393 = vunpack.c.l.s4 1983009808
    %v5394 = vunpack.c.0.s8 %v5393
    %v5395 = vlaneseq
    %v5396 = vshrl.u32 %v5395, 7
    %v5397 = vsub.s32 %v5394, %v5396
    %v5398 = vrot.slane %v5390, %v5397
    %v5400 = vunpack.c.l.s4 1983009808
    %v5401 = vunpack.c.0.s8 %v5400
    %v5402 = vlaneseq
    %v5403 = vshrl.u32 %v5402, 7
    %v5404 = vsub.s32 %v5401, %v5403
    %v5405 = vrot.slane %v5391, %v5404
    %v5406 = vcombine.low %v1069, %v1133
    %v5407 = vcombine.high %v1069, %v1133
    %v5409 = vunpack.c.l.s4 1983009808
    %v5410 = vunpack.c.0.s8 %v5409
    %v5411 = vlaneseq
    %v5412 = vshrl.u32 %v5411, 7
    %v5413 = vsub.s32 %v5410, %v5412
    %v5414 = vrot.slane %v5406, %v5413
    %v5416 = vunpack.c.l.s4 1983009808
    %v5417 = vunpack.c.0.s8 %v5416
    %v5418 = vlaneseq
    %v5419 = vshrl.u32 %v5418, 7
    %v5420 = vsub.s32 %v5417, %v5419
    %v5421 = vrot.slane %v5407, %v5420
    %v5422 = vcombine.low %v5366, %v5382
    %v5423 = vcombine.high %v5366, %v5382
    %v5425 = vunpack.c.l.s4 1934713408
    %v5426 = vunpack.c.0.s8 %v5425
    %v5427 = vlaneseq
    %v5428 = vshrl.u32 %v5427, 7
    %v5429 = vsub.s32 %v5426, %v5428
    %v5430 = vrot.slane %v5422, %v5429
    %v5432 = vunpack.c.l.s4 1934713408
    %v5433 = vunpack.c.0.s8 %v5432
    %v5434 = vlaneseq
    %v5435 = vshrl.u32 %v5434, 7
    %v5436 = vsub.s32 %v5433, %v5435
    %v5437 = vrot.slane %v5423, %v5436
    %v5438 = vcombine.low %v5373, %v5389
    %v5439 = vcombine.high %v5373, %v5389
    %v5441 = vunpack.c.l.s4 1934713408
    %v5442 = vunpack.c.0.s8 %v5441
    %v5443 = vlaneseq
    %v5444 = vshrl.u32 %v5443, 7
    %v5445 = vsub.s32 %v5442, %v5444
    %v5446 = vrot.slane %v5438, %v5445
    %v5448 = vunpack.c.l.s4 1934713408
    %v5449 = vunpack.c.0.s8 %v5448
    %v5450 = vlaneseq
    %v5451 = vshrl.u32 %v5450, 7
    %v5452 = vsub.s32 %v5449, %v5451
    %v5453 = vrot.slane %v5439, %v5452
    %v5454 = vcombine.low %v5398, %v5414
    %v5455 = vcombine.high %v5398, %v5414
    %v5457 = vunpack.c.l.s4 1934713408
    %v5458 = vunpack.c.0.s8 %v5457
    %v5459 = vlaneseq
    %v5460 = vshrl.u32 %v5459, 7
    %v5461 = vsub.s32 %v5458, %v5460
    %v5462 = vrot.slane %v5454, %v5461
    %v5464 = vunpack.c.l.s4 1934713408
    %v5465 = vunpack.c.0.s8 %v5464
    %v5466 = vlaneseq
    %v5467 = vshrl.u32 %v5466, 7
    %v5468 = vsub.s32 %v5465, %v5467
    %v5469 = vrot.slane %v5455, %v5468
    %v5470 = vcombine.low %v5405, %v5421
    %v5471 = vcombine.high %v5405, %v5421
    %v5473 = vunpack.c.l.s4 1934713408
    %v5474 = vunpack.c.0.s8 %v5473
    %v5475 = vlaneseq
    %v5476 = vshrl.u32 %v5475, 7
    %v5477 = vsub.s32 %v5474, %v5476
    %v5478 = vrot.slane %v5470, %v5477
    %v5480 = vunpack.c.l.s4 1934713408
    %v5481 = vunpack.c.0.s8 %v5480
    %v5482 = vlaneseq
    %v5483 = vshrl.u32 %v5482, 7
    %v5484 = vsub.s32 %v5481, %v5483
    %v5485 = vrot.slane %v5471, %v5484
    %v5486 = vcombine.low %v5430, %v5462
    %v5487 = vcombine.high %v5430, %v5462
    %v5488 = vcombine.low %v5437, %v5469
    %v5489 = vcombine.high %v5437, %v5469
    %v5490 = vcombine.low %v5446, %v5478
    %v5491 = vcombine.high %v5446, %v5478
    %v5492 = vcombine.low %v5453, %v5485
    %v5493 = vcombine.high %v5453, %v5485
    %5494 = vxpose.xlu0.b32.start [1/16] %v1270, 128
    %5495 = vxpose.xlu0.b32.cont [2/16] %v1406, 128
    %5496 = vxpose.xlu0.b32.cont [3/16] %v1542, 128
    %5497 = vxpose.xlu0.b32.cont [4/16] %v1678, 128
    %5498 = vxpose.xlu0.b32.cont [5/16] 0.0, 128
    %5499 = vxpose.xlu0.b32.cont [6/16] 0.0, 128
    %5500 = vxpose.xlu0.b32.cont [7/16] 0.0, 128
    %5501 = vxpose.xlu0.b32.cont [8/16] 0.0, 128
    %5502 = vxpose.xlu0.b32.cont [9/16] 0.0, 128
    %5503 = vxpose.xlu0.b32.cont [10/16] 0.0, 128
    %5504 = vxpose.xlu0.b32.cont [11/16] 0.0, 128
    %5505 = vxpose.xlu0.b32.cont [12/16] 0.0, 128
    %5506 = vxpose.xlu0.b32.cont [13/16] 0.0, 128
    %5507 = vxpose.xlu0.b32.cont [14/16] 0.0, 128
    %5508 = vxpose.xlu0.b32.cont [15/16] 0.0, 128
    %5509 = vxpose.xlu0.b32.end [16/16] 0.0, 128
    %v5510 = vpop.trf.xlu0
    %v5511 = vpop.trf.xlu0
    %v5512 = vpop.trf.xlu0
    %v5513 = vpop.trf.xlu0
    %v5514 = vpop.trf.xlu0
    %v5515 = vpop.trf.xlu0
    %v5516 = vpop.trf.xlu0
    %v5517 = vpop.trf.xlu0
    %v5518 = vpop.trf.xlu0
    %v5519 = vpop.trf.xlu0
    %v5520 = vpop.trf.xlu0
    %v5521 = vpop.trf.xlu0
    %v5522 = vpop.trf.xlu0
    %v5523 = vpop.trf.xlu0
    %v5524 = vpop.trf.xlu0
    %v5525 = vpop.trf.xlu0
    %5526 = vxpose.xlu0.b32.start [1/16] %v1271, 128
    %5527 = vxpose.xlu0.b32.cont [2/16] %v1407, 128
    %5528 = vxpose.xlu0.b32.cont [3/16] %v1543, 128
    %5529 = vxpose.xlu0.b32.cont [4/16] %v1679, 128
    %5530 = vxpose.xlu0.b32.cont [5/16] 0.0, 128
    %5531 = vxpose.xlu0.b32.cont [6/16] 0.0, 128
    %5532 = vxpose.xlu0.b32.cont [7/16] 0.0, 128
    %5533 = vxpose.xlu0.b32.cont [8/16] 0.0, 128
    %5534 = vxpose.xlu0.b32.cont [9/16] 0.0, 128
    %5535 = vxpose.xlu0.b32.cont [10/16] 0.0, 128
    %5536 = vxpose.xlu0.b32.cont [11/16] 0.0, 128
    %5537 = vxpose.xlu0.b32.cont [12/16] 0.0, 128
    %5538 = vxpose.xlu0.b32.cont [13/16] 0.0, 128
    %5539 = vxpose.xlu0.b32.cont [14/16] 0.0, 128
    %5540 = vxpose.xlu0.b32.cont [15/16] 0.0, 128
    %5541 = vxpose.xlu0.b32.end [16/16] 0.0, 128
    %v5542 = vpop.trf.xlu0
    %v5543 = vpop.trf.xlu0
    %v5544 = vpop.trf.xlu0
    %v5545 = vpop.trf.xlu0
    %v5546 = vpop.trf.xlu0
    %v5547 = vpop.trf.xlu0
    %v5548 = vpop.trf.xlu0
    %v5549 = vpop.trf.xlu0
    %v5550 = vpop.trf.xlu0
    %v5551 = vpop.trf.xlu0
    %v5552 = vpop.trf.xlu0
    %v5553 = vpop.trf.xlu0
    %v5554 = vpop.trf.xlu0
    %v5555 = vpop.trf.xlu0
    %v5556 = vpop.trf.xlu0
    %v5557 = vpop.trf.xlu0
    %5558 = vxpose.xlu0.b32.start [1/16] %v1272, 128
    %5559 = vxpose.xlu0.b32.cont [2/16] %v1408, 128
    %5560 = vxpose.xlu0.b32.cont [3/16] %v1544, 128
    %5561 = vxpose.xlu0.b32.cont [4/16] %v1680, 128
    %5562 = vxpose.xlu0.b32.cont [5/16] 0.0, 128
    %5563 = vxpose.xlu0.b32.cont [6/16] 0.0, 128
    %5564 = vxpose.xlu0.b32.cont [7/16] 0.0, 128
    %5565 = vxpose.xlu0.b32.cont [8/16] 0.0, 128
    %5566 = vxpose.xlu0.b32.cont [9/16] 0.0, 128
    %5567 = vxpose.xlu0.b32.cont [10/16] 0.0, 128
    %5568 = vxpose.xlu0.b32.cont [11/16] 0.0, 128
    %5569 = vxpose.xlu0.b32.cont [12/16] 0.0, 128
    %5570 = vxpose.xlu0.b32.cont [13/16] 0.0, 128
    %5571 = vxpose.xlu0.b32.cont [14/16] 0.0, 128
    %5572 = vxpose.xlu0.b32.cont [15/16] 0.0, 128
    %5573 = vxpose.xlu0.b32.end [16/16] 0.0, 128
    %v5574 = vpop.trf.xlu0
    %v5575 = vpop.trf.xlu0
    %v5576 = vpop.trf.xlu0
    %v5577 = vpop.trf.xlu0
    %v5578 = vpop.trf.xlu0
    %v5579 = vpop.trf.xlu0
    %v5580 = vpop.trf.xlu0
    %v5581 = vpop.trf.xlu0
    %v5582 = vpop.trf.xlu0
    %v5583 = vpop.trf.xlu0
    %v5584 = vpop.trf.xlu0
    %v5585 = vpop.trf.xlu0
    %v5586 = vpop.trf.xlu0
    %v5587 = vpop.trf.xlu0
    %v5588 = vpop.trf.xlu0
    %v5589 = vpop.trf.xlu0
    %5590 = vxpose.xlu0.b32.start [1/16] %v1273, 128
    %5591 = vxpose.xlu0.b32.cont [2/16] %v1409, 128
    %5592 = vxpose.xlu0.b32.cont [3/16] %v1545, 128
    %5593 = vxpose.xlu0.b32.cont [4/16] %v1681, 128
    %5594 = vxpose.xlu0.b32.cont [5/16] 0.0, 128
    %5595 = vxpose.xlu0.b32.cont [6/16] 0.0, 128
    %5596 = vxpose.xlu0.b32.cont [7/16] 0.0, 128
    %5597 = vxpose.xlu0.b32.cont [8/16] 0.0, 128
    %5598 = vxpose.xlu0.b32.cont [9/16] 0.0, 128
    %5599 = vxpose.xlu0.b32.cont [10/16] 0.0, 128
    %5600 = vxpose.xlu0.b32.cont [11/16] 0.0, 128
    %5601 = vxpose.xlu0.b32.cont [12/16] 0.0, 128
    %5602 = vxpose.xlu0.b32.cont [13/16] 0.0, 128
    %5603 = vxpose.xlu0.b32.cont [14/16] 0.0, 128
    %5604 = vxpose.xlu0.b32.cont [15/16] 0.0, 128
    %5605 = vxpose.xlu0.b32.end [16/16] 0.0, 128
    %v5606 = vpop.trf.xlu0
    %v5607 = vpop.trf.xlu0
    %v5608 = vpop.trf.xlu0
    %v5609 = vpop.trf.xlu0
    %v5610 = vpop.trf.xlu0
    %v5611 = vpop.trf.xlu0
    %v5612 = vpop.trf.xlu0
    %v5613 = vpop.trf.xlu0
    %v5614 = vpop.trf.xlu0
    %v5615 = vpop.trf.xlu0
    %v5616 = vpop.trf.xlu0
    %v5617 = vpop.trf.xlu0
    %v5618 = vpop.trf.xlu0
    %v5619 = vpop.trf.xlu0
    %v5620 = vpop.trf.xlu0
    %v5621 = vpop.trf.xlu0
    %5622 = vxpose.xlu0.b32.start [1/16] %v1274, 128
    %5623 = vxpose.xlu0.b32.cont [2/16] %v1410, 128
    %5624 = vxpose.xlu0.b32.cont [3/16] %v1546, 128
    %5625 = vxpose.xlu0.b32.cont [4/16] %v1682, 128
    %5626 = vxpose.xlu0.b32.cont [5/16] 0.0, 128
    %5627 = vxpose.xlu0.b32.cont [6/16] 0.0, 128
    %5628 = vxpose.xlu0.b32.cont [7/16] 0.0, 128
    %5629 = vxpose.xlu0.b32.cont [8/16] 0.0, 128
    %5630 = vxpose.xlu0.b32.cont [9/16] 0.0, 128
    %5631 = vxpose.xlu0.b32.cont [10/16] 0.0, 128
    %5632 = vxpose.xlu0.b32.cont [11/16] 0.0, 128
    %5633 = vxpose.xlu0.b32.cont [12/16] 0.0, 128
    %5634 = vxpose.xlu0.b32.cont [13/16] 0.0, 128
    %5635 = vxpose.xlu0.b32.cont [14/16] 0.0, 128
    %5636 = vxpose.xlu0.b32.cont [15/16] 0.0, 128
    %5637 = vxpose.xlu0.b32.end [16/16] 0.0, 128
    %v5638 = vpop.trf.xlu0
    %v5639 = vpop.trf.xlu0
    %v5640 = vpop.trf.xlu0
    %v5641 = vpop.trf.xlu0
    %v5642 = vpop.trf.xlu0
    %v5643 = vpop.trf.xlu0
    %v5644 = vpop.trf.xlu0
    %v5645 = vpop.trf.xlu0
    %v5646 = vpop.trf.xlu0
    %v5647 = vpop.trf.xlu0
    %v5648 = vpop.trf.xlu0
    %v5649 = vpop.trf.xlu0
    %v5650 = vpop.trf.xlu0
    %v5651 = vpop.trf.xlu0
    %v5652 = vpop.trf.xlu0
    %v5653 = vpop.trf.xlu0
    %5654 = vxpose.xlu0.b32.start [1/16] %v1275, 128
    %5655 = vxpose.xlu0.b32.cont [2/16] %v1411, 128
    %5656 = vxpose.xlu0.b32.cont [3/16] %v1547, 128
    %5657 = vxpose.xlu0.b32.cont [4/16] %v1683, 128
    %5658 = vxpose.xlu0.b32.cont [5/16] 0.0, 128
    %5659 = vxpose.xlu0.b32.cont [6/16] 0.0, 128
    %5660 = vxpose.xlu0.b32.cont [7/16] 0.0, 128
    %5661 = vxpose.xlu0.b32.cont [8/16] 0.0, 128
    %5662 = vxpose.xlu0.b32.cont [9/16] 0.0, 128
    %5663 = vxpose.xlu0.b32.cont [10/16] 0.0, 128
    %5664 = vxpose.xlu0.b32.cont [11/16] 0.0, 128
    %5665 = vxpose.xlu0.b32.cont [12/16] 0.0, 128
    %5666 = vxpose.xlu0.b32.cont [13/16] 0.0, 128
    %5667 = vxpose.xlu0.b32.cont [14/16] 0.0, 128
    %5668 = vxpose.xlu0.b32.cont [15/16] 0.0, 128
    %5669 = vxpose.xlu0.b32.end [16/16] 0.0, 128
    %v5670 = vpop.trf.xlu0
    %v5671 = vpop.trf.xlu0
    %v5672 = vpop.trf.xlu0
    %v5673 = vpop.trf.xlu0
    %v5674 = vpop.trf.xlu0
    %v5675 = vpop.trf.xlu0
    %v5676 = vpop.trf.xlu0
    %v5677 = vpop.trf.xlu0
    %v5678 = vpop.trf.xlu0
    %v5679 = vpop.trf.xlu0
    %v5680 = vpop.trf.xlu0
    %v5681 = vpop.trf.xlu0
    %v5682 = vpop.trf.xlu0
    %v5683 = vpop.trf.xlu0
    %v5684 = vpop.trf.xlu0
    %v5685 = vpop.trf.xlu0
    %5686 = vxpose.xlu0.b32.start [1/16] %v1276, 128
    %5687 = vxpose.xlu0.b32.cont [2/16] %v1412, 128
    %5688 = vxpose.xlu0.b32.cont [3/16] %v1548, 128
    %5689 = vxpose.xlu0.b32.cont [4/16] %v1684, 128
    %5690 = vxpose.xlu0.b32.cont [5/16] 0.0, 128
    %5691 = vxpose.xlu0.b32.cont [6/16] 0.0, 128
    %5692 = vxpose.xlu0.b32.cont [7/16] 0.0, 128
    %5693 = vxpose.xlu0.b32.cont [8/16] 0.0, 128
    %5694 = vxpose.xlu0.b32.cont [9/16] 0.0, 128
    %5695 = vxpose.xlu0.b32.cont [10/16] 0.0, 128
    %5696 = vxpose.xlu0.b32.cont [11/16] 0.0, 128
    %5697 = vxpose.xlu0.b32.cont [12/16] 0.0, 128
    %5698 = vxpose.xlu0.b32.cont [13/16] 0.0, 128
    %5699 = vxpose.xlu0.b32.cont [14/16] 0.0, 128
    %5700 = vxpose.xlu0.b32.cont [15/16] 0.0, 128
    %5701 = vxpose.xlu0.b32.end [16/16] 0.0, 128
    %v5702 = vpop.trf.xlu0
    %v5703 = vpop.trf.xlu0
    %v5704 = vpop.trf.xlu0
    %v5705 = vpop.trf.xlu0
    %v5706 = vpop.trf.xlu0
    %v5707 = vpop.trf.xlu0
    %v5708 = vpop.trf.xlu0
    %v5709 = vpop.trf.xlu0
    %v5710 = vpop.trf.xlu0
    %v5711 = vpop.trf.xlu0
    %v5712 = vpop.trf.xlu0
    %v5713 = vpop.trf.xlu0
    %v5714 = vpop.trf.xlu0
    %v5715 = vpop.trf.xlu0
    %v5716 = vpop.trf.xlu0
    %v5717 = vpop.trf.xlu0
    %5718 = vxpose.xlu0.b32.start [1/16] %v1277, 128
    %5719 = vxpose.xlu0.b32.cont [2/16] %v1413, 128
    %5720 = vxpose.xlu0.b32.cont [3/16] %v1549, 128
    %5721 = vxpose.xlu0.b32.cont [4/16] %v1685, 128
    %5722 = vxpose.xlu0.b32.cont [5/16] 0.0, 128
    %5723 = vxpose.xlu0.b32.cont [6/16] 0.0, 128
    %5724 = vxpose.xlu0.b32.cont [7/16] 0.0, 128
    %5725 = vxpose.xlu0.b32.cont [8/16] 0.0, 128
    %5726 = vxpose.xlu0.b32.cont [9/16] 0.0, 128
    %5727 = vxpose.xlu0.b32.cont [10/16] 0.0, 128
    %5728 = vxpose.xlu0.b32.cont [11/16] 0.0, 128
    %5729 = vxpose.xlu0.b32.cont [12/16] 0.0, 128
    %5730 = vxpose.xlu0.b32.cont [13/16] 0.0, 128
    %5731 = vxpose.xlu0.b32.cont [14/16] 0.0, 128
    %5732 = vxpose.xlu0.b32.cont [15/16] 0.0, 128
    %5733 = vxpose.xlu0.b32.end [16/16] 0.0, 128
    %v5734 = vpop.trf.xlu0
    %v5735 = vpop.trf.xlu0
    %v5736 = vpop.trf.xlu0
    %v5737 = vpop.trf.xlu0
    %v5738 = vpop.trf.xlu0
    %v5739 = vpop.trf.xlu0
    %v5740 = vpop.trf.xlu0
    %v5741 = vpop.trf.xlu0
    %v5742 = vpop.trf.xlu0
    %v5743 = vpop.trf.xlu0
    %v5744 = vpop.trf.xlu0
    %v5745 = vpop.trf.xlu0
    %v5746 = vpop.trf.xlu0
    %v5747 = vpop.trf.xlu0
    %v5748 = vpop.trf.xlu0
    %v5749 = vpop.trf.xlu0
    %5750 = vxpose.xlu0.b32.start [1/16] %v1814, 128
    %5751 = vxpose.xlu0.b32.cont [2/16] %v1950, 128
    %5752 = vxpose.xlu0.b32.cont [3/16] %v2086, 128
    %5753 = vxpose.xlu0.b32.cont [4/16] %v2222, 128
    %5754 = vxpose.xlu0.b32.cont [5/16] 0.0, 128
    %5755 = vxpose.xlu0.b32.cont [6/16] 0.0, 128
    %5756 = vxpose.xlu0.b32.cont [7/16] 0.0, 128
    %5757 = vxpose.xlu0.b32.cont [8/16] 0.0, 128
    %5758 = vxpose.xlu0.b32.cont [9/16] 0.0, 128
    %5759 = vxpose.xlu0.b32.cont [10/16] 0.0, 128
    %5760 = vxpose.xlu0.b32.cont [11/16] 0.0, 128
    %5761 = vxpose.xlu0.b32.cont [12/16] 0.0, 128
    %5762 = vxpose.xlu0.b32.cont [13/16] 0.0, 128
    %5763 = vxpose.xlu0.b32.cont [14/16] 0.0, 128
    %5764 = vxpose.xlu0.b32.cont [15/16] 0.0, 128
    %5765 = vxpose.xlu0.b32.end [16/16] 0.0, 128
    %v5766 = vpop.trf.xlu0
    %v5767 = vpop.trf.xlu0
    %v5768 = vpop.trf.xlu0
    %v5769 = vpop.trf.xlu0
    %v5770 = vpop.trf.xlu0
    %v5771 = vpop.trf.xlu0
    %v5772 = vpop.trf.xlu0
    %v5773 = vpop.trf.xlu0
    %v5774 = vpop.trf.xlu0
    %v5775 = vpop.trf.xlu0
    %v5776 = vpop.trf.xlu0
    %v5777 = vpop.trf.xlu0
    %v5778 = vpop.trf.xlu0
    %v5779 = vpop.trf.xlu0
    %v5780 = vpop.trf.xlu0
    %v5781 = vpop.trf.xlu0
    %5782 = vxpose.xlu0.b32.start [1/16] %v1815, 128
    %5783 = vxpose.xlu0.b32.cont [2/16] %v1951, 128
    %5784 = vxpose.xlu0.b32.cont [3/16] %v2087, 128
    %5785 = vxpose.xlu0.b32.cont [4/16] %v2223, 128
    %5786 = vxpose.xlu0.b32.cont [5/16] 0.0, 128
    %5787 = vxpose.xlu0.b32.cont [6/16] 0.0, 128
    %5788 = vxpose.xlu0.b32.cont [7/16] 0.0, 128
    %5789 = vxpose.xlu0.b32.cont [8/16] 0.0, 128
    %5790 = vxpose.xlu0.b32.cont [9/16] 0.0, 128
    %5791 = vxpose.xlu0.b32.cont [10/16] 0.0, 128
    %5792 = vxpose.xlu0.b32.cont [11/16] 0.0, 128
    %5793 = vxpose.xlu0.b32.cont [12/16] 0.0, 128
    %5794 = vxpose.xlu0.b32.cont [13/16] 0.0, 128
    %5795 = vxpose.xlu0.b32.cont [14/16] 0.0, 128
    %5796 = vxpose.xlu0.b32.cont [15/16] 0.0, 128
    %5797 = vxpose.xlu0.b32.end [16/16] 0.0, 128
    %v5798 = vpop.trf.xlu0
    %v5799 = vpop.trf.xlu0
    %v5800 = vpop.trf.xlu0
    %v5801 = vpop.trf.xlu0
    %v5802 = vpop.trf.xlu0
    %v5803 = vpop.trf.xlu0
    %v5804 = vpop.trf.xlu0
    %v5805 = vpop.trf.xlu0
    %v5806 = vpop.trf.xlu0
    %v5807 = vpop.trf.xlu0
    %v5808 = vpop.trf.xlu0
    %v5809 = vpop.trf.xlu0
    %v5810 = vpop.trf.xlu0
    %v5811 = vpop.trf.xlu0
    %v5812 = vpop.trf.xlu0
    %v5813 = vpop.trf.xlu0
    %5814 = vxpose.xlu0.b32.start [1/16] %v1816, 128
    %5815 = vxpose.xlu0.b32.cont [2/16] %v1952, 128
    %5816 = vxpose.xlu0.b32.cont [3/16] %v2088, 128
    %5817 = vxpose.xlu0.b32.cont [4/16] %v2224, 128
    %5818 = vxpose.xlu0.b32.cont [5/16] 0.0, 128
    %5819 = vxpose.xlu0.b32.cont [6/16] 0.0, 128
    %5820 = vxpose.xlu0.b32.cont [7/16] 0.0, 128
    %5821 = vxpose.xlu0.b32.cont [8/16] 0.0, 128
    %5822 = vxpose.xlu0.b32.cont [9/16] 0.0, 128
    %5823 = vxpose.xlu0.b32.cont [10/16] 0.0, 128
    %5824 = vxpose.xlu0.b32.cont [11/16] 0.0, 128
    %5825 = vxpose.xlu0.b32.cont [12/16] 0.0, 128
    %5826 = vxpose.xlu0.b32.cont [13/16] 0.0, 128
    %5827 = vxpose.xlu0.b32.cont [14/16] 0.0, 128
    %5828 = vxpose.xlu0.b32.cont [15/16] 0.0, 128
    %5829 = vxpose.xlu0.b32.end [16/16] 0.0, 128
    %v5830 = vpop.trf.xlu0
    %v5831 = vpop.trf.xlu0
    %v5832 = vpop.trf.xlu0
    %v5833 = vpop.trf.xlu0
    %v5834 = vpop.trf.xlu0
    %v5835 = vpop.trf.xlu0
    %v5836 = vpop.trf.xlu0
    %v5837 = vpop.trf.xlu0
    %v5838 = vpop.trf.xlu0
    %v5839 = vpop.trf.xlu0
    %v5840 = vpop.trf.xlu0
    %v5841 = vpop.trf.xlu0
    %v5842 = vpop.trf.xlu0
    %v5843 = vpop.trf.xlu0
    %v5844 = vpop.trf.xlu0
    %v5845 = vpop.trf.xlu0
    %5846 = vxpose.xlu0.b32.start [1/16] %v1817, 128
    %5847 = vxpose.xlu0.b32.cont [2/16] %v1953, 128
    %5848 = vxpose.xlu0.b32.cont [3/16] %v2089, 128
    %5849 = vxpose.xlu0.b32.cont [4/16] %v2225, 128
    %5850 = vxpose.xlu0.b32.cont [5/16] 0.0, 128
    %5851 = vxpose.xlu0.b32.cont [6/16] 0.0, 128
    %5852 = vxpose.xlu0.b32.cont [7/16] 0.0, 128
    %5853 = vxpose.xlu0.b32.cont [8/16] 0.0, 128
    %5854 = vxpose.xlu0.b32.cont [9/16] 0.0, 128
    %5855 = vxpose.xlu0.b32.cont [10/16] 0.0, 128
    %5856 = vxpose.xlu0.b32.cont [11/16] 0.0, 128
    %5857 = vxpose.xlu0.b32.cont [12/16] 0.0, 128
    %5858 = vxpose.xlu0.b32.cont [13/16] 0.0, 128
    %5859 = vxpose.xlu0.b32.cont [14/16] 0.0, 128
    %5860 = vxpose.xlu0.b32.cont [15/16] 0.0, 128
    %5861 = vxpose.xlu0.b32.end [16/16] 0.0, 128
    %v5862 = vpop.trf.xlu0
    %v5863 = vpop.trf.xlu0
    %v5864 = vpop.trf.xlu0
    %v5865 = vpop.trf.xlu0
    %v5866 = vpop.trf.xlu0
    %v5867 = vpop.trf.xlu0
    %v5868 = vpop.trf.xlu0
    %v5869 = vpop.trf.xlu0
    %v5870 = vpop.trf.xlu0
    %v5871 = vpop.trf.xlu0
    %v5872 = vpop.trf.xlu0
    %v5873 = vpop.trf.xlu0
    %v5874 = vpop.trf.xlu0
    %v5875 = vpop.trf.xlu0
    %v5876 = vpop.trf.xlu0
    %v5877 = vpop.trf.xlu0
    %5878 = vxpose.xlu0.b32.start [1/16] %v1818, 128
    %5879 = vxpose.xlu0.b32.cont [2/16] %v1954, 128
    %5880 = vxpose.xlu0.b32.cont [3/16] %v2090, 128
    %5881 = vxpose.xlu0.b32.cont [4/16] %v2226, 128
    %5882 = vxpose.xlu0.b32.cont [5/16] 0.0, 128
    %5883 = vxpose.xlu0.b32.cont [6/16] 0.0, 128
    %5884 = vxpose.xlu0.b32.cont [7/16] 0.0, 128
    %5885 = vxpose.xlu0.b32.cont [8/16] 0.0, 128
    %5886 = vxpose.xlu0.b32.cont [9/16] 0.0, 128
    %5887 = vxpose.xlu0.b32.cont [10/16] 0.0, 128
    %5888 = vxpose.xlu0.b32.cont [11/16] 0.0, 128
    %5889 = vxpose.xlu0.b32.cont [12/16] 0.0, 128
    %5890 = vxpose.xlu0.b32.cont [13/16] 0.0, 128
    %5891 = vxpose.xlu0.b32.cont [14/16] 0.0, 128
    %5892 = vxpose.xlu0.b32.cont [15/16] 0.0, 128
    %5893 = vxpose.xlu0.b32.end [16/16] 0.0, 128
    %v5894 = vpop.trf.xlu0
    %v5895 = vpop.trf.xlu0
    %v5896 = vpop.trf.xlu0
    %v5897 = vpop.trf.xlu0
    %v5898 = vpop.trf.xlu0
    %v5899 = vpop.trf.xlu0
    %v5900 = vpop.trf.xlu0
    %v5901 = vpop.trf.xlu0
    %v5902 = vpop.trf.xlu0
    %v5903 = vpop.trf.xlu0
    %v5904 = vpop.trf.xlu0
    %v5905 = vpop.trf.xlu0
    %v5906 = vpop.trf.xlu0
    %v5907 = vpop.trf.xlu0
    %v5908 = vpop.trf.xlu0
    %v5909 = vpop.trf.xlu0
    %5910 = vxpose.xlu0.b32.start [1/16] %v1819, 128
    %5911 = vxpose.xlu0.b32.cont [2/16] %v1955, 128
    %5912 = vxpose.xlu0.b32.cont [3/16] %v2091, 128
    %5913 = vxpose.xlu0.b32.cont [4/16] %v2227, 128
    %5914 = vxpose.xlu0.b32.cont [5/16] 0.0, 128
    %5915 = vxpose.xlu0.b32.cont [6/16] 0.0, 128
    %5916 = vxpose.xlu0.b32.cont [7/16] 0.0, 128
    %5917 = vxpose.xlu0.b32.cont [8/16] 0.0, 128
    %5918 = vxpose.xlu0.b32.cont [9/16] 0.0, 128
    %5919 = vxpose.xlu0.b32.cont [10/16] 0.0, 128
    %5920 = vxpose.xlu0.b32.cont [11/16] 0.0, 128
    %5921 = vxpose.xlu0.b32.cont [12/16] 0.0, 128
    %5922 = vxpose.xlu0.b32.cont [13/16] 0.0, 128
    %5923 = vxpose.xlu0.b32.cont [14/16] 0.0, 128
    %5924 = vxpose.xlu0.b32.cont [15/16] 0.0, 128
    %5925 = vxpose.xlu0.b32.end [16/16] 0.0, 128
    %v5926 = vpop.trf.xlu0
    %v5927 = vpop.trf.xlu0
    %v5928 = vpop.trf.xlu0
    %v5929 = vpop.trf.xlu0
    %v5930 = vpop.trf.xlu0
    %v5931 = vpop.trf.xlu0
    %v5932 = vpop.trf.xlu0
    %v5933 = vpop.trf.xlu0
    %v5934 = vpop.trf.xlu0
    %v5935 = vpop.trf.xlu0
    %v5936 = vpop.trf.xlu0
    %v5937 = vpop.trf.xlu0
    %v5938 = vpop.trf.xlu0
    %v5939 = vpop.trf.xlu0
    %v5940 = vpop.trf.xlu0
    %v5941 = vpop.trf.xlu0
    %5942 = vxpose.xlu0.b32.start [1/16] %v1820, 128
    %5943 = vxpose.xlu0.b32.cont [2/16] %v1956, 128
    %5944 = vxpose.xlu0.b32.cont [3/16] %v2092, 128
    %5945 = vxpose.xlu0.b32.cont [4/16] %v2228, 128
    %5946 = vxpose.xlu0.b32.cont [5/16] 0.0, 128
    %5947 = vxpose.xlu0.b32.cont [6/16] 0.0, 128
    %5948 = vxpose.xlu0.b32.cont [7/16] 0.0, 128
    %5949 = vxpose.xlu0.b32.cont [8/16] 0.0, 128
    %5950 = vxpose.xlu0.b32.cont [9/16] 0.0, 128
    %5951 = vxpose.xlu0.b32.cont [10/16] 0.0, 128
    %5952 = vxpose.xlu0.b32.cont [11/16] 0.0, 128
    %5953 = vxpose.xlu0.b32.cont [12/16] 0.0, 128
    %5954 = vxpose.xlu0.b32.cont [13/16] 0.0, 128
    %5955 = vxpose.xlu0.b32.cont [14/16] 0.0, 128
    %5956 = vxpose.xlu0.b32.cont [15/16] 0.0, 128
    %5957 = vxpose.xlu0.b32.end [16/16] 0.0, 128
    %v5958 = vpop.trf.xlu0
    %v5959 = vpop.trf.xlu0
    %v5960 = vpop.trf.xlu0
    %v5961 = vpop.trf.xlu0
    %v5962 = vpop.trf.xlu0
    %v5963 = vpop.trf.xlu0
    %v5964 = vpop.trf.xlu0
    %v5965 = vpop.trf.xlu0
    %v5966 = vpop.trf.xlu0
    %v5967 = vpop.trf.xlu0
    %v5968 = vpop.trf.xlu0
    %v5969 = vpop.trf.xlu0
    %v5970 = vpop.trf.xlu0
    %v5971 = vpop.trf.xlu0
    %v5972 = vpop.trf.xlu0
    %v5973 = vpop.trf.xlu0
    %5974 = vxpose.xlu0.b32.start [1/16] %v1821, 128
    %5975 = vxpose.xlu0.b32.cont [2/16] %v1957, 128
    %5976 = vxpose.xlu0.b32.cont [3/16] %v2093, 128
    %5977 = vxpose.xlu0.b32.cont [4/16] %v2229, 128
    %5978 = vxpose.xlu0.b32.cont [5/16] 0.0, 128
    %5979 = vxpose.xlu0.b32.cont [6/16] 0.0, 128
    %5980 = vxpose.xlu0.b32.cont [7/16] 0.0, 128
    %5981 = vxpose.xlu0.b32.cont [8/16] 0.0, 128
    %5982 = vxpose.xlu0.b32.cont [9/16] 0.0, 128
    %5983 = vxpose.xlu0.b32.cont [10/16] 0.0, 128
    %5984 = vxpose.xlu0.b32.cont [11/16] 0.0, 128
    %5985 = vxpose.xlu0.b32.cont [12/16] 0.0, 128
    %5986 = vxpose.xlu0.b32.cont [13/16] 0.0, 128
    %5987 = vxpose.xlu0.b32.cont [14/16] 0.0, 128
    %5988 = vxpose.xlu0.b32.cont [15/16] 0.0, 128
    %5989 = vxpose.xlu0.b32.end [16/16] 0.0, 128
    %v5990 = vpop.trf.xlu0
    %v5991 = vpop.trf.xlu0
    %v5992 = vpop.trf.xlu0
    %v5993 = vpop.trf.xlu0
    %v5994 = vpop.trf.xlu0
    %v5995 = vpop.trf.xlu0
    %v5996 = vpop.trf.xlu0
    %v5997 = vpop.trf.xlu0
    %v5998 = vpop.trf.xlu0
    %v5999 = vpop.trf.xlu0
    %v6000 = vpop.trf.xlu0
    %v6001 = vpop.trf.xlu0
    %v6002 = vpop.trf.xlu0
    %v6003 = vpop.trf.xlu0
    %v6004 = vpop.trf.xlu0
    %v6005 = vpop.trf.xlu0
    %6006 = vxpose.xlu0.b32.start [1/16] %v2358, 128
    %6007 = vxpose.xlu0.b32.cont [2/16] %v2494, 128
    %6008 = vxpose.xlu0.b32.cont [3/16] %v2630, 128
    %6009 = vxpose.xlu0.b32.cont [4/16] %v2766, 128
    %6010 = vxpose.xlu0.b32.cont [5/16] 0.0, 128
    %6011 = vxpose.xlu0.b32.cont [6/16] 0.0, 128
    %6012 = vxpose.xlu0.b32.cont [7/16] 0.0, 128
    %6013 = vxpose.xlu0.b32.cont [8/16] 0.0, 128
    %6014 = vxpose.xlu0.b32.cont [9/16] 0.0, 128
    %6015 = vxpose.xlu0.b32.cont [10/16] 0.0, 128
    %6016 = vxpose.xlu0.b32.cont [11/16] 0.0, 128
    %6017 = vxpose.xlu0.b32.cont [12/16] 0.0, 128
    %6018 = vxpose.xlu0.b32.cont [13/16] 0.0, 128
    %6019 = vxpose.xlu0.b32.cont [14/16] 0.0, 128
    %6020 = vxpose.xlu0.b32.cont [15/16] 0.0, 128
    %6021 = vxpose.xlu0.b32.end [16/16] 0.0, 128
    %v6022 = vpop.trf.xlu0
    %v6023 = vpop.trf.xlu0
    %v6024 = vpop.trf.xlu0
    %v6025 = vpop.trf.xlu0
    %v6026 = vpop.trf.xlu0
    %v6027 = vpop.trf.xlu0
    %v6028 = vpop.trf.xlu0
    %v6029 = vpop.trf.xlu0
    %v6030 = vpop.trf.xlu0
    %v6031 = vpop.trf.xlu0
    %v6032 = vpop.trf.xlu0
    %v6033 = vpop.trf.xlu0
    %v6034 = vpop.trf.xlu0
    %v6035 = vpop.trf.xlu0
    %v6036 = vpop.trf.xlu0
    %v6037 = vpop.trf.xlu0
    %6038 = vxpose.xlu0.b32.start [1/16] %v2359, 128
    %6039 = vxpose.xlu0.b32.cont [2/16] %v2495, 128
    %6040 = vxpose.xlu0.b32.cont [3/16] %v2631, 128
    %6041 = vxpose.xlu0.b32.cont [4/16] %v2767, 128
    %6042 = vxpose.xlu0.b32.cont [5/16] 0.0, 128
    %6043 = vxpose.xlu0.b32.cont [6/16] 0.0, 128
    %6044 = vxpose.xlu0.b32.cont [7/16] 0.0, 128
    %6045 = vxpose.xlu0.b32.cont [8/16] 0.0, 128
    %6046 = vxpose.xlu0.b32.cont [9/16] 0.0, 128
    %6047 = vxpose.xlu0.b32.cont [10/16] 0.0, 128
    %6048 = vxpose.xlu0.b32.cont [11/16] 0.0, 128
    %6049 = vxpose.xlu0.b32.cont [12/16] 0.0, 128
    %6050 = vxpose.xlu0.b32.cont [13/16] 0.0, 128
    %6051 = vxpose.xlu0.b32.cont [14/16] 0.0, 128
    %6052 = vxpose.xlu0.b32.cont [15/16] 0.0, 128
    %6053 = vxpose.xlu0.b32.end [16/16] 0.0, 128
    %v6054 = vpop.trf.xlu0
    %v6055 = vpop.trf.xlu0
    %v6056 = vpop.trf.xlu0
    %v6057 = vpop.trf.xlu0
    %v6058 = vpop.trf.xlu0
    %v6059 = vpop.trf.xlu0
    %v6060 = vpop.trf.xlu0
    %v6061 = vpop.trf.xlu0
    %v6062 = vpop.trf.xlu0
    %v6063 = vpop.trf.xlu0
    %v6064 = vpop.trf.xlu0
    %v6065 = vpop.trf.xlu0
    %v6066 = vpop.trf.xlu0
    %v6067 = vpop.trf.xlu0
    %v6068 = vpop.trf.xlu0
    %v6069 = vpop.trf.xlu0
    %6070 = vxpose.xlu0.b32.start [1/16] %v2360, 128
    %6071 = vxpose.xlu0.b32.cont [2/16] %v2496, 128
    %6072 = vxpose.xlu0.b32.cont [3/16] %v2632, 128
    %6073 = vxpose.xlu0.b32.cont [4/16] %v2768, 128
    %6074 = vxpose.xlu0.b32.cont [5/16] 0.0, 128
    %6075 = vxpose.xlu0.b32.cont [6/16] 0.0, 128
    %6076 = vxpose.xlu0.b32.cont [7/16] 0.0, 128
    %6077 = vxpose.xlu0.b32.cont [8/16] 0.0, 128
    %6078 = vxpose.xlu0.b32.cont [9/16] 0.0, 128
    %6079 = vxpose.xlu0.b32.cont [10/16] 0.0, 128
    %6080 = vxpose.xlu0.b32.cont [11/16] 0.0, 128
    %6081 = vxpose.xlu0.b32.cont [12/16] 0.0, 128
    %6082 = vxpose.xlu0.b32.cont [13/16] 0.0, 128
    %6083 = vxpose.xlu0.b32.cont [14/16] 0.0, 128
    %6084 = vxpose.xlu0.b32.cont [15/16] 0.0, 128
    %6085 = vxpose.xlu0.b32.end [16/16] 0.0, 128
    %v6086 = vpop.trf.xlu0
    %v6087 = vpop.trf.xlu0
    %v6088 = vpop.trf.xlu0
    %v6089 = vpop.trf.xlu0
    %v6090 = vpop.trf.xlu0
    %v6091 = vpop.trf.xlu0
    %v6092 = vpop.trf.xlu0
    %v6093 = vpop.trf.xlu0
    %v6094 = vpop.trf.xlu0
    %v6095 = vpop.trf.xlu0
    %v6096 = vpop.trf.xlu0
    %v6097 = vpop.trf.xlu0
    %v6098 = vpop.trf.xlu0
    %v6099 = vpop.trf.xlu0
    %v6100 = vpop.trf.xlu0
    %v6101 = vpop.trf.xlu0
    %6102 = vxpose.xlu0.b32.start [1/16] %v2361, 128
    %6103 = vxpose.xlu0.b32.cont [2/16] %v2497, 128
    %6104 = vxpose.xlu0.b32.cont [3/16] %v2633, 128
    %6105 = vxpose.xlu0.b32.cont [4/16] %v2769, 128
    %6106 = vxpose.xlu0.b32.cont [5/16] 0.0, 128
    %6107 = vxpose.xlu0.b32.cont [6/16] 0.0, 128
    %6108 = vxpose.xlu0.b32.cont [7/16] 0.0, 128
    %6109 = vxpose.xlu0.b32.cont [8/16] 0.0, 128
    %6110 = vxpose.xlu0.b32.cont [9/16] 0.0, 128
    %6111 = vxpose.xlu0.b32.cont [10/16] 0.0, 128
    %6112 = vxpose.xlu0.b32.cont [11/16] 0.0, 128
    %6113 = vxpose.xlu0.b32.cont [12/16] 0.0, 128
    %6114 = vxpose.xlu0.b32.cont [13/16] 0.0, 128
    %6115 = vxpose.xlu0.b32.cont [14/16] 0.0, 128
    %6116 = vxpose.xlu0.b32.cont [15/16] 0.0, 128
    %6117 = vxpose.xlu0.b32.end [16/16] 0.0, 128
    %v6118 = vpop.trf.xlu0
    %v6119 = vpop.trf.xlu0
    %v6120 = vpop.trf.xlu0
    %v6121 = vpop.trf.xlu0
    %v6122 = vpop.trf.xlu0
    %v6123 = vpop.trf.xlu0
    %v6124 = vpop.trf.xlu0
    %v6125 = vpop.trf.xlu0
    %v6126 = vpop.trf.xlu0
    %v6127 = vpop.trf.xlu0
    %v6128 = vpop.trf.xlu0
    %v6129 = vpop.trf.xlu0
    %v6130 = vpop.trf.xlu0
    %v6131 = vpop.trf.xlu0
    %v6132 = vpop.trf.xlu0
    %v6133 = vpop.trf.xlu0
    %6134 = vxpose.xlu0.b32.start [1/16] %v2362, 128
    %6135 = vxpose.xlu0.b32.cont [2/16] %v2498, 128
    %6136 = vxpose.xlu0.b32.cont [3/16] %v2634, 128
    %6137 = vxpose.xlu0.b32.cont [4/16] %v2770, 128
    %6138 = vxpose.xlu0.b32.cont [5/16] 0.0, 128
    %6139 = vxpose.xlu0.b32.cont [6/16] 0.0, 128
    %6140 = vxpose.xlu0.b32.cont [7/16] 0.0, 128
    %6141 = vxpose.xlu0.b32.cont [8/16] 0.0, 128
    %6142 = vxpose.xlu0.b32.cont [9/16] 0.0, 128
    %6143 = vxpose.xlu0.b32.cont [10/16] 0.0, 128
    %6144 = vxpose.xlu0.b32.cont [11/16] 0.0, 128
    %6145 = vxpose.xlu0.b32.cont [12/16] 0.0, 128
    %6146 = vxpose.xlu0.b32.cont [13/16] 0.0, 128
    %6147 = vxpose.xlu0.b32.cont [14/16] 0.0, 128
    %6148 = vxpose.xlu0.b32.cont [15/16] 0.0, 128
    %6149 = vxpose.xlu0.b32.end [16/16] 0.0, 128
    %v6150 = vpop.trf.xlu0
    %v6151 = vpop.trf.xlu0
    %v6152 = vpop.trf.xlu0
    %v6153 = vpop.trf.xlu0
    %v6154 = vpop.trf.xlu0
    %v6155 = vpop.trf.xlu0
    %v6156 = vpop.trf.xlu0
    %v6157 = vpop.trf.xlu0
    %v6158 = vpop.trf.xlu0
    %v6159 = vpop.trf.xlu0
    %v6160 = vpop.trf.xlu0
    %v6161 = vpop.trf.xlu0
    %v6162 = vpop.trf.xlu0
    %v6163 = vpop.trf.xlu0
    %v6164 = vpop.trf.xlu0
    %v6165 = vpop.trf.xlu0
    %6166 = vxpose.xlu0.b32.start [1/16] %v2363, 128
    %6167 = vxpose.xlu0.b32.cont [2/16] %v2499, 128
    %6168 = vxpose.xlu0.b32.cont [3/16] %v2635, 128
    %6169 = vxpose.xlu0.b32.cont [4/16] %v2771, 128
    %6170 = vxpose.xlu0.b32.cont [5/16] 0.0, 128
    %6171 = vxpose.xlu0.b32.cont [6/16] 0.0, 128
    %6172 = vxpose.xlu0.b32.cont [7/16] 0.0, 128
    %6173 = vxpose.xlu0.b32.cont [8/16] 0.0, 128
    %6174 = vxpose.xlu0.b32.cont [9/16] 0.0, 128
    %6175 = vxpose.xlu0.b32.cont [10/16] 0.0, 128
    %6176 = vxpose.xlu0.b32.cont [11/16] 0.0, 128
    %6177 = vxpose.xlu0.b32.cont [12/16] 0.0, 128
    %6178 = vxpose.xlu0.b32.cont [13/16] 0.0, 128
    %6179 = vxpose.xlu0.b32.cont [14/16] 0.0, 128
    %6180 = vxpose.xlu0.b32.cont [15/16] 0.0, 128
    %6181 = vxpose.xlu0.b32.end [16/16] 0.0, 128
    %v6182 = vpop.trf.xlu0
    %v6183 = vpop.trf.xlu0
    %v6184 = vpop.trf.xlu0
    %v6185 = vpop.trf.xlu0
    %v6186 = vpop.trf.xlu0
    %v6187 = vpop.trf.xlu0
    %v6188 = vpop.trf.xlu0
    %v6189 = vpop.trf.xlu0
    %v6190 = vpop.trf.xlu0
    %v6191 = vpop.trf.xlu0
    %v6192 = vpop.trf.xlu0
    %v6193 = vpop.trf.xlu0
    %v6194 = vpop.trf.xlu0
    %v6195 = vpop.trf.xlu0
    %v6196 = vpop.trf.xlu0
    %v6197 = vpop.trf.xlu0
    %6198 = vxpose.xlu0.b32.start [1/16] %v2364, 128
    %6199 = vxpose.xlu0.b32.cont [2/16] %v2500, 128
    %6200 = vxpose.xlu0.b32.cont [3/16] %v2636, 128
    %6201 = vxpose.xlu0.b32.cont [4/16] %v2772, 128
    %6202 = vxpose.xlu0.b32.cont [5/16] 0.0, 128
    %6203 = vxpose.xlu0.b32.cont [6/16] 0.0, 128
    %6204 = vxpose.xlu0.b32.cont [7/16] 0.0, 128
    %6205 = vxpose.xlu0.b32.cont [8/16] 0.0, 128
    %6206 = vxpose.xlu0.b32.cont [9/16] 0.0, 128
    %6207 = vxpose.xlu0.b32.cont [10/16] 0.0, 128
    %6208 = vxpose.xlu0.b32.cont [11/16] 0.0, 128
    %6209 = vxpose.xlu0.b32.cont [12/16] 0.0, 128
    %6210 = vxpose.xlu0.b32.cont [13/16] 0.0, 128
    %6211 = vxpose.xlu0.b32.cont [14/16] 0.0, 128
    %6212 = vxpose.xlu0.b32.cont [15/16] 0.0, 128
    %6213 = vxpose.xlu0.b32.end [16/16] 0.0, 128
    %v6214 = vpop.trf.xlu0
    %v6215 = vpop.trf.xlu0
    %v6216 = vpop.trf.xlu0
    %v6217 = vpop.trf.xlu0
    %v6218 = vpop.trf.xlu0
    %v6219 = vpop.trf.xlu0
    %v6220 = vpop.trf.xlu0
    %v6221 = vpop.trf.xlu0
    %v6222 = vpop.trf.xlu0
    %v6223 = vpop.trf.xlu0
    %v6224 = vpop.trf.xlu0
    %v6225 = vpop.trf.xlu0
    %v6226 = vpop.trf.xlu0
    %v6227 = vpop.trf.xlu0
    %v6228 = vpop.trf.xlu0
    %v6229 = vpop.trf.xlu0
    %6230 = vxpose.xlu0.b32.start [1/16] %v2365, 128
    %6231 = vxpose.xlu0.b32.cont [2/16] %v2501, 128
    %6232 = vxpose.xlu0.b32.cont [3/16] %v2637, 128
    %6233 = vxpose.xlu0.b32.cont [4/16] %v2773, 128
    %6234 = vxpose.xlu0.b32.cont [5/16] 0.0, 128
    %6235 = vxpose.xlu0.b32.cont [6/16] 0.0, 128
    %6236 = vxpose.xlu0.b32.cont [7/16] 0.0, 128
    %6237 = vxpose.xlu0.b32.cont [8/16] 0.0, 128
    %6238 = vxpose.xlu0.b32.cont [9/16] 0.0, 128
    %6239 = vxpose.xlu0.b32.cont [10/16] 0.0, 128
    %6240 = vxpose.xlu0.b32.cont [11/16] 0.0, 128
    %6241 = vxpose.xlu0.b32.cont [12/16] 0.0, 128
    %6242 = vxpose.xlu0.b32.cont [13/16] 0.0, 128
    %6243 = vxpose.xlu0.b32.cont [14/16] 0.0, 128
    %6244 = vxpose.xlu0.b32.cont [15/16] 0.0, 128
    %6245 = vxpose.xlu0.b32.end [16/16] 0.0, 128
    %v6246 = vpop.trf.xlu0
    %v6247 = vpop.trf.xlu0
    %v6248 = vpop.trf.xlu0
    %v6249 = vpop.trf.xlu0
    %v6250 = vpop.trf.xlu0
    %v6251 = vpop.trf.xlu0
    %v6252 = vpop.trf.xlu0
    %v6253 = vpop.trf.xlu0
    %v6254 = vpop.trf.xlu0
    %v6255 = vpop.trf.xlu0
    %v6256 = vpop.trf.xlu0
    %v6257 = vpop.trf.xlu0
    %v6258 = vpop.trf.xlu0
    %v6259 = vpop.trf.xlu0
    %v6260 = vpop.trf.xlu0
    %v6261 = vpop.trf.xlu0
    %6262 = vxpose.xlu0.b32.start [1/16] %v2902, 128
    %6263 = vxpose.xlu0.b32.cont [2/16] %v3038, 128
    %6264 = vxpose.xlu0.b32.cont [3/16] %v3174, 128
    %6265 = vxpose.xlu0.b32.cont [4/16] %v3310, 128
    %6266 = vxpose.xlu0.b32.cont [5/16] 0.0, 128
    %6267 = vxpose.xlu0.b32.cont [6/16] 0.0, 128
    %6268 = vxpose.xlu0.b32.cont [7/16] 0.0, 128
    %6269 = vxpose.xlu0.b32.cont [8/16] 0.0, 128
    %6270 = vxpose.xlu0.b32.cont [9/16] 0.0, 128
    %6271 = vxpose.xlu0.b32.cont [10/16] 0.0, 128
    %6272 = vxpose.xlu0.b32.cont [11/16] 0.0, 128
    %6273 = vxpose.xlu0.b32.cont [12/16] 0.0, 128
    %6274 = vxpose.xlu0.b32.cont [13/16] 0.0, 128
    %6275 = vxpose.xlu0.b32.cont [14/16] 0.0, 128
    %6276 = vxpose.xlu0.b32.cont [15/16] 0.0, 128
    %6277 = vxpose.xlu0.b32.end [16/16] 0.0, 128
    %v6278 = vpop.trf.xlu0
    %v6279 = vpop.trf.xlu0
    %v6280 = vpop.trf.xlu0
    %v6281 = vpop.trf.xlu0
    %v6282 = vpop.trf.xlu0
    %v6283 = vpop.trf.xlu0
    %v6284 = vpop.trf.xlu0
    %v6285 = vpop.trf.xlu0
    %v6286 = vpop.trf.xlu0
    %v6287 = vpop.trf.xlu0
    %v6288 = vpop.trf.xlu0
    %v6289 = vpop.trf.xlu0
    %v6290 = vpop.trf.xlu0
    %v6291 = vpop.trf.xlu0
    %v6292 = vpop.trf.xlu0
    %v6293 = vpop.trf.xlu0
    %6294 = vxpose.xlu0.b32.start [1/16] %v2903, 128
    %6295 = vxpose.xlu0.b32.cont [2/16] %v3039, 128
    %6296 = vxpose.xlu0.b32.cont [3/16] %v3175, 128
    %6297 = vxpose.xlu0.b32.cont [4/16] %v3311, 128
    %6298 = vxpose.xlu0.b32.cont [5/16] 0.0, 128
    %6299 = vxpose.xlu0.b32.cont [6/16] 0.0, 128
    %6300 = vxpose.xlu0.b32.cont [7/16] 0.0, 128
    %6301 = vxpose.xlu0.b32.cont [8/16] 0.0, 128
    %6302 = vxpose.xlu0.b32.cont [9/16] 0.0, 128
    %6303 = vxpose.xlu0.b32.cont [10/16] 0.0, 128
    %6304 = vxpose.xlu0.b32.cont [11/16] 0.0, 128
    %6305 = vxpose.xlu0.b32.cont [12/16] 0.0, 128
    %6306 = vxpose.xlu0.b32.cont [13/16] 0.0, 128
    %6307 = vxpose.xlu0.b32.cont [14/16] 0.0, 128
    %6308 = vxpose.xlu0.b32.cont [15/16] 0.0, 128
    %6309 = vxpose.xlu0.b32.end [16/16] 0.0, 128
    %v6310 = vpop.trf.xlu0
    %v6311 = vpop.trf.xlu0
    %v6312 = vpop.trf.xlu0
    %v6313 = vpop.trf.xlu0
    %v6314 = vpop.trf.xlu0
    %v6315 = vpop.trf.xlu0
    %v6316 = vpop.trf.xlu0
    %v6317 = vpop.trf.xlu0
    %v6318 = vpop.trf.xlu0
    %v6319 = vpop.trf.xlu0
    %v6320 = vpop.trf.xlu0
    %v6321 = vpop.trf.xlu0
    %v6322 = vpop.trf.xlu0
    %v6323 = vpop.trf.xlu0
    %v6324 = vpop.trf.xlu0
    %v6325 = vpop.trf.xlu0
    %6326 = vxpose.xlu0.b32.start [1/16] %v2904, 128
    %6327 = vxpose.xlu0.b32.cont [2/16] %v3040, 128
    %6328 = vxpose.xlu0.b32.cont [3/16] %v3176, 128
    %6329 = vxpose.xlu0.b32.cont [4/16] %v3312, 128
    %6330 = vxpose.xlu0.b32.cont [5/16] 0.0, 128
    %6331 = vxpose.xlu0.b32.cont [6/16] 0.0, 128
    %6332 = vxpose.xlu0.b32.cont [7/16] 0.0, 128
    %6333 = vxpose.xlu0.b32.cont [8/16] 0.0, 128
    %6334 = vxpose.xlu0.b32.cont [9/16] 0.0, 128
    %6335 = vxpose.xlu0.b32.cont [10/16] 0.0, 128
    %6336 = vxpose.xlu0.b32.cont [11/16] 0.0, 128
    %6337 = vxpose.xlu0.b32.cont [12/16] 0.0, 128
    %6338 = vxpose.xlu0.b32.cont [13/16] 0.0, 128
    %6339 = vxpose.xlu0.b32.cont [14/16] 0.0, 128
    %6340 = vxpose.xlu0.b32.cont [15/16] 0.0, 128
    %6341 = vxpose.xlu0.b32.end [16/16] 0.0, 128
    %v6342 = vpop.trf.xlu0
    %v6343 = vpop.trf.xlu0
    %v6344 = vpop.trf.xlu0
    %v6345 = vpop.trf.xlu0
    %v6346 = vpop.trf.xlu0
    %v6347 = vpop.trf.xlu0
    %v6348 = vpop.trf.xlu0
    %v6349 = vpop.trf.xlu0
    %v6350 = vpop.trf.xlu0
    %v6351 = vpop.trf.xlu0
    %v6352 = vpop.trf.xlu0
    %v6353 = vpop.trf.xlu0
    %v6354 = vpop.trf.xlu0
    %v6355 = vpop.trf.xlu0
    %v6356 = vpop.trf.xlu0
    %v6357 = vpop.trf.xlu0
    %6358 = vxpose.xlu0.b32.start [1/16] %v2905, 128
    %6359 = vxpose.xlu0.b32.cont [2/16] %v3041, 128
    %6360 = vxpose.xlu0.b32.cont [3/16] %v3177, 128
    %6361 = vxpose.xlu0.b32.cont [4/16] %v3313, 128
    %6362 = vxpose.xlu0.b32.cont [5/16] 0.0, 128
    %6363 = vxpose.xlu0.b32.cont [6/16] 0.0, 128
    %6364 = vxpose.xlu0.b32.cont [7/16] 0.0, 128
    %6365 = vxpose.xlu0.b32.cont [8/16] 0.0, 128
    %6366 = vxpose.xlu0.b32.cont [9/16] 0.0, 128
    %6367 = vxpose.xlu0.b32.cont [10/16] 0.0, 128
    %6368 = vxpose.xlu0.b32.cont [11/16] 0.0, 128
    %6369 = vxpose.xlu0.b32.cont [12/16] 0.0, 128
    %6370 = vxpose.xlu0.b32.cont [13/16] 0.0, 128
    %6371 = vxpose.xlu0.b32.cont [14/16] 0.0, 128
    %6372 = vxpose.xlu0.b32.cont [15/16] 0.0, 128
    %6373 = vxpose.xlu0.b32.end [16/16] 0.0, 128
    %v6374 = vpop.trf.xlu0
    %v6375 = vpop.trf.xlu0
    %v6376 = vpop.trf.xlu0
    %v6377 = vpop.trf.xlu0
    %v6378 = vpop.trf.xlu0
    %v6379 = vpop.trf.xlu0
    %v6380 = vpop.trf.xlu0
    %v6381 = vpop.trf.xlu0
    %v6382 = vpop.trf.xlu0
    %v6383 = vpop.trf.xlu0
    %v6384 = vpop.trf.xlu0
    %v6385 = vpop.trf.xlu0
    %v6386 = vpop.trf.xlu0
    %v6387 = vpop.trf.xlu0
    %v6388 = vpop.trf.xlu0
    %v6389 = vpop.trf.xlu0
    %6390 = vxpose.xlu0.b32.start [1/16] %v2906, 128
    %6391 = vxpose.xlu0.b32.cont [2/16] %v3042, 128
    %6392 = vxpose.xlu0.b32.cont [3/16] %v3178, 128
    %6393 = vxpose.xlu0.b32.cont [4/16] %v3314, 128
    %6394 = vxpose.xlu0.b32.cont [5/16] 0.0, 128
    %6395 = vxpose.xlu0.b32.cont [6/16] 0.0, 128
    %6396 = vxpose.xlu0.b32.cont [7/16] 0.0, 128
    %6397 = vxpose.xlu0.b32.cont [8/16] 0.0, 128
    %6398 = vxpose.xlu0.b32.cont [9/16] 0.0, 128
    %6399 = vxpose.xlu0.b32.cont [10/16] 0.0, 128
    %6400 = vxpose.xlu0.b32.cont [11/16] 0.0, 128
    %6401 = vxpose.xlu0.b32.cont [12/16] 0.0, 128
    %6402 = vxpose.xlu0.b32.cont [13/16] 0.0, 128
    %6403 = vxpose.xlu0.b32.cont [14/16] 0.0, 128
    %6404 = vxpose.xlu0.b32.cont [15/16] 0.0, 128
    %6405 = vxpose.xlu0.b32.end [16/16] 0.0, 128
    %v6406 = vpop.trf.xlu0
    %v6407 = vpop.trf.xlu0
    %v6408 = vpop.trf.xlu0
    %v6409 = vpop.trf.xlu0
    %v6410 = vpop.trf.xlu0
    %v6411 = vpop.trf.xlu0
    %v6412 = vpop.trf.xlu0
    %v6413 = vpop.trf.xlu0
    %v6414 = vpop.trf.xlu0
    %v6415 = vpop.trf.xlu0
    %v6416 = vpop.trf.xlu0
    %v6417 = vpop.trf.xlu0
    %v6418 = vpop.trf.xlu0
    %v6419 = vpop.trf.xlu0
    %v6420 = vpop.trf.xlu0
    %v6421 = vpop.trf.xlu0
    %6422 = vxpose.xlu0.b32.start [1/16] %v2907, 128
    %6423 = vxpose.xlu0.b32.cont [2/16] %v3043, 128
    %6424 = vxpose.xlu0.b32.cont [3/16] %v3179, 128
    %6425 = vxpose.xlu0.b32.cont [4/16] %v3315, 128
    %6426 = vxpose.xlu0.b32.cont [5/16] 0.0, 128
    %6427 = vxpose.xlu0.b32.cont [6/16] 0.0, 128
    %6428 = vxpose.xlu0.b32.cont [7/16] 0.0, 128
    %6429 = vxpose.xlu0.b32.cont [8/16] 0.0, 128
    %6430 = vxpose.xlu0.b32.cont [9/16] 0.0, 128
    %6431 = vxpose.xlu0.b32.cont [10/16] 0.0, 128
    %6432 = vxpose.xlu0.b32.cont [11/16] 0.0, 128
    %6433 = vxpose.xlu0.b32.cont [12/16] 0.0, 128
    %6434 = vxpose.xlu0.b32.cont [13/16] 0.0, 128
    %6435 = vxpose.xlu0.b32.cont [14/16] 0.0, 128
    %6436 = vxpose.xlu0.b32.cont [15/16] 0.0, 128
    %6437 = vxpose.xlu0.b32.end [16/16] 0.0, 128
    %v6438 = vpop.trf.xlu0
    %v6439 = vpop.trf.xlu0
    %v6440 = vpop.trf.xlu0
    %v6441 = vpop.trf.xlu0
    %v6442 = vpop.trf.xlu0
    %v6443 = vpop.trf.xlu0
    %v6444 = vpop.trf.xlu0
    %v6445 = vpop.trf.xlu0
    %v6446 = vpop.trf.xlu0
    %v6447 = vpop.trf.xlu0
    %v6448 = vpop.trf.xlu0
    %v6449 = vpop.trf.xlu0
    %v6450 = vpop.trf.xlu0
    %v6451 = vpop.trf.xlu0
    %v6452 = vpop.trf.xlu0
    %v6453 = vpop.trf.xlu0
    %6454 = vxpose.xlu0.b32.start [1/16] %v2908, 128
    %6455 = vxpose.xlu0.b32.cont [2/16] %v3044, 128
    %6456 = vxpose.xlu0.b32.cont [3/16] %v3180, 128
    %6457 = vxpose.xlu0.b32.cont [4/16] %v3316, 128
    %6458 = vxpose.xlu0.b32.cont [5/16] 0.0, 128
    %6459 = vxpose.xlu0.b32.cont [6/16] 0.0, 128
    %6460 = vxpose.xlu0.b32.cont [7/16] 0.0, 128
    %6461 = vxpose.xlu0.b32.cont [8/16] 0.0, 128
    %6462 = vxpose.xlu0.b32.cont [9/16] 0.0, 128
    %6463 = vxpose.xlu0.b32.cont [10/16] 0.0, 128
    %6464 = vxpose.xlu0.b32.cont [11/16] 0.0, 128
    %6465 = vxpose.xlu0.b32.cont [12/16] 0.0, 128
    %6466 = vxpose.xlu0.b32.cont [13/16] 0.0, 128
    %6467 = vxpose.xlu0.b32.cont [14/16] 0.0, 128
    %6468 = vxpose.xlu0.b32.cont [15/16] 0.0, 128
    %6469 = vxpose.xlu0.b32.end [16/16] 0.0, 128
    %v6470 = vpop.trf.xlu0
    %v6471 = vpop.trf.xlu0
    %v6472 = vpop.trf.xlu0
    %v6473 = vpop.trf.xlu0
    %v6474 = vpop.trf.xlu0
    %v6475 = vpop.trf.xlu0
    %v6476 = vpop.trf.xlu0
    %v6477 = vpop.trf.xlu0
    %v6478 = vpop.trf.xlu0
    %v6479 = vpop.trf.xlu0
    %v6480 = vpop.trf.xlu0
    %v6481 = vpop.trf.xlu0
    %v6482 = vpop.trf.xlu0
    %v6483 = vpop.trf.xlu0
    %v6484 = vpop.trf.xlu0
    %v6485 = vpop.trf.xlu0
    %6486 = vxpose.xlu0.b32.start [1/16] %v2909, 128
    %6487 = vxpose.xlu0.b32.cont [2/16] %v3045, 128
    %6488 = vxpose.xlu0.b32.cont [3/16] %v3181, 128
    %6489 = vxpose.xlu0.b32.cont [4/16] %v3317, 128
    %6490 = vxpose.xlu0.b32.cont [5/16] 0.0, 128
    %6491 = vxpose.xlu0.b32.cont [6/16] 0.0, 128
    %6492 = vxpose.xlu0.b32.cont [7/16] 0.0, 128
    %6493 = vxpose.xlu0.b32.cont [8/16] 0.0, 128
    %6494 = vxpose.xlu0.b32.cont [9/16] 0.0, 128
    %6495 = vxpose.xlu0.b32.cont [10/16] 0.0, 128
    %6496 = vxpose.xlu0.b32.cont [11/16] 0.0, 128
    %6497 = vxpose.xlu0.b32.cont [12/16] 0.0, 128
    %6498 = vxpose.xlu0.b32.cont [13/16] 0.0, 128
    %6499 = vxpose.xlu0.b32.cont [14/16] 0.0, 128
    %6500 = vxpose.xlu0.b32.cont [15/16] 0.0, 128
    %6501 = vxpose.xlu0.b32.end [16/16] 0.0, 128
    %v6502 = vpop.trf.xlu0
    %v6503 = vpop.trf.xlu0
    %v6504 = vpop.trf.xlu0
    %v6505 = vpop.trf.xlu0
    %v6506 = vpop.trf.xlu0
    %v6507 = vpop.trf.xlu0
    %v6508 = vpop.trf.xlu0
    %v6509 = vpop.trf.xlu0
    %v6510 = vpop.trf.xlu0
    %v6511 = vpop.trf.xlu0
    %v6512 = vpop.trf.xlu0
    %v6513 = vpop.trf.xlu0
    %v6514 = vpop.trf.xlu0
    %v6515 = vpop.trf.xlu0
    %v6516 = vpop.trf.xlu0
    %v6517 = vpop.trf.xlu0
    %6518 = vxpose.xlu0.b32.start [1/16] %v3446, 128
    %6519 = vxpose.xlu0.b32.cont [2/16] %v3582, 128
    %6520 = vxpose.xlu0.b32.cont [3/16] %v3718, 128
    %6521 = vxpose.xlu0.b32.cont [4/16] %v3854, 128
    %6522 = vxpose.xlu0.b32.cont [5/16] 0.0, 128
    %6523 = vxpose.xlu0.b32.cont [6/16] 0.0, 128
    %6524 = vxpose.xlu0.b32.cont [7/16] 0.0, 128
    %6525 = vxpose.xlu0.b32.cont [8/16] 0.0, 128
    %6526 = vxpose.xlu0.b32.cont [9/16] 0.0, 128
    %6527 = vxpose.xlu0.b32.cont [10/16] 0.0, 128
    %6528 = vxpose.xlu0.b32.cont [11/16] 0.0, 128
    %6529 = vxpose.xlu0.b32.cont [12/16] 0.0, 128
    %6530 = vxpose.xlu0.b32.cont [13/16] 0.0, 128
    %6531 = vxpose.xlu0.b32.cont [14/16] 0.0, 128
    %6532 = vxpose.xlu0.b32.cont [15/16] 0.0, 128
    %6533 = vxpose.xlu0.b32.end [16/16] 0.0, 128
    %v6534 = vpop.trf.xlu0
    %v6535 = vpop.trf.xlu0
    %v6536 = vpop.trf.xlu0
    %v6537 = vpop.trf.xlu0
    %v6538 = vpop.trf.xlu0
    %v6539 = vpop.trf.xlu0
    %v6540 = vpop.trf.xlu0
    %v6541 = vpop.trf.xlu0
    %v6542 = vpop.trf.xlu0
    %v6543 = vpop.trf.xlu0
    %v6544 = vpop.trf.xlu0
    %v6545 = vpop.trf.xlu0
    %v6546 = vpop.trf.xlu0
    %v6547 = vpop.trf.xlu0
    %v6548 = vpop.trf.xlu0
    %v6549 = vpop.trf.xlu0
    %6550 = vxpose.xlu0.b32.start [1/16] %v3447, 128
    %6551 = vxpose.xlu0.b32.cont [2/16] %v3583, 128
    %6552 = vxpose.xlu0.b32.cont [3/16] %v3719, 128
    %6553 = vxpose.xlu0.b32.cont [4/16] %v3855, 128
    %6554 = vxpose.xlu0.b32.cont [5/16] 0.0, 128
    %6555 = vxpose.xlu0.b32.cont [6/16] 0.0, 128
    %6556 = vxpose.xlu0.b32.cont [7/16] 0.0, 128
    %6557 = vxpose.xlu0.b32.cont [8/16] 0.0, 128
    %6558 = vxpose.xlu0.b32.cont [9/16] 0.0, 128
    %6559 = vxpose.xlu0.b32.cont [10/16] 0.0, 128
    %6560 = vxpose.xlu0.b32.cont [11/16] 0.0, 128
    %6561 = vxpose.xlu0.b32.cont [12/16] 0.0, 128
    %6562 = vxpose.xlu0.b32.cont [13/16] 0.0, 128
    %6563 = vxpose.xlu0.b32.cont [14/16] 0.0, 128
    %6564 = vxpose.xlu0.b32.cont [15/16] 0.0, 128
    %6565 = vxpose.xlu0.b32.end [16/16] 0.0, 128
    %v6566 = vpop.trf.xlu0
    %v6567 = vpop.trf.xlu0
    %v6568 = vpop.trf.xlu0
    %v6569 = vpop.trf.xlu0
    %v6570 = vpop.trf.xlu0
    %v6571 = vpop.trf.xlu0
    %v6572 = vpop.trf.xlu0
    %v6573 = vpop.trf.xlu0
    %v6574 = vpop.trf.xlu0
    %v6575 = vpop.trf.xlu0
    %v6576 = vpop.trf.xlu0
    %v6577 = vpop.trf.xlu0
    %v6578 = vpop.trf.xlu0
    %v6579 = vpop.trf.xlu0
    %v6580 = vpop.trf.xlu0
    %v6581 = vpop.trf.xlu0
    %6582 = vxpose.xlu0.b32.start [1/16] %v3448, 128
    %6583 = vxpose.xlu0.b32.cont [2/16] %v3584, 128
    %6584 = vxpose.xlu0.b32.cont [3/16] %v3720, 128
    %6585 = vxpose.xlu0.b32.cont [4/16] %v3856, 128
    %6586 = vxpose.xlu0.b32.cont [5/16] 0.0, 128
    %6587 = vxpose.xlu0.b32.cont [6/16] 0.0, 128
    %6588 = vxpose.xlu0.b32.cont [7/16] 0.0, 128
    %6589 = vxpose.xlu0.b32.cont [8/16] 0.0, 128
    %6590 = vxpose.xlu0.b32.cont [9/16] 0.0, 128
    %6591 = vxpose.xlu0.b32.cont [10/16] 0.0, 128
    %6592 = vxpose.xlu0.b32.cont [11/16] 0.0, 128
    %6593 = vxpose.xlu0.b32.cont [12/16] 0.0, 128
    %6594 = vxpose.xlu0.b32.cont [13/16] 0.0, 128
    %6595 = vxpose.xlu0.b32.cont [14/16] 0.0, 128
    %6596 = vxpose.xlu0.b32.cont [15/16] 0.0, 128
    %6597 = vxpose.xlu0.b32.end [16/16] 0.0, 128
    %v6598 = vpop.trf.xlu0
    %v6599 = vpop.trf.xlu0
    %v6600 = vpop.trf.xlu0
    %v6601 = vpop.trf.xlu0
    %v6602 = vpop.trf.xlu0
    %v6603 = vpop.trf.xlu0
    %v6604 = vpop.trf.xlu0
    %v6605 = vpop.trf.xlu0
    %v6606 = vpop.trf.xlu0
    %v6607 = vpop.trf.xlu0
    %v6608 = vpop.trf.xlu0
    %v6609 = vpop.trf.xlu0
    %v6610 = vpop.trf.xlu0
    %v6611 = vpop.trf.xlu0
    %v6612 = vpop.trf.xlu0
    %v6613 = vpop.trf.xlu0
    %6614 = vxpose.xlu0.b32.start [1/16] %v3449, 128
    %6615 = vxpose.xlu0.b32.cont [2/16] %v3585, 128
    %6616 = vxpose.xlu0.b32.cont [3/16] %v3721, 128
    %6617 = vxpose.xlu0.b32.cont [4/16] %v3857, 128
    %6618 = vxpose.xlu0.b32.cont [5/16] 0.0, 128
    %6619 = vxpose.xlu0.b32.cont [6/16] 0.0, 128
    %6620 = vxpose.xlu0.b32.cont [7/16] 0.0, 128
    %6621 = vxpose.xlu0.b32.cont [8/16] 0.0, 128
    %6622 = vxpose.xlu0.b32.cont [9/16] 0.0, 128
    %6623 = vxpose.xlu0.b32.cont [10/16] 0.0, 128
    %6624 = vxpose.xlu0.b32.cont [11/16] 0.0, 128
    %6625 = vxpose.xlu0.b32.cont [12/16] 0.0, 128
    %6626 = vxpose.xlu0.b32.cont [13/16] 0.0, 128
    %6627 = vxpose.xlu0.b32.cont [14/16] 0.0, 128
    %6628 = vxpose.xlu0.b32.cont [15/16] 0.0, 128
    %6629 = vxpose.xlu0.b32.end [16/16] 0.0, 128
    %v6630 = vpop.trf.xlu0
    %v6631 = vpop.trf.xlu0
    %v6632 = vpop.trf.xlu0
    %v6633 = vpop.trf.xlu0
    %v6634 = vpop.trf.xlu0
    %v6635 = vpop.trf.xlu0
    %v6636 = vpop.trf.xlu0
    %v6637 = vpop.trf.xlu0
    %v6638 = vpop.trf.xlu0
    %v6639 = vpop.trf.xlu0
    %v6640 = vpop.trf.xlu0
    %v6641 = vpop.trf.xlu0
    %v6642 = vpop.trf.xlu0
    %v6643 = vpop.trf.xlu0
    %v6644 = vpop.trf.xlu0
    %v6645 = vpop.trf.xlu0
    %6646 = vxpose.xlu0.b32.start [1/16] %v3450, 128
    %6647 = vxpose.xlu0.b32.cont [2/16] %v3586, 128
    %6648 = vxpose.xlu0.b32.cont [3/16] %v3722, 128
    %6649 = vxpose.xlu0.b32.cont [4/16] %v3858, 128
    %6650 = vxpose.xlu0.b32.cont [5/16] 0.0, 128
    %6651 = vxpose.xlu0.b32.cont [6/16] 0.0, 128
    %6652 = vxpose.xlu0.b32.cont [7/16] 0.0, 128
    %6653 = vxpose.xlu0.b32.cont [8/16] 0.0, 128
    %6654 = vxpose.xlu0.b32.cont [9/16] 0.0, 128
    %6655 = vxpose.xlu0.b32.cont [10/16] 0.0, 128
    %6656 = vxpose.xlu0.b32.cont [11/16] 0.0, 128
    %6657 = vxpose.xlu0.b32.cont [12/16] 0.0, 128
    %6658 = vxpose.xlu0.b32.cont [13/16] 0.0, 128
    %6659 = vxpose.xlu0.b32.cont [14/16] 0.0, 128
    %6660 = vxpose.xlu0.b32.cont [15/16] 0.0, 128
    %6661 = vxpose.xlu0.b32.end [16/16] 0.0, 128
    %v6662 = vpop.trf.xlu0
    %v6663 = vpop.trf.xlu0
    %v6664 = vpop.trf.xlu0
    %v6665 = vpop.trf.xlu0
    %v6666 = vpop.trf.xlu0
    %v6667 = vpop.trf.xlu0
    %v6668 = vpop.trf.xlu0
    %v6669 = vpop.trf.xlu0
    %v6670 = vpop.trf.xlu0
    %v6671 = vpop.trf.xlu0
    %v6672 = vpop.trf.xlu0
    %v6673 = vpop.trf.xlu0
    %v6674 = vpop.trf.xlu0
    %v6675 = vpop.trf.xlu0
    %v6676 = vpop.trf.xlu0
    %v6677 = vpop.trf.xlu0
    %6678 = vxpose.xlu0.b32.start [1/16] %v3451, 128
    %6679 = vxpose.xlu0.b32.cont [2/16] %v3587, 128
    %6680 = vxpose.xlu0.b32.cont [3/16] %v3723, 128
    %6681 = vxpose.xlu0.b32.cont [4/16] %v3859, 128
    %6682 = vxpose.xlu0.b32.cont [5/16] 0.0, 128
    %6683 = vxpose.xlu0.b32.cont [6/16] 0.0, 128
    %6684 = vxpose.xlu0.b32.cont [7/16] 0.0, 128
    %6685 = vxpose.xlu0.b32.cont [8/16] 0.0, 128
    %6686 = vxpose.xlu0.b32.cont [9/16] 0.0, 128
    %6687 = vxpose.xlu0.b32.cont [10/16] 0.0, 128
    %6688 = vxpose.xlu0.b32.cont [11/16] 0.0, 128
    %6689 = vxpose.xlu0.b32.cont [12/16] 0.0, 128
    %6690 = vxpose.xlu0.b32.cont [13/16] 0.0, 128
    %6691 = vxpose.xlu0.b32.cont [14/16] 0.0, 128
    %6692 = vxpose.xlu0.b32.cont [15/16] 0.0, 128
    %6693 = vxpose.xlu0.b32.end [16/16] 0.0, 128
    %v6694 = vpop.trf.xlu0
    %v6695 = vpop.trf.xlu0
    %v6696 = vpop.trf.xlu0
    %v6697 = vpop.trf.xlu0
    %v6698 = vpop.trf.xlu0
    %v6699 = vpop.trf.xlu0
    %v6700 = vpop.trf.xlu0
    %v6701 = vpop.trf.xlu0
    %v6702 = vpop.trf.xlu0
    %v6703 = vpop.trf.xlu0
    %v6704 = vpop.trf.xlu0
    %v6705 = vpop.trf.xlu0
    %v6706 = vpop.trf.xlu0
    %v6707 = vpop.trf.xlu0
    %v6708 = vpop.trf.xlu0
    %v6709 = vpop.trf.xlu0
    %6710 = vxpose.xlu0.b32.start [1/16] %v3452, 128
    %6711 = vxpose.xlu0.b32.cont [2/16] %v3588, 128
    %6712 = vxpose.xlu0.b32.cont [3/16] %v3724, 128
    %6713 = vxpose.xlu0.b32.cont [4/16] %v3860, 128
    %6714 = vxpose.xlu0.b32.cont [5/16] 0.0, 128
    %6715 = vxpose.xlu0.b32.cont [6/16] 0.0, 128
    %6716 = vxpose.xlu0.b32.cont [7/16] 0.0, 128
    %6717 = vxpose.xlu0.b32.cont [8/16] 0.0, 128
    %6718 = vxpose.xlu0.b32.cont [9/16] 0.0, 128
    %6719 = vxpose.xlu0.b32.cont [10/16] 0.0, 128
    %6720 = vxpose.xlu0.b32.cont [11/16] 0.0, 128
    %6721 = vxpose.xlu0.b32.cont [12/16] 0.0, 128
    %6722 = vxpose.xlu0.b32.cont [13/16] 0.0, 128
    %6723 = vxpose.xlu0.b32.cont [14/16] 0.0, 128
    %6724 = vxpose.xlu0.b32.cont [15/16] 0.0, 128
    %6725 = vxpose.xlu0.b32.end [16/16] 0.0, 128
    %v6726 = vpop.trf.xlu0
    %v6727 = vpop.trf.xlu0
    %v6728 = vpop.trf.xlu0
    %v6729 = vpop.trf.xlu0
    %v6730 = vpop.trf.xlu0
    %v6731 = vpop.trf.xlu0
    %v6732 = vpop.trf.xlu0
    %v6733 = vpop.trf.xlu0
    %v6734 = vpop.trf.xlu0
    %v6735 = vpop.trf.xlu0
    %v6736 = vpop.trf.xlu0
    %v6737 = vpop.trf.xlu0
    %v6738 = vpop.trf.xlu0
    %v6739 = vpop.trf.xlu0
    %v6740 = vpop.trf.xlu0
    %v6741 = vpop.trf.xlu0
    %6742 = vxpose.xlu0.b32.start [1/16] %v3453, 128
    %6743 = vxpose.xlu0.b32.cont [2/16] %v3589, 128
    %6744 = vxpose.xlu0.b32.cont [3/16] %v3725, 128
    %6745 = vxpose.xlu0.b32.cont [4/16] %v3861, 128
    %6746 = vxpose.xlu0.b32.cont [5/16] 0.0, 128
    %6747 = vxpose.xlu0.b32.cont [6/16] 0.0, 128
    %6748 = vxpose.xlu0.b32.cont [7/16] 0.0, 128
    %6749 = vxpose.xlu0.b32.cont [8/16] 0.0, 128
    %6750 = vxpose.xlu0.b32.cont [9/16] 0.0, 128
    %6751 = vxpose.xlu0.b32.cont [10/16] 0.0, 128
    %6752 = vxpose.xlu0.b32.cont [11/16] 0.0, 128
    %6753 = vxpose.xlu0.b32.cont [12/16] 0.0, 128
    %6754 = vxpose.xlu0.b32.cont [13/16] 0.0, 128
    %6755 = vxpose.xlu0.b32.cont [14/16] 0.0, 128
    %6756 = vxpose.xlu0.b32.cont [15/16] 0.0, 128
    %6757 = vxpose.xlu0.b32.end [16/16] 0.0, 128
    %v6758 = vpop.trf.xlu0
    %v6759 = vpop.trf.xlu0
    %v6760 = vpop.trf.xlu0
    %v6761 = vpop.trf.xlu0
    %v6762 = vpop.trf.xlu0
    %v6763 = vpop.trf.xlu0
    %v6764 = vpop.trf.xlu0
    %v6765 = vpop.trf.xlu0
    %v6766 = vpop.trf.xlu0
    %v6767 = vpop.trf.xlu0
    %v6768 = vpop.trf.xlu0
    %v6769 = vpop.trf.xlu0
    %v6770 = vpop.trf.xlu0
    %v6771 = vpop.trf.xlu0
    %v6772 = vpop.trf.xlu0
    %v6773 = vpop.trf.xlu0
    %6774 = vxpose.xlu0.b32.start [1/16] %v3990, 128
    %6775 = vxpose.xlu0.b32.cont [2/16] %v4126, 128
    %6776 = vxpose.xlu0.b32.cont [3/16] %v4262, 128
    %6777 = vxpose.xlu0.b32.cont [4/16] %v4398, 128
    %6778 = vxpose.xlu0.b32.cont [5/16] 0.0, 128
    %6779 = vxpose.xlu0.b32.cont [6/16] 0.0, 128
    %6780 = vxpose.xlu0.b32.cont [7/16] 0.0, 128
    %6781 = vxpose.xlu0.b32.cont [8/16] 0.0, 128
    %6782 = vxpose.xlu0.b32.cont [9/16] 0.0, 128
    %6783 = vxpose.xlu0.b32.cont [10/16] 0.0, 128
    %6784 = vxpose.xlu0.b32.cont [11/16] 0.0, 128
    %6785 = vxpose.xlu0.b32.cont [12/16] 0.0, 128
    %6786 = vxpose.xlu0.b32.cont [13/16] 0.0, 128
    %6787 = vxpose.xlu0.b32.cont [14/16] 0.0, 128
    %6788 = vxpose.xlu0.b32.cont [15/16] 0.0, 128
    %6789 = vxpose.xlu0.b32.end [16/16] 0.0, 128
    %v6790 = vpop.trf.xlu0
    %v6791 = vpop.trf.xlu0
    %v6792 = vpop.trf.xlu0
    %v6793 = vpop.trf.xlu0
    %v6794 = vpop.trf.xlu0
    %v6795 = vpop.trf.xlu0
    %v6796 = vpop.trf.xlu0
    %v6797 = vpop.trf.xlu0
    %v6798 = vpop.trf.xlu0
    %v6799 = vpop.trf.xlu0
    %v6800 = vpop.trf.xlu0
    %v6801 = vpop.trf.xlu0
    %v6802 = vpop.trf.xlu0
    %v6803 = vpop.trf.xlu0
    %v6804 = vpop.trf.xlu0
    %v6805 = vpop.trf.xlu0
    %6806 = vxpose.xlu0.b32.start [1/16] %v3991, 128
    %6807 = vxpose.xlu0.b32.cont [2/16] %v4127, 128
    %6808 = vxpose.xlu0.b32.cont [3/16] %v4263, 128
    %6809 = vxpose.xlu0.b32.cont [4/16] %v4399, 128
    %6810 = vxpose.xlu0.b32.cont [5/16] 0.0, 128
    %6811 = vxpose.xlu0.b32.cont [6/16] 0.0, 128
    %6812 = vxpose.xlu0.b32.cont [7/16] 0.0, 128
    %6813 = vxpose.xlu0.b32.cont [8/16] 0.0, 128
    %6814 = vxpose.xlu0.b32.cont [9/16] 0.0, 128
    %6815 = vxpose.xlu0.b32.cont [10/16] 0.0, 128
    %6816 = vxpose.xlu0.b32.cont [11/16] 0.0, 128
    %6817 = vxpose.xlu0.b32.cont [12/16] 0.0, 128
    %6818 = vxpose.xlu0.b32.cont [13/16] 0.0, 128
    %6819 = vxpose.xlu0.b32.cont [14/16] 0.0, 128
    %6820 = vxpose.xlu0.b32.cont [15/16] 0.0, 128
    %6821 = vxpose.xlu0.b32.end [16/16] 0.0, 128
    %v6822 = vpop.trf.xlu0
    %v6823 = vpop.trf.xlu0
    %v6824 = vpop.trf.xlu0
    %v6825 = vpop.trf.xlu0
    %v6826 = vpop.trf.xlu0
    %v6827 = vpop.trf.xlu0
    %v6828 = vpop.trf.xlu0
    %v6829 = vpop.trf.xlu0
    %v6830 = vpop.trf.xlu0
    %v6831 = vpop.trf.xlu0
    %v6832 = vpop.trf.xlu0
    %v6833 = vpop.trf.xlu0
    %v6834 = vpop.trf.xlu0
    %v6835 = vpop.trf.xlu0
    %v6836 = vpop.trf.xlu0
    %v6837 = vpop.trf.xlu0
    %6838 = vxpose.xlu0.b32.start [1/16] %v3992, 128
    %6839 = vxpose.xlu0.b32.cont [2/16] %v4128, 128
    %6840 = vxpose.xlu0.b32.cont [3/16] %v4264, 128
    %6841 = vxpose.xlu0.b32.cont [4/16] %v4400, 128
    %6842 = vxpose.xlu0.b32.cont [5/16] 0.0, 128
    %6843 = vxpose.xlu0.b32.cont [6/16] 0.0, 128
    %6844 = vxpose.xlu0.b32.cont [7/16] 0.0, 128
    %6845 = vxpose.xlu0.b32.cont [8/16] 0.0, 128
    %6846 = vxpose.xlu0.b32.cont [9/16] 0.0, 128
    %6847 = vxpose.xlu0.b32.cont [10/16] 0.0, 128
    %6848 = vxpose.xlu0.b32.cont [11/16] 0.0, 128
    %6849 = vxpose.xlu0.b32.cont [12/16] 0.0, 128
    %6850 = vxpose.xlu0.b32.cont [13/16] 0.0, 128
    %6851 = vxpose.xlu0.b32.cont [14/16] 0.0, 128
    %6852 = vxpose.xlu0.b32.cont [15/16] 0.0, 128
    %6853 = vxpose.xlu0.b32.end [16/16] 0.0, 128
    %v6854 = vpop.trf.xlu0
    %v6855 = vpop.trf.xlu0
    %v6856 = vpop.trf.xlu0
    %v6857 = vpop.trf.xlu0
    %v6858 = vpop.trf.xlu0
    %v6859 = vpop.trf.xlu0
    %v6860 = vpop.trf.xlu0
    %v6861 = vpop.trf.xlu0
    %v6862 = vpop.trf.xlu0
    %v6863 = vpop.trf.xlu0
    %v6864 = vpop.trf.xlu0
    %v6865 = vpop.trf.xlu0
    %v6866 = vpop.trf.xlu0
    %v6867 = vpop.trf.xlu0
    %v6868 = vpop.trf.xlu0
    %v6869 = vpop.trf.xlu0
    %6870 = vxpose.xlu0.b32.start [1/16] %v3993, 128
    %6871 = vxpose.xlu0.b32.cont [2/16] %v4129, 128
    %6872 = vxpose.xlu0.b32.cont [3/16] %v4265, 128
    %6873 = vxpose.xlu0.b32.cont [4/16] %v4401, 128
    %6874 = vxpose.xlu0.b32.cont [5/16] 0.0, 128
    %6875 = vxpose.xlu0.b32.cont [6/16] 0.0, 128
    %6876 = vxpose.xlu0.b32.cont [7/16] 0.0, 128
    %6877 = vxpose.xlu0.b32.cont [8/16] 0.0, 128
    %6878 = vxpose.xlu0.b32.cont [9/16] 0.0, 128
    %6879 = vxpose.xlu0.b32.cont [10/16] 0.0, 128
    %6880 = vxpose.xlu0.b32.cont [11/16] 0.0, 128
    %6881 = vxpose.xlu0.b32.cont [12/16] 0.0, 128
    %6882 = vxpose.xlu0.b32.cont [13/16] 0.0, 128
    %6883 = vxpose.xlu0.b32.cont [14/16] 0.0, 128
    %6884 = vxpose.xlu0.b32.cont [15/16] 0.0, 128
    %6885 = vxpose.xlu0.b32.end [16/16] 0.0, 128
    %v6886 = vpop.trf.xlu0
    %v6887 = vpop.trf.xlu0
    %v6888 = vpop.trf.xlu0
    %v6889 = vpop.trf.xlu0
    %v6890 = vpop.trf.xlu0
    %v6891 = vpop.trf.xlu0
    %v6892 = vpop.trf.xlu0
    %v6893 = vpop.trf.xlu0
    %v6894 = vpop.trf.xlu0
    %v6895 = vpop.trf.xlu0
    %v6896 = vpop.trf.xlu0
    %v6897 = vpop.trf.xlu0
    %v6898 = vpop.trf.xlu0
    %v6899 = vpop.trf.xlu0
    %v6900 = vpop.trf.xlu0
    %v6901 = vpop.trf.xlu0
    %6902 = vxpose.xlu0.b32.start [1/16] %v3994, 128
    %6903 = vxpose.xlu0.b32.cont [2/16] %v4130, 128
    %6904 = vxpose.xlu0.b32.cont [3/16] %v4266, 128
    %6905 = vxpose.xlu0.b32.cont [4/16] %v4402, 128
    %6906 = vxpose.xlu0.b32.cont [5/16] 0.0, 128
    %6907 = vxpose.xlu0.b32.cont [6/16] 0.0, 128
    %6908 = vxpose.xlu0.b32.cont [7/16] 0.0, 128
    %6909 = vxpose.xlu0.b32.cont [8/16] 0.0, 128
    %6910 = vxpose.xlu0.b32.cont [9/16] 0.0, 128
    %6911 = vxpose.xlu0.b32.cont [10/16] 0.0, 128
    %6912 = vxpose.xlu0.b32.cont [11/16] 0.0, 128
    %6913 = vxpose.xlu0.b32.cont [12/16] 0.0, 128
    %6914 = vxpose.xlu0.b32.cont [13/16] 0.0, 128
    %6915 = vxpose.xlu0.b32.cont [14/16] 0.0, 128
    %6916 = vxpose.xlu0.b32.cont [15/16] 0.0, 128
    %6917 = vxpose.xlu0.b32.end [16/16] 0.0, 128
    %v6918 = vpop.trf.xlu0
    %v6919 = vpop.trf.xlu0
    %v6920 = vpop.trf.xlu0
    %v6921 = vpop.trf.xlu0
    %v6922 = vpop.trf.xlu0
    %v6923 = vpop.trf.xlu0
    %v6924 = vpop.trf.xlu0
    %v6925 = vpop.trf.xlu0
    %v6926 = vpop.trf.xlu0
    %v6927 = vpop.trf.xlu0
    %v6928 = vpop.trf.xlu0
    %v6929 = vpop.trf.xlu0
    %v6930 = vpop.trf.xlu0
    %v6931 = vpop.trf.xlu0
    %v6932 = vpop.trf.xlu0
    %v6933 = vpop.trf.xlu0
    %6934 = vxpose.xlu0.b32.start [1/16] %v3995, 128
    %6935 = vxpose.xlu0.b32.cont [2/16] %v4131, 128
    %6936 = vxpose.xlu0.b32.cont [3/16] %v4267, 128
    %6937 = vxpose.xlu0.b32.cont [4/16] %v4403, 128
    %6938 = vxpose.xlu0.b32.cont [5/16] 0.0, 128
    %6939 = vxpose.xlu0.b32.cont [6/16] 0.0, 128
    %6940 = vxpose.xlu0.b32.cont [7/16] 0.0, 128
    %6941 = vxpose.xlu0.b32.cont [8/16] 0.0, 128
    %6942 = vxpose.xlu0.b32.cont [9/16] 0.0, 128
    %6943 = vxpose.xlu0.b32.cont [10/16] 0.0, 128
    %6944 = vxpose.xlu0.b32.cont [11/16] 0.0, 128
    %6945 = vxpose.xlu0.b32.cont [12/16] 0.0, 128
    %6946 = vxpose.xlu0.b32.cont [13/16] 0.0, 128
    %6947 = vxpose.xlu0.b32.cont [14/16] 0.0, 128
    %6948 = vxpose.xlu0.b32.cont [15/16] 0.0, 128
    %6949 = vxpose.xlu0.b32.end [16/16] 0.0, 128
    %v6950 = vpop.trf.xlu0
    %v6951 = vpop.trf.xlu0
    %v6952 = vpop.trf.xlu0
    %v6953 = vpop.trf.xlu0
    %v6954 = vpop.trf.xlu0
    %v6955 = vpop.trf.xlu0
    %v6956 = vpop.trf.xlu0
    %v6957 = vpop.trf.xlu0
    %v6958 = vpop.trf.xlu0
    %v6959 = vpop.trf.xlu0
    %v6960 = vpop.trf.xlu0
    %v6961 = vpop.trf.xlu0
    %v6962 = vpop.trf.xlu0
    %v6963 = vpop.trf.xlu0
    %v6964 = vpop.trf.xlu0
    %v6965 = vpop.trf.xlu0
    %6966 = vxpose.xlu0.b32.start [1/16] %v3996, 128
    %6967 = vxpose.xlu0.b32.cont [2/16] %v4132, 128
    %6968 = vxpose.xlu0.b32.cont [3/16] %v4268, 128
    %6969 = vxpose.xlu0.b32.cont [4/16] %v4404, 128
    %6970 = vxpose.xlu0.b32.cont [5/16] 0.0, 128
    %6971 = vxpose.xlu0.b32.cont [6/16] 0.0, 128
    %6972 = vxpose.xlu0.b32.cont [7/16] 0.0, 128
    %6973 = vxpose.xlu0.b32.cont [8/16] 0.0, 128
    %6974 = vxpose.xlu0.b32.cont [9/16] 0.0, 128
    %6975 = vxpose.xlu0.b32.cont [10/16] 0.0, 128
    %6976 = vxpose.xlu0.b32.cont [11/16] 0.0, 128
    %6977 = vxpose.xlu0.b32.cont [12/16] 0.0, 128
    %6978 = vxpose.xlu0.b32.cont [13/16] 0.0, 128
    %6979 = vxpose.xlu0.b32.cont [14/16] 0.0, 128
    %6980 = vxpose.xlu0.b32.cont [15/16] 0.0, 128
    %6981 = vxpose.xlu0.b32.end [16/16] 0.0, 128
    %v6982 = vpop.trf.xlu0
    %v6983 = vpop.trf.xlu0
    %v6984 = vpop.trf.xlu0
    %v6985 = vpop.trf.xlu0
    %v6986 = vpop.trf.xlu0
    %v6987 = vpop.trf.xlu0
    %v6988 = vpop.trf.xlu0
    %v6989 = vpop.trf.xlu0
    %v6990 = vpop.trf.xlu0
    %v6991 = vpop.trf.xlu0
    %v6992 = vpop.trf.xlu0
    %v6993 = vpop.trf.xlu0
    %v6994 = vpop.trf.xlu0
    %v6995 = vpop.trf.xlu0
    %v6996 = vpop.trf.xlu0
    %v6997 = vpop.trf.xlu0
    %6998 = vxpose.xlu0.b32.start [1/16] %v3997, 128
    %6999 = vxpose.xlu0.b32.cont [2/16] %v4133, 128
    %7000 = vxpose.xlu0.b32.cont [3/16] %v4269, 128
    %7001 = vxpose.xlu0.b32.cont [4/16] %v4405, 128
    %7002 = vxpose.xlu0.b32.cont [5/16] 0.0, 128
    %7003 = vxpose.xlu0.b32.cont [6/16] 0.0, 128
    %7004 = vxpose.xlu0.b32.cont [7/16] 0.0, 128
    %7005 = vxpose.xlu0.b32.cont [8/16] 0.0, 128
    %7006 = vxpose.xlu0.b32.cont [9/16] 0.0, 128
    %7007 = vxpose.xlu0.b32.cont [10/16] 0.0, 128
    %7008 = vxpose.xlu0.b32.cont [11/16] 0.0, 128
    %7009 = vxpose.xlu0.b32.cont [12/16] 0.0, 128
    %7010 = vxpose.xlu0.b32.cont [13/16] 0.0, 128
    %7011 = vxpose.xlu0.b32.cont [14/16] 0.0, 128
    %7012 = vxpose.xlu0.b32.cont [15/16] 0.0, 128
    %7013 = vxpose.xlu0.b32.end [16/16] 0.0, 128
    %v7014 = vpop.trf.xlu0
    %v7015 = vpop.trf.xlu0
    %v7016 = vpop.trf.xlu0
    %v7017 = vpop.trf.xlu0
    %v7018 = vpop.trf.xlu0
    %v7019 = vpop.trf.xlu0
    %v7020 = vpop.trf.xlu0
    %v7021 = vpop.trf.xlu0
    %v7022 = vpop.trf.xlu0
    %v7023 = vpop.trf.xlu0
    %v7024 = vpop.trf.xlu0
    %v7025 = vpop.trf.xlu0
    %v7026 = vpop.trf.xlu0
    %v7027 = vpop.trf.xlu0
    %v7028 = vpop.trf.xlu0
    %v7029 = vpop.trf.xlu0
    %7030 = vxpose.xlu0.b32.start [1/16] %v4534, 128
    %7031 = vxpose.xlu0.b32.cont [2/16] %v4670, 128
    %7032 = vxpose.xlu0.b32.cont [3/16] %v4806, 128
    %7033 = vxpose.xlu0.b32.cont [4/16] %v4942, 128
    %7034 = vxpose.xlu0.b32.cont [5/16] 0.0, 128
    %7035 = vxpose.xlu0.b32.cont [6/16] 0.0, 128
    %7036 = vxpose.xlu0.b32.cont [7/16] 0.0, 128
    %7037 = vxpose.xlu0.b32.cont [8/16] 0.0, 128
    %7038 = vxpose.xlu0.b32.cont [9/16] 0.0, 128
    %7039 = vxpose.xlu0.b32.cont [10/16] 0.0, 128
    %7040 = vxpose.xlu0.b32.cont [11/16] 0.0, 128
    %7041 = vxpose.xlu0.b32.cont [12/16] 0.0, 128
    %7042 = vxpose.xlu0.b32.cont [13/16] 0.0, 128
    %7043 = vxpose.xlu0.b32.cont [14/16] 0.0, 128
    %7044 = vxpose.xlu0.b32.cont [15/16] 0.0, 128
    %7045 = vxpose.xlu0.b32.end [16/16] 0.0, 128
    %v7046 = vpop.trf.xlu0
    %v7047 = vpop.trf.xlu0
    %v7048 = vpop.trf.xlu0
    %v7049 = vpop.trf.xlu0
    %v7050 = vpop.trf.xlu0
    %v7051 = vpop.trf.xlu0
    %v7052 = vpop.trf.xlu0
    %v7053 = vpop.trf.xlu0
    %v7054 = vpop.trf.xlu0
    %v7055 = vpop.trf.xlu0
    %v7056 = vpop.trf.xlu0
    %v7057 = vpop.trf.xlu0
    %v7058 = vpop.trf.xlu0
    %v7059 = vpop.trf.xlu0
    %v7060 = vpop.trf.xlu0
    %v7061 = vpop.trf.xlu0
    %7062 = vxpose.xlu0.b32.start [1/16] %v4535, 128
    %7063 = vxpose.xlu0.b32.cont [2/16] %v4671, 128
    %7064 = vxpose.xlu0.b32.cont [3/16] %v4807, 128
    %7065 = vxpose.xlu0.b32.cont [4/16] %v4943, 128
    %7066 = vxpose.xlu0.b32.cont [5/16] 0.0, 128
    %7067 = vxpose.xlu0.b32.cont [6/16] 0.0, 128
    %7068 = vxpose.xlu0.b32.cont [7/16] 0.0, 128
    %7069 = vxpose.xlu0.b32.cont [8/16] 0.0, 128
    %7070 = vxpose.xlu0.b32.cont [9/16] 0.0, 128
    %7071 = vxpose.xlu0.b32.cont [10/16] 0.0, 128
    %7072 = vxpose.xlu0.b32.cont [11/16] 0.0, 128
    %7073 = vxpose.xlu0.b32.cont [12/16] 0.0, 128
    %7074 = vxpose.xlu0.b32.cont [13/16] 0.0, 128
    %7075 = vxpose.xlu0.b32.cont [14/16] 0.0, 128
    %7076 = vxpose.xlu0.b32.cont [15/16] 0.0, 128
    %7077 = vxpose.xlu0.b32.end [16/16] 0.0, 128
    %v7078 = vpop.trf.xlu0
    %v7079 = vpop.trf.xlu0
    %v7080 = vpop.trf.xlu0
    %v7081 = vpop.trf.xlu0
    %v7082 = vpop.trf.xlu0
    %v7083 = vpop.trf.xlu0
    %v7084 = vpop.trf.xlu0
    %v7085 = vpop.trf.xlu0
    %v7086 = vpop.trf.xlu0
    %v7087 = vpop.trf.xlu0
    %v7088 = vpop.trf.xlu0
    %v7089 = vpop.trf.xlu0
    %v7090 = vpop.trf.xlu0
    %v7091 = vpop.trf.xlu0
    %v7092 = vpop.trf.xlu0
    %v7093 = vpop.trf.xlu0
    %7094 = vxpose.xlu0.b32.start [1/16] %v4536, 128
    %7095 = vxpose.xlu0.b32.cont [2/16] %v4672, 128
    %7096 = vxpose.xlu0.b32.cont [3/16] %v4808, 128
    %7097 = vxpose.xlu0.b32.cont [4/16] %v4944, 128
    %7098 = vxpose.xlu0.b32.cont [5/16] 0.0, 128
    %7099 = vxpose.xlu0.b32.cont [6/16] 0.0, 128
    %7100 = vxpose.xlu0.b32.cont [7/16] 0.0, 128
    %7101 = vxpose.xlu0.b32.cont [8/16] 0.0, 128
    %7102 = vxpose.xlu0.b32.cont [9/16] 0.0, 128
    %7103 = vxpose.xlu0.b32.cont [10/16] 0.0, 128
    %7104 = vxpose.xlu0.b32.cont [11/16] 0.0, 128
    %7105 = vxpose.xlu0.b32.cont [12/16] 0.0, 128
    %7106 = vxpose.xlu0.b32.cont [13/16] 0.0, 128
    %7107 = vxpose.xlu0.b32.cont [14/16] 0.0, 128
    %7108 = vxpose.xlu0.b32.cont [15/16] 0.0, 128
    %7109 = vxpose.xlu0.b32.end [16/16] 0.0, 128
    %v7110 = vpop.trf.xlu0
    %v7111 = vpop.trf.xlu0
    %v7112 = vpop.trf.xlu0
    %v7113 = vpop.trf.xlu0
    %v7114 = vpop.trf.xlu0
    %v7115 = vpop.trf.xlu0
    %v7116 = vpop.trf.xlu0
    %v7117 = vpop.trf.xlu0
    %v7118 = vpop.trf.xlu0
    %v7119 = vpop.trf.xlu0
    %v7120 = vpop.trf.xlu0
    %v7121 = vpop.trf.xlu0
    %v7122 = vpop.trf.xlu0
    %v7123 = vpop.trf.xlu0
    %v7124 = vpop.trf.xlu0
    %v7125 = vpop.trf.xlu0
    %7126 = vxpose.xlu0.b32.start [1/16] %v4537, 128
    %7127 = vxpose.xlu0.b32.cont [2/16] %v4673, 128
    %7128 = vxpose.xlu0.b32.cont [3/16] %v4809, 128
    %7129 = vxpose.xlu0.b32.cont [4/16] %v4945, 128
    %7130 = vxpose.xlu0.b32.cont [5/16] 0.0, 128
    %7131 = vxpose.xlu0.b32.cont [6/16] 0.0, 128
    %7132 = vxpose.xlu0.b32.cont [7/16] 0.0, 128
    %7133 = vxpose.xlu0.b32.cont [8/16] 0.0, 128
    %7134 = vxpose.xlu0.b32.cont [9/16] 0.0, 128
    %7135 = vxpose.xlu0.b32.cont [10/16] 0.0, 128
    %7136 = vxpose.xlu0.b32.cont [11/16] 0.0, 128
    %7137 = vxpose.xlu0.b32.cont [12/16] 0.0, 128
    %7138 = vxpose.xlu0.b32.cont [13/16] 0.0, 128
    %7139 = vxpose.xlu0.b32.cont [14/16] 0.0, 128
    %7140 = vxpose.xlu0.b32.cont [15/16] 0.0, 128
    %7141 = vxpose.xlu0.b32.end [16/16] 0.0, 128
    %v7142 = vpop.trf.xlu0
    %v7143 = vpop.trf.xlu0
    %v7144 = vpop.trf.xlu0
    %v7145 = vpop.trf.xlu0
    %v7146 = vpop.trf.xlu0
    %v7147 = vpop.trf.xlu0
    %v7148 = vpop.trf.xlu0
    %v7149 = vpop.trf.xlu0
    %v7150 = vpop.trf.xlu0
    %v7151 = vpop.trf.xlu0
    %v7152 = vpop.trf.xlu0
    %v7153 = vpop.trf.xlu0
    %v7154 = vpop.trf.xlu0
    %v7155 = vpop.trf.xlu0
    %v7156 = vpop.trf.xlu0
    %v7157 = vpop.trf.xlu0
    %7158 = vxpose.xlu0.b32.start [1/16] %v4538, 128
    %7159 = vxpose.xlu0.b32.cont [2/16] %v4674, 128
    %7160 = vxpose.xlu0.b32.cont [3/16] %v4810, 128
    %7161 = vxpose.xlu0.b32.cont [4/16] %v4946, 128
    %7162 = vxpose.xlu0.b32.cont [5/16] 0.0, 128
    %7163 = vxpose.xlu0.b32.cont [6/16] 0.0, 128
    %7164 = vxpose.xlu0.b32.cont [7/16] 0.0, 128
    %7165 = vxpose.xlu0.b32.cont [8/16] 0.0, 128
    %7166 = vxpose.xlu0.b32.cont [9/16] 0.0, 128
    %7167 = vxpose.xlu0.b32.cont [10/16] 0.0, 128
    %7168 = vxpose.xlu0.b32.cont [11/16] 0.0, 128
    %7169 = vxpose.xlu0.b32.cont [12/16] 0.0, 128
    %7170 = vxpose.xlu0.b32.cont [13/16] 0.0, 128
    %7171 = vxpose.xlu0.b32.cont [14/16] 0.0, 128
    %7172 = vxpose.xlu0.b32.cont [15/16] 0.0, 128
    %7173 = vxpose.xlu0.b32.end [16/16] 0.0, 128
    %v7174 = vpop.trf.xlu0
    %v7175 = vpop.trf.xlu0
    %v7176 = vpop.trf.xlu0
    %v7177 = vpop.trf.xlu0
    %v7178 = vpop.trf.xlu0
    %v7179 = vpop.trf.xlu0
    %v7180 = vpop.trf.xlu0
    %v7181 = vpop.trf.xlu0
    %v7182 = vpop.trf.xlu0
    %v7183 = vpop.trf.xlu0
    %v7184 = vpop.trf.xlu0
    %v7185 = vpop.trf.xlu0
    %v7186 = vpop.trf.xlu0
    %v7187 = vpop.trf.xlu0
    %v7188 = vpop.trf.xlu0
    %v7189 = vpop.trf.xlu0
    %7190 = vxpose.xlu0.b32.start [1/16] %v4539, 128
    %7191 = vxpose.xlu0.b32.cont [2/16] %v4675, 128
    %7192 = vxpose.xlu0.b32.cont [3/16] %v4811, 128
    %7193 = vxpose.xlu0.b32.cont [4/16] %v4947, 128
    %7194 = vxpose.xlu0.b32.cont [5/16] 0.0, 128
    %7195 = vxpose.xlu0.b32.cont [6/16] 0.0, 128
    %7196 = vxpose.xlu0.b32.cont [7/16] 0.0, 128
    %7197 = vxpose.xlu0.b32.cont [8/16] 0.0, 128
    %7198 = vxpose.xlu0.b32.cont [9/16] 0.0, 128
    %7199 = vxpose.xlu0.b32.cont [10/16] 0.0, 128
    %7200 = vxpose.xlu0.b32.cont [11/16] 0.0, 128
    %7201 = vxpose.xlu0.b32.cont [12/16] 0.0, 128
    %7202 = vxpose.xlu0.b32.cont [13/16] 0.0, 128
    %7203 = vxpose.xlu0.b32.cont [14/16] 0.0, 128
    %7204 = vxpose.xlu0.b32.cont [15/16] 0.0, 128
    %7205 = vxpose.xlu0.b32.end [16/16] 0.0, 128
    %v7206 = vpop.trf.xlu0
    %v7207 = vpop.trf.xlu0
    %v7208 = vpop.trf.xlu0
    %v7209 = vpop.trf.xlu0
    %v7210 = vpop.trf.xlu0
    %v7211 = vpop.trf.xlu0
    %v7212 = vpop.trf.xlu0
    %v7213 = vpop.trf.xlu0
    %v7214 = vpop.trf.xlu0
    %v7215 = vpop.trf.xlu0
    %v7216 = vpop.trf.xlu0
    %v7217 = vpop.trf.xlu0
    %v7218 = vpop.trf.xlu0
    %v7219 = vpop.trf.xlu0
    %v7220 = vpop.trf.xlu0
    %v7221 = vpop.trf.xlu0
    %7222 = vxpose.xlu0.b32.start [1/16] %v4540, 128
    %7223 = vxpose.xlu0.b32.cont [2/16] %v4676, 128
    %7224 = vxpose.xlu0.b32.cont [3/16] %v4812, 128
    %7225 = vxpose.xlu0.b32.cont [4/16] %v4948, 128
    %7226 = vxpose.xlu0.b32.cont [5/16] 0.0, 128
    %7227 = vxpose.xlu0.b32.cont [6/16] 0.0, 128
    %7228 = vxpose.xlu0.b32.cont [7/16] 0.0, 128
    %7229 = vxpose.xlu0.b32.cont [8/16] 0.0, 128
    %7230 = vxpose.xlu0.b32.cont [9/16] 0.0, 128
    %7231 = vxpose.xlu0.b32.cont [10/16] 0.0, 128
    %7232 = vxpose.xlu0.b32.cont [11/16] 0.0, 128
    %7233 = vxpose.xlu0.b32.cont [12/16] 0.0, 128
    %7234 = vxpose.xlu0.b32.cont [13/16] 0.0, 128
    %7235 = vxpose.xlu0.b32.cont [14/16] 0.0, 128
    %7236 = vxpose.xlu0.b32.cont [15/16] 0.0, 128
    %7237 = vxpose.xlu0.b32.end [16/16] 0.0, 128
    %v7238 = vpop.trf.xlu0
    %v7239 = vpop.trf.xlu0
    %v7240 = vpop.trf.xlu0
    %v7241 = vpop.trf.xlu0
    %v7242 = vpop.trf.xlu0
    %v7243 = vpop.trf.xlu0
    %v7244 = vpop.trf.xlu0
    %v7245 = vpop.trf.xlu0
    %v7246 = vpop.trf.xlu0
    %v7247 = vpop.trf.xlu0
    %v7248 = vpop.trf.xlu0
    %v7249 = vpop.trf.xlu0
    %v7250 = vpop.trf.xlu0
    %v7251 = vpop.trf.xlu0
    %v7252 = vpop.trf.xlu0
    %v7253 = vpop.trf.xlu0
    %7254 = vxpose.xlu0.b32.start [1/16] %v4541, 128
    %7255 = vxpose.xlu0.b32.cont [2/16] %v4677, 128
    %7256 = vxpose.xlu0.b32.cont [3/16] %v4813, 128
    %7257 = vxpose.xlu0.b32.cont [4/16] %v4949, 128
    %7258 = vxpose.xlu0.b32.cont [5/16] 0.0, 128
    %7259 = vxpose.xlu0.b32.cont [6/16] 0.0, 128
    %7260 = vxpose.xlu0.b32.cont [7/16] 0.0, 128
    %7261 = vxpose.xlu0.b32.cont [8/16] 0.0, 128
    %7262 = vxpose.xlu0.b32.cont [9/16] 0.0, 128
    %7263 = vxpose.xlu0.b32.cont [10/16] 0.0, 128
    %7264 = vxpose.xlu0.b32.cont [11/16] 0.0, 128
    %7265 = vxpose.xlu0.b32.cont [12/16] 0.0, 128
    %7266 = vxpose.xlu0.b32.cont [13/16] 0.0, 128
    %7267 = vxpose.xlu0.b32.cont [14/16] 0.0, 128
    %7268 = vxpose.xlu0.b32.cont [15/16] 0.0, 128
    %7269 = vxpose.xlu0.b32.end [16/16] 0.0, 128
    %v7270 = vpop.trf.xlu0
    %v7271 = vpop.trf.xlu0
    %v7272 = vpop.trf.xlu0
    %v7273 = vpop.trf.xlu0
    %v7274 = vpop.trf.xlu0
    %v7275 = vpop.trf.xlu0
    %v7276 = vpop.trf.xlu0
    %v7277 = vpop.trf.xlu0
    %v7278 = vpop.trf.xlu0
    %v7279 = vpop.trf.xlu0
    %v7280 = vpop.trf.xlu0
    %v7281 = vpop.trf.xlu0
    %v7282 = vpop.trf.xlu0
    %v7283 = vpop.trf.xlu0
    %v7284 = vpop.trf.xlu0
    %v7285 = vpop.trf.xlu0
    %7286 = vxpose.xlu0.b32.start [1/16] %v5078, 128
    %7287 = vxpose.xlu0.b32.cont [2/16] %v5214, 128
    %7288 = vxpose.xlu0.b32.cont [3/16] %v5350, 128
    %7289 = vxpose.xlu0.b32.cont [4/16] %v5486, 128
    %7290 = vxpose.xlu0.b32.cont [5/16] 0.0, 128
    %7291 = vxpose.xlu0.b32.cont [6/16] 0.0, 128
    %7292 = vxpose.xlu0.b32.cont [7/16] 0.0, 128
    %7293 = vxpose.xlu0.b32.cont [8/16] 0.0, 128
    %7294 = vxpose.xlu0.b32.cont [9/16] 0.0, 128
    %7295 = vxpose.xlu0.b32.cont [10/16] 0.0, 128
    %7296 = vxpose.xlu0.b32.cont [11/16] 0.0, 128
    %7297 = vxpose.xlu0.b32.cont [12/16] 0.0, 128
    %7298 = vxpose.xlu0.b32.cont [13/16] 0.0, 128
    %7299 = vxpose.xlu0.b32.cont [14/16] 0.0, 128
    %7300 = vxpose.xlu0.b32.cont [15/16] 0.0, 128
    %7301 = vxpose.xlu0.b32.end [16/16] 0.0, 128
    %v7302 = vpop.trf.xlu0
    %v7303 = vpop.trf.xlu0
    %v7304 = vpop.trf.xlu0
    %v7305 = vpop.trf.xlu0
    %v7306 = vpop.trf.xlu0
    %v7307 = vpop.trf.xlu0
    %v7308 = vpop.trf.xlu0
    %v7309 = vpop.trf.xlu0
    %v7310 = vpop.trf.xlu0
    %v7311 = vpop.trf.xlu0
    %v7312 = vpop.trf.xlu0
    %v7313 = vpop.trf.xlu0
    %v7314 = vpop.trf.xlu0
    %v7315 = vpop.trf.xlu0
    %v7316 = vpop.trf.xlu0
    %v7317 = vpop.trf.xlu0
    %7318 = vxpose.xlu0.b32.start [1/16] %v5079, 128
    %7319 = vxpose.xlu0.b32.cont [2/16] %v5215, 128
    %7320 = vxpose.xlu0.b32.cont [3/16] %v5351, 128
    %7321 = vxpose.xlu0.b32.cont [4/16] %v5487, 128
    %7322 = vxpose.xlu0.b32.cont [5/16] 0.0, 128
    %7323 = vxpose.xlu0.b32.cont [6/16] 0.0, 128
    %7324 = vxpose.xlu0.b32.cont [7/16] 0.0, 128
    %7325 = vxpose.xlu0.b32.cont [8/16] 0.0, 128
    %7326 = vxpose.xlu0.b32.cont [9/16] 0.0, 128
    %7327 = vxpose.xlu0.b32.cont [10/16] 0.0, 128
    %7328 = vxpose.xlu0.b32.cont [11/16] 0.0, 128
    %7329 = vxpose.xlu0.b32.cont [12/16] 0.0, 128
    %7330 = vxpose.xlu0.b32.cont [13/16] 0.0, 128
    %7331 = vxpose.xlu0.b32.cont [14/16] 0.0, 128
    %7332 = vxpose.xlu0.b32.cont [15/16] 0.0, 128
    %7333 = vxpose.xlu0.b32.end [16/16] 0.0, 128
    %v7334 = vpop.trf.xlu0
    %v7335 = vpop.trf.xlu0
    %v7336 = vpop.trf.xlu0
    %v7337 = vpop.trf.xlu0
    %v7338 = vpop.trf.xlu0
    %v7339 = vpop.trf.xlu0
    %v7340 = vpop.trf.xlu0
    %v7341 = vpop.trf.xlu0
    %v7342 = vpop.trf.xlu0
    %v7343 = vpop.trf.xlu0
    %v7344 = vpop.trf.xlu0
    %v7345 = vpop.trf.xlu0
    %v7346 = vpop.trf.xlu0
    %v7347 = vpop.trf.xlu0
    %v7348 = vpop.trf.xlu0
    %v7349 = vpop.trf.xlu0
    %7350 = vxpose.xlu0.b32.start [1/16] %v5080, 128
    %7351 = vxpose.xlu0.b32.cont [2/16] %v5216, 128
    %7352 = vxpose.xlu0.b32.cont [3/16] %v5352, 128
    %7353 = vxpose.xlu0.b32.cont [4/16] %v5488, 128
    %7354 = vxpose.xlu0.b32.cont [5/16] 0.0, 128
    %7355 = vxpose.xlu0.b32.cont [6/16] 0.0, 128
    %7356 = vxpose.xlu0.b32.cont [7/16] 0.0, 128
    %7357 = vxpose.xlu0.b32.cont [8/16] 0.0, 128
    %7358 = vxpose.xlu0.b32.cont [9/16] 0.0, 128
    %7359 = vxpose.xlu0.b32.cont [10/16] 0.0, 128
    %7360 = vxpose.xlu0.b32.cont [11/16] 0.0, 128
    %7361 = vxpose.xlu0.b32.cont [12/16] 0.0, 128
    %7362 = vxpose.xlu0.b32.cont [13/16] 0.0, 128
    %7363 = vxpose.xlu0.b32.cont [14/16] 0.0, 128
    %7364 = vxpose.xlu0.b32.cont [15/16] 0.0, 128
    %7365 = vxpose.xlu0.b32.end [16/16] 0.0, 128
    %v7366 = vpop.trf.xlu0
    %v7367 = vpop.trf.xlu0
    %v7368 = vpop.trf.xlu0
    %v7369 = vpop.trf.xlu0
    %v7370 = vpop.trf.xlu0
    %v7371 = vpop.trf.xlu0
    %v7372 = vpop.trf.xlu0
    %v7373 = vpop.trf.xlu0
    %v7374 = vpop.trf.xlu0
    %v7375 = vpop.trf.xlu0
    %v7376 = vpop.trf.xlu0
    %v7377 = vpop.trf.xlu0
    %v7378 = vpop.trf.xlu0
    %v7379 = vpop.trf.xlu0
    %v7380 = vpop.trf.xlu0
    %v7381 = vpop.trf.xlu0
    %7382 = vxpose.xlu0.b32.start [1/16] %v5081, 128
    %7383 = vxpose.xlu0.b32.cont [2/16] %v5217, 128
    %7384 = vxpose.xlu0.b32.cont [3/16] %v5353, 128
    %7385 = vxpose.xlu0.b32.cont [4/16] %v5489, 128
    %7386 = vxpose.xlu0.b32.cont [5/16] 0.0, 128
    %7387 = vxpose.xlu0.b32.cont [6/16] 0.0, 128
    %7388 = vxpose.xlu0.b32.cont [7/16] 0.0, 128
    %7389 = vxpose.xlu0.b32.cont [8/16] 0.0, 128
    %7390 = vxpose.xlu0.b32.cont [9/16] 0.0, 128
    %7391 = vxpose.xlu0.b32.cont [10/16] 0.0, 128
    %7392 = vxpose.xlu0.b32.cont [11/16] 0.0, 128
    %7393 = vxpose.xlu0.b32.cont [12/16] 0.0, 128
    %7394 = vxpose.xlu0.b32.cont [13/16] 0.0, 128
    %7395 = vxpose.xlu0.b32.cont [14/16] 0.0, 128
    %7396 = vxpose.xlu0.b32.cont [15/16] 0.0, 128
    %7397 = vxpose.xlu0.b32.end [16/16] 0.0, 128
    %v7398 = vpop.trf.xlu0
    %v7399 = vpop.trf.xlu0
    %v7400 = vpop.trf.xlu0
    %v7401 = vpop.trf.xlu0
    %v7402 = vpop.trf.xlu0
    %v7403 = vpop.trf.xlu0
    %v7404 = vpop.trf.xlu0
    %v7405 = vpop.trf.xlu0
    %v7406 = vpop.trf.xlu0
    %v7407 = vpop.trf.xlu0
    %v7408 = vpop.trf.xlu0
    %v7409 = vpop.trf.xlu0
    %v7410 = vpop.trf.xlu0
    %v7411 = vpop.trf.xlu0
    %v7412 = vpop.trf.xlu0
    %v7413 = vpop.trf.xlu0
    %7414 = vxpose.xlu0.b32.start [1/16] %v5082, 128
    %7415 = vxpose.xlu0.b32.cont [2/16] %v5218, 128
    %7416 = vxpose.xlu0.b32.cont [3/16] %v5354, 128
    %7417 = vxpose.xlu0.b32.cont [4/16] %v5490, 128
    %7418 = vxpose.xlu0.b32.cont [5/16] 0.0, 128
    %7419 = vxpose.xlu0.b32.cont [6/16] 0.0, 128
    %7420 = vxpose.xlu0.b32.cont [7/16] 0.0, 128
    %7421 = vxpose.xlu0.b32.cont [8/16] 0.0, 128
    %7422 = vxpose.xlu0.b32.cont [9/16] 0.0, 128
    %7423 = vxpose.xlu0.b32.cont [10/16] 0.0, 128
    %7424 = vxpose.xlu0.b32.cont [11/16] 0.0, 128
    %7425 = vxpose.xlu0.b32.cont [12/16] 0.0, 128
    %7426 = vxpose.xlu0.b32.cont [13/16] 0.0, 128
    %7427 = vxpose.xlu0.b32.cont [14/16] 0.0, 128
    %7428 = vxpose.xlu0.b32.cont [15/16] 0.0, 128
    %7429 = vxpose.xlu0.b32.end [16/16] 0.0, 128
    %v7430 = vpop.trf.xlu0
    %v7431 = vpop.trf.xlu0
    %v7432 = vpop.trf.xlu0
    %v7433 = vpop.trf.xlu0
    %v7434 = vpop.trf.xlu0
    %v7435 = vpop.trf.xlu0
    %v7436 = vpop.trf.xlu0
    %v7437 = vpop.trf.xlu0
    %v7438 = vpop.trf.xlu0
    %v7439 = vpop.trf.xlu0
    %v7440 = vpop.trf.xlu0
    %v7441 = vpop.trf.xlu0
    %v7442 = vpop.trf.xlu0
    %v7443 = vpop.trf.xlu0
    %v7444 = vpop.trf.xlu0
    %v7445 = vpop.trf.xlu0
    %7446 = vxpose.xlu0.b32.start [1/16] %v5083, 128
    %7447 = vxpose.xlu0.b32.cont [2/16] %v5219, 128
    %7448 = vxpose.xlu0.b32.cont [3/16] %v5355, 128
    %7449 = vxpose.xlu0.b32.cont [4/16] %v5491, 128
    %7450 = vxpose.xlu0.b32.cont [5/16] 0.0, 128
    %7451 = vxpose.xlu0.b32.cont [6/16] 0.0, 128
    %7452 = vxpose.xlu0.b32.cont [7/16] 0.0, 128
    %7453 = vxpose.xlu0.b32.cont [8/16] 0.0, 128
    %7454 = vxpose.xlu0.b32.cont [9/16] 0.0, 128
    %7455 = vxpose.xlu0.b32.cont [10/16] 0.0, 128
    %7456 = vxpose.xlu0.b32.cont [11/16] 0.0, 128
    %7457 = vxpose.xlu0.b32.cont [12/16] 0.0, 128
    %7458 = vxpose.xlu0.b32.cont [13/16] 0.0, 128
    %7459 = vxpose.xlu0.b32.cont [14/16] 0.0, 128
    %7460 = vxpose.xlu0.b32.cont [15/16] 0.0, 128
    %7461 = vxpose.xlu0.b32.end [16/16] 0.0, 128
    %v7462 = vpop.trf.xlu0
    %v7463 = vpop.trf.xlu0
    %v7464 = vpop.trf.xlu0
    %v7465 = vpop.trf.xlu0
    %v7466 = vpop.trf.xlu0
    %v7467 = vpop.trf.xlu0
    %v7468 = vpop.trf.xlu0
    %v7469 = vpop.trf.xlu0
    %v7470 = vpop.trf.xlu0
    %v7471 = vpop.trf.xlu0
    %v7472 = vpop.trf.xlu0
    %v7473 = vpop.trf.xlu0
    %v7474 = vpop.trf.xlu0
    %v7475 = vpop.trf.xlu0
    %v7476 = vpop.trf.xlu0
    %v7477 = vpop.trf.xlu0
    %7478 = vxpose.xlu0.b32.start [1/16] %v5084, 128
    %7479 = vxpose.xlu0.b32.cont [2/16] %v5220, 128
    %7480 = vxpose.xlu0.b32.cont [3/16] %v5356, 128
    %7481 = vxpose.xlu0.b32.cont [4/16] %v5492, 128
    %7482 = vxpose.xlu0.b32.cont [5/16] 0.0, 128
    %7483 = vxpose.xlu0.b32.cont [6/16] 0.0, 128
    %7484 = vxpose.xlu0.b32.cont [7/16] 0.0, 128
    %7485 = vxpose.xlu0.b32.cont [8/16] 0.0, 128
    %7486 = vxpose.xlu0.b32.cont [9/16] 0.0, 128
    %7487 = vxpose.xlu0.b32.cont [10/16] 0.0, 128
    %7488 = vxpose.xlu0.b32.cont [11/16] 0.0, 128
    %7489 = vxpose.xlu0.b32.cont [12/16] 0.0, 128
    %7490 = vxpose.xlu0.b32.cont [13/16] 0.0, 128
    %7491 = vxpose.xlu0.b32.cont [14/16] 0.0, 128
    %7492 = vxpose.xlu0.b32.cont [15/16] 0.0, 128
    %7493 = vxpose.xlu0.b32.end [16/16] 0.0, 128
    %v7494 = vpop.trf.xlu0
    %v7495 = vpop.trf.xlu0
    %v7496 = vpop.trf.xlu0
    %v7497 = vpop.trf.xlu0
    %v7498 = vpop.trf.xlu0
    %v7499 = vpop.trf.xlu0
    %v7500 = vpop.trf.xlu0
    %v7501 = vpop.trf.xlu0
    %v7502 = vpop.trf.xlu0
    %v7503 = vpop.trf.xlu0
    %v7504 = vpop.trf.xlu0
    %v7505 = vpop.trf.xlu0
    %v7506 = vpop.trf.xlu0
    %v7507 = vpop.trf.xlu0
    %v7508 = vpop.trf.xlu0
    %v7509 = vpop.trf.xlu0
    %7510 = vxpose.xlu0.b32.start [1/16] %v5085, 128
    %7511 = vxpose.xlu0.b32.cont [2/16] %v5221, 128
    %7512 = vxpose.xlu0.b32.cont [3/16] %v5357, 128
    %7513 = vxpose.xlu0.b32.cont [4/16] %v5493, 128
    %7514 = vxpose.xlu0.b32.cont [5/16] 0.0, 128
    %7515 = vxpose.xlu0.b32.cont [6/16] 0.0, 128
    %7516 = vxpose.xlu0.b32.cont [7/16] 0.0, 128
    %7517 = vxpose.xlu0.b32.cont [8/16] 0.0, 128
    %7518 = vxpose.xlu0.b32.cont [9/16] 0.0, 128
    %7519 = vxpose.xlu0.b32.cont [10/16] 0.0, 128
    %7520 = vxpose.xlu0.b32.cont [11/16] 0.0, 128
    %7521 = vxpose.xlu0.b32.cont [12/16] 0.0, 128
    %7522 = vxpose.xlu0.b32.cont [13/16] 0.0, 128
    %7523 = vxpose.xlu0.b32.cont [14/16] 0.0, 128
    %7524 = vxpose.xlu0.b32.cont [15/16] 0.0, 128
    %7525 = vxpose.xlu0.b32.end [16/16] 0.0, 128
    %v7526 = vpop.trf.xlu0
    %v7527 = vpop.trf.xlu0
    %v7528 = vpop.trf.xlu0
    %v7529 = vpop.trf.xlu0
    %v7530 = vpop.trf.xlu0
    %v7531 = vpop.trf.xlu0
    %v7532 = vpop.trf.xlu0
    %v7533 = vpop.trf.xlu0
    %v7534 = vpop.trf.xlu0
    %v7535 = vpop.trf.xlu0
    %v7536 = vpop.trf.xlu0
    %v7537 = vpop.trf.xlu0
    %v7538 = vpop.trf.xlu0
    %v7539 = vpop.trf.xlu0
    %v7540 = vpop.trf.xlu0
    %v7541 = vpop.trf.xlu0
    %v7542 = vcombine.low %v5510, %v5574
    %v7544 = vunpack.c.l.s4 1983009808
    %v7545 = vunpack.c.0.s8 %v7544
    %v7546 = vlaneseq
    %v7547 = vshrl.u32 %v7546, 7
    %v7548 = vsub.s32 %v7545, %v7547
    %v7549 = vrot.slane %v7542, %v7548
    %v7550 = vcombine.low %v5542, %v5606
    %v7552 = vunpack.c.l.s4 1983009808
    %v7553 = vunpack.c.0.s8 %v7552
    %v7554 = vlaneseq
    %v7555 = vshrl.u32 %v7554, 7
    %v7556 = vsub.s32 %v7553, %v7555
    %v7557 = vrot.slane %v7550, %v7556
    %v7558 = vcombine.low %v5638, %v5702
    %v7560 = vunpack.c.l.s4 1983009808
    %v7561 = vunpack.c.0.s8 %v7560
    %v7562 = vlaneseq
    %v7563 = vshrl.u32 %v7562, 7
    %v7564 = vsub.s32 %v7561, %v7563
    %v7565 = vrot.slane %v7558, %v7564
    %v7566 = vcombine.low %v5670, %v5734
    %v7568 = vunpack.c.l.s4 1983009808
    %v7569 = vunpack.c.0.s8 %v7568
    %v7570 = vlaneseq
    %v7571 = vshrl.u32 %v7570, 7
    %v7572 = vsub.s32 %v7569, %v7571
    %v7573 = vrot.slane %v7566, %v7572
    %v7574 = vcombine.low %v7549, %v7557
    %v7575 = vcombine.high %v7549, %v7557
    %v7577 = vunpack.c.l.s4 1934713408
    %v7578 = vunpack.c.0.s8 %v7577
    %v7579 = vlaneseq
    %v7580 = vshrl.u32 %v7579, 7
    %v7581 = vsub.s32 %v7578, %v7580
    %v7582 = vrot.slane %v7574, %v7581
    %v7584 = vunpack.c.l.s4 1934713408
    %v7585 = vunpack.c.0.s8 %v7584
    %v7586 = vlaneseq
    %v7587 = vshrl.u32 %v7586, 7
    %v7588 = vsub.s32 %v7585, %v7587
    %v7589 = vrot.slane %v7575, %v7588
    %v7590 = vcombine.low %v7565, %v7573
    %v7591 = vcombine.high %v7565, %v7573
    %v7593 = vunpack.c.l.s4 1934713408
    %v7594 = vunpack.c.0.s8 %v7593
    %v7595 = vlaneseq
    %v7596 = vshrl.u32 %v7595, 7
    %v7597 = vsub.s32 %v7594, %v7596
    %v7598 = vrot.slane %v7590, %v7597
    %v7600 = vunpack.c.l.s4 1934713408
    %v7601 = vunpack.c.0.s8 %v7600
    %v7602 = vlaneseq
    %v7603 = vshrl.u32 %v7602, 7
    %v7604 = vsub.s32 %v7601, %v7603
    %v7605 = vrot.slane %v7591, %v7604
    %v7606 = vcombine.low %v7582, %v7598
    %v7607 = vcombine.high %v7582, %v7598
    %v7608 = vcombine.low %v7589, %v7605
    %v7609 = vcombine.high %v7589, %v7605
    %v7610 = vcombine.low %v5766, %v5830
    %v7612 = vunpack.c.l.s4 1983009808
    %v7613 = vunpack.c.0.s8 %v7612
    %v7614 = vlaneseq
    %v7615 = vshrl.u32 %v7614, 7
    %v7616 = vsub.s32 %v7613, %v7615
    %v7617 = vrot.slane %v7610, %v7616
    %v7618 = vcombine.low %v5798, %v5862
    %v7620 = vunpack.c.l.s4 1983009808
    %v7621 = vunpack.c.0.s8 %v7620
    %v7622 = vlaneseq
    %v7623 = vshrl.u32 %v7622, 7
    %v7624 = vsub.s32 %v7621, %v7623
    %v7625 = vrot.slane %v7618, %v7624
    %v7626 = vcombine.low %v5894, %v5958
    %v7628 = vunpack.c.l.s4 1983009808
    %v7629 = vunpack.c.0.s8 %v7628
    %v7630 = vlaneseq
    %v7631 = vshrl.u32 %v7630, 7
    %v7632 = vsub.s32 %v7629, %v7631
    %v7633 = vrot.slane %v7626, %v7632
    %v7634 = vcombine.low %v5926, %v5990
    %v7636 = vunpack.c.l.s4 1983009808
    %v7637 = vunpack.c.0.s8 %v7636
    %v7638 = vlaneseq
    %v7639 = vshrl.u32 %v7638, 7
    %v7640 = vsub.s32 %v7637, %v7639
    %v7641 = vrot.slane %v7634, %v7640
    %v7642 = vcombine.low %v7617, %v7625
    %v7643 = vcombine.high %v7617, %v7625
    %v7645 = vunpack.c.l.s4 1934713408
    %v7646 = vunpack.c.0.s8 %v7645
    %v7647 = vlaneseq
    %v7648 = vshrl.u32 %v7647, 7
    %v7649 = vsub.s32 %v7646, %v7648
    %v7650 = vrot.slane %v7642, %v7649
    %v7652 = vunpack.c.l.s4 1934713408
    %v7653 = vunpack.c.0.s8 %v7652
    %v7654 = vlaneseq
    %v7655 = vshrl.u32 %v7654, 7
    %v7656 = vsub.s32 %v7653, %v7655
    %v7657 = vrot.slane %v7643, %v7656
    %v7658 = vcombine.low %v7633, %v7641
    %v7659 = vcombine.high %v7633, %v7641
    %v7661 = vunpack.c.l.s4 1934713408
    %v7662 = vunpack.c.0.s8 %v7661
    %v7663 = vlaneseq
    %v7664 = vshrl.u32 %v7663, 7
    %v7665 = vsub.s32 %v7662, %v7664
    %v7666 = vrot.slane %v7658, %v7665
    %v7668 = vunpack.c.l.s4 1934713408
    %v7669 = vunpack.c.0.s8 %v7668
    %v7670 = vlaneseq
    %v7671 = vshrl.u32 %v7670, 7
    %v7672 = vsub.s32 %v7669, %v7671
    %v7673 = vrot.slane %v7659, %v7672
    %v7674 = vcombine.low %v7650, %v7666
    %v7675 = vcombine.high %v7650, %v7666
    %v7676 = vcombine.low %v7657, %v7673
    %v7677 = vcombine.high %v7657, %v7673
    %v7678 = vcombine.low %v6022, %v6086
    %v7680 = vunpack.c.l.s4 1983009808
    %v7681 = vunpack.c.0.s8 %v7680
    %v7682 = vlaneseq
    %v7683 = vshrl.u32 %v7682, 7
    %v7684 = vsub.s32 %v7681, %v7683
    %v7685 = vrot.slane %v7678, %v7684
    %v7686 = vcombine.low %v6054, %v6118
    %v7688 = vunpack.c.l.s4 1983009808
    %v7689 = vunpack.c.0.s8 %v7688
    %v7690 = vlaneseq
    %v7691 = vshrl.u32 %v7690, 7
    %v7692 = vsub.s32 %v7689, %v7691
    %v7693 = vrot.slane %v7686, %v7692
    %v7694 = vcombine.low %v6150, %v6214
    %v7696 = vunpack.c.l.s4 1983009808
    %v7697 = vunpack.c.0.s8 %v7696
    %v7698 = vlaneseq
    %v7699 = vshrl.u32 %v7698, 7
    %v7700 = vsub.s32 %v7697, %v7699
    %v7701 = vrot.slane %v7694, %v7700
    %v7702 = vcombine.low %v6182, %v6246
    %v7704 = vunpack.c.l.s4 1983009808
    %v7705 = vunpack.c.0.s8 %v7704
    %v7706 = vlaneseq
    %v7707 = vshrl.u32 %v7706, 7
    %v7708 = vsub.s32 %v7705, %v7707
    %v7709 = vrot.slane %v7702, %v7708
    %v7710 = vcombine.low %v7685, %v7693
    %v7711 = vcombine.high %v7685, %v7693
    %v7713 = vunpack.c.l.s4 1934713408
    %v7714 = vunpack.c.0.s8 %v7713
    %v7715 = vlaneseq
    %v7716 = vshrl.u32 %v7715, 7
    %v7717 = vsub.s32 %v7714, %v7716
    %v7718 = vrot.slane %v7710, %v7717
    %v7720 = vunpack.c.l.s4 1934713408
    %v7721 = vunpack.c.0.s8 %v7720
    %v7722 = vlaneseq
    %v7723 = vshrl.u32 %v7722, 7
    %v7724 = vsub.s32 %v7721, %v7723
    %v7725 = vrot.slane %v7711, %v7724
    %v7726 = vcombine.low %v7701, %v7709
    %v7727 = vcombine.high %v7701, %v7709
    %v7729 = vunpack.c.l.s4 1934713408
    %v7730 = vunpack.c.0.s8 %v7729
    %v7731 = vlaneseq
    %v7732 = vshrl.u32 %v7731, 7
    %v7733 = vsub.s32 %v7730, %v7732
    %v7734 = vrot.slane %v7726, %v7733
    %v7736 = vunpack.c.l.s4 1934713408
    %v7737 = vunpack.c.0.s8 %v7736
    %v7738 = vlaneseq
    %v7739 = vshrl.u32 %v7738, 7
    %v7740 = vsub.s32 %v7737, %v7739
    %v7741 = vrot.slane %v7727, %v7740
    %v7742 = vcombine.low %v7718, %v7734
    %v7743 = vcombine.high %v7718, %v7734
    %v7744 = vcombine.low %v7725, %v7741
    %v7745 = vcombine.high %v7725, %v7741
    %v7746 = vcombine.low %v6278, %v6342
    %v7748 = vunpack.c.l.s4 1983009808
    %v7749 = vunpack.c.0.s8 %v7748
    %v7750 = vlaneseq
    %v7751 = vshrl.u32 %v7750, 7
    %v7752 = vsub.s32 %v7749, %v7751
    %v7753 = vrot.slane %v7746, %v7752
    %v7754 = vcombine.low %v6310, %v6374
    %v7756 = vunpack.c.l.s4 1983009808
    %v7757 = vunpack.c.0.s8 %v7756
    %v7758 = vlaneseq
    %v7759 = vshrl.u32 %v7758, 7
    %v7760 = vsub.s32 %v7757, %v7759
    %v7761 = vrot.slane %v7754, %v7760
    %v7762 = vcombine.low %v6406, %v6470
    %v7764 = vunpack.c.l.s4 1983009808
    %v7765 = vunpack.c.0.s8 %v7764
    %v7766 = vlaneseq
    %v7767 = vshrl.u32 %v7766, 7
    %v7768 = vsub.s32 %v7765, %v7767
    %v7769 = vrot.slane %v7762, %v7768
    %v7770 = vcombine.low %v6438, %v6502
    %v7772 = vunpack.c.l.s4 1983009808
    %v7773 = vunpack.c.0.s8 %v7772
    %v7774 = vlaneseq
    %v7775 = vshrl.u32 %v7774, 7
    %v7776 = vsub.s32 %v7773, %v7775
    %v7777 = vrot.slane %v7770, %v7776
    %v7778 = vcombine.low %v7753, %v7761
    %v7779 = vcombine.high %v7753, %v7761
    %v7781 = vunpack.c.l.s4 1934713408
    %v7782 = vunpack.c.0.s8 %v7781
    %v7783 = vlaneseq
    %v7784 = vshrl.u32 %v7783, 7
    %v7785 = vsub.s32 %v7782, %v7784
    %v7786 = vrot.slane %v7778, %v7785
    %v7788 = vunpack.c.l.s4 1934713408
    %v7789 = vunpack.c.0.s8 %v7788
    %v7790 = vlaneseq
    %v7791 = vshrl.u32 %v7790, 7
    %v7792 = vsub.s32 %v7789, %v7791
    %v7793 = vrot.slane %v7779, %v7792
    %v7794 = vcombine.low %v7769, %v7777
    %v7795 = vcombine.high %v7769, %v7777
    %v7797 = vunpack.c.l.s4 1934713408
    %v7798 = vunpack.c.0.s8 %v7797
    %v7799 = vlaneseq
    %v7800 = vshrl.u32 %v7799, 7
    %v7801 = vsub.s32 %v7798, %v7800
    %v7802 = vrot.slane %v7794, %v7801
    %v7804 = vunpack.c.l.s4 1934713408
    %v7805 = vunpack.c.0.s8 %v7804
    %v7806 = vlaneseq
    %v7807 = vshrl.u32 %v7806, 7
    %v7808 = vsub.s32 %v7805, %v7807
    %v7809 = vrot.slane %v7795, %v7808
    %v7810 = vcombine.low %v7786, %v7802
    %v7811 = vcombine.high %v7786, %v7802
    %v7812 = vcombine.low %v7793, %v7809
    %v7813 = vcombine.high %v7793, %v7809
    %v7814 = vcombine.low %v6534, %v6598
    %v7816 = vunpack.c.l.s4 1983009808
    %v7817 = vunpack.c.0.s8 %v7816
    %v7818 = vlaneseq
    %v7819 = vshrl.u32 %v7818, 7
    %v7820 = vsub.s32 %v7817, %v7819
    %v7821 = vrot.slane %v7814, %v7820
    %v7822 = vcombine.low %v6566, %v6630
    %v7824 = vunpack.c.l.s4 1983009808
    %v7825 = vunpack.c.0.s8 %v7824
    %v7826 = vlaneseq
    %v7827 = vshrl.u32 %v7826, 7
    %v7828 = vsub.s32 %v7825, %v7827
    %v7829 = vrot.slane %v7822, %v7828
    %v7830 = vcombine.low %v6662, %v6726
    %v7832 = vunpack.c.l.s4 1983009808
    %v7833 = vunpack.c.0.s8 %v7832
    %v7834 = vlaneseq
    %v7835 = vshrl.u32 %v7834, 7
    %v7836 = vsub.s32 %v7833, %v7835
    %v7837 = vrot.slane %v7830, %v7836
    %v7838 = vcombine.low %v6694, %v6758
    %v7840 = vunpack.c.l.s4 1983009808
    %v7841 = vunpack.c.0.s8 %v7840
    %v7842 = vlaneseq
    %v7843 = vshrl.u32 %v7842, 7
    %v7844 = vsub.s32 %v7841, %v7843
    %v7845 = vrot.slane %v7838, %v7844
    %v7846 = vcombine.low %v7821, %v7829
    %v7847 = vcombine.high %v7821, %v7829
    %v7849 = vunpack.c.l.s4 1934713408
    %v7850 = vunpack.c.0.s8 %v7849
    %v7851 = vlaneseq
    %v7852 = vshrl.u32 %v7851, 7
    %v7853 = vsub.s32 %v7850, %v7852
    %v7854 = vrot.slane %v7846, %v7853
    %v7856 = vunpack.c.l.s4 1934713408
    %v7857 = vunpack.c.0.s8 %v7856
    %v7858 = vlaneseq
    %v7859 = vshrl.u32 %v7858, 7
    %v7860 = vsub.s32 %v7857, %v7859
    %v7861 = vrot.slane %v7847, %v7860
    %v7862 = vcombine.low %v7837, %v7845
    %v7863 = vcombine.high %v7837, %v7845
    %v7865 = vunpack.c.l.s4 1934713408
    %v7866 = vunpack.c.0.s8 %v7865
    %v7867 = vlaneseq
    %v7868 = vshrl.u32 %v7867, 7
    %v7869 = vsub.s32 %v7866, %v7868
    %v7870 = vrot.slane %v7862, %v7869
    %v7872 = vunpack.c.l.s4 1934713408
    %v7873 = vunpack.c.0.s8 %v7872
    %v7874 = vlaneseq
    %v7875 = vshrl.u32 %v7874, 7
    %v7876 = vsub.s32 %v7873, %v7875
    %v7877 = vrot.slane %v7863, %v7876
    %v7878 = vcombine.low %v7854, %v7870
    %v7879 = vcombine.high %v7854, %v7870
    %v7880 = vcombine.low %v7861, %v7877
    %v7881 = vcombine.high %v7861, %v7877
    %v7882 = vcombine.low %v6790, %v6854
    %v7884 = vunpack.c.l.s4 1983009808
    %v7885 = vunpack.c.0.s8 %v7884
    %v7886 = vlaneseq
    %v7887 = vshrl.u32 %v7886, 7
    %v7888 = vsub.s32 %v7885, %v7887
    %v7889 = vrot.slane %v7882, %v7888
    %v7890 = vcombine.low %v6822, %v6886
    %v7892 = vunpack.c.l.s4 1983009808
    %v7893 = vunpack.c.0.s8 %v7892
    %v7894 = vlaneseq
    %v7895 = vshrl.u32 %v7894, 7
    %v7896 = vsub.s32 %v7893, %v7895
    %v7897 = vrot.slane %v7890, %v7896
    %v7898 = vcombine.low %v6918, %v6982
    %v7900 = vunpack.c.l.s4 1983009808
    %v7901 = vunpack.c.0.s8 %v7900
    %v7902 = vlaneseq
    %v7903 = vshrl.u32 %v7902, 7
    %v7904 = vsub.s32 %v7901, %v7903
    %v7905 = vrot.slane %v7898, %v7904
    %v7906 = vcombine.low %v6950, %v7014
    %v7908 = vunpack.c.l.s4 1983009808
    %v7909 = vunpack.c.0.s8 %v7908
    %v7910 = vlaneseq
    %v7911 = vshrl.u32 %v7910, 7
    %v7912 = vsub.s32 %v7909, %v7911
    %v7913 = vrot.slane %v7906, %v7912
    %v7914 = vcombine.low %v7889, %v7897
    %v7915 = vcombine.high %v7889, %v7897
    %v7917 = vunpack.c.l.s4 1934713408
    %v7918 = vunpack.c.0.s8 %v7917
    %v7919 = vlaneseq
    %v7920 = vshrl.u32 %v7919, 7
    %v7921 = vsub.s32 %v7918, %v7920
    %v7922 = vrot.slane %v7914, %v7921
    %v7924 = vunpack.c.l.s4 1934713408
    %v7925 = vunpack.c.0.s8 %v7924
    %v7926 = vlaneseq
    %v7927 = vshrl.u32 %v7926, 7
    %v7928 = vsub.s32 %v7925, %v7927
    %v7929 = vrot.slane %v7915, %v7928
    %v7930 = vcombine.low %v7905, %v7913
    %v7931 = vcombine.high %v7905, %v7913
    %v7933 = vunpack.c.l.s4 1934713408
    %v7934 = vunpack.c.0.s8 %v7933
    %v7935 = vlaneseq
    %v7936 = vshrl.u32 %v7935, 7
    %v7937 = vsub.s32 %v7934, %v7936
    %v7938 = vrot.slane %v7930, %v7937
    %v7940 = vunpack.c.l.s4 1934713408
    %v7941 = vunpack.c.0.s8 %v7940
    %v7942 = vlaneseq
    %v7943 = vshrl.u32 %v7942, 7
    %v7944 = vsub.s32 %v7941, %v7943
    %v7945 = vrot.slane %v7931, %v7944
    %v7946 = vcombine.low %v7922, %v7938
    %v7947 = vcombine.high %v7922, %v7938
    %v7948 = vcombine.low %v7929, %v7945
    %v7949 = vcombine.high %v7929, %v7945
    %v7950 = vcombine.low %v7046, %v7110
    %v7952 = vunpack.c.l.s4 1983009808
    %v7953 = vunpack.c.0.s8 %v7952
    %v7954 = vlaneseq
    %v7955 = vshrl.u32 %v7954, 7
    %v7956 = vsub.s32 %v7953, %v7955
    %v7957 = vrot.slane %v7950, %v7956
    %v7958 = vcombine.low %v7078, %v7142
    %v7960 = vunpack.c.l.s4 1983009808
    %v7961 = vunpack.c.0.s8 %v7960
    %v7962 = vlaneseq
    %v7963 = vshrl.u32 %v7962, 7
    %v7964 = vsub.s32 %v7961, %v7963
    %v7965 = vrot.slane %v7958, %v7964
    %v7966 = vcombine.low %v7174, %v7238
    %v7968 = vunpack.c.l.s4 1983009808
    %v7969 = vunpack.c.0.s8 %v7968
    %v7970 = vlaneseq
    %v7971 = vshrl.u32 %v7970, 7
    %v7972 = vsub.s32 %v7969, %v7971
    %v7973 = vrot.slane %v7966, %v7972
    %v7974 = vcombine.low %v7206, %v7270
    %v7976 = vunpack.c.l.s4 1983009808
    %v7977 = vunpack.c.0.s8 %v7976
    %v7978 = vlaneseq
    %v7979 = vshrl.u32 %v7978, 7
    %v7980 = vsub.s32 %v7977, %v7979
    %v7981 = vrot.slane %v7974, %v7980
    %v7982 = vcombine.low %v7957, %v7965
    %v7983 = vcombine.high %v7957, %v7965
    %v7985 = vunpack.c.l.s4 1934713408
    %v7986 = vunpack.c.0.s8 %v7985
    %v7987 = vlaneseq
    %v7988 = vshrl.u32 %v7987, 7
    %v7989 = vsub.s32 %v7986, %v7988
    %v7990 = vrot.slane %v7982, %v7989
    %v7992 = vunpack.c.l.s4 1934713408
    %v7993 = vunpack.c.0.s8 %v7992
    %v7994 = vlaneseq
    %v7995 = vshrl.u32 %v7994, 7
    %v7996 = vsub.s32 %v7993, %v7995
    %v7997 = vrot.slane %v7983, %v7996
    %v7998 = vcombine.low %v7973, %v7981
    %v7999 = vcombine.high %v7973, %v7981
    %v8001 = vunpack.c.l.s4 1934713408
    %v8002 = vunpack.c.0.s8 %v8001
    %v8003 = vlaneseq
    %v8004 = vshrl.u32 %v8003, 7
    %v8005 = vsub.s32 %v8002, %v8004
    %v8006 = vrot.slane %v7998, %v8005
    %v8008 = vunpack.c.l.s4 1934713408
    %v8009 = vunpack.c.0.s8 %v8008
    %v8010 = vlaneseq
    %v8011 = vshrl.u32 %v8010, 7
    %v8012 = vsub.s32 %v8009, %v8011
    %v8013 = vrot.slane %v7999, %v8012
    %v8014 = vcombine.low %v7990, %v8006
    %v8015 = vcombine.high %v7990, %v8006
    %v8016 = vcombine.low %v7997, %v8013
    %v8017 = vcombine.high %v7997, %v8013
    %v8018 = vcombine.low %v7302, %v7366
    %v8020 = vunpack.c.l.s4 1983009808
    %v8021 = vunpack.c.0.s8 %v8020
    %v8022 = vlaneseq
    %v8023 = vshrl.u32 %v8022, 7
    %v8024 = vsub.s32 %v8021, %v8023
    %v8025 = vrot.slane %v8018, %v8024
    %v8026 = vcombine.low %v7334, %v7398
    %v8028 = vunpack.c.l.s4 1983009808
    %v8029 = vunpack.c.0.s8 %v8028
    %v8030 = vlaneseq
    %v8031 = vshrl.u32 %v8030, 7
    %v8032 = vsub.s32 %v8029, %v8031
    %v8033 = vrot.slane %v8026, %v8032
    %v8034 = vcombine.low %v7430, %v7494
    %v8036 = vunpack.c.l.s4 1983009808
    %v8037 = vunpack.c.0.s8 %v8036
    %v8038 = vlaneseq
    %v8039 = vshrl.u32 %v8038, 7
    %v8040 = vsub.s32 %v8037, %v8039
    %v8041 = vrot.slane %v8034, %v8040
    %v8042 = vcombine.low %v7462, %v7526
    %v8044 = vunpack.c.l.s4 1983009808
    %v8045 = vunpack.c.0.s8 %v8044
    %v8046 = vlaneseq
    %v8047 = vshrl.u32 %v8046, 7
    %v8048 = vsub.s32 %v8045, %v8047
    %v8049 = vrot.slane %v8042, %v8048
    %v8050 = vcombine.low %v8025, %v8033
    %v8051 = vcombine.high %v8025, %v8033
    %v8053 = vunpack.c.l.s4 1934713408
    %v8054 = vunpack.c.0.s8 %v8053
    %v8055 = vlaneseq
    %v8056 = vshrl.u32 %v8055, 7
    %v8057 = vsub.s32 %v8054, %v8056
    %v8058 = vrot.slane %v8050, %v8057
    %v8060 = vunpack.c.l.s4 1934713408
    %v8061 = vunpack.c.0.s8 %v8060
    %v8062 = vlaneseq
    %v8063 = vshrl.u32 %v8062, 7
    %v8064 = vsub.s32 %v8061, %v8063
    %v8065 = vrot.slane %v8051, %v8064
    %v8066 = vcombine.low %v8041, %v8049
    %v8067 = vcombine.high %v8041, %v8049
    %v8069 = vunpack.c.l.s4 1934713408
    %v8070 = vunpack.c.0.s8 %v8069
    %v8071 = vlaneseq
    %v8072 = vshrl.u32 %v8071, 7
    %v8073 = vsub.s32 %v8070, %v8072
    %v8074 = vrot.slane %v8066, %v8073
    %v8076 = vunpack.c.l.s4 1934713408
    %v8077 = vunpack.c.0.s8 %v8076
    %v8078 = vlaneseq
    %v8079 = vshrl.u32 %v8078, 7
    %v8080 = vsub.s32 %v8077, %v8079
    %v8081 = vrot.slane %v8067, %v8080
    %v8082 = vcombine.low %v8058, %v8074
    %v8083 = vcombine.high %v8058, %v8074
    %v8084 = vcombine.low %v8065, %v8081
    %v8085 = vcombine.high %v8065, %v8081
    %8086 = vxpose.xlu0.b32.start [1/16] %v86, 128
    %8087 = vxpose.xlu0.b32.cont [2/16] %v87, 128
    %8088 = vxpose.xlu0.b32.cont [3/16] %v88, 128
    %8089 = vxpose.xlu0.b32.cont [4/16] %v89, 128
    %8090 = vxpose.xlu0.b32.cont [5/16] %v90, 128
    %8091 = vxpose.xlu0.b32.cont [6/16] %v91, 128
    %8092 = vxpose.xlu0.b32.cont [7/16] %v92, 128
    %8093 = vxpose.xlu0.b32.cont [8/16] %v93, 128
    %8094 = vxpose.xlu0.b32.cont [9/16] 0.0, 128
    %8095 = vxpose.xlu0.b32.cont [10/16] 0.0, 128
    %8096 = vxpose.xlu0.b32.cont [11/16] 0.0, 128
    %8097 = vxpose.xlu0.b32.cont [12/16] 0.0, 128
    %8098 = vxpose.xlu0.b32.cont [13/16] 0.0, 128
    %8099 = vxpose.xlu0.b32.cont [14/16] 0.0, 128
    %8100 = vxpose.xlu0.b32.cont [15/16] 0.0, 128
    %8101 = vxpose.xlu0.b32.end [16/16] 0.0, 128
    %v8102 = vpop.trf.xlu0
    %v8103 = vpop.trf.xlu0
    %v8104 = vpop.trf.xlu0
    %v8105 = vpop.trf.xlu0
    %v8106 = vpop.trf.xlu0
    %v8107 = vpop.trf.xlu0
    %v8108 = vpop.trf.xlu0
    %v8109 = vpop.trf.xlu0
    %v8110 = vpop.trf.xlu0
    %v8111 = vpop.trf.xlu0
    %v8112 = vpop.trf.xlu0
    %v8113 = vpop.trf.xlu0
    %v8114 = vpop.trf.xlu0
    %v8115 = vpop.trf.xlu0
    %v8116 = vpop.trf.xlu0
    %v8117 = vpop.trf.xlu0
    %vm8118 = vcmask 523264
    %v8120 = vsel %vm8118, %v8102, 0
    %v8123 = vsel %vm8118, %v8103, 0
    %v8126 = vsel %vm8118, %v8104, 0
    %v8129 = vsel %vm8118, %v8105, 0
    %v8132 = vsel %vm8118, %v8106, 0
    %v8135 = vsel %vm8118, %v8107, 0
    %v8138 = vsel %vm8118, %v8108, 0
    %v8141 = vsel %vm8118, %v8109, 0
    %v8144 = vsel %vm8118, %v8110, 0
    %v8147 = vsel %vm8118, %v8111, 0
    %v8150 = vsel %vm8118, %v8112, 0
    %v8153 = vsel %vm8118, %v8113, 0
    %v8156 = vsel %vm8118, %v8114, 0
    %v8159 = vsel %vm8118, %v8115, 0
    %v8162 = vsel %vm8118, %v8116, 0
    %v8165 = vsel %vm8118, %v8117, 0
    %8167 = vmatprep.subr.mxu0 0.0
    %8168 = vmatpush1.msra.mxu0 0.0
    %8169 = vmatprep.subr.mxu0 0.0
    %8170 = vmatpush1.msra.mxu0 0.0
    %8171 = vmatprep.subr.mxu0 0.0
    %8172 = vmatpush1.msra.mxu0 0.0
    %8173 = vmatprep.subr.mxu0 0.0
    %8174 = vmatpush1.msra.mxu0 0.0
    %8175 = vmatprep.subr.mxu0 0.0
    %8176 = vmatpush1.msra.mxu0 0.0
    %8177 = vmatprep.subr.mxu0 0.0
    %8178 = vmatpush1.msra.mxu0 0.0
    %8179 = vmatprep.subr.mxu0 0.0
    %8180 = vmatpush1.msra.mxu0 0.0
    %8181 = vmatprep.subr.mxu0 0.0
    %8182 = vmatpush1.msra.mxu0 0.0
    %8183 = vmatprep.subr.mxu0 0.0
    %8184 = vmatpush1.msra.mxu0 %v8082
    %8185 = vmatprep.subr.mxu0 0.0
    %8186 = vmatpush1.msra.mxu0 %v8014
    %8187 = vmatprep.subr.mxu0 0.0
    %8188 = vmatpush1.msra.mxu0 %v7946
    %8189 = vmatprep.subr.mxu0 0.0
    %8190 = vmatpush1.msra.mxu0 %v7878
    %8191 = vmatprep.subr.mxu0 0.0
    %8192 = vmatpush1.msra.mxu0 %v7810
    %8193 = vmatprep.subr.mxu0 0.0
    %8194 = vmatpush1.msra.mxu0 %v7742
    %8195 = vmatprep.subr.mxu0 0.0
    %8196 = vmatpush1.msra.mxu0 %v7674
    %8197 = vmatprep.subr.mxu0 0.0
    %8198 = vmatpush1.msra.mxu0 %v7606
    %8199 = vmatprep.subr.mxu0 0.0
    %8200 = vmatpush2.msra.mxu0 0.0
    %8201 = vmatprep.subr.mxu0 0.0
    %8202 = vmatpush2.msra.mxu0 0.0
    %8203 = vmatprep.subr.mxu0 0.0
    %8204 = vmatpush2.msra.mxu0 0.0
    %8205 = vmatprep.subr.mxu0 0.0
    %8206 = vmatpush2.msra.mxu0 0.0
    %8207 = vmatprep.subr.mxu0 0.0
    %8208 = vmatpush2.msra.mxu0 0.0
    %8209 = vmatprep.subr.mxu0 0.0
    %8210 = vmatpush2.msra.mxu0 0.0
    %8211 = vmatprep.subr.mxu0 0.0
    %8212 = vmatpush2.msra.mxu0 0.0
    %8213 = vmatprep.subr.mxu0 0.0
    %8214 = vmatpush2.msra.mxu0 0.0
    %8215 = vmatprep.subr.mxu0 0.0
    %8216 = vmatpush2.msra.mxu0 0.0
    %8217 = vmatprep.subr.mxu0 0.0
    %8218 = vmatpush2.msra.mxu0 0.0
    %8219 = vmatprep.subr.mxu0 0.0
    %8220 = vmatpush2.msra.mxu0 0.0
    %8221 = vmatprep.subr.mxu0 0.0
    %8222 = vmatpush2.msra.mxu0 0.0
    %8223 = vmatprep.subr.mxu0 0.0
    %8224 = vmatpush2.msra.mxu0 0.0
    %8225 = vmatprep.subr.mxu0 0.0
    %8226 = vmatpush2.msra.mxu0 0.0
    %8227 = vmatprep.subr.mxu0 0.0
    %8228 = vmatpush2.msra.mxu0 0.0
    %8229 = vmatprep.subr.mxu0 0.0
    %8230 = vmatpush2.msra.mxu0 0.0
    %8231 = vmatprep.mubr.f32.mxu0 0.0
    %8232 = vmatmul.mubr.f32.gmra.mxu0 %v8120
    %v8233 = vpop.f32.mrf.mxu0
    %v8234 = vadd.f32 0.0, %v8233
    %v8235 = vpop.f32.mrf.mxu0
    %8236 = vmatprep.mubr.f32.mxu0 0.0
    %8237 = vmatmul.mubr.f32.gmra.mxu0 %v8123
    %v8238 = vpop.f32.mrf.mxu0
    %v8239 = vadd.f32 0.0, %v8238
    %v8240 = vpop.f32.mrf.mxu0
    %8241 = vmatprep.mubr.f32.mxu0 0.0
    %8242 = vmatmul.mubr.f32.gmra.mxu0 %v8126
    %v8243 = vpop.f32.mrf.mxu0
    %v8244 = vadd.f32 0.0, %v8243
    %v8245 = vpop.f32.mrf.mxu0
    %8246 = vmatprep.mubr.f32.mxu0 0.0
    %8247 = vmatmul.mubr.f32.gmra.mxu0 %v8129
    %v8248 = vpop.f32.mrf.mxu0
    %v8249 = vadd.f32 0.0, %v8248
    %v8250 = vpop.f32.mrf.mxu0
    %8251 = vmatprep.mubr.f32.mxu0 0.0
    %8252 = vmatmul.mubr.f32.gmra.mxu0 %v8132
    %v8253 = vpop.f32.mrf.mxu0
    %v8254 = vadd.f32 0.0, %v8253
    %v8255 = vpop.f32.mrf.mxu0
    %8256 = vmatprep.mubr.f32.mxu0 0.0
    %8257 = vmatmul.mubr.f32.gmra.mxu0 %v8135
    %v8258 = vpop.f32.mrf.mxu0
    %v8259 = vadd.f32 0.0, %v8258
    %v8260 = vpop.f32.mrf.mxu0
    %8261 = vmatprep.mubr.f32.mxu0 0.0
    %8262 = vmatmul.mubr.f32.gmra.mxu0 %v8138
    %v8263 = vpop.f32.mrf.mxu0
    %v8264 = vadd.f32 0.0, %v8263
    %v8265 = vpop.f32.mrf.mxu0
    %8266 = vmatprep.mubr.f32.mxu0 0.0
    %8267 = vmatmul.mubr.f32.gmra.mxu0 %v8141
    %v8268 = vpop.f32.mrf.mxu0
    %v8269 = vadd.f32 0.0, %v8268
    %v8270 = vpop.f32.mrf.mxu0
    %8271 = vmatprep.mubr.f32.mxu0 0.0
    %8272 = vmatmul.mubr.f32.gmra.mxu0 %v8144
    %v8273 = vpop.f32.mrf.mxu0
    %v8274 = vadd.f32 0.0, %v8273
    %v8275 = vpop.f32.mrf.mxu0
    %8276 = vmatprep.mubr.f32.mxu0 0.0
    %8277 = vmatmul.mubr.f32.gmra.mxu0 %v8147
    %v8278 = vpop.f32.mrf.mxu0
    %v8279 = vadd.f32 0.0, %v8278
    %v8280 = vpop.f32.mrf.mxu0
    %8281 = vmatprep.mubr.f32.mxu0 0.0
    %8282 = vmatmul.mubr.f32.gmra.mxu0 %v8150
    %v8283 = vpop.f32.mrf.mxu0
    %v8284 = vadd.f32 0.0, %v8283
    %v8285 = vpop.f32.mrf.mxu0
    %8286 = vmatprep.mubr.f32.mxu0 0.0
    %8287 = vmatmul.mubr.f32.gmra.mxu0 %v8153
    %v8288 = vpop.f32.mrf.mxu0
    %v8289 = vadd.f32 0.0, %v8288
    %v8290 = vpop.f32.mrf.mxu0
    %8291 = vmatprep.mubr.f32.mxu0 0.0
    %8292 = vmatmul.mubr.f32.gmra.mxu0 %v8156
    %v8293 = vpop.f32.mrf.mxu0
    %v8294 = vadd.f32 0.0, %v8293
    %v8295 = vpop.f32.mrf.mxu0
    %8296 = vmatprep.mubr.f32.mxu0 0.0
    %8297 = vmatmul.mubr.f32.gmra.mxu0 %v8159
    %v8298 = vpop.f32.mrf.mxu0
    %v8299 = vadd.f32 0.0, %v8298
    %v8300 = vpop.f32.mrf.mxu0
    %8301 = vmatprep.mubr.f32.mxu0 0.0
    %8302 = vmatmul.mubr.f32.gmra.mxu0 %v8162
    %v8303 = vpop.f32.mrf.mxu0
    %v8304 = vadd.f32 0.0, %v8303
    %v8305 = vpop.f32.mrf.mxu0
    %8306 = vmatprep.mubr.f32.mxu0 0.0
    %8307 = vmatmul.mubr.f32.gmra.mxu0 %v8165
    %v8308 = vpop.f32.mrf.mxu0
    %v8309 = vadd.f32 0.0, %v8308
    %v8310 = vpop.f32.mrf.mxu0
    %8311 = vdwg.mxu0
    %8312 = vxpose.xlu0.b32.start [1/16] %v94, 128
    %8313 = vxpose.xlu0.b32.cont [2/16] %v95, 128
    %8314 = vxpose.xlu0.b32.cont [3/16] %v96, 128
    %8315 = vxpose.xlu0.b32.cont [4/16] %v97, 128
    %8316 = vxpose.xlu0.b32.cont [5/16] %v98, 128
    %8317 = vxpose.xlu0.b32.cont [6/16] %v99, 128
    %8318 = vxpose.xlu0.b32.cont [7/16] %v100, 128
    %8319 = vxpose.xlu0.b32.cont [8/16] %v101, 128
    %8320 = vxpose.xlu0.b32.cont [9/16] 0.0, 128
    %8321 = vxpose.xlu0.b32.cont [10/16] 0.0, 128
    %8322 = vxpose.xlu0.b32.cont [11/16] 0.0, 128
    %8323 = vxpose.xlu0.b32.cont [12/16] 0.0, 128
    %8324 = vxpose.xlu0.b32.cont [13/16] 0.0, 128
    %8325 = vxpose.xlu0.b32.cont [14/16] 0.0, 128
    %8326 = vxpose.xlu0.b32.cont [15/16] 0.0, 128
    %8327 = vxpose.xlu0.b32.end [16/16] 0.0, 128
    %v8328 = vpop.trf.xlu0
    %v8329 = vpop.trf.xlu0
    %v8330 = vpop.trf.xlu0
    %v8331 = vpop.trf.xlu0
    %v8332 = vpop.trf.xlu0
    %v8333 = vpop.trf.xlu0
    %v8334 = vpop.trf.xlu0
    %v8335 = vpop.trf.xlu0
    %v8336 = vpop.trf.xlu0
    %v8337 = vpop.trf.xlu0
    %v8338 = vpop.trf.xlu0
    %v8339 = vpop.trf.xlu0
    %v8340 = vpop.trf.xlu0
    %v8341 = vpop.trf.xlu0
    %v8342 = vpop.trf.xlu0
    %v8343 = vpop.trf.xlu0
    %v8345 = vsel %vm8118, %v8328, 0
    %v8348 = vsel %vm8118, %v8329, 0
    %v8351 = vsel %vm8118, %v8330, 0
    %v8354 = vsel %vm8118, %v8331, 0
    %v8357 = vsel %vm8118, %v8332, 0
    %v8360 = vsel %vm8118, %v8333, 0
    %v8363 = vsel %vm8118, %v8334, 0
    %v8366 = vsel %vm8118, %v8335, 0
    %v8369 = vsel %vm8118, %v8336, 0
    %v8372 = vsel %vm8118, %v8337, 0
    %v8375 = vsel %vm8118, %v8338, 0
    %v8378 = vsel %vm8118, %v8339, 0
    %v8381 = vsel %vm8118, %v8340, 0
    %v8384 = vsel %vm8118, %v8341, 0
    %v8387 = vsel %vm8118, %v8342, 0
    %v8390 = vsel %vm8118, %v8343, 0
    %8392 = vmatprep.subr.mxu0 0.0
    %8393 = vmatpush1.msra.mxu0 0.0
    %8394 = vmatprep.subr.mxu0 0.0
    %8395 = vmatpush1.msra.mxu0 0.0
    %8396 = vmatprep.subr.mxu0 0.0
    %8397 = vmatpush1.msra.mxu0 0.0
    %8398 = vmatprep.subr.mxu0 0.0
    %8399 = vmatpush1.msra.mxu0 0.0
    %8400 = vmatprep.subr.mxu0 0.0
    %8401 = vmatpush1.msra.mxu0 0.0
    %8402 = vmatprep.subr.mxu0 0.0
    %8403 = vmatpush1.msra.mxu0 0.0
    %8404 = vmatprep.subr.mxu0 0.0
    %8405 = vmatpush1.msra.mxu0 0.0
    %8406 = vmatprep.subr.mxu0 0.0
    %8407 = vmatpush1.msra.mxu0 0.0
    %8408 = vmatprep.subr.mxu0 0.0
    %8409 = vmatpush1.msra.mxu0 %v8083
    %8410 = vmatprep.subr.mxu0 0.0
    %8411 = vmatpush1.msra.mxu0 %v8015
    %8412 = vmatprep.subr.mxu0 0.0
    %8413 = vmatpush1.msra.mxu0 %v7947
    %8414 = vmatprep.subr.mxu0 0.0
    %8415 = vmatpush1.msra.mxu0 %v7879
    %8416 = vmatprep.subr.mxu0 0.0
    %8417 = vmatpush1.msra.mxu0 %v7811
    %8418 = vmatprep.subr.mxu0 0.0
    %8419 = vmatpush1.msra.mxu0 %v7743
    %8420 = vmatprep.subr.mxu0 0.0
    %8421 = vmatpush1.msra.mxu0 %v7675
    %8422 = vmatprep.subr.mxu0 0.0
    %8423 = vmatpush1.msra.mxu0 %v7607
    %8424 = vmatprep.subr.mxu0 0.0
    %8425 = vmatpush2.msra.mxu0 0.0
    %8426 = vmatprep.subr.mxu0 0.0
    %8427 = vmatpush2.msra.mxu0 0.0
    %8428 = vmatprep.subr.mxu0 0.0
    %8429 = vmatpush2.msra.mxu0 0.0
    %8430 = vmatprep.subr.mxu0 0.0
    %8431 = vmatpush2.msra.mxu0 0.0
    %8432 = vmatprep.subr.mxu0 0.0
    %8433 = vmatpush2.msra.mxu0 0.0
    %8434 = vmatprep.subr.mxu0 0.0
    %8435 = vmatpush2.msra.mxu0 0.0
    %8436 = vmatprep.subr.mxu0 0.0
    %8437 = vmatpush2.msra.mxu0 0.0
    %8438 = vmatprep.subr.mxu0 0.0
    %8439 = vmatpush2.msra.mxu0 0.0
    %8440 = vmatprep.subr.mxu0 0.0
    %8441 = vmatpush2.msra.mxu0 0.0
    %8442 = vmatprep.subr.mxu0 0.0
    %8443 = vmatpush2.msra.mxu0 0.0
    %8444 = vmatprep.subr.mxu0 0.0
    %8445 = vmatpush2.msra.mxu0 0.0
    %8446 = vmatprep.subr.mxu0 0.0
    %8447 = vmatpush2.msra.mxu0 0.0
    %8448 = vmatprep.subr.mxu0 0.0
    %8449 = vmatpush2.msra.mxu0 0.0
    %8450 = vmatprep.subr.mxu0 0.0
    %8451 = vmatpush2.msra.mxu0 0.0
    %8452 = vmatprep.subr.mxu0 0.0
    %8453 = vmatpush2.msra.mxu0 0.0
    %8454 = vmatprep.subr.mxu0 0.0
    %8455 = vmatpush2.msra.mxu0 0.0
    %8456 = vmatprep.mubr.f32.mxu0 0.0
    %8457 = vmatmul.mubr.f32.gmra.mxu0 %v8345
    %v8458 = vpop.f32.mrf.mxu0
    %v8459 = vadd.f32 0.0, %v8458
    %v8460 = vpop.f32.mrf.mxu0
    %8461 = vmatprep.mubr.f32.mxu0 0.0
    %8462 = vmatmul.mubr.f32.gmra.mxu0 %v8348
    %v8463 = vpop.f32.mrf.mxu0
    %v8464 = vadd.f32 0.0, %v8463
    %v8465 = vpop.f32.mrf.mxu0
    %8466 = vmatprep.mubr.f32.mxu0 0.0
    %8467 = vmatmul.mubr.f32.gmra.mxu0 %v8351
    %v8468 = vpop.f32.mrf.mxu0
    %v8469 = vadd.f32 0.0, %v8468
    %v8470 = vpop.f32.mrf.mxu0
    %8471 = vmatprep.mubr.f32.mxu0 0.0
    %8472 = vmatmul.mubr.f32.gmra.mxu0 %v8354
    %v8473 = vpop.f32.mrf.mxu0
    %v8474 = vadd.f32 0.0, %v8473
    %v8475 = vpop.f32.mrf.mxu0
    %8476 = vmatprep.mubr.f32.mxu0 0.0
    %8477 = vmatmul.mubr.f32.gmra.mxu0 %v8357
    %v8478 = vpop.f32.mrf.mxu0
    %v8479 = vadd.f32 0.0, %v8478
    %v8480 = vpop.f32.mrf.mxu0
    %8481 = vmatprep.mubr.f32.mxu0 0.0
    %8482 = vmatmul.mubr.f32.gmra.mxu0 %v8360
    %v8483 = vpop.f32.mrf.mxu0
    %v8484 = vadd.f32 0.0, %v8483
    %v8485 = vpop.f32.mrf.mxu0
    %8486 = vmatprep.mubr.f32.mxu0 0.0
    %8487 = vmatmul.mubr.f32.gmra.mxu0 %v8363
    %v8488 = vpop.f32.mrf.mxu0
    %v8489 = vadd.f32 0.0, %v8488
    %v8490 = vpop.f32.mrf.mxu0
    %8491 = vmatprep.mubr.f32.mxu0 0.0
    %8492 = vmatmul.mubr.f32.gmra.mxu0 %v8366
    %v8493 = vpop.f32.mrf.mxu0
    %v8494 = vadd.f32 0.0, %v8493
    %v8495 = vpop.f32.mrf.mxu0
    %8496 = vmatprep.mubr.f32.mxu0 0.0
    %8497 = vmatmul.mubr.f32.gmra.mxu0 %v8369
    %v8498 = vpop.f32.mrf.mxu0
    %v8499 = vadd.f32 0.0, %v8498
    %v8500 = vpop.f32.mrf.mxu0
    %8501 = vmatprep.mubr.f32.mxu0 0.0
    %8502 = vmatmul.mubr.f32.gmra.mxu0 %v8372
    %v8503 = vpop.f32.mrf.mxu0
    %v8504 = vadd.f32 0.0, %v8503
    %v8505 = vpop.f32.mrf.mxu0
    %8506 = vmatprep.mubr.f32.mxu0 0.0
    %8507 = vmatmul.mubr.f32.gmra.mxu0 %v8375
    %v8508 = vpop.f32.mrf.mxu0
    %v8509 = vadd.f32 0.0, %v8508
    %v8510 = vpop.f32.mrf.mxu0
    %8511 = vmatprep.mubr.f32.mxu0 0.0
    %8512 = vmatmul.mubr.f32.gmra.mxu0 %v8378
    %v8513 = vpop.f32.mrf.mxu0
    %v8514 = vadd.f32 0.0, %v8513
    %v8515 = vpop.f32.mrf.mxu0
    %8516 = vmatprep.mubr.f32.mxu0 0.0
    %8517 = vmatmul.mubr.f32.gmra.mxu0 %v8381
    %v8518 = vpop.f32.mrf.mxu0
    %v8519 = vadd.f32 0.0, %v8518
    %v8520 = vpop.f32.mrf.mxu0
    %8521 = vmatprep.mubr.f32.mxu0 0.0
    %8522 = vmatmul.mubr.f32.gmra.mxu0 %v8384
    %v8523 = vpop.f32.mrf.mxu0
    %v8524 = vadd.f32 0.0, %v8523
    %v8525 = vpop.f32.mrf.mxu0
    %8526 = vmatprep.mubr.f32.mxu0 0.0
    %8527 = vmatmul.mubr.f32.gmra.mxu0 %v8387
    %v8528 = vpop.f32.mrf.mxu0
    %v8529 = vadd.f32 0.0, %v8528
    %v8530 = vpop.f32.mrf.mxu0
    %8531 = vmatprep.mubr.f32.mxu0 0.0
    %8532 = vmatmul.mubr.f32.gmra.mxu0 %v8390
    %v8533 = vpop.f32.mrf.mxu0
    %v8534 = vadd.f32 0.0, %v8533
    %v8535 = vpop.f32.mrf.mxu0
    %8536 = vdwg.mxu0
    %8537 = vxpose.xlu0.b32.start [1/16] %v102, 128
    %8538 = vxpose.xlu0.b32.cont [2/16] %v103, 128
    %8539 = vxpose.xlu0.b32.cont [3/16] %v104, 128
    %8540 = vxpose.xlu0.b32.cont [4/16] %v105, 128
    %8541 = vxpose.xlu0.b32.cont [5/16] %v106, 128
    %8542 = vxpose.xlu0.b32.cont [6/16] %v107, 128
    %8543 = vxpose.xlu0.b32.cont [7/16] %v108, 128
    %8544 = vxpose.xlu0.b32.cont [8/16] %v109, 128
    %8545 = vxpose.xlu0.b32.cont [9/16] 0.0, 128
    %8546 = vxpose.xlu0.b32.cont [10/16] 0.0, 128
    %8547 = vxpose.xlu0.b32.cont [11/16] 0.0, 128
    %8548 = vxpose.xlu0.b32.cont [12/16] 0.0, 128
    %8549 = vxpose.xlu0.b32.cont [13/16] 0.0, 128
    %8550 = vxpose.xlu0.b32.cont [14/16] 0.0, 128
    %8551 = vxpose.xlu0.b32.cont [15/16] 0.0, 128
    %8552 = vxpose.xlu0.b32.end [16/16] 0.0, 128
    %v8553 = vpop.trf.xlu0
    %v8554 = vpop.trf.xlu0
    %v8555 = vpop.trf.xlu0
    %v8556 = vpop.trf.xlu0
    %v8557 = vpop.trf.xlu0
    %v8558 = vpop.trf.xlu0
    %v8559 = vpop.trf.xlu0
    %v8560 = vpop.trf.xlu0
    %v8561 = vpop.trf.xlu0
    %v8562 = vpop.trf.xlu0
    %v8563 = vpop.trf.xlu0
    %v8564 = vpop.trf.xlu0
    %v8565 = vpop.trf.xlu0
    %v8566 = vpop.trf.xlu0
    %v8567 = vpop.trf.xlu0
    %v8568 = vpop.trf.xlu0
    %v8570 = vsel %vm8118, %v8553, 0
    %v8573 = vsel %vm8118, %v8554, 0
    %v8576 = vsel %vm8118, %v8555, 0
    %v8579 = vsel %vm8118, %v8556, 0
    %v8582 = vsel %vm8118, %v8557, 0
    %v8585 = vsel %vm8118, %v8558, 0
    %v8588 = vsel %vm8118, %v8559, 0
    %v8591 = vsel %vm8118, %v8560, 0
    %v8594 = vsel %vm8118, %v8561, 0
    %v8597 = vsel %vm8118, %v8562, 0
    %v8600 = vsel %vm8118, %v8563, 0
    %v8603 = vsel %vm8118, %v8564, 0
    %v8606 = vsel %vm8118, %v8565, 0
    %v8609 = vsel %vm8118, %v8566, 0
    %v8612 = vsel %vm8118, %v8567, 0
    %v8615 = vsel %vm8118, %v8568, 0
    %8617 = vmatprep.subr.mxu0 0.0
    %8618 = vmatpush1.msra.mxu0 0.0
    %8619 = vmatprep.subr.mxu0 0.0
    %8620 = vmatpush1.msra.mxu0 0.0
    %8621 = vmatprep.subr.mxu0 0.0
    %8622 = vmatpush1.msra.mxu0 0.0
    %8623 = vmatprep.subr.mxu0 0.0
    %8624 = vmatpush1.msra.mxu0 0.0
    %8625 = vmatprep.subr.mxu0 0.0
    %8626 = vmatpush1.msra.mxu0 0.0
    %8627 = vmatprep.subr.mxu0 0.0
    %8628 = vmatpush1.msra.mxu0 0.0
    %8629 = vmatprep.subr.mxu0 0.0
    %8630 = vmatpush1.msra.mxu0 0.0
    %8631 = vmatprep.subr.mxu0 0.0
    %8632 = vmatpush1.msra.mxu0 0.0
    %8633 = vmatprep.subr.mxu0 0.0
    %8634 = vmatpush1.msra.mxu0 %v8084
    %8635 = vmatprep.subr.mxu0 0.0
    %8636 = vmatpush1.msra.mxu0 %v8016
    %8637 = vmatprep.subr.mxu0 0.0
    %8638 = vmatpush1.msra.mxu0 %v7948
    %8639 = vmatprep.subr.mxu0 0.0
    %8640 = vmatpush1.msra.mxu0 %v7880
    %8641 = vmatprep.subr.mxu0 0.0
    %8642 = vmatpush1.msra.mxu0 %v7812
    %8643 = vmatprep.subr.mxu0 0.0
    %8644 = vmatpush1.msra.mxu0 %v7744
    %8645 = vmatprep.subr.mxu0 0.0
    %8646 = vmatpush1.msra.mxu0 %v7676
    %8647 = vmatprep.subr.mxu0 0.0
    %8648 = vmatpush1.msra.mxu0 %v7608
    %8649 = vmatprep.subr.mxu0 0.0
    %8650 = vmatpush2.msra.mxu0 0.0
    %8651 = vmatprep.subr.mxu0 0.0
    %8652 = vmatpush2.msra.mxu0 0.0
    %8653 = vmatprep.subr.mxu0 0.0
    %8654 = vmatpush2.msra.mxu0 0.0
    %8655 = vmatprep.subr.mxu0 0.0
    %8656 = vmatpush2.msra.mxu0 0.0
    %8657 = vmatprep.subr.mxu0 0.0
    %8658 = vmatpush2.msra.mxu0 0.0
    %8659 = vmatprep.subr.mxu0 0.0
    %8660 = vmatpush2.msra.mxu0 0.0
    %8661 = vmatprep.subr.mxu0 0.0
    %8662 = vmatpush2.msra.mxu0 0.0
    %8663 = vmatprep.subr.mxu0 0.0
    %8664 = vmatpush2.msra.mxu0 0.0
    %8665 = vmatprep.subr.mxu0 0.0
    %8666 = vmatpush2.msra.mxu0 0.0
    %8667 = vmatprep.subr.mxu0 0.0
    %8668 = vmatpush2.msra.mxu0 0.0
    %8669 = vmatprep.subr.mxu0 0.0
    %8670 = vmatpush2.msra.mxu0 0.0
    %8671 = vmatprep.subr.mxu0 0.0
    %8672 = vmatpush2.msra.mxu0 0.0
    %8673 = vmatprep.subr.mxu0 0.0
    %8674 = vmatpush2.msra.mxu0 0.0
    %8675 = vmatprep.subr.mxu0 0.0
    %8676 = vmatpush2.msra.mxu0 0.0
    %8677 = vmatprep.subr.mxu0 0.0
    %8678 = vmatpush2.msra.mxu0 0.0
    %8679 = vmatprep.subr.mxu0 0.0
    %8680 = vmatpush2.msra.mxu0 0.0
    %8681 = vmatprep.mubr.f32.mxu0 0.0
    %8682 = vmatmul.mubr.f32.gmra.mxu0 %v8570
    %v8683 = vpop.f32.mrf.mxu0
    %v8684 = vadd.f32 0.0, %v8683
    %v8685 = vpop.f32.mrf.mxu0
    %8686 = vmatprep.mubr.f32.mxu0 0.0
    %8687 = vmatmul.mubr.f32.gmra.mxu0 %v8573
    %v8688 = vpop.f32.mrf.mxu0
    %v8689 = vadd.f32 0.0, %v8688
    %v8690 = vpop.f32.mrf.mxu0
    %8691 = vmatprep.mubr.f32.mxu0 0.0
    %8692 = vmatmul.mubr.f32.gmra.mxu0 %v8576
    %v8693 = vpop.f32.mrf.mxu0
    %v8694 = vadd.f32 0.0, %v8693
    %v8695 = vpop.f32.mrf.mxu0
    %8696 = vmatprep.mubr.f32.mxu0 0.0
    %8697 = vmatmul.mubr.f32.gmra.mxu0 %v8579
    %v8698 = vpop.f32.mrf.mxu0
    %v8699 = vadd.f32 0.0, %v8698
    %v8700 = vpop.f32.mrf.mxu0
    %8701 = vmatprep.mubr.f32.mxu0 0.0
    %8702 = vmatmul.mubr.f32.gmra.mxu0 %v8582
    %v8703 = vpop.f32.mrf.mxu0
    %v8704 = vadd.f32 0.0, %v8703
    %v8705 = vpop.f32.mrf.mxu0
    %8706 = vmatprep.mubr.f32.mxu0 0.0
    %8707 = vmatmul.mubr.f32.gmra.mxu0 %v8585
    %v8708 = vpop.f32.mrf.mxu0
    %v8709 = vadd.f32 0.0, %v8708
    %v8710 = vpop.f32.mrf.mxu0
    %8711 = vmatprep.mubr.f32.mxu0 0.0
    %8712 = vmatmul.mubr.f32.gmra.mxu0 %v8588
    %v8713 = vpop.f32.mrf.mxu0
    %v8714 = vadd.f32 0.0, %v8713
    %v8715 = vpop.f32.mrf.mxu0
    %8716 = vmatprep.mubr.f32.mxu0 0.0
    %8717 = vmatmul.mubr.f32.gmra.mxu0 %v8591
    %v8718 = vpop.f32.mrf.mxu0
    %v8719 = vadd.f32 0.0, %v8718
    %v8720 = vpop.f32.mrf.mxu0
    %8721 = vmatprep.mubr.f32.mxu0 0.0
    %8722 = vmatmul.mubr.f32.gmra.mxu0 %v8594
    %v8723 = vpop.f32.mrf.mxu0
    %v8724 = vadd.f32 0.0, %v8723
    %v8725 = vpop.f32.mrf.mxu0
    %8726 = vmatprep.mubr.f32.mxu0 0.0
    %8727 = vmatmul.mubr.f32.gmra.mxu0 %v8597
    %v8728 = vpop.f32.mrf.mxu0
    %v8729 = vadd.f32 0.0, %v8728
    %v8730 = vpop.f32.mrf.mxu0
    %8731 = vmatprep.mubr.f32.mxu0 0.0
    %8732 = vmatmul.mubr.f32.gmra.mxu0 %v8600
    %v8733 = vpop.f32.mrf.mxu0
    %v8734 = vadd.f32 0.0, %v8733
    %v8735 = vpop.f32.mrf.mxu0
    %8736 = vmatprep.mubr.f32.mxu0 0.0
    %8737 = vmatmul.mubr.f32.gmra.mxu0 %v8603
    %v8738 = vpop.f32.mrf.mxu0
    %v8739 = vadd.f32 0.0, %v8738
    %v8740 = vpop.f32.mrf.mxu0
    %8741 = vmatprep.mubr.f32.mxu0 0.0
    %8742 = vmatmul.mubr.f32.gmra.mxu0 %v8606
    %v8743 = vpop.f32.mrf.mxu0
    %v8744 = vadd.f32 0.0, %v8743
    %v8745 = vpop.f32.mrf.mxu0
    %8746 = vmatprep.mubr.f32.mxu0 0.0
    %8747 = vmatmul.mubr.f32.gmra.mxu0 %v8609
    %v8748 = vpop.f32.mrf.mxu0
    %v8749 = vadd.f32 0.0, %v8748
    %v8750 = vpop.f32.mrf.mxu0
    %8751 = vmatprep.mubr.f32.mxu0 0.0
    %8752 = vmatmul.mubr.f32.gmra.mxu0 %v8612
    %v8753 = vpop.f32.mrf.mxu0
    %v8754 = vadd.f32 0.0, %v8753
    %v8755 = vpop.f32.mrf.mxu0
    %8756 = vmatprep.mubr.f32.mxu0 0.0
    %8757 = vmatmul.mubr.f32.gmra.mxu0 %v8615
    %v8758 = vpop.f32.mrf.mxu0
    %v8759 = vadd.f32 0.0, %v8758
    %v8760 = vpop.f32.mrf.mxu0
    %8761 = vdwg.mxu0
    %8762 = vxpose.xlu0.b32.start [1/16] %v110, 128
    %8763 = vxpose.xlu0.b32.cont [2/16] %v111, 128
    %8764 = vxpose.xlu0.b32.cont [3/16] %v112, 128
    %8765 = vxpose.xlu0.b32.cont [4/16] %v113, 128
    %8766 = vxpose.xlu0.b32.cont [5/16] %v114, 128
    %8767 = vxpose.xlu0.b32.cont [6/16] %v115, 128
    %8768 = vxpose.xlu0.b32.cont [7/16] %v116, 128
    %8769 = vxpose.xlu0.b32.cont [8/16] %v117, 128
    %8770 = vxpose.xlu0.b32.cont [9/16] 0.0, 128
    %8771 = vxpose.xlu0.b32.cont [10/16] 0.0, 128
    %8772 = vxpose.xlu0.b32.cont [11/16] 0.0, 128
    %8773 = vxpose.xlu0.b32.cont [12/16] 0.0, 128
    %8774 = vxpose.xlu0.b32.cont [13/16] 0.0, 128
    %8775 = vxpose.xlu0.b32.cont [14/16] 0.0, 128
    %8776 = vxpose.xlu0.b32.cont [15/16] 0.0, 128
    %8777 = vxpose.xlu0.b32.end [16/16] 0.0, 128
    %v8778 = vpop.trf.xlu0
    %v8779 = vpop.trf.xlu0
    %v8780 = vpop.trf.xlu0
    %v8781 = vpop.trf.xlu0
    %v8782 = vpop.trf.xlu0
    %v8783 = vpop.trf.xlu0
    %v8784 = vpop.trf.xlu0
    %v8785 = vpop.trf.xlu0
    %v8786 = vpop.trf.xlu0
    %v8787 = vpop.trf.xlu0
    %v8788 = vpop.trf.xlu0
    %v8789 = vpop.trf.xlu0
    %v8790 = vpop.trf.xlu0
    %v8791 = vpop.trf.xlu0
    %v8792 = vpop.trf.xlu0
    %v8793 = vpop.trf.xlu0
    %v8795 = vsel %vm8118, %v8778, 0
    %v8798 = vsel %vm8118, %v8779, 0
    %v8801 = vsel %vm8118, %v8780, 0
    %v8804 = vsel %vm8118, %v8781, 0
    %v8807 = vsel %vm8118, %v8782, 0
    %v8810 = vsel %vm8118, %v8783, 0
    %v8813 = vsel %vm8118, %v8784, 0
    %v8816 = vsel %vm8118, %v8785, 0
    %v8819 = vsel %vm8118, %v8786, 0
    %v8822 = vsel %vm8118, %v8787, 0
    %v8825 = vsel %vm8118, %v8788, 0
    %v8828 = vsel %vm8118, %v8789, 0
    %v8831 = vsel %vm8118, %v8790, 0
    %v8834 = vsel %vm8118, %v8791, 0
    %v8837 = vsel %vm8118, %v8792, 0
    %v8840 = vsel %vm8118, %v8793, 0
    %8842 = vmatprep.subr.mxu0 0.0
    %8843 = vmatpush1.msra.mxu0 0.0
    %8844 = vmatprep.subr.mxu0 0.0
    %8845 = vmatpush1.msra.mxu0 0.0
    %8846 = vmatprep.subr.mxu0 0.0
    %8847 = vmatpush1.msra.mxu0 0.0
    %8848 = vmatprep.subr.mxu0 0.0
    %8849 = vmatpush1.msra.mxu0 0.0
    %8850 = vmatprep.subr.mxu0 0.0
    %8851 = vmatpush1.msra.mxu0 0.0
    %8852 = vmatprep.subr.mxu0 0.0
    %8853 = vmatpush1.msra.mxu0 0.0
    %8854 = vmatprep.subr.mxu0 0.0
    %8855 = vmatpush1.msra.mxu0 0.0
    %8856 = vmatprep.subr.mxu0 0.0
    %8857 = vmatpush1.msra.mxu0 0.0
    %8858 = vmatprep.subr.mxu0 0.0
    %8859 = vmatpush1.msra.mxu0 %v8085
    %8860 = vmatprep.subr.mxu0 0.0
    %8861 = vmatpush1.msra.mxu0 %v8017
    %8862 = vmatprep.subr.mxu0 0.0
    %8863 = vmatpush1.msra.mxu0 %v7949
    %8864 = vmatprep.subr.mxu0 0.0
    %8865 = vmatpush1.msra.mxu0 %v7881
    %8866 = vmatprep.subr.mxu0 0.0
    %8867 = vmatpush1.msra.mxu0 %v7813
    %8868 = vmatprep.subr.mxu0 0.0
    %8869 = vmatpush1.msra.mxu0 %v7745
    %8870 = vmatprep.subr.mxu0 0.0
    %8871 = vmatpush1.msra.mxu0 %v7677
    %8872 = vmatprep.subr.mxu0 0.0
    %8873 = vmatpush1.msra.mxu0 %v7609
    %8874 = vmatprep.subr.mxu0 0.0
    %8875 = vmatpush2.msra.mxu0 0.0
    %8876 = vmatprep.subr.mxu0 0.0
    %8877 = vmatpush2.msra.mxu0 0.0
    %8878 = vmatprep.subr.mxu0 0.0
    %8879 = vmatpush2.msra.mxu0 0.0
    %8880 = vmatprep.subr.mxu0 0.0
    %8881 = vmatpush2.msra.mxu0 0.0
    %8882 = vmatprep.subr.mxu0 0.0
    %8883 = vmatpush2.msra.mxu0 0.0
    %8884 = vmatprep.subr.mxu0 0.0
    %8885 = vmatpush2.msra.mxu0 0.0
    %8886 = vmatprep.subr.mxu0 0.0
    %8887 = vmatpush2.msra.mxu0 0.0
    %8888 = vmatprep.subr.mxu0 0.0
    %8889 = vmatpush2.msra.mxu0 0.0
    %8890 = vmatprep.subr.mxu0 0.0
    %8891 = vmatpush2.msra.mxu0 0.0
    %8892 = vmatprep.subr.mxu0 0.0
    %8893 = vmatpush2.msra.mxu0 0.0
    %8894 = vmatprep.subr.mxu0 0.0
    %8895 = vmatpush2.msra.mxu0 0.0
    %8896 = vmatprep.subr.mxu0 0.0
    %8897 = vmatpush2.msra.mxu0 0.0
    %8898 = vmatprep.subr.mxu0 0.0
    %8899 = vmatpush2.msra.mxu0 0.0
    %8900 = vmatprep.subr.mxu0 0.0
    %8901 = vmatpush2.msra.mxu0 0.0
    %8902 = vmatprep.subr.mxu0 0.0
    %8903 = vmatpush2.msra.mxu0 0.0
    %8904 = vmatprep.subr.mxu0 0.0
    %8905 = vmatpush2.msra.mxu0 0.0
    %8906 = vmatprep.mubr.f32.mxu0 0.0
    %8907 = vmatmul.mubr.f32.gmra.mxu0 %v8795
    %v8908 = vpop.f32.mrf.mxu0
    %v8909 = vadd.f32 0.0, %v8908
    %v8910 = vpop.f32.mrf.mxu0
    %8911 = vmatprep.mubr.f32.mxu0 0.0
    %8912 = vmatmul.mubr.f32.gmra.mxu0 %v8798
    %v8913 = vpop.f32.mrf.mxu0
    %v8914 = vadd.f32 0.0, %v8913
    %v8915 = vpop.f32.mrf.mxu0
    %8916 = vmatprep.mubr.f32.mxu0 0.0
    %8917 = vmatmul.mubr.f32.gmra.mxu0 %v8801
    %v8918 = vpop.f32.mrf.mxu0
    %v8919 = vadd.f32 0.0, %v8918
    %v8920 = vpop.f32.mrf.mxu0
    %8921 = vmatprep.mubr.f32.mxu0 0.0
    %8922 = vmatmul.mubr.f32.gmra.mxu0 %v8804
    %v8923 = vpop.f32.mrf.mxu0
    %v8924 = vadd.f32 0.0, %v8923
    %v8925 = vpop.f32.mrf.mxu0
    %8926 = vmatprep.mubr.f32.mxu0 0.0
    %8927 = vmatmul.mubr.f32.gmra.mxu0 %v8807
    %v8928 = vpop.f32.mrf.mxu0
    %v8929 = vadd.f32 0.0, %v8928
    %v8930 = vpop.f32.mrf.mxu0
    %8931 = vmatprep.mubr.f32.mxu0 0.0
    %8932 = vmatmul.mubr.f32.gmra.mxu0 %v8810
    %v8933 = vpop.f32.mrf.mxu0
    %v8934 = vadd.f32 0.0, %v8933
    %v8935 = vpop.f32.mrf.mxu0
    %8936 = vmatprep.mubr.f32.mxu0 0.0
    %8937 = vmatmul.mubr.f32.gmra.mxu0 %v8813
    %v8938 = vpop.f32.mrf.mxu0
    %v8939 = vadd.f32 0.0, %v8938
    %v8940 = vpop.f32.mrf.mxu0
    %8941 = vmatprep.mubr.f32.mxu0 0.0
    %8942 = vmatmul.mubr.f32.gmra.mxu0 %v8816
    %v8943 = vpop.f32.mrf.mxu0
    %v8944 = vadd.f32 0.0, %v8943
    %v8945 = vpop.f32.mrf.mxu0
    %8946 = vmatprep.mubr.f32.mxu0 0.0
    %8947 = vmatmul.mubr.f32.gmra.mxu0 %v8819
    %v8948 = vpop.f32.mrf.mxu0
    %v8949 = vadd.f32 0.0, %v8948
    %v8950 = vpop.f32.mrf.mxu0
    %8951 = vmatprep.mubr.f32.mxu0 0.0
    %8952 = vmatmul.mubr.f32.gmra.mxu0 %v8822
    %v8953 = vpop.f32.mrf.mxu0
    %v8954 = vadd.f32 0.0, %v8953
    %v8955 = vpop.f32.mrf.mxu0
    %8956 = vmatprep.mubr.f32.mxu0 0.0
    %8957 = vmatmul.mubr.f32.gmra.mxu0 %v8825
    %v8958 = vpop.f32.mrf.mxu0
    %v8959 = vadd.f32 0.0, %v8958
    %v8960 = vpop.f32.mrf.mxu0
    %8961 = vmatprep.mubr.f32.mxu0 0.0
    %8962 = vmatmul.mubr.f32.gmra.mxu0 %v8828
    %v8963 = vpop.f32.mrf.mxu0
    %v8964 = vadd.f32 0.0, %v8963
    %v8965 = vpop.f32.mrf.mxu0
    %8966 = vmatprep.mubr.f32.mxu0 0.0
    %8967 = vmatmul.mubr.f32.gmra.mxu0 %v8831
    %v8968 = vpop.f32.mrf.mxu0
    %v8969 = vadd.f32 0.0, %v8968
    %v8970 = vpop.f32.mrf.mxu0
    %8971 = vmatprep.mubr.f32.mxu0 0.0
    %8972 = vmatmul.mubr.f32.gmra.mxu0 %v8834
    %v8973 = vpop.f32.mrf.mxu0
    %v8974 = vadd.f32 0.0, %v8973
    %v8975 = vpop.f32.mrf.mxu0
    %8976 = vmatprep.mubr.f32.mxu0 0.0
    %8977 = vmatmul.mubr.f32.gmra.mxu0 %v8837
    %v8978 = vpop.f32.mrf.mxu0
    %v8979 = vadd.f32 0.0, %v8978
    %v8980 = vpop.f32.mrf.mxu0
    %8981 = vmatprep.mubr.f32.mxu0 0.0
    %8982 = vmatmul.mubr.f32.gmra.mxu0 %v8840
    %v8983 = vpop.f32.mrf.mxu0
    %v8984 = vadd.f32 0.0, %v8983
    %v8985 = vpop.f32.mrf.mxu0
    %8986 = vdwg.mxu0
    %8987 = vxpose.xlu0.b32.start [1/16] %v8234, 128
    %8988 = vxpose.xlu0.b32.cont [2/16] %v8239, 128
    %8989 = vxpose.xlu0.b32.cont [3/16] %v8244, 128
    %8990 = vxpose.xlu0.b32.cont [4/16] %v8249, 128
    %8991 = vxpose.xlu0.b32.cont [5/16] %v8254, 128
    %8992 = vxpose.xlu0.b32.cont [6/16] %v8259, 128
    %8993 = vxpose.xlu0.b32.cont [7/16] %v8264, 128
    %8994 = vxpose.xlu0.b32.cont [8/16] %v8269, 128
    %8995 = vxpose.xlu0.b32.cont [9/16] %v8274, 128
    %8996 = vxpose.xlu0.b32.cont [10/16] %v8279, 128
    %8997 = vxpose.xlu0.b32.cont [11/16] %v8284, 128
    %8998 = vxpose.xlu0.b32.cont [12/16] %v8289, 128
    %8999 = vxpose.xlu0.b32.cont [13/16] %v8294, 128
    %9000 = vxpose.xlu0.b32.cont [14/16] %v8299, 128
    %9001 = vxpose.xlu0.b32.cont [15/16] %v8304, 128
    %9002 = vxpose.xlu0.b32.end [16/16] %v8309, 128
    %v9003 = vpop.trf.xlu0
    %v9004 = vpop.trf.xlu0
    %v9005 = vpop.trf.xlu0
    %v9006 = vpop.trf.xlu0
    %v9007 = vpop.trf.xlu0
    %v9008 = vpop.trf.xlu0
    %v9009 = vpop.trf.xlu0
    %v9010 = vpop.trf.xlu0
    %v9011 = vpop.trf.xlu0
    %v9012 = vpop.trf.xlu0
    %v9013 = vpop.trf.xlu0
    %v9014 = vpop.trf.xlu0
    %v9015 = vpop.trf.xlu0
    %v9016 = vpop.trf.xlu0
    %v9017 = vpop.trf.xlu0
    %v9018 = vpop.trf.xlu0
    %9019 = vxpose.xlu0.b32.start [1/16] %v8459, 128
    %9020 = vxpose.xlu0.b32.cont [2/16] %v8464, 128
    %9021 = vxpose.xlu0.b32.cont [3/16] %v8469, 128
    %9022 = vxpose.xlu0.b32.cont [4/16] %v8474, 128
    %9023 = vxpose.xlu0.b32.cont [5/16] %v8479, 128
    %9024 = vxpose.xlu0.b32.cont [6/16] %v8484, 128
    %9025 = vxpose.xlu0.b32.cont [7/16] %v8489, 128
    %9026 = vxpose.xlu0.b32.cont [8/16] %v8494, 128
    %9027 = vxpose.xlu0.b32.cont [9/16] %v8499, 128
    %9028 = vxpose.xlu0.b32.cont [10/16] %v8504, 128
    %9029 = vxpose.xlu0.b32.cont [11/16] %v8509, 128
    %9030 = vxpose.xlu0.b32.cont [12/16] %v8514, 128
    %9031 = vxpose.xlu0.b32.cont [13/16] %v8519, 128
    %9032 = vxpose.xlu0.b32.cont [14/16] %v8524, 128
    %9033 = vxpose.xlu0.b32.cont [15/16] %v8529, 128
    %9034 = vxpose.xlu0.b32.end [16/16] %v8534, 128
    %v9035 = vpop.trf.xlu0
    %v9036 = vpop.trf.xlu0
    %v9037 = vpop.trf.xlu0
    %v9038 = vpop.trf.xlu0
    %v9039 = vpop.trf.xlu0
    %v9040 = vpop.trf.xlu0
    %v9041 = vpop.trf.xlu0
    %v9042 = vpop.trf.xlu0
    %v9043 = vpop.trf.xlu0
    %v9044 = vpop.trf.xlu0
    %v9045 = vpop.trf.xlu0
    %v9046 = vpop.trf.xlu0
    %v9047 = vpop.trf.xlu0
    %v9048 = vpop.trf.xlu0
    %v9049 = vpop.trf.xlu0
    %v9050 = vpop.trf.xlu0
    %9051 = vxpose.xlu0.b32.start [1/16] %v8684, 128
    %9052 = vxpose.xlu0.b32.cont [2/16] %v8689, 128
    %9053 = vxpose.xlu0.b32.cont [3/16] %v8694, 128
    %9054 = vxpose.xlu0.b32.cont [4/16] %v8699, 128
    %9055 = vxpose.xlu0.b32.cont [5/16] %v8704, 128
    %9056 = vxpose.xlu0.b32.cont [6/16] %v8709, 128
    %9057 = vxpose.xlu0.b32.cont [7/16] %v8714, 128
    %9058 = vxpose.xlu0.b32.cont [8/16] %v8719, 128
    %9059 = vxpose.xlu0.b32.cont [9/16] %v8724, 128
    %9060 = vxpose.xlu0.b32.cont [10/16] %v8729, 128
    %9061 = vxpose.xlu0.b32.cont [11/16] %v8734, 128
    %9062 = vxpose.xlu0.b32.cont [12/16] %v8739, 128
    %9063 = vxpose.xlu0.b32.cont [13/16] %v8744, 128
    %9064 = vxpose.xlu0.b32.cont [14/16] %v8749, 128
    %9065 = vxpose.xlu0.b32.cont [15/16] %v8754, 128
    %9066 = vxpose.xlu0.b32.end [16/16] %v8759, 128
    %v9067 = vpop.trf.xlu0
    %v9068 = vpop.trf.xlu0
    %v9069 = vpop.trf.xlu0
    %v9070 = vpop.trf.xlu0
    %v9071 = vpop.trf.xlu0
    %v9072 = vpop.trf.xlu0
    %v9073 = vpop.trf.xlu0
    %v9074 = vpop.trf.xlu0
    %v9075 = vpop.trf.xlu0
    %v9076 = vpop.trf.xlu0
    %v9077 = vpop.trf.xlu0
    %v9078 = vpop.trf.xlu0
    %v9079 = vpop.trf.xlu0
    %v9080 = vpop.trf.xlu0
    %v9081 = vpop.trf.xlu0
    %v9082 = vpop.trf.xlu0
    %9083 = vxpose.xlu0.b32.start [1/16] %v8909, 128
    %9084 = vxpose.xlu0.b32.cont [2/16] %v8914, 128
    %9085 = vxpose.xlu0.b32.cont [3/16] %v8919, 128
    %9086 = vxpose.xlu0.b32.cont [4/16] %v8924, 128
    %9087 = vxpose.xlu0.b32.cont [5/16] %v8929, 128
    %9088 = vxpose.xlu0.b32.cont [6/16] %v8934, 128
    %9089 = vxpose.xlu0.b32.cont [7/16] %v8939, 128
    %9090 = vxpose.xlu0.b32.cont [8/16] %v8944, 128
    %9091 = vxpose.xlu0.b32.cont [9/16] %v8949, 128
    %9092 = vxpose.xlu0.b32.cont [10/16] %v8954, 128
    %9093 = vxpose.xlu0.b32.cont [11/16] %v8959, 128
    %9094 = vxpose.xlu0.b32.cont [12/16] %v8964, 128
    %9095 = vxpose.xlu0.b32.cont [13/16] %v8969, 128
    %9096 = vxpose.xlu0.b32.cont [14/16] %v8974, 128
    %9097 = vxpose.xlu0.b32.cont [15/16] %v8979, 128
    %9098 = vxpose.xlu0.b32.end [16/16] %v8984, 128
    %v9099 = vpop.trf.xlu0
    %v9100 = vpop.trf.xlu0
    %v9101 = vpop.trf.xlu0
    %v9102 = vpop.trf.xlu0
    %v9103 = vpop.trf.xlu0
    %v9104 = vpop.trf.xlu0
    %v9105 = vpop.trf.xlu0
    %v9106 = vpop.trf.xlu0
    %v9107 = vpop.trf.xlu0
    %v9108 = vpop.trf.xlu0
    %v9109 = vpop.trf.xlu0
    %v9110 = vpop.trf.xlu0
    %v9111 = vpop.trf.xlu0
    %v9112 = vpop.trf.xlu0
    %v9113 = vpop.trf.xlu0
    %v9114 = vpop.trf.xlu0
    %v9115 = vcombine.low %v9003, %v9067
    %v9116 = vcombine.high %v9003, %v9067
    %v9118 = vunpack.c.l.s4 1983009808
    %v9119 = vunpack.c.0.s8 %v9118
    %v9120 = vlaneseq
    %v9121 = vshrl.u32 %v9120, 7
    %v9122 = vsub.s32 %v9119, %v9121
    %v9123 = vrot.slane %v9115, %v9122
    %v9125 = vunpack.c.l.s4 1983009808
    %v9126 = vunpack.c.0.s8 %v9125
    %v9127 = vlaneseq
    %v9128 = vshrl.u32 %v9127, 7
    %v9129 = vsub.s32 %v9126, %v9128
    %v9130 = vrot.slane %v9116, %v9129
    %v9131 = vcombine.low %v9035, %v9099
    %v9132 = vcombine.high %v9035, %v9099
    %v9134 = vunpack.c.l.s4 1983009808
    %v9135 = vunpack.c.0.s8 %v9134
    %v9136 = vlaneseq
    %v9137 = vshrl.u32 %v9136, 7
    %v9138 = vsub.s32 %v9135, %v9137
    %v9139 = vrot.slane %v9131, %v9138
    %v9141 = vunpack.c.l.s4 1983009808
    %v9142 = vunpack.c.0.s8 %v9141
    %v9143 = vlaneseq
    %v9144 = vshrl.u32 %v9143, 7
    %v9145 = vsub.s32 %v9142, %v9144
    %v9146 = vrot.slane %v9132, %v9145
    %v9147 = vcombine.low %v9123, %v9139
    %v9148 = vcombine.high %v9123, %v9139
    %v9150 = vunpack.c.l.s4 1934713408
    %v9151 = vunpack.c.0.s8 %v9150
    %v9152 = vlaneseq
    %v9153 = vshrl.u32 %v9152, 7
    %v9154 = vsub.s32 %v9151, %v9153
    %v9155 = vrot.slane %v9147, %v9154
    %v9157 = vunpack.c.l.s4 1934713408
    %v9158 = vunpack.c.0.s8 %v9157
    %v9159 = vlaneseq
    %v9160 = vshrl.u32 %v9159, 7
    %v9161 = vsub.s32 %v9158, %v9160
    %v9162 = vrot.slane %v9148, %v9161
    %v9163 = vcombine.low %v9130, %v9146
    %v9164 = vcombine.high %v9130, %v9146
    %v9166 = vunpack.c.l.s4 1934713408
    %v9167 = vunpack.c.0.s8 %v9166
    %v9168 = vlaneseq
    %v9169 = vshrl.u32 %v9168, 7
    %v9170 = vsub.s32 %v9167, %v9169
    %v9171 = vrot.slane %v9163, %v9170
    %v9173 = vunpack.c.l.s4 1934713408
    %v9174 = vunpack.c.0.s8 %v9173
    %v9175 = vlaneseq
    %v9176 = vshrl.u32 %v9175, 7
    %v9177 = vsub.s32 %v9174, %v9176
    %v9178 = vrot.slane %v9164, %v9177
    %v9179 = vcombine.high %v9155, 0.0
    %v9180 = vcombine.high %v9162, 0.0
    %v9181 = vcombine.high %v9171, 0.0
    %v9182 = vcombine.high %v9178, 0.0
    %v9183 = vcombine.low %v9004, %v9068
    %v9184 = vcombine.high %v9004, %v9068
    %v9186 = vunpack.c.l.s4 1983009808
    %v9187 = vunpack.c.0.s8 %v9186
    %v9188 = vlaneseq
    %v9189 = vshrl.u32 %v9188, 7
    %v9190 = vsub.s32 %v9187, %v9189
    %v9191 = vrot.slane %v9183, %v9190
    %v9193 = vunpack.c.l.s4 1983009808
    %v9194 = vunpack.c.0.s8 %v9193
    %v9195 = vlaneseq
    %v9196 = vshrl.u32 %v9195, 7
    %v9197 = vsub.s32 %v9194, %v9196
    %v9198 = vrot.slane %v9184, %v9197
    %v9199 = vcombine.low %v9036, %v9100
    %v9200 = vcombine.high %v9036, %v9100
    %v9202 = vunpack.c.l.s4 1983009808
    %v9203 = vunpack.c.0.s8 %v9202
    %v9204 = vlaneseq
    %v9205 = vshrl.u32 %v9204, 7
    %v9206 = vsub.s32 %v9203, %v9205
    %v9207 = vrot.slane %v9199, %v9206
    %v9209 = vunpack.c.l.s4 1983009808
    %v9210 = vunpack.c.0.s8 %v9209
    %v9211 = vlaneseq
    %v9212 = vshrl.u32 %v9211, 7
    %v9213 = vsub.s32 %v9210, %v9212
    %v9214 = vrot.slane %v9200, %v9213
    %v9215 = vcombine.low %v9191, %v9207
    %v9216 = vcombine.high %v9191, %v9207
    %v9218 = vunpack.c.l.s4 1934713408
    %v9219 = vunpack.c.0.s8 %v9218
    %v9220 = vlaneseq
    %v9221 = vshrl.u32 %v9220, 7
    %v9222 = vsub.s32 %v9219, %v9221
    %v9223 = vrot.slane %v9215, %v9222
    %v9225 = vunpack.c.l.s4 1934713408
    %v9226 = vunpack.c.0.s8 %v9225
    %v9227 = vlaneseq
    %v9228 = vshrl.u32 %v9227, 7
    %v9229 = vsub.s32 %v9226, %v9228
    %v9230 = vrot.slane %v9216, %v9229
    %v9231 = vcombine.low %v9198, %v9214
    %v9232 = vcombine.high %v9198, %v9214
    %v9234 = vunpack.c.l.s4 1934713408
    %v9235 = vunpack.c.0.s8 %v9234
    %v9236 = vlaneseq
    %v9237 = vshrl.u32 %v9236, 7
    %v9238 = vsub.s32 %v9235, %v9237
    %v9239 = vrot.slane %v9231, %v9238
    %v9241 = vunpack.c.l.s4 1934713408
    %v9242 = vunpack.c.0.s8 %v9241
    %v9243 = vlaneseq
    %v9244 = vshrl.u32 %v9243, 7
    %v9245 = vsub.s32 %v9242, %v9244
    %v9246 = vrot.slane %v9232, %v9245
    %v9247 = vcombine.high %v9223, 0.0
    %v9248 = vcombine.high %v9230, 0.0
    %v9249 = vcombine.high %v9239, 0.0
    %v9250 = vcombine.high %v9246, 0.0
    %v9251 = vcombine.low %v9005, %v9069
    %v9252 = vcombine.high %v9005, %v9069
    %v9254 = vunpack.c.l.s4 1983009808
    %v9255 = vunpack.c.0.s8 %v9254
    %v9256 = vlaneseq
    %v9257 = vshrl.u32 %v9256, 7
    %v9258 = vsub.s32 %v9255, %v9257
    %v9259 = vrot.slane %v9251, %v9258
    %v9261 = vunpack.c.l.s4 1983009808
    %v9262 = vunpack.c.0.s8 %v9261
    %v9263 = vlaneseq
    %v9264 = vshrl.u32 %v9263, 7
    %v9265 = vsub.s32 %v9262, %v9264
    %v9266 = vrot.slane %v9252, %v9265
    %v9267 = vcombine.low %v9037, %v9101
    %v9268 = vcombine.high %v9037, %v9101
    %v9270 = vunpack.c.l.s4 1983009808
    %v9271 = vunpack.c.0.s8 %v9270
    %v9272 = vlaneseq
    %v9273 = vshrl.u32 %v9272, 7
    %v9274 = vsub.s32 %v9271, %v9273
    %v9275 = vrot.slane %v9267, %v9274
    %v9277 = vunpack.c.l.s4 1983009808
    %v9278 = vunpack.c.0.s8 %v9277
    %v9279 = vlaneseq
    %v9280 = vshrl.u32 %v9279, 7
    %v9281 = vsub.s32 %v9278, %v9280
    %v9282 = vrot.slane %v9268, %v9281
    %v9283 = vcombine.low %v9259, %v9275
    %v9284 = vcombine.high %v9259, %v9275
    %v9286 = vunpack.c.l.s4 1934713408
    %v9287 = vunpack.c.0.s8 %v9286
    %v9288 = vlaneseq
    %v9289 = vshrl.u32 %v9288, 7
    %v9290 = vsub.s32 %v9287, %v9289
    %v9291 = vrot.slane %v9283, %v9290
    %v9293 = vunpack.c.l.s4 1934713408
    %v9294 = vunpack.c.0.s8 %v9293
    %v9295 = vlaneseq
    %v9296 = vshrl.u32 %v9295, 7
    %v9297 = vsub.s32 %v9294, %v9296
    %v9298 = vrot.slane %v9284, %v9297
    %v9299 = vcombine.low %v9266, %v9282
    %v9300 = vcombine.high %v9266, %v9282
    %v9302 = vunpack.c.l.s4 1934713408
    %v9303 = vunpack.c.0.s8 %v9302
    %v9304 = vlaneseq
    %v9305 = vshrl.u32 %v9304, 7
    %v9306 = vsub.s32 %v9303, %v9305
    %v9307 = vrot.slane %v9299, %v9306
    %v9309 = vunpack.c.l.s4 1934713408
    %v9310 = vunpack.c.0.s8 %v9309
    %v9311 = vlaneseq
    %v9312 = vshrl.u32 %v9311, 7
    %v9313 = vsub.s32 %v9310, %v9312
    %v9314 = vrot.slane %v9300, %v9313
    %v9315 = vcombine.high %v9291, 0.0
    %v9316 = vcombine.high %v9298, 0.0
    %v9317 = vcombine.high %v9307, 0.0
    %v9318 = vcombine.high %v9314, 0.0
    %v9319 = vcombine.low %v9006, %v9070
    %v9320 = vcombine.high %v9006, %v9070
    %v9322 = vunpack.c.l.s4 1983009808
    %v9323 = vunpack.c.0.s8 %v9322
    %v9324 = vlaneseq
    %v9325 = vshrl.u32 %v9324, 7
    %v9326 = vsub.s32 %v9323, %v9325
    %v9327 = vrot.slane %v9319, %v9326
    %v9329 = vunpack.c.l.s4 1983009808
    %v9330 = vunpack.c.0.s8 %v9329
    %v9331 = vlaneseq
    %v9332 = vshrl.u32 %v9331, 7
    %v9333 = vsub.s32 %v9330, %v9332
    %v9334 = vrot.slane %v9320, %v9333
    %v9335 = vcombine.low %v9038, %v9102
    %v9336 = vcombine.high %v9038, %v9102
    %v9338 = vunpack.c.l.s4 1983009808
    %v9339 = vunpack.c.0.s8 %v9338
    %v9340 = vlaneseq
    %v9341 = vshrl.u32 %v9340, 7
    %v9342 = vsub.s32 %v9339, %v9341
    %v9343 = vrot.slane %v9335, %v9342
    %v9345 = vunpack.c.l.s4 1983009808
    %v9346 = vunpack.c.0.s8 %v9345
    %v9347 = vlaneseq
    %v9348 = vshrl.u32 %v9347, 7
    %v9349 = vsub.s32 %v9346, %v9348
    %v9350 = vrot.slane %v9336, %v9349
    %v9351 = vcombine.low %v9327, %v9343
    %v9352 = vcombine.high %v9327, %v9343
    %v9354 = vunpack.c.l.s4 1934713408
    %v9355 = vunpack.c.0.s8 %v9354
    %v9356 = vlaneseq
    %v9357 = vshrl.u32 %v9356, 7
    %v9358 = vsub.s32 %v9355, %v9357
    %v9359 = vrot.slane %v9351, %v9358
    %v9361 = vunpack.c.l.s4 1934713408
    %v9362 = vunpack.c.0.s8 %v9361
    %v9363 = vlaneseq
    %v9364 = vshrl.u32 %v9363, 7
    %v9365 = vsub.s32 %v9362, %v9364
    %v9366 = vrot.slane %v9352, %v9365
    %v9367 = vcombine.low %v9334, %v9350
    %v9368 = vcombine.high %v9334, %v9350
    %v9370 = vunpack.c.l.s4 1934713408
    %v9371 = vunpack.c.0.s8 %v9370
    %v9372 = vlaneseq
    %v9373 = vshrl.u32 %v9372, 7
    %v9374 = vsub.s32 %v9371, %v9373
    %v9375 = vrot.slane %v9367, %v9374
    %v9377 = vunpack.c.l.s4 1934713408
    %v9378 = vunpack.c.0.s8 %v9377
    %v9379 = vlaneseq
    %v9380 = vshrl.u32 %v9379, 7
    %v9381 = vsub.s32 %v9378, %v9380
    %v9382 = vrot.slane %v9368, %v9381
    %v9383 = vcombine.high %v9359, 0.0
    %v9384 = vcombine.high %v9366, 0.0
    %v9385 = vcombine.high %v9375, 0.0
    %v9386 = vcombine.high %v9382, 0.0
    %v9387 = vld [vmem:[#allocation7] sm:$0xf]
    %v9388 = vadd.f32 %v9155, %v9387
    %v9389 = vadd.f32 %v9179, %v9387
    %v9390 = vadd.f32 %v9162, %v9387
    %v9391 = vadd.f32 %v9180, %v9387
    %v9392 = vadd.f32 %v9171, %v9387
    %v9393 = vadd.f32 %v9181, %v9387
    %v9394 = vadd.f32 %v9178, %v9387
    %v9395 = vadd.f32 %v9182, %v9387
    %v9396 = vadd.f32 %v9223, %v9387
    %v9397 = vadd.f32 %v9247, %v9387
    %v9398 = vadd.f32 %v9230, %v9387
    %v9399 = vadd.f32 %v9248, %v9387
    %v9400 = vadd.f32 %v9239, %v9387
    %v9401 = vadd.f32 %v9249, %v9387
    %v9402 = vadd.f32 %v9246, %v9387
    %v9403 = vadd.f32 %v9250, %v9387
    %v9404 = vadd.f32 %v9291, %v9387
    %v9405 = vadd.f32 %v9315, %v9387
    %v9406 = vadd.f32 %v9298, %v9387
    %v9407 = vadd.f32 %v9316, %v9387
    %v9408 = vadd.f32 %v9307, %v9387
    %v9409 = vadd.f32 %v9317, %v9387
    %v9410 = vadd.f32 %v9314, %v9387
    %v9411 = vadd.f32 %v9318, %v9387
    %v9412 = vadd.f32 %v9359, %v9387
    %v9413 = vadd.f32 %v9383, %v9387
    %v9414 = vadd.f32 %v9366, %v9387
    %v9415 = vadd.f32 %v9384, %v9387
    %v9416 = vadd.f32 %v9375, %v9387
    %v9417 = vadd.f32 %v9385, %v9387
    %v9418 = vadd.f32 %v9382, %v9387
    %v9419 = vadd.f32 %v9386, %v9387
    %9420 = vst [vmem:[#allocation8] sm:$0xf] %v9388
    %9421 = vst [vmem:[#allocation8 + $0x4] sm:$0xf] %v9389
    %9422 = vst [vmem:[#allocation8 + $0x8] sm:$0xf] %v9390
    %9423 = vst [vmem:[#allocation8 + $0xc] sm:$0xf] %v9391
    %9424 = vst [vmem:[#allocation8 + $0x10] sm:$0xf] %v9392
    %9425 = vst [vmem:[#allocation8 + $0x14] sm:$0xf] %v9393
    %9426 = vst [vmem:[#allocation8 + $0x18] sm:$0xf] %v9394
    %9427 = vst [vmem:[#allocation8 + $0x1c] sm:$0xf] %v9395
    %9428 = vst [vmem:[#allocation8 + $0x20] sm:$0xf] %v9396
    %9429 = vst [vmem:[#allocation8 + $0x24] sm:$0xf] %v9397
    %9430 = vst [vmem:[#allocation8 + $0x28] sm:$0xf] %v9398
    %9431 = vst [vmem:[#allocation8 + $0x2c] sm:$0xf] %v9399
    %9432 = vst [vmem:[#allocation8 + $0x30] sm:$0xf] %v9400
    %9433 = vst [vmem:[#allocation8 + $0x34] sm:$0xf] %v9401
    %9434 = vst [vmem:[#allocation8 + $0x38] sm:$0xf] %v9402
    %9435 = vst [vmem:[#allocation8 + $0x3c] sm:$0xf] %v9403
    %9436 = vst [vmem:[#allocation8 + $0x40] sm:$0xf] %v9404
    %9437 = vst [vmem:[#allocation8 + $0x44] sm:$0xf] %v9405
    %9438 = vst [vmem:[#allocation8 + $0x48] sm:$0xf] %v9406
    %9439 = vst [vmem:[#allocation8 + $0x4c] sm:$0xf] %v9407
    %9440 = vst [vmem:[#allocation8 + $0x50] sm:$0xf] %v9408
    %9441 = vst [vmem:[#allocation8 + $0x54] sm:$0xf] %v9409
    %9442 = vst [vmem:[#allocation8 + $0x58] sm:$0xf] %v9410
    %9443 = vst [vmem:[#allocation8 + $0x5c] sm:$0xf] %v9411
    %9444 = vst [vmem:[#allocation8 + $0x60] sm:$0xf] %v9412
    %9445 = vst [vmem:[#allocation8 + $0x64] sm:$0xf] %v9413
    %9446 = vst [vmem:[#allocation8 + $0x68] sm:$0xf] %v9414
    %9447 = vst [vmem:[#allocation8 + $0x6c] sm:$0xf] %v9415
    %9448 = vst [vmem:[#allocation8 + $0x70] sm:$0xf] %v9416
    %9449 = vst [vmem:[#allocation8 + $0x74] sm:$0xf] %v9417
    %9450 = vst [vmem:[#allocation8 + $0x78] sm:$0xf] %v9418
    %9451 = vst [vmem:[#allocation8 + $0x7c] sm:$0xf] %v9419
    // Predicated region
    $region26: #{tpu_custom_call.1} parent=1 // pred_check
      _
    $region27: #{tpu_custom_call.1} parent=1 // pred_check_branch
      %9453 = sbr.rel (0) target = $region29
    $region28: #{tpu_custom_call.1} parent=1 // pred_region
      %s9455 = ssub.s32 2048, 2048
      %9456 = vsyncadd [#allocation4], %s9455
      %s9457 = sshll.u32 [#allocation8], 4
      %s9458 = int_to_ptr.vmem [resolvable:$true] %s9457
      %9463 = dma.vmem_to_hbm [thread:$0]  %s9458, 2048, %s3, [#allocation4], 64, 64, 4
    $region29: #{tpu_custom_call.1} parent=1 // pred_fallthru
      _
    // Predicated region
    $region30: #{tpu_custom_call.1} parent=1 // pred_check
      _
    $region31: #{tpu_custom_call.1} parent=1 // pred_check_branch
      %9465 = sbr.rel (0) target = $region33
    $region32: #{tpu_custom_call.1} parent=1 // pred_region
      %9466 = dma.done [#allocation4], 2048
    $region33: #{tpu_custom_call.1} parent=1 // pred_fallthru
      _
    %9467 = vsyncpa [#allocation3], 1
    %9468 = vsyncpa [#allocation6], 1
    %9469 = vsyncpa [#allocation4], 1

</llo_original>
